<compile_context>
chip_gen: v7x
topology: tpu7x:2x2x1
jax: 0.10.0
libtpu: 0.0.40
codegen_flags: <defaults>
</compile_context>

<pallas_src>
import numpy as np
import jax
import jax.numpy as jnp
from jax.experimental import pallas as pl
from jax.experimental.pallas import tpu as pltpu

# ------------------------- hyper-parameters (small) -------------------------
TARGET_DIM = 4
CONTEXT_LEN = 6
PRED_LEN = 4
LAGS_SEQ = [1, 2, 3]                         # sorted, no duplicates
SHIFTED_LAGS = [l - 1 for l in LAGS_SEQ]     # decoder lags
NUM_LAGS = len(LAGS_SEQ)
MAX_LAG = max(LAGS_SEQ)
HISTORY_LEN = CONTEXT_LEN + MAX_LAG          # 9
NUM_CELLS = 32
NUM_LAYERS = 2
CARDINALITY = [5]
EMBED_DIMS = [3]
NUM_STATIC_REAL = 1
NUM_TIME_FEAT = 2
NUM_PARALLEL_SAMPLES = 10
BATCH = 2
STATIC_DIM = sum(EMBED_DIMS) + NUM_STATIC_REAL + TARGET_DIM        # 8
INPUT_SIZE = NUM_LAGS * TARGET_DIM + STATIC_DIM + NUM_TIME_FEAT    # 22
NUM_HIST = max(SHIFTED_LAGS) + 1                                   # 3
DEC_BN = BATCH * NUM_PARALLEL_SAMPLES                              # 20


# ------------------------------ LSTM gate math ------------------------------
def _apply_gates(gates, c):
    """Gate columns pre-permuted to [i, f, o, g]: one sigmoid over a (., 3H)
    slice + one tanh over (., H) (2 EUP launches per cell instead of 4)."""
    H = NUM_CELLS
    sig = jax.nn.sigmoid(gates[:, :3 * H])
    i_g = sig[:, :H]
    f_g = sig[:, H:2 * H]
    o_g = sig[:, 2 * H:]
    g_g = jnp.tanh(gates[:, 3 * H:])
    c_new = f_g * c + i_g * g_g
    h_new = o_g * jnp.tanh(c_new)
    return h_new, c_new


# ------------------------------ fused kernel --------------------------------
def deepvar_kernel(tgt_ref, tenc_ref, tdec_ref, static_ref, scale_ref,
                   sel_ref, eps_ref,
                   w0l_ref, w0s_ref, w0t_ref, wh0_ref, b0_ref,
                   w1i_ref, w1h_ref, b1_ref, wp_ref, bp_ref,
                   out_ref):
    """Fused 2-layer LSTM encoder + autoregressive sampling decoder."""
    f32 = jnp.float32
    H, C = NUM_CELLS, TARGET_DIM
    dot = lambda a, b: jnp.dot(a, b, preferred_element_type=f32)

    scale = scale_ref[...]                        # (B, C), >= 1e-10
    inv_scale = 1.0 / scale
    static = static_ref[...]                      # (B, K)
    sel = sel_ref[...]                            # (Bn, B) one-hot repeat mat
    w0l = [w0l_ref[i] for i in range(NUM_LAGS)]   # per-lag rows of W_ih^0
    w0s = w0s_ref[...]                            # static rows of W_ih^0
    w0t = w0t_ref[...]                            # time rows of W_ih^0
    wh0 = wh0_ref[...]                            # W_hh^0
    w1i = w1i_ref[...]
    w1h = w1h_ref[...]
    b1 = b1_ref[...]
    wp = wp_ref[...]                              # (H, 2C) = loc | raw_sigma
    bp = bp_ref[...]

    tgt = [tgt_ref[u] for u in range(HISTORY_LEN)]          # (B, C) each
    tgt_scaled = [v * inv_scale for v in tgt]

    # loop-invariant layer-0 gate contribution (static features + bias)
    stat_contrib = dot(static, w0s) + b0_ref[...]           # (B, 4H)

    # ------------------------------ encoder ------------------------------
    # All layer-0 input-side contributions are known up front -> hoist them
    # off the serial (h, c) critical path.
    x0_enc = []
    for t in range(CONTEXT_LEN):
        g = dot(tenc_ref[t], w0t) + stat_contrib
        for i, lag in enumerate(LAGS_SEQ):
            g = g + dot(tgt_scaled[MAX_LAG - lag + t], w0l[i])
        x0_enc.append(g)                                    # (B, 4H)

    B = scale.shape[0]
    h0 = jnp.zeros((B, H), f32)
    c0 = jnp.zeros((B, H), f32)
    h1 = jnp.zeros((B, H), f32)
    c1 = jnp.zeros((B, H), f32)
    for t in range(CONTEXT_LEN):                  # serial recurrence, unrolled
        h0, c0 = _apply_gates(x0_enc[t] + dot(h0, wh0), c0)
        h1, c1 = _apply_gates(dot(h0, w1i) + dot(h1, w1h) + b1, c1)

    # ------------------------------ decoder ------------------------------
    # repeat_interleave(num_parallel_samples) via one-hot selection matmuls;
    # the encoder states never leave VMEM.
    hd0, cd0 = dot(sel, h0), dot(sel, c0)
    hd1, cd1 = dot(sel, h1), dot(sel, c1)
    scale_d = dot(sel, scale)                     # (Bn, C)
    inv_scale_d = dot(sel, inv_scale)
    hist = [dot(sel, tgt[HISTORY_LEN - NUM_HIST + j]) for j in range(NUM_HIST)]

    # per-step layer-0 (time + static + bias) contributions, hoisted
    x0_dec = [dot(sel, dot(tdec_ref[k], w0t) + stat_contrib)
              for k in range(PRED_LEN)]           # (Bn, 4H) each

    for k in range(PRED_LEN):                     # autoregressive sampling
        g0 = x0_dec[k] + dot(hd0, wh0)
        for i, s in enumerate(SHIFTED_LAGS):      # lag gather from VMEM history
            g0 = g0 + dot(hist[-1 - s] * inv_scale_d, w0l[i])
        hd0, cd0 = _apply_gates(g0, cd0)
        hd1, cd1 = _apply_gates(dot(hd0, w1i) + dot(hd1, w1h) + b1, cd1)
        # TODO(synk): distr_output is abstract in PyTorch; modeled here as a
        # diagonal Gaussian with an affine scale transform.
        proj = dot(hd1, wp) + bp                  # (Bn, 2C)
        loc = proj[:, :C]
        sigma = jax.nn.softplus(proj[:, C:])
        sample = scale_d * (loc + sigma * eps_ref[k])
        out_ref[k] = sample                       # (Bn, C)
        hist.append(sample)


def _full_spec(shape):
    nd = len(shape)

    def index_map(i):
        return (0,) * nd

    return pl.BlockSpec(shape, index_map)


def deepvar_pallas(tgt, tenc, tdec, static, scale, sel, eps, kp):
    inputs = (tgt, tenc, tdec, static, scale, sel, eps,
              kp['w0_lag'], kp['w0_static'], kp['w0_time'], kp['wh0'],
              kp['b0'], kp['w1_ih'], kp['w1_hh'], kp['b1'],
              kp['w_proj'], kp['b_proj'])
    out_shape = jax.ShapeDtypeStruct((PRED_LEN, DEC_BN, TARGET_DIM),
                                     jnp.float32)
    # Working set << 1 MiB: every operand is a single full-array VMEM block.
    return pl.pallas_call(
        deepvar_kernel,
        out_shape=out_shape,
        grid=(1,),
        in_specs=[_full_spec(a.shape) for a in inputs],
        out_specs=_full_spec(out_shape.shape),
        compiler_params=pltpu.CompilerParams(
            dimension_semantics=("arbitrary",)),
    )(*inputs)


# ------------------------------ plain-JAX glue -------------------------------
def mean_scaler(data, obs):
    """MeanScaler(keepdim) over (B, T, C) -> (B, C)."""
    sum_abs = jnp.sum(jnp.abs(data) * obs, axis=1)
    num_obs = jnp.sum(obs, axis=1)
    total_obs = jnp.sum(num_obs, axis=0, keepdims=True)
    default_scale = (jnp.sum(sum_abs, axis=0, keepdims=True)
                     / jnp.maximum(total_obs, 1.0))
    scale = sum_abs / jnp.maximum(num_obs, 1.0)
    scale = jnp.where(sum_abs > 0.0, scale,
                      jnp.broadcast_to(default_scale, scale.shape))
    return jnp.maximum(scale, 1e-10)


def feature_embedder(feat_static_cat, tables):
    return jnp.concatenate(
        [tables[j][feat_static_cat[:, j]] for j in range(len(tables))], axis=1)


@jax.jit
def forward(kp, feat_static_cat, feat_static_real, past_time_feat,
            past_target_cdf, past_observed_values, past_is_pad,
            future_time_feat, eps):
    """DeepVARPredictionNetwork.forward -> samples (B, num_samples, P, C)."""
    B, C = past_target_cdf.shape[0], TARGET_DIM
    past_observed_values = jnp.minimum(past_observed_values,
                                       1.0 - past_is_pad[..., None])
    scale = mean_scaler(past_target_cdf[:, -CONTEXT_LEN:, :],
                        past_observed_values[:, -CONTEXT_LEN:, :])   # (B, C)
    embedded = feature_embedder(feat_static_cat, kp['embed'])
    static_feat = jnp.concatenate(
        [embedded, feat_static_real, jnp.log(scale)], axis=1)        # (B, K)

    # time-major layouts: batch ends up on sublanes inside the kernel
    tgt_tbc = jnp.transpose(past_target_cdf, (1, 0, 2))              # (HIST,B,C)
    tenc = jnp.transpose(past_time_feat[:, -CONTEXT_LEN:, :], (1, 0, 2))
    tdec = jnp.transpose(future_time_feat, (1, 0, 2))                # (P,B,F)

    out = deepvar_pallas(tgt_tbc, tenc, tdec, static_feat, scale,
                         kp['sel'], eps, kp)                         # (P,Bn,C)
    samples = jnp.transpose(out, (1, 0, 2))                          # (Bn,P,C)
    return samples.reshape(B, NUM_PARALLEL_SAMPLES, PRED_LEN, C)


# ------------------------------- parameters ----------------------------------
def init_params(key):
    n_keys = 3 * NUM_LAYERS + 4 + len(CARDINALITY)
    keys = jax.random.split(key, n_keys)
    idx = 0
    lstm_w, lstm_b = [], []
    for l in range(NUM_LAYERS):
        d_in = INPUT_SIZE if l == 0 else NUM_CELLS
        k1, k2, k3 = keys[idx], keys[idx + 1], keys[idx + 2]
        idx += 3
        wih = 0.1 * jax.random.normal(k1, (4 * NUM_CELLS, d_in), jnp.float32)
        whh = 0.1 * jax.random.normal(k2, (4 * NUM_CELLS, NUM_CELLS),
                                      jnp.float32)
        b = 0.1 * jax.random.normal(k3, (4 * NUM_CELLS,), jnp.float32)
        lstm_w.append(jnp.concatenate([wih.T, whh.T], axis=0))   # (d_in+H, 4H)
        lstm_b.append(b.reshape(1, -1))                          # b_ih + b_hh
    kl1, kl2, kl3, kl4 = keys[idx], keys[idx + 1], keys[idx + 2], keys[idx + 3]
    idx += 4
    w_loc = 0.1 * jax.random.normal(kl1, (NUM_CELLS, TARGET_DIM), jnp.float32)
    b_loc = 0.1 * jax.random.normal(kl2, (1, TARGET_DIM), jnp.float32)
    w_sig = 0.1 * jax.random.normal(kl3, (NUM_CELLS, TARGET_DIM), jnp.float32)
    b_sig = 0.1 * jax.random.normal(kl4, (1, TARGET_DIM), jnp.float32)
    embed = [0.1 * jax.random.normal(keys[idx + j],
                                     (CARDINALITY[j], EMBED_DIMS[j]),
                                     jnp.float32)
             for j in range(len(CARDINALITY))]
    return dict(w0=lstm_w[0], b0=lstm_b[0], w1=lstm_w[1], b1=lstm_b[1],
                w_proj=jnp.concatenate([w_loc, w_sig], axis=1),   # (H, 2C)
                b_proj=jnp.concatenate([b_loc, b_sig], axis=1),   # (1, 2C)
                embed=embed)


def prepare_kernel_params(params):
    """One-time host-side weight re-layout for the fused kernel:
       * split layer-0 weight rows into per-lag / static / time / recurrent,
       * permute gate columns [i, f, g, o] -> [i, f, o, g],
       * build the one-hot repeat_interleave selection matrix."""
    H, C = NUM_CELLS, TARGET_DIM
    gperm = np.concatenate([np.arange(0, 2 * H),
                            np.arange(3 * H, 4 * H),
                            np.arange(2 * H, 3 * H)])

    def gp(w):
        return jnp.asarray(w)[..., gperm]

    w0, w1 = params['w0'], params['w1']
    lag_rows = NUM_LAGS * C
    # PyTorch lag-feature columns are channel-major: row = c * NUM_LAGS + i
    w0_lag = jnp.stack(
        [w0[np.array([c * NUM_LAGS + i for c in range(C)])]
         for i in range(NUM_LAGS)], axis=0)                        # (I, C, 4H)
    sel = np.repeat(np.eye(BATCH, dtype=np.float32),
                    NUM_PARALLEL_SAMPLES, axis=0)                  # (Bn, B)
    return dict(
        w0_lag=gp(w0_lag),
        w0_static=gp(w0[lag_rows:lag_rows + STATIC_DIM]),
        w0_time=gp(w0[lag_rows + STATIC_DIM:INPUT_SIZE]),
        wh0=gp(w0[INPUT_SIZE:]),
        b0=gp(params['b0']),
        w1_ih=gp(w1[:NUM_CELLS]),
        w1_hh=gp(w1[NUM_CELLS:]),
        b1=gp(params['b1']),
        w_proj=params['w_proj'],
        b_proj=params['b_proj'],
        embed=params['embed'],
        sel=jnp.asarray(sel))


# -------------------- plain-JAX reference (sanity check) ---------------------
def get_lagged_subsequences(seq, indices, S):
    """seq (B, L, C) -> (B, S, C, I): lagged[i,:,:,k] = seq[i, L-idx[k]-S+j]."""
    L = seq.shape[1]
    vals = [seq[:, L - lag - S:L - lag, :] for lag in indices]
    return jnp.stack(vals, axis=-1)


def _lstm_ref_step(x, h, c, w, b):
    """Plain-JAX LSTM cell with PyTorch gate order [i, f, g, o]."""
    H = NUM_CELLS
    gates = jnp.dot(jnp.concatenate([x, h], axis=-1), w,
                    precision=jax.lax.Precision.HIGHEST) + b
    i = jax.nn.sigmoid(gates[:, :H])
    f = jax.nn.sigmoid(gates[:, H:2 * H])
    g = jnp.tanh(gates[:, 2 * H:3 * H])
    o = jax.nn.sigmoid(gates[:, 3 * H:])
    c = f * c + i * g
    h = o * jnp.tanh(c)
    return h, c


@jax.jit
def reference_forward(params, feat_static_cat, feat_static_real,
                      past_time_feat, past_target_cdf, past_observed_values,
                      past_is_pad, future_time_feat, eps):
    """Straightforward JAX transcription of the PyTorch module (no Pallas)."""
    B, C, ns = BATCH, TARGET_DIM, NUM_PARALLEL_SAMPLES
    obs = jnp.minimum(past_observed_values, 1.0 - past_is_pad[..., None])
    scale = mean_scaler(past_target_cdf[:, -CONTEXT_LEN:, :],
                        obs[:, -CONTEXT_LEN:, :])
    embedded = feature_embedder(feat_static_cat, params['embed'])
    static = jnp.concatenate([embedded, feat_static_real, jnp.log(scale)], 1)
    layers = [(params['w0'], params['b0']), (params['w1'], params['b1'])]

    # encoder
    lags = get_lagged_subsequences(past_target_cdf, LAGS_SEQ, CONTEXT_LEN)
    input_lags = (lags / scale[:, None, :, None]).reshape(
        B, CONTEXT_LEN, NUM_LAGS * C)
    enc_in = jnp.concatenate(
        [input_lags,
         jnp.broadcast_to(static[:, None, :], (B, CONTEXT_LEN, STATIC_DIM)),
         past_time_feat[:, -CONTEXT_LEN:, :]], axis=-1)
    h = [jnp.zeros((B, NUM_CELLS))] * NUM_LAYERS
    c = [jnp.zeros((B, NUM_CELLS))] * NUM_LAYERS
    for t in range(CONTEXT_LEN):
        x = enc_in[:, t, :]
        for l, (w, b) in enumerate(layers):
            h[l], c[l] = _lstm_ref_step(x, h[l], c[l], w, b)
            x = h[l]

    # sampling decoder
    rep = lambda a: jnp.repeat(a, ns, axis=0)
    hist = rep(past_target_cdf)                       # (Bn, HIST, C)
    scale_d, static_d, time_d = rep(scale), rep(static), rep(future_time_feat)
    hd = [rep(h[l]) for l in range(NUM_LAYERS)]
    cd = [rep(c[l]) for l in range(NUM_LAYERS)]
    samples = []
    for k in range(PRED_LEN):
        lags_k = get_lagged_subsequences(hist, SHIFTED_LAGS, 1)   # (Bn,1,C,I)
        lag_block = (lags_k / scale_d[:, None, :, None]).reshape(
            DEC_BN, NUM_LAGS * C)
        x = jnp.concatenate([lag_block, static_d, time_d[:, k, :]], axis=-1)
        for l, (w, b) in enumerate(layers):
            hd[l], cd[l] = _lstm_ref_step(x, hd[l], cd[l], w, b)
            x = hd[l]
        proj = jnp.dot(x, params['w_proj'],
                       precision=jax.lax.Precision.HIGHEST) + params['b_proj']
        loc, sigma = proj[:, :C], jax.nn.softplus(proj[:, C:])
        new = scale_d * (loc + sigma * eps[k])
        samples.append(new)
        hist = jnp.concatenate([hist, new[:, None, :]], axis=1)
    out = jnp.stack(samples, axis=1)                  # (Bn, P, C)
    return out.reshape(B, ns, PRED_LEN, C)


# ------------------------------------ main -----------------------------------
if __name__ == "__main__":
    key = jax.random.PRNGKey(0)
    kparam, kdata = jax.random.split(key)
    params = init_params(kparam)
    kp = prepare_kernel_params(params)

    ks = jax.random.split(kdata, 8)
    feat_static_cat = jax.random.randint(ks[0], (BATCH, len(CARDINALITY)),
                                         0, CARDINALITY[0])
    feat_static_real = jax.random.normal(ks[1], (BATCH, NUM_STATIC_REAL),
                                         jnp.float32)
    past_time_feat = jax.random.normal(
        ks[2], (BATCH, HISTORY_LEN, NUM_TIME_FEAT), jnp.float32)
    past_target_cdf = jnp.abs(jax.random.normal(
        ks[3], (BATCH, HISTORY_LEN, TARGET_DIM), jnp.float32)) + 0.1
    past_observed_values = jnp.ones((BATCH, HISTORY_LEN, TARGET_DIM),
                                    jnp.float32)
    past_is_pad = jnp.zeros((BATCH, HISTORY_LEN), jnp.float32)
    future_time_feat = jax.random.normal(
        ks[4], (BATCH, PRED_LEN, NUM_TIME_FEAT), jnp.float32)
    # pre-drawn reparameterization noise (replaces torch's rsample RNG)
    eps = jax.random.normal(ks[5], (PRED_LEN, DEC_BN, TARGET_DIM), jnp.float32)

    args = (feat_static_cat, feat_static_real, past_time_feat, past_target_cdf,
            past_observed_values, past_is_pad, future_time_feat, eps)

    samples = jax.block_until_ready(forward(kp, *args))
    assert samples.shape == (BATCH, NUM_PARALLEL_SAMPLES, PRED_LEN, TARGET_DIM)
    assert bool(jnp.all(jnp.isfinite(samples)))

    # sanity check of the weight-splitting / gate-permutation bookkeeping
    # against a plain-JAX transcription (loose tol: matmul precision differs)
    ref = jax.block_until_ready(reference_forward(params, *args))
    assert bool(jnp.allclose(samples, ref, rtol=5e-2, atol=5e-2)), (
        "kernel/reference mismatch, max abs diff = %f"
        % float(jnp.max(jnp.abs(samples - ref))))

    print("KERNEL_OK")
</pallas_src>

<mosaic_0001>
module attributes {stable_mosaic.version = 11 : i64} {
  func.func @deepvar_kernel(%arg0: i32, %arg1: memref<9x2x4xf32, #tpu.memory_space<vmem>>, %arg2: memref<6x2x2xf32, #tpu.memory_space<vmem>>, %arg3: memref<4x2x2xf32, #tpu.memory_space<vmem>>, %arg4: memref<2x8xf32, #tpu.memory_space<vmem>>, %arg5: memref<2x4xf32, #tpu.memory_space<vmem>>, %arg6: memref<20x2xf32, #tpu.memory_space<vmem>>, %arg7: memref<4x20x4xf32, #tpu.memory_space<vmem>>, %arg8: memref<3x4x128xf32, #tpu.memory_space<vmem>>, %arg9: memref<8x128xf32, #tpu.memory_space<vmem>>, %arg10: memref<2x128xf32, #tpu.memory_space<vmem>>, %arg11: memref<32x128xf32, #tpu.memory_space<vmem>>, %arg12: memref<1x128xf32, #tpu.memory_space<vmem>>, %arg13: memref<32x128xf32, #tpu.memory_space<vmem>>, %arg14: memref<32x128xf32, #tpu.memory_space<vmem>>, %arg15: memref<1x128xf32, #tpu.memory_space<vmem>>, %arg16: memref<32x8xf32, #tpu.memory_space<vmem>>, %arg17: memref<1x8xf32, #tpu.memory_space<vmem>>, %arg18: memref<4x20x4xf32, #tpu.memory_space<vmem>>) attributes {dimension_semantics = [#tpu.dimension_semantics<arbitrary>], iteration_bounds = array<i64: 1>, scalar_prefetch = 0 : i64, scratch_operands = 0 : i64, tpu.core_type = #tpu.core_type<tc>, window_params = [{pipeline_mode = #tpu.pipeline_mode<synchronous>, transform_indices = @transform_0, window_bounds = array<i64: 9, 2, 4>}, {pipeline_mode = #tpu.pipeline_mode<synchronous>, transform_indices = @transform_1, window_bounds = array<i64: 6, 2, 2>}, {pipeline_mode = #tpu.pipeline_mode<synchronous>, transform_indices = @transform_2, window_bounds = array<i64: 4, 2, 2>}, {pipeline_mode = #tpu.pipeline_mode<synchronous>, transform_indices = @transform_3, window_bounds = array<i64: 2, 8>}, {pipeline_mode = #tpu.pipeline_mode<synchronous>, transform_indices = @transform_4, window_bounds = array<i64: 2, 4>}, {pipeline_mode = #tpu.pipeline_mode<synchronous>, transform_indices = @transform_5, window_bounds = array<i64: 20, 2>}, {pipeline_mode = #tpu.pipeline_mode<synchronous>, transform_indices = @transform_6, window_bounds = array<i64: 4, 20, 4>}, {pipeline_mode = #tpu.pipeline_mode<synchronous>, transform_indices = @transform_7, window_bounds = array<i64: 3, 4, 128>}, {pipeline_mode = #tpu.pipeline_mode<synchronous>, transform_indices = @transform_8, window_bounds = array<i64: 8, 128>}, {pipeline_mode = #tpu.pipeline_mode<synchronous>, transform_indices = @transform_9, window_bounds = array<i64: 2, 128>}, {pipeline_mode = #tpu.pipeline_mode<synchronous>, transform_indices = @transform_10, window_bounds = array<i64: 32, 128>}, {pipeline_mode = #tpu.pipeline_mode<synchronous>, transform_indices = @transform_11, window_bounds = array<i64: 1, 128>}, {pipeline_mode = #tpu.pipeline_mode<synchronous>, transform_indices = @transform_12, window_bounds = array<i64: 32, 128>}, {pipeline_mode = #tpu.pipeline_mode<synchronous>, transform_indices = @transform_13, window_bounds = array<i64: 32, 128>}, {pipeline_mode = #tpu.pipeline_mode<synchronous>, transform_indices = @transform_14, window_bounds = array<i64: 1, 128>}, {pipeline_mode = #tpu.pipeline_mode<synchronous>, transform_indices = @transform_15, window_bounds = array<i64: 32, 8>}, {pipeline_mode = #tpu.pipeline_mode<synchronous>, transform_indices = @transform_16, window_bounds = array<i64: 1, 8>}, {pipeline_mode = #tpu.pipeline_mode<synchronous>, transform_indices = @transform_17, window_bounds = array<i64: 4, 20, 4>}]} {
    %c0 = arith.constant 0 : index
    %c0_0 = arith.constant 0 : index
    %0 = vector.load %arg5[%c0, %c0_0] : memref<2x4xf32, #tpu.memory_space<vmem>>, vector<2x4xf32>
    %cst = arith.constant 1.000000e+00 : f32
    %1 = vector.broadcast %cst : f32 to vector<2x4xf32>
    %2 = arith.divf %1, %0 : vector<2x4xf32>
    %c0_1 = arith.constant 0 : index
    %c0_2 = arith.constant 0 : index
    %3 = vector.load %arg4[%c0_1, %c0_2] : memref<2x8xf32, #tpu.memory_space<vmem>>, vector<2x8xf32>
    %c0_3 = arith.constant 0 : index
    %c0_4 = arith.constant 0 : index
    %4 = vector.load %arg6[%c0_3, %c0_4] : memref<20x2xf32, #tpu.memory_space<vmem>>, vector<20x2xf32>
    %c0_5 = arith.constant 0 : index
    %c0_6 = arith.constant 0 : index
    %c0_7 = arith.constant 0 : index
    %5 = vector.load %arg8[%c0_5, %c0_6, %c0_7] : memref<3x4x128xf32, #tpu.memory_space<vmem>>, vector<1x4x128xf32>
    %6 = vector.shape_cast %5 : vector<1x4x128xf32> to vector<4x128xf32>
    %c1 = arith.constant 1 : index
    %c0_8 = arith.constant 0 : index
    %c0_9 = arith.constant 0 : index
    %7 = vector.load %arg8[%c1, %c0_8, %c0_9] : memref<3x4x128xf32, #tpu.memory_space<vmem>>, vector<1x4x128xf32>
    %8 = vector.shape_cast %7 : vector<1x4x128xf32> to vector<4x128xf32>
    %c2 = arith.constant 2 : index
    %c0_10 = arith.constant 0 : index
    %c0_11 = arith.constant 0 : index
    %9 = vector.load %arg8[%c2, %c0_10, %c0_11] : memref<3x4x128xf32, #tpu.memory_space<vmem>>, vector<1x4x128xf32>
    %10 = vector.shape_cast %9 : vector<1x4x128xf32> to vector<4x128xf32>
    %c0_12 = arith.constant 0 : index
    %c0_13 = arith.constant 0 : index
    %11 = vector.load %arg9[%c0_12, %c0_13] : memref<8x128xf32, #tpu.memory_space<vmem>>, vector<8x128xf32>
    %c0_14 = arith.constant 0 : index
    %c0_15 = arith.constant 0 : index
    %12 = vector.load %arg10[%c0_14, %c0_15] : memref<2x128xf32, #tpu.memory_space<vmem>>, vector<2x128xf32>
    %c0_16 = arith.constant 0 : index
    %c0_17 = arith.constant 0 : index
    %13 = vector.load %arg11[%c0_16, %c0_17] : memref<32x128xf32, #tpu.memory_space<vmem>>, vector<32x128xf32>
    %c0_18 = arith.constant 0 : index
    %c0_19 = arith.constant 0 : index
    %14 = vector.load %arg13[%c0_18, %c0_19] : memref<32x128xf32, #tpu.memory_space<vmem>>, vector<32x128xf32>
    %c0_20 = arith.constant 0 : index
    %c0_21 = arith.constant 0 : index
    %15 = vector.load %arg14[%c0_20, %c0_21] : memref<32x128xf32, #tpu.memory_space<vmem>>, vector<32x128xf32>
    %c0_22 = arith.constant 0 : index
    %c0_23 = arith.constant 0 : index
    %16 = vector.load %arg15[%c0_22, %c0_23] : memref<1x128xf32, #tpu.memory_space<vmem>>, vector<1x128xf32>
    %c0_24 = arith.constant 0 : index
    %c0_25 = arith.constant 0 : index
    %17 = vector.load %arg16[%c0_24, %c0_25] : memref<32x8xf32, #tpu.memory_space<vmem>>, vector<32x8xf32>
    %c0_26 = arith.constant 0 : index
    %c0_27 = arith.constant 0 : index
    %18 = vector.load %arg17[%c0_26, %c0_27] : memref<1x8xf32, #tpu.memory_space<vmem>>, vector<1x8xf32>
    %c0_28 = arith.constant 0 : index
    %c0_29 = arith.constant 0 : index
    %c0_30 = arith.constant 0 : index
    %19 = vector.load %arg1[%c0_28, %c0_29, %c0_30] : memref<9x2x4xf32, #tpu.memory_space<vmem>>, vector<1x2x4xf32>
    %20 = vector.shape_cast %19 : vector<1x2x4xf32> to vector<2x4xf32>
    %c1_31 = arith.constant 1 : index
    %c0_32 = arith.constant 0 : index
    %c0_33 = arith.constant 0 : index
    %21 = vector.load %arg1[%c1_31, %c0_32, %c0_33] : memref<9x2x4xf32, #tpu.memory_space<vmem>>, vector<1x2x4xf32>
    %22 = vector.shape_cast %21 : vector<1x2x4xf32> to vector<2x4xf32>
    %c2_34 = arith.constant 2 : index
    %c0_35 = arith.constant 0 : index
    %c0_36 = arith.constant 0 : index
    %23 = vector.load %arg1[%c2_34, %c0_35, %c0_36] : memref<9x2x4xf32, #tpu.memory_space<vmem>>, vector<1x2x4xf32>
    %24 = vector.shape_cast %23 : vector<1x2x4xf32> to vector<2x4xf32>
    %c3 = arith.constant 3 : index
    %c0_37 = arith.constant 0 : index
    %c0_38 = arith.constant 0 : index
    %25 = vector.load %arg1[%c3, %c0_37, %c0_38] : memref<9x2x4xf32, #tpu.memory_space<vmem>>, vector<1x2x4xf32>
    %26 = vector.shape_cast %25 : vector<1x2x4xf32> to vector<2x4xf32>
    %c4 = arith.constant 4 : index
    %c0_39 = arith.constant 0 : index
    %c0_40 = arith.constant 0 : index
    %27 = vector.load %arg1[%c4, %c0_39, %c0_40] : memref<9x2x4xf32, #tpu.memory_space<vmem>>, vector<1x2x4xf32>
    %28 = vector.shape_cast %27 : vector<1x2x4xf32> to vector<2x4xf32>
    %c5 = arith.constant 5 : index
    %c0_41 = arith.constant 0 : index
    %c0_42 = arith.constant 0 : index
    %29 = vector.load %arg1[%c5, %c0_41, %c0_42] : memref<9x2x4xf32, #tpu.memory_space<vmem>>, vector<1x2x4xf32>
    %30 = vector.shape_cast %29 : vector<1x2x4xf32> to vector<2x4xf32>
    %c6 = arith.constant 6 : index
    %c0_43 = arith.constant 0 : index
    %c0_44 = arith.constant 0 : index
    %31 = vector.load %arg1[%c6, %c0_43, %c0_44] : memref<9x2x4xf32, #tpu.memory_space<vmem>>, vector<1x2x4xf32>
    %32 = vector.shape_cast %31 : vector<1x2x4xf32> to vector<2x4xf32>
    %c7 = arith.constant 7 : index
    %c0_45 = arith.constant 0 : index
    %c0_46 = arith.constant 0 : index
    %33 = vector.load %arg1[%c7, %c0_45, %c0_46] : memref<9x2x4xf32, #tpu.memory_space<vmem>>, vector<1x2x4xf32>
    %34 = vector.shape_cast %33 : vector<1x2x4xf32> to vector<2x4xf32>
    %c8 = arith.constant 8 : index
    %c0_47 = arith.constant 0 : index
    %c0_48 = arith.constant 0 : index
    %35 = vector.load %arg1[%c8, %c0_47, %c0_48] : memref<9x2x4xf32, #tpu.memory_space<vmem>>, vector<1x2x4xf32>
    %36 = vector.shape_cast %35 : vector<1x2x4xf32> to vector<2x4xf32>
    %37 = arith.mulf %20, %2 : vector<2x4xf32>
    %38 = arith.mulf %22, %2 : vector<2x4xf32>
    %39 = arith.mulf %24, %2 : vector<2x4xf32>
    %40 = arith.mulf %26, %2 : vector<2x4xf32>
    %41 = arith.mulf %28, %2 : vector<2x4xf32>
    %42 = arith.mulf %30, %2 : vector<2x4xf32>
    %43 = arith.mulf %32, %2 : vector<2x4xf32>
    %44 = arith.mulf %34, %2 : vector<2x4xf32>
    %cst_49 = arith.constant dense<0.000000e+00> : vector<2x128xf32>
    %45 = tpu.matmul %3, %11, %cst_49 {dimension_numbers = #tpu.dot_dimension_numbers<[1], [0], [0], [1], [0, 0, 1, 1], [], []>} : vector<2x8xf32>, vector<8x128xf32>, vector<2x128xf32> -> vector<2x128xf32>
    %c0_50 = arith.constant 0 : index
    %c0_51 = arith.constant 0 : index
    %46 = vector.load %arg12[%c0_50, %c0_51] : memref<1x128xf32, #tpu.memory_space<vmem>>, vector<1x128xf32>
    %47 = vector.broadcast %46 : vector<1x128xf32> to vector<2x128xf32>
    %48 = arith.addf %45, %47 : vector<2x128xf32>
    %c0_52 = arith.constant 0 : index
    %c0_53 = arith.constant 0 : index
    %c0_54 = arith.constant 0 : index
    %49 = vector.load %arg2[%c0_52, %c0_53, %c0_54] : memref<6x2x2xf32, #tpu.memory_space<vmem>>, vector<1x2x2xf32>
    %50 = vector.shape_cast %49 : vector<1x2x2xf32> to vector<2x2xf32>
    %cst_55 = arith.constant dense<0.000000e+00> : vector<2x128xf32>
    %51 = tpu.matmul %50, %12, %cst_55 {dimension_numbers = #tpu.dot_dimension_numbers<[1], [0], [0], [1], [0, 0, 1, 1], [], []>} : vector<2x2xf32>, vector<2x128xf32>, vector<2x128xf32> -> vector<2x128xf32>
    %52 = arith.addf %51, %48 : vector<2x128xf32>
    %cst_56 = arith.constant dense<0.000000e+00> : vector<2x128xf32>
    %53 = tpu.matmul %39, %6, %cst_56 {dimension_numbers = #tpu.dot_dimension_numbers<[1], [0], [0], [1], [0, 0, 1, 1], [], []>} : vector<2x4xf32>, vector<4x128xf32>, vector<2x128xf32> -> vector<2x128xf32>
    %54 = arith.addf %52, %53 : vector<2x128xf32>
    %cst_57 = arith.constant dense<0.000000e+00> : vector<2x128xf32>
    %55 = tpu.matmul %38, %8, %cst_57 {dimension_numbers = #tpu.dot_dimension_numbers<[1], [0], [0], [1], [0, 0, 1, 1], [], []>} : vector<2x4xf32>, vector<4x128xf32>, vector<2x128xf32> -> vector<2x128xf32>
    %56 = arith.addf %54, %55 : vector<2x128xf32>
    %cst_58 = arith.constant dense<0.000000e+00> : vector<2x128xf32>
    %57 = tpu.matmul %37, %10, %cst_58 {dimension_numbers = #tpu.dot_dimension_numbers<[1], [0], [0], [1], [0, 0, 1, 1], [], []>} : vector<2x4xf32>, vector<4x128xf32>, vector<2x128xf32> -> vector<2x128xf32>
    %58 = arith.addf %56, %57 : vector<2x128xf32>
    %c1_59 = arith.constant 1 : index
    %c0_60 = arith.constant 0 : index
    %c0_61 = arith.constant 0 : index
    %59 = vector.load %arg2[%c1_59, %c0_60, %c0_61] : memref<6x2x2xf32, #tpu.memory_space<vmem>>, vector<1x2x2xf32>
    %60 = vector.shape_cast %59 : vector<1x2x2xf32> to vector<2x2xf32>
    %cst_62 = arith.constant dense<0.000000e+00> : vector<2x128xf32>
    %61 = tpu.matmul %60, %12, %cst_62 {dimension_numbers = #tpu.dot_dimension_numbers<[1], [0], [0], [1], [0, 0, 1, 1], [], []>} : vector<2x2xf32>, vector<2x128xf32>, vector<2x128xf32> -> vector<2x128xf32>
    %62 = arith.addf %61, %48 : vector<2x128xf32>
    %cst_63 = arith.constant dense<0.000000e+00> : vector<2x128xf32>
    %63 = tpu.matmul %40, %6, %cst_63 {dimension_numbers = #tpu.dot_dimension_numbers<[1], [0], [0], [1], [0, 0, 1, 1], [], []>} : vector<2x4xf32>, vector<4x128xf32>, vector<2x128xf32> -> vector<2x128xf32>
    %64 = arith.addf %62, %63 : vector<2x128xf32>
    %cst_64 = arith.constant dense<0.000000e+00> : vector<2x128xf32>
    %65 = tpu.matmul %39, %8, %cst_64 {dimension_numbers = #tpu.dot_dimension_numbers<[1], [0], [0], [1], [0, 0, 1, 1], [], []>} : vector<2x4xf32>, vector<4x128xf32>, vector<2x128xf32> -> vector<2x128xf32>
    %66 = arith.addf %64, %65 : vector<2x128xf32>
    %cst_65 = arith.constant dense<0.000000e+00> : vector<2x128xf32>
    %67 = tpu.matmul %38, %10, %cst_65 {dimension_numbers = #tpu.dot_dimension_numbers<[1], [0], [0], [1], [0, 0, 1, 1], [], []>} : vector<2x4xf32>, vector<4x128xf32>, vector<2x128xf32> -> vector<2x128xf32>
    %68 = arith.addf %66, %67 : vector<2x128xf32>
    %c2_66 = arith.constant 2 : index
    %c0_67 = arith.constant 0 : index
    %c0_68 = arith.constant 0 : index
    %69 = vector.load %arg2[%c2_66, %c0_67, %c0_68] : memref<6x2x2xf32, #tpu.memory_space<vmem>>, vector<1x2x2xf32>
    %70 = vector.shape_cast %69 : vector<1x2x2xf32> to vector<2x2xf32>
    %cst_69 = arith.constant dense<0.000000e+00> : vector<2x128xf32>
    %71 = tpu.matmul %70, %12, %cst_69 {dimension_numbers = #tpu.dot_dimension_numbers<[1], [0], [0], [1], [0, 0, 1, 1], [], []>} : vector<2x2xf32>, vector<2x128xf32>, vector<2x128xf32> -> vector<2x128xf32>
    %72 = arith.addf %71, %48 : vector<2x128xf32>
    %cst_70 = arith.constant dense<0.000000e+00> : vector<2x128xf32>
    %73 = tpu.matmul %41, %6, %cst_70 {dimension_numbers = #tpu.dot_dimension_numbers<[1], [0], [0], [1], [0, 0, 1, 1], [], []>} : vector<2x4xf32>, vector<4x128xf32>, vector<2x128xf32> -> vector<2x128xf32>
    %74 = arith.addf %72, %73 : vector<2x128xf32>
    %cst_71 = arith.constant dense<0.000000e+00> : vector<2x128xf32>
    %75 = tpu.matmul %40, %8, %cst_71 {dimension_numbers = #tpu.dot_dimension_numbers<[1], [0], [0], [1], [0, 0, 1, 1], [], []>} : vector<2x4xf32>, vector<4x128xf32>, vector<2x128xf32> -> vector<2x128xf32>
    %76 = arith.addf %74, %75 : vector<2x128xf32>
    %cst_72 = arith.constant dense<0.000000e+00> : vector<2x128xf32>
    %77 = tpu.matmul %39, %10, %cst_72 {dimension_numbers = #tpu.dot_dimension_numbers<[1], [0], [0], [1], [0, 0, 1, 1], [], []>} : vector<2x4xf32>, vector<4x128xf32>, vector<2x128xf32> -> vector<2x128xf32>
    %78 = arith.addf %76, %77 : vector<2x128xf32>
    %c3_73 = arith.constant 3 : index
    %c0_74 = arith.constant 0 : index
    %c0_75 = arith.constant 0 : index
    %79 = vector.load %arg2[%c3_73, %c0_74, %c0_75] : memref<6x2x2xf32, #tpu.memory_space<vmem>>, vector<1x2x2xf32>
    %80 = vector.shape_cast %79 : vector<1x2x2xf32> to vector<2x2xf32>
    %cst_76 = arith.constant dense<0.000000e+00> : vector<2x128xf32>
    %81 = tpu.matmul %80, %12, %cst_76 {dimension_numbers = #tpu.dot_dimension_numbers<[1], [0], [0], [1], [0, 0, 1, 1], [], []>} : vector<2x2xf32>, vector<2x128xf32>, vector<2x128xf32> -> vector<2x128xf32>
    %82 = arith.addf %81, %48 : vector<2x128xf32>
    %cst_77 = arith.constant dense<0.000000e+00> : vector<2x128xf32>
    %83 = tpu.matmul %42, %6, %cst_77 {dimension_numbers = #tpu.dot_dimension_numbers<[1], [0], [0], [1], [0, 0, 1, 1], [], []>} : vector<2x4xf32>, vector<4x128xf32>, vector<2x128xf32> -> vector<2x128xf32>
    %84 = arith.addf %82, %83 : vector<2x128xf32>
    %cst_78 = arith.constant dense<0.000000e+00> : vector<2x128xf32>
    %85 = tpu.matmul %41, %8, %cst_78 {dimension_numbers = #tpu.dot_dimension_numbers<[1], [0], [0], [1], [0, 0, 1, 1], [], []>} : vector<2x4xf32>, vector<4x128xf32>, vector<2x128xf32> -> vector<2x128xf32>
    %86 = arith.addf %84, %85 : vector<2x128xf32>
    %cst_79 = arith.constant dense<0.000000e+00> : vector<2x128xf32>
    %87 = tpu.matmul %40, %10, %cst_79 {dimension_numbers = #tpu.dot_dimension_numbers<[1], [0], [0], [1], [0, 0, 1, 1], [], []>} : vector<2x4xf32>, vector<4x128xf32>, vector<2x128xf32> -> vector<2x128xf32>
    %88 = arith.addf %86, %87 : vector<2x128xf32>
    %c4_80 = arith.constant 4 : index
    %c0_81 = arith.constant 0 : index
    %c0_82 = arith.constant 0 : index
    %89 = vector.load %arg2[%c4_80, %c0_81, %c0_82] : memref<6x2x2xf32, #tpu.memory_space<vmem>>, vector<1x2x2xf32>
    %90 = vector.shape_cast %89 : vector<1x2x2xf32> to vector<2x2xf32>
    %cst_83 = arith.constant dense<0.000000e+00> : vector<2x128xf32>
    %91 = tpu.matmul %90, %12, %cst_83 {dimension_numbers = #tpu.dot_dimension_numbers<[1], [0], [0], [1], [0, 0, 1, 1], [], []>} : vector<2x2xf32>, vector<2x128xf32>, vector<2x128xf32> -> vector<2x128xf32>
    %92 = arith.addf %91, %48 : vector<2x128xf32>
    %cst_84 = arith.constant dense<0.000000e+00> : vector<2x128xf32>
    %93 = tpu.matmul %43, %6, %cst_84 {dimension_numbers = #tpu.dot_dimension_numbers<[1], [0], [0], [1], [0, 0, 1, 1], [], []>} : vector<2x4xf32>, vector<4x128xf32>, vector<2x128xf32> -> vector<2x128xf32>
    %94 = arith.addf %92, %93 : vector<2x128xf32>
    %cst_85 = arith.constant dense<0.000000e+00> : vector<2x128xf32>
    %95 = tpu.matmul %42, %8, %cst_85 {dimension_numbers = #tpu.dot_dimension_numbers<[1], [0], [0], [1], [0, 0, 1, 1], [], []>} : vector<2x4xf32>, vector<4x128xf32>, vector<2x128xf32> -> vector<2x128xf32>
    %96 = arith.addf %94, %95 : vector<2x128xf32>
    %cst_86 = arith.constant dense<0.000000e+00> : vector<2x128xf32>
    %97 = tpu.matmul %41, %10, %cst_86 {dimension_numbers = #tpu.dot_dimension_numbers<[1], [0], [0], [1], [0, 0, 1, 1], [], []>} : vector<2x4xf32>, vector<4x128xf32>, vector<2x128xf32> -> vector<2x128xf32>
    %98 = arith.addf %96, %97 : vector<2x128xf32>
    %c5_87 = arith.constant 5 : index
    %c0_88 = arith.constant 0 : index
    %c0_89 = arith.constant 0 : index
    %99 = vector.load %arg2[%c5_87, %c0_88, %c0_89] : memref<6x2x2xf32, #tpu.memory_space<vmem>>, vector<1x2x2xf32>
    %100 = vector.shape_cast %99 : vector<1x2x2xf32> to vector<2x2xf32>
    %cst_90 = arith.constant dense<0.000000e+00> : vector<2x128xf32>
    %101 = tpu.matmul %100, %12, %cst_90 {dimension_numbers = #tpu.dot_dimension_numbers<[1], [0], [0], [1], [0, 0, 1, 1], [], []>} : vector<2x2xf32>, vector<2x128xf32>, vector<2x128xf32> -> vector<2x128xf32>
    %102 = arith.addf %101, %48 : vector<2x128xf32>
    %cst_91 = arith.constant dense<0.000000e+00> : vector<2x128xf32>
    %103 = tpu.matmul %44, %6, %cst_91 {dimension_numbers = #tpu.dot_dimension_numbers<[1], [0], [0], [1], [0, 0, 1, 1], [], []>} : vector<2x4xf32>, vector<4x128xf32>, vector<2x128xf32> -> vector<2x128xf32>
    %104 = arith.addf %102, %103 : vector<2x128xf32>
    %cst_92 = arith.constant dense<0.000000e+00> : vector<2x128xf32>
    %105 = tpu.matmul %43, %8, %cst_92 {dimension_numbers = #tpu.dot_dimension_numbers<[1], [0], [0], [1], [0, 0, 1, 1], [], []>} : vector<2x4xf32>, vector<4x128xf32>, vector<2x128xf32> -> vector<2x128xf32>
    %106 = arith.addf %104, %105 : vector<2x128xf32>
    %cst_93 = arith.constant dense<0.000000e+00> : vector<2x128xf32>
    %107 = tpu.matmul %42, %10, %cst_93 {dimension_numbers = #tpu.dot_dimension_numbers<[1], [0], [0], [1], [0, 0, 1, 1], [], []>} : vector<2x4xf32>, vector<4x128xf32>, vector<2x128xf32> -> vector<2x128xf32>
    %108 = arith.addf %106, %107 : vector<2x128xf32>
    %cst_94 = arith.constant 0.000000e+00 : f32
    %109 = vector.broadcast %cst_94 : f32 to vector<2x32xf32>
    %cst_95 = arith.constant 0.000000e+00 : f32
    %110 = vector.broadcast %cst_95 : f32 to vector<2x32xf32>
    %cst_96 = arith.constant 0.000000e+00 : f32
    %111 = vector.broadcast %cst_96 : f32 to vector<2x32xf32>
    %cst_97 = arith.constant 0.000000e+00 : f32
    %112 = vector.broadcast %cst_97 : f32 to vector<2x32xf32>
    %cst_98 = arith.constant dense<0.000000e+00> : vector<2x128xf32>
    %113 = tpu.matmul %109, %13, %cst_98 {dimension_numbers = #tpu.dot_dimension_numbers<[1], [0], [0], [1], [0, 0, 1, 1], [], []>} : vector<2x32xf32>, vector<32x128xf32>, vector<2x128xf32> -> vector<2x128xf32>
    %114 = arith.addf %58, %113 : vector<2x128xf32>
    %115 = vector.extract_strided_slice %114 {offsets = [0, 0], sizes = [2, 96], strides = [1, 1]} : vector<2x128xf32> to vector<2x96xf32>
    %116 = arith.negf %115 : vector<2x96xf32>
    %117 = math.exp %116 : vector<2x96xf32>
    %cst_99 = arith.constant 1.000000e+00 : f32
    %118 = vector.broadcast %cst_99 : f32 to vector<2x96xf32>
    %119 = arith.addf %118, %117 : vector<2x96xf32>
    %120 = arith.divf %118, %119 : vector<2x96xf32>
    %121 = vector.extract_strided_slice %120 {offsets = [0, 0], sizes = [2, 32], strides = [1, 1]} : vector<2x96xf32> to vector<2x32xf32>
    %122 = vector.extract_strided_slice %120 {offsets = [0, 32], sizes = [2, 32], strides = [1, 1]} : vector<2x96xf32> to vector<2x32xf32>
    %123 = vector.extract_strided_slice %120 {offsets = [0, 64], sizes = [2, 32], strides = [1, 1]} : vector<2x96xf32> to vector<2x32xf32>
    %124 = vector.extract_strided_slice %114 {offsets = [0, 96], sizes = [2, 32], strides = [1, 1]} : vector<2x128xf32> to vector<2x32xf32>
    %125 = math.tanh %124 : vector<2x32xf32>
    %126 = arith.mulf %122, %110 : vector<2x32xf32>
    %127 = arith.mulf %121, %125 : vector<2x32xf32>
    %128 = arith.addf %126, %127 : vector<2x32xf32>
    %129 = math.tanh %128 : vector<2x32xf32>
    %130 = arith.mulf %123, %129 : vector<2x32xf32>
    %cst_100 = arith.constant dense<0.000000e+00> : vector<2x128xf32>
    %131 = tpu.matmul %130, %14, %cst_100 {dimension_numbers = #tpu.dot_dimension_numbers<[1], [0], [0], [1], [0, 0, 1, 1], [], []>} : vector<2x32xf32>, vector<32x128xf32>, vector<2x128xf32> -> vector<2x128xf32>
    %cst_101 = arith.constant dense<0.000000e+00> : vector<2x128xf32>
    %132 = tpu.matmul %111, %15, %cst_101 {dimension_numbers = #tpu.dot_dimension_numbers<[1], [0], [0], [1], [0, 0, 1, 1], [], []>} : vector<2x32xf32>, vector<32x128xf32>, vector<2x128xf32> -> vector<2x128xf32>
    %133 = arith.addf %131, %132 : vector<2x128xf32>
    %134 = vector.broadcast %16 : vector<1x128xf32> to vector<2x128xf32>
    %135 = arith.addf %133, %134 : vector<2x128xf32>
    %136 = vector.extract_strided_slice %135 {offsets = [0, 0], sizes = [2, 96], strides = [1, 1]} : vector<2x128xf32> to vector<2x96xf32>
    %137 = arith.negf %136 : vector<2x96xf32>
    %138 = math.exp %137 : vector<2x96xf32>
    %cst_102 = arith.constant 1.000000e+00 : f32
    %139 = vector.broadcast %cst_102 : f32 to vector<2x96xf32>
    %140 = arith.addf %139, %138 : vector<2x96xf32>
    %141 = arith.divf %139, %140 : vector<2x96xf32>
    %142 = vector.extract_strided_slice %141 {offsets = [0, 0], sizes = [2, 32], strides = [1, 1]} : vector<2x96xf32> to vector<2x32xf32>
    %143 = vector.extract_strided_slice %141 {offsets = [0, 32], sizes = [2, 32], strides = [1, 1]} : vector<2x96xf32> to vector<2x32xf32>
    %144 = vector.extract_strided_slice %141 {offsets = [0, 64], sizes = [2, 32], strides = [1, 1]} : vector<2x96xf32> to vector<2x32xf32>
    %145 = vector.extract_strided_slice %135 {offsets = [0, 96], sizes = [2, 32], strides = [1, 1]} : vector<2x128xf32> to vector<2x32xf32>
    %146 = math.tanh %145 : vector<2x32xf32>
    %147 = arith.mulf %143, %112 : vector<2x32xf32>
    %148 = arith.mulf %142, %146 : vector<2x32xf32>
    %149 = arith.addf %147, %148 : vector<2x32xf32>
    %150 = math.tanh %149 : vector<2x32xf32>
    %151 = arith.mulf %144, %150 : vector<2x32xf32>
    %cst_103 = arith.constant dense<0.000000e+00> : vector<2x128xf32>
    %152 = tpu.matmul %130, %13, %cst_103 {dimension_numbers = #tpu.dot_dimension_numbers<[1], [0], [0], [1], [0, 0, 1, 1], [], []>} : vector<2x32xf32>, vector<32x128xf32>, vector<2x128xf32> -> vector<2x128xf32>
    %153 = arith.addf %68, %152 : vector<2x128xf32>
    %154 = vector.extract_strided_slice %153 {offsets = [0, 0], sizes = [2, 96], strides = [1, 1]} : vector<2x128xf32> to vector<2x96xf32>
    %155 = arith.negf %154 : vector<2x96xf32>
    %156 = math.exp %155 : vector<2x96xf32>
    %cst_104 = arith.constant 1.000000e+00 : f32
    %157 = vector.broadcast %cst_104 : f32 to vector<2x96xf32>
    %158 = arith.addf %157, %156 : vector<2x96xf32>
    %159 = arith.divf %157, %158 : vector<2x96xf32>
    %160 = vector.extract_strided_slice %159 {offsets = [0, 0], sizes = [2, 32], strides = [1, 1]} : vector<2x96xf32> to vector<2x32xf32>
    %161 = vector.extract_strided_slice %159 {offsets = [0, 32], sizes = [2, 32], strides = [1, 1]} : vector<2x96xf32> to vector<2x32xf32>
    %162 = vector.extract_strided_slice %159 {offsets = [0, 64], sizes = [2, 32], strides = [1, 1]} : vector<2x96xf32> to vector<2x32xf32>
    %163 = vector.extract_strided_slice %153 {offsets = [0, 96], sizes = [2, 32], strides = [1, 1]} : vector<2x128xf32> to vector<2x32xf32>
    %164 = math.tanh %163 : vector<2x32xf32>
    %165 = arith.mulf %161, %128 : vector<2x32xf32>
    %166 = arith.mulf %160, %164 : vector<2x32xf32>
    %167 = arith.addf %165, %166 : vector<2x32xf32>
    %168 = math.tanh %167 : vector<2x32xf32>
    %169 = arith.mulf %162, %168 : vector<2x32xf32>
    %cst_105 = arith.constant dense<0.000000e+00> : vector<2x128xf32>
    %170 = tpu.matmul %169, %14, %cst_105 {dimension_numbers = #tpu.dot_dimension_numbers<[1], [0], [0], [1], [0, 0, 1, 1], [], []>} : vector<2x32xf32>, vector<32x128xf32>, vector<2x128xf32> -> vector<2x128xf32>
    %cst_106 = arith.constant dense<0.000000e+00> : vector<2x128xf32>
    %171 = tpu.matmul %151, %15, %cst_106 {dimension_numbers = #tpu.dot_dimension_numbers<[1], [0], [0], [1], [0, 0, 1, 1], [], []>} : vector<2x32xf32>, vector<32x128xf32>, vector<2x128xf32> -> vector<2x128xf32>
    %172 = arith.addf %170, %171 : vector<2x128xf32>
    %173 = vector.broadcast %16 : vector<1x128xf32> to vector<2x128xf32>
    %174 = arith.addf %172, %173 : vector<2x128xf32>
    %175 = vector.extract_strided_slice %174 {offsets = [0, 0], sizes = [2, 96], strides = [1, 1]} : vector<2x128xf32> to vector<2x96xf32>
    %176 = arith.negf %175 : vector<2x96xf32>
    %177 = math.exp %176 : vector<2x96xf32>
    %cst_107 = arith.constant 1.000000e+00 : f32
    %178 = vector.broadcast %cst_107 : f32 to vector<2x96xf32>
    %179 = arith.addf %178, %177 : vector<2x96xf32>
    %180 = arith.divf %178, %179 : vector<2x96xf32>
    %181 = vector.extract_strided_slice %180 {offsets = [0, 0], sizes = [2, 32], strides = [1, 1]} : vector<2x96xf32> to vector<2x32xf32>
    %182 = vector.extract_strided_slice %180 {offsets = [0, 32], sizes = [2, 32], strides = [1, 1]} : vector<2x96xf32> to vector<2x32xf32>
    %183 = vector.extract_strided_slice %180 {offsets = [0, 64], sizes = [2, 32], strides = [1, 1]} : vector<2x96xf32> to vector<2x32xf32>
    %184 = vector.extract_strided_slice %174 {offsets = [0, 96], sizes = [2, 32], strides = [1, 1]} : vector<2x128xf32> to vector<2x32xf32>
    %185 = math.tanh %184 : vector<2x32xf32>
    %186 = arith.mulf %182, %149 : vector<2x32xf32>
    %187 = arith.mulf %181, %185 : vector<2x32xf32>
    %188 = arith.addf %186, %187 : vector<2x32xf32>
    %189 = math.tanh %188 : vector<2x32xf32>
    %190 = arith.mulf %183, %189 : vector<2x32xf32>
    %cst_108 = arith.constant dense<0.000000e+00> : vector<2x128xf32>
    %191 = tpu.matmul %169, %13, %cst_108 {dimension_numbers = #tpu.dot_dimension_numbers<[1], [0], [0], [1], [0, 0, 1, 1], [], []>} : vector<2x32xf32>, vector<32x128xf32>, vector<2x128xf32> -> vector<2x128xf32>
    %192 = arith.addf %78, %191 : vector<2x128xf32>
    %193 = vector.extract_strided_slice %192 {offsets = [0, 0], sizes = [2, 96], strides = [1, 1]} : vector<2x128xf32> to vector<2x96xf32>
    %194 = arith.negf %193 : vector<2x96xf32>
    %195 = math.exp %194 : vector<2x96xf32>
    %cst_109 = arith.constant 1.000000e+00 : f32
    %196 = vector.broadcast %cst_109 : f32 to vector<2x96xf32>
    %197 = arith.addf %196, %195 : vector<2x96xf32>
    %198 = arith.divf %196, %197 : vector<2x96xf32>
    %199 = vector.extract_strided_slice %198 {offsets = [0, 0], sizes = [2, 32], strides = [1, 1]} : vector<2x96xf32> to vector<2x32xf32>
    %200 = vector.extract_strided_slice %198 {offsets = [0, 32], sizes = [2, 32], strides = [1, 1]} : vector<2x96xf32> to vector<2x32xf32>
    %201 = vector.extract_strided_slice %198 {offsets = [0, 64], sizes = [2, 32], strides = [1, 1]} : vector<2x96xf32> to vector<2x32xf32>
    %202 = vector.extract_strided_slice %192 {offsets = [0, 96], sizes = [2, 32], strides = [1, 1]} : vector<2x128xf32> to vector<2x32xf32>
    %203 = math.tanh %202 : vector<2x32xf32>
    %204 = arith.mulf %200, %167 : vector<2x32xf32>
    %205 = arith.mulf %199, %203 : vector<2x32xf32>
    %206 = arith.addf %204, %205 : vector<2x32xf32>
    %207 = math.tanh %206 : vector<2x32xf32>
    %208 = arith.mulf %201, %207 : vector<2x32xf32>
    %cst_110 = arith.constant dense<0.000000e+00> : vector<2x128xf32>
    %209 = tpu.matmul %208, %14, %cst_110 {dimension_numbers = #tpu.dot_dimension_numbers<[1], [0], [0], [1], [0, 0, 1, 1], [], []>} : vector<2x32xf32>, vector<32x128xf32>, vector<2x128xf32> -> vector<2x128xf32>
    %cst_111 = arith.constant dense<0.000000e+00> : vector<2x128xf32>
    %210 = tpu.matmul %190, %15, %cst_111 {dimension_numbers = #tpu.dot_dimension_numbers<[1], [0], [0], [1], [0, 0, 1, 1], [], []>} : vector<2x32xf32>, vector<32x128xf32>, vector<2x128xf32> -> vector<2x128xf32>
    %211 = arith.addf %209, %210 : vector<2x128xf32>
    %212 = vector.broadcast %16 : vector<1x128xf32> to vector<2x128xf32>
    %213 = arith.addf %211, %212 : vector<2x128xf32>
    %214 = vector.extract_strided_slice %213 {offsets = [0, 0], sizes = [2, 96], strides = [1, 1]} : vector<2x128xf32> to vector<2x96xf32>
    %215 = arith.negf %214 : vector<2x96xf32>
    %216 = math.exp %215 : vector<2x96xf32>
    %cst_112 = arith.constant 1.000000e+00 : f32
    %217 = vector.broadcast %cst_112 : f32 to vector<2x96xf32>
    %218 = arith.addf %217, %216 : vector<2x96xf32>
    %219 = arith.divf %217, %218 : vector<2x96xf32>
    %220 = vector.extract_strided_slice %219 {offsets = [0, 0], sizes = [2, 32], strides = [1, 1]} : vector<2x96xf32> to vector<2x32xf32>
    %221 = vector.extract_strided_slice %219 {offsets = [0, 32], sizes = [2, 32], strides = [1, 1]} : vector<2x96xf32> to vector<2x32xf32>
    %222 = vector.extract_strided_slice %219 {offsets = [0, 64], sizes = [2, 32], strides = [1, 1]} : vector<2x96xf32> to vector<2x32xf32>
    %223 = vector.extract_strided_slice %213 {offsets = [0, 96], sizes = [2, 32], strides = [1, 1]} : vector<2x128xf32> to vector<2x32xf32>
    %224 = math.tanh %223 : vector<2x32xf32>
    %225 = arith.mulf %221, %188 : vector<2x32xf32>
    %226 = arith.mulf %220, %224 : vector<2x32xf32>
    %227 = arith.addf %225, %226 : vector<2x32xf32>
    %228 = math.tanh %227 : vector<2x32xf32>
    %229 = arith.mulf %222, %228 : vector<2x32xf32>
    %cst_113 = arith.constant dense<0.000000e+00> : vector<2x128xf32>
    %230 = tpu.matmul %208, %13, %cst_113 {dimension_numbers = #tpu.dot_dimension_numbers<[1], [0], [0], [1], [0, 0, 1, 1], [], []>} : vector<2x32xf32>, vector<32x128xf32>, vector<2x128xf32> -> vector<2x128xf32>
    %231 = arith.addf %88, %230 : vector<2x128xf32>
    %232 = vector.extract_strided_slice %231 {offsets = [0, 0], sizes = [2, 96], strides = [1, 1]} : vector<2x128xf32> to vector<2x96xf32>
    %233 = arith.negf %232 : vector<2x96xf32>
    %234 = math.exp %233 : vector<2x96xf32>
    %cst_114 = arith.constant 1.000000e+00 : f32
    %235 = vector.broadcast %cst_114 : f32 to vector<2x96xf32>
    %236 = arith.addf %235, %234 : vector<2x96xf32>
    %237 = arith.divf %235, %236 : vector<2x96xf32>
    %238 = vector.extract_strided_slice %237 {offsets = [0, 0], sizes = [2, 32], strides = [1, 1]} : vector<2x96xf32> to vector<2x32xf32>
    %239 = vector.extract_strided_slice %237 {offsets = [0, 32], sizes = [2, 32], strides = [1, 1]} : vector<2x96xf32> to vector<2x32xf32>
    %240 = vector.extract_strided_slice %237 {offsets = [0, 64], sizes = [2, 32], strides = [1, 1]} : vector<2x96xf32> to vector<2x32xf32>
    %241 = vector.extract_strided_slice %231 {offsets = [0, 96], sizes = [2, 32], strides = [1, 1]} : vector<2x128xf32> to vector<2x32xf32>
    %242 = math.tanh %241 : vector<2x32xf32>
    %243 = arith.mulf %239, %206 : vector<2x32xf32>
    %244 = arith.mulf %238, %242 : vector<2x32xf32>
    %245 = arith.addf %243, %244 : vector<2x32xf32>
    %246 = math.tanh %245 : vector<2x32xf32>
    %247 = arith.mulf %240, %246 : vector<2x32xf32>
    %cst_115 = arith.constant dense<0.000000e+00> : vector<2x128xf32>
    %248 = tpu.matmul %247, %14, %cst_115 {dimension_numbers = #tpu.dot_dimension_numbers<[1], [0], [0], [1], [0, 0, 1, 1], [], []>} : vector<2x32xf32>, vector<32x128xf32>, vector<2x128xf32> -> vector<2x128xf32>
    %cst_116 = arith.constant dense<0.000000e+00> : vector<2x128xf32>
    %249 = tpu.matmul %229, %15, %cst_116 {dimension_numbers = #tpu.dot_dimension_numbers<[1], [0], [0], [1], [0, 0, 1, 1], [], []>} : vector<2x32xf32>, vector<32x128xf32>, vector<2x128xf32> -> vector<2x128xf32>
    %250 = arith.addf %248, %249 : vector<2x128xf32>
    %251 = vector.broadcast %16 : vector<1x128xf32> to vector<2x128xf32>
    %252 = arith.addf %250, %251 : vector<2x128xf32>
    %253 = vector.extract_strided_slice %252 {offsets = [0, 0], sizes = [2, 96], strides = [1, 1]} : vector<2x128xf32> to vector<2x96xf32>
    %254 = arith.negf %253 : vector<2x96xf32>
    %255 = math.exp %254 : vector<2x96xf32>
    %cst_117 = arith.constant 1.000000e+00 : f32
    %256 = vector.broadcast %cst_117 : f32 to vector<2x96xf32>
    %257 = arith.addf %256, %255 : vector<2x96xf32>
    %258 = arith.divf %256, %257 : vector<2x96xf32>
    %259 = vector.extract_strided_slice %258 {offsets = [0, 0], sizes = [2, 32], strides = [1, 1]} : vector<2x96xf32> to vector<2x32xf32>
    %260 = vector.extract_strided_slice %258 {offsets = [0, 32], sizes = [2, 32], strides = [1, 1]} : vector<2x96xf32> to vector<2x32xf32>
    %261 = vector.extract_strided_slice %258 {offsets = [0, 64], sizes = [2, 32], strides = [1, 1]} : vector<2x96xf32> to vector<2x32xf32>
    %262 = vector.extract_strided_slice %252 {offsets = [0, 96], sizes = [2, 32], strides = [1, 1]} : vector<2x128xf32> to vector<2x32xf32>
    %263 = math.tanh %262 : vector<2x32xf32>
    %264 = arith.mulf %260, %227 : vector<2x32xf32>
    %265 = arith.mulf %259, %263 : vector<2x32xf32>
    %266 = arith.addf %264, %265 : vector<2x32xf32>
    %267 = math.tanh %266 : vector<2x32xf32>
    %268 = arith.mulf %261, %267 : vector<2x32xf32>
    %cst_118 = arith.constant dense<0.000000e+00> : vector<2x128xf32>
    %269 = tpu.matmul %247, %13, %cst_118 {dimension_numbers = #tpu.dot_dimension_numbers<[1], [0], [0], [1], [0, 0, 1, 1], [], []>} : vector<2x32xf32>, vector<32x128xf32>, vector<2x128xf32> -> vector<2x128xf32>
    %270 = arith.addf %98, %269 : vector<2x128xf32>
    %271 = vector.extract_strided_slice %270 {offsets = [0, 0], sizes = [2, 96], strides = [1, 1]} : vector<2x128xf32> to vector<2x96xf32>
    %272 = arith.negf %271 : vector<2x96xf32>
    %273 = math.exp %272 : vector<2x96xf32>
    %cst_119 = arith.constant 1.000000e+00 : f32
    %274 = vector.broadcast %cst_119 : f32 to vector<2x96xf32>
    %275 = arith.addf %274, %273 : vector<2x96xf32>
    %276 = arith.divf %274, %275 : vector<2x96xf32>
    %277 = vector.extract_strided_slice %276 {offsets = [0, 0], sizes = [2, 32], strides = [1, 1]} : vector<2x96xf32> to vector<2x32xf32>
    %278 = vector.extract_strided_slice %276 {offsets = [0, 32], sizes = [2, 32], strides = [1, 1]} : vector<2x96xf32> to vector<2x32xf32>
    %279 = vector.extract_strided_slice %276 {offsets = [0, 64], sizes = [2, 32], strides = [1, 1]} : vector<2x96xf32> to vector<2x32xf32>
    %280 = vector.extract_strided_slice %270 {offsets = [0, 96], sizes = [2, 32], strides = [1, 1]} : vector<2x128xf32> to vector<2x32xf32>
    %281 = math.tanh %280 : vector<2x32xf32>
    %282 = arith.mulf %278, %245 : vector<2x32xf32>
    %283 = arith.mulf %277, %281 : vector<2x32xf32>
    %284 = arith.addf %282, %283 : vector<2x32xf32>
    %285 = math.tanh %284 : vector<2x32xf32>
    %286 = arith.mulf %279, %285 : vector<2x32xf32>
    %cst_120 = arith.constant dense<0.000000e+00> : vector<2x128xf32>
    %287 = tpu.matmul %286, %14, %cst_120 {dimension_numbers = #tpu.dot_dimension_numbers<[1], [0], [0], [1], [0, 0, 1, 1], [], []>} : vector<2x32xf32>, vector<32x128xf32>, vector<2x128xf32> -> vector<2x128xf32>
    %cst_121 = arith.constant dense<0.000000e+00> : vector<2x128xf32>
    %288 = tpu.matmul %268, %15, %cst_121 {dimension_numbers = #tpu.dot_dimension_numbers<[1], [0], [0], [1], [0, 0, 1, 1], [], []>} : vector<2x32xf32>, vector<32x128xf32>, vector<2x128xf32> -> vector<2x128xf32>
    %289 = arith.addf %287, %288 : vector<2x128xf32>
    %290 = vector.broadcast %16 : vector<1x128xf32> to vector<2x128xf32>
    %291 = arith.addf %289, %290 : vector<2x128xf32>
    %292 = vector.extract_strided_slice %291 {offsets = [0, 0], sizes = [2, 96], strides = [1, 1]} : vector<2x128xf32> to vector<2x96xf32>
    %293 = arith.negf %292 : vector<2x96xf32>
    %294 = math.exp %293 : vector<2x96xf32>
    %cst_122 = arith.constant 1.000000e+00 : f32
    %295 = vector.broadcast %cst_122 : f32 to vector<2x96xf32>
    %296 = arith.addf %295, %294 : vector<2x96xf32>
    %297 = arith.divf %295, %296 : vector<2x96xf32>
    %298 = vector.extract_strided_slice %297 {offsets = [0, 0], sizes = [2, 32], strides = [1, 1]} : vector<2x96xf32> to vector<2x32xf32>
    %299 = vector.extract_strided_slice %297 {offsets = [0, 32], sizes = [2, 32], strides = [1, 1]} : vector<2x96xf32> to vector<2x32xf32>
    %300 = vector.extract_strided_slice %297 {offsets = [0, 64], sizes = [2, 32], strides = [1, 1]} : vector<2x96xf32> to vector<2x32xf32>
    %301 = vector.extract_strided_slice %291 {offsets = [0, 96], sizes = [2, 32], strides = [1, 1]} : vector<2x128xf32> to vector<2x32xf32>
    %302 = math.tanh %301 : vector<2x32xf32>
    %303 = arith.mulf %299, %266 : vector<2x32xf32>
    %304 = arith.mulf %298, %302 : vector<2x32xf32>
    %305 = arith.addf %303, %304 : vector<2x32xf32>
    %306 = math.tanh %305 : vector<2x32xf32>
    %307 = arith.mulf %300, %306 : vector<2x32xf32>
    %cst_123 = arith.constant dense<0.000000e+00> : vector<2x128xf32>
    %308 = tpu.matmul %286, %13, %cst_123 {dimension_numbers = #tpu.dot_dimension_numbers<[1], [0], [0], [1], [0, 0, 1, 1], [], []>} : vector<2x32xf32>, vector<32x128xf32>, vector<2x128xf32> -> vector<2x128xf32>
    %309 = arith.addf %108, %308 : vector<2x128xf32>
    %310 = vector.extract_strided_slice %309 {offsets = [0, 0], sizes = [2, 96], strides = [1, 1]} : vector<2x128xf32> to vector<2x96xf32>
    %311 = arith.negf %310 : vector<2x96xf32>
    %312 = math.exp %311 : vector<2x96xf32>
    %cst_124 = arith.constant 1.000000e+00 : f32
    %313 = vector.broadcast %cst_124 : f32 to vector<2x96xf32>
    %314 = arith.addf %313, %312 : vector<2x96xf32>
    %315 = arith.divf %313, %314 : vector<2x96xf32>
    %316 = vector.extract_strided_slice %315 {offsets = [0, 0], sizes = [2, 32], strides = [1, 1]} : vector<2x96xf32> to vector<2x32xf32>
    %317 = vector.extract_strided_slice %315 {offsets = [0, 32], sizes = [2, 32], strides = [1, 1]} : vector<2x96xf32> to vector<2x32xf32>
    %318 = vector.extract_strided_slice %315 {offsets = [0, 64], sizes = [2, 32], strides = [1, 1]} : vector<2x96xf32> to vector<2x32xf32>
    %319 = vector.extract_strided_slice %309 {offsets = [0, 96], sizes = [2, 32], strides = [1, 1]} : vector<2x128xf32> to vector<2x32xf32>
    %320 = math.tanh %319 : vector<2x32xf32>
    %321 = arith.mulf %317, %284 : vector<2x32xf32>
    %322 = arith.mulf %316, %320 : vector<2x32xf32>
    %323 = arith.addf %321, %322 : vector<2x32xf32>
    %324 = math.tanh %323 : vector<2x32xf32>
    %325 = arith.mulf %318, %324 : vector<2x32xf32>
    %cst_125 = arith.constant dense<0.000000e+00> : vector<2x128xf32>
    %326 = tpu.matmul %325, %14, %cst_125 {dimension_numbers = #tpu.dot_dimension_numbers<[1], [0], [0], [1], [0, 0, 1, 1], [], []>} : vector<2x32xf32>, vector<32x128xf32>, vector<2x128xf32> -> vector<2x128xf32>
    %cst_126 = arith.constant dense<0.000000e+00> : vector<2x128xf32>
    %327 = tpu.matmul %307, %15, %cst_126 {dimension_numbers = #tpu.dot_dimension_numbers<[1], [0], [0], [1], [0, 0, 1, 1], [], []>} : vector<2x32xf32>, vector<32x128xf32>, vector<2x128xf32> -> vector<2x128xf32>
    %328 = arith.addf %326, %327 : vector<2x128xf32>
    %329 = vector.broadcast %16 : vector<1x128xf32> to vector<2x128xf32>
    %330 = arith.addf %328, %329 : vector<2x128xf32>
    %331 = vector.extract_strided_slice %330 {offsets = [0, 0], sizes = [2, 96], strides = [1, 1]} : vector<2x128xf32> to vector<2x96xf32>
    %332 = arith.negf %331 : vector<2x96xf32>
    %333 = math.exp %332 : vector<2x96xf32>
    %cst_127 = arith.constant 1.000000e+00 : f32
    %334 = vector.broadcast %cst_127 : f32 to vector<2x96xf32>
    %335 = arith.addf %334, %333 : vector<2x96xf32>
    %336 = arith.divf %334, %335 : vector<2x96xf32>
    %337 = vector.extract_strided_slice %336 {offsets = [0, 0], sizes = [2, 32], strides = [1, 1]} : vector<2x96xf32> to vector<2x32xf32>
    %338 = vector.extract_strided_slice %336 {offsets = [0, 32], sizes = [2, 32], strides = [1, 1]} : vector<2x96xf32> to vector<2x32xf32>
    %339 = vector.extract_strided_slice %336 {offsets = [0, 64], sizes = [2, 32], strides = [1, 1]} : vector<2x96xf32> to vector<2x32xf32>
    %340 = vector.extract_strided_slice %330 {offsets = [0, 96], sizes = [2, 32], strides = [1, 1]} : vector<2x128xf32> to vector<2x32xf32>
    %341 = math.tanh %340 : vector<2x32xf32>
    %342 = arith.mulf %338, %305 : vector<2x32xf32>
    %343 = arith.mulf %337, %341 : vector<2x32xf32>
    %344 = arith.addf %342, %343 : vector<2x32xf32>
    %345 = math.tanh %344 : vector<2x32xf32>
    %346 = arith.mulf %339, %345 : vector<2x32xf32>
    %cst_128 = arith.constant dense<0.000000e+00> : vector<20x32xf32>
    %347 = tpu.matmul %4, %325, %cst_128 {dimension_numbers = #tpu.dot_dimension_numbers<[1], [0], [0], [1], [0, 0, 1, 1], [], []>} : vector<20x2xf32>, vector<2x32xf32>, vector<20x32xf32> -> vector<20x32xf32>
    %cst_129 = arith.constant dense<0.000000e+00> : vector<20x32xf32>
    %348 = tpu.matmul %4, %323, %cst_129 {dimension_numbers = #tpu.dot_dimension_numbers<[1], [0], [0], [1], [0, 0, 1, 1], [], []>} : vector<20x2xf32>, vector<2x32xf32>, vector<20x32xf32> -> vector<20x32xf32>
    %cst_130 = arith.constant dense<0.000000e+00> : vector<20x32xf32>
    %349 = tpu.matmul %4, %346, %cst_130 {dimension_numbers = #tpu.dot_dimension_numbers<[1], [0], [0], [1], [0, 0, 1, 1], [], []>} : vector<20x2xf32>, vector<2x32xf32>, vector<20x32xf32> -> vector<20x32xf32>
    %cst_131 = arith.constant dense<0.000000e+00> : vector<20x32xf32>
    %350 = tpu.matmul %4, %344, %cst_131 {dimension_numbers = #tpu.dot_dimension_numbers<[1], [0], [0], [1], [0, 0, 1, 1], [], []>} : vector<20x2xf32>, vector<2x32xf32>, vector<20x32xf32> -> vector<20x32xf32>
    %cst_132 = arith.constant dense<0.000000e+00> : vector<20x4xf32>
    %351 = tpu.matmul %4, %0, %cst_132 {dimension_numbers = #tpu.dot_dimension_numbers<[1], [0], [0], [1], [0, 0, 1, 1], [], []>} : vector<20x2xf32>, vector<2x4xf32>, vector<20x4xf32> -> vector<20x4xf32>
    %cst_133 = arith.constant dense<0.000000e+00> : vector<20x4xf32>
    %352 = tpu.matmul %4, %2, %cst_133 {dimension_numbers = #tpu.dot_dimension_numbers<[1], [0], [0], [1], [0, 0, 1, 1], [], []>} : vector<20x2xf32>, vector<2x4xf32>, vector<20x4xf32> -> vector<20x4xf32>
    %cst_134 = arith.constant dense<0.000000e+00> : vector<20x4xf32>
    %353 = tpu.matmul %4, %32, %cst_134 {dimension_numbers = #tpu.dot_dimension_numbers<[1], [0], [0], [1], [0, 0, 1, 1], [], []>} : vector<20x2xf32>, vector<2x4xf32>, vector<20x4xf32> -> vector<20x4xf32>
    %cst_135 = arith.constant dense<0.000000e+00> : vector<20x4xf32>
    %354 = tpu.matmul %4, %34, %cst_135 {dimension_numbers = #tpu.dot_dimension_numbers<[1], [0], [0], [1], [0, 0, 1, 1], [], []>} : vector<20x2xf32>, vector<2x4xf32>, vector<20x4xf32> -> vector<20x4xf32>
    %cst_136 = arith.constant dense<0.000000e+00> : vector<20x4xf32>
    %355 = tpu.matmul %4, %36, %cst_136 {dimension_numbers = #tpu.dot_dimension_numbers<[1], [0], [0], [1], [0, 0, 1, 1], [], []>} : vector<20x2xf32>, vector<2x4xf32>, vector<20x4xf32> -> vector<20x4xf32>
    %c0_137 = arith.constant 0 : index
    %c0_138 = arith.constant 0 : index
    %c0_139 = arith.constant 0 : index
    %356 = vector.load %arg3[%c0_137, %c0_138, %c0_139] : memref<4x2x2xf32, #tpu.memory_space<vmem>>, vector<1x2x2xf32>
    %357 = vector.shape_cast %356 : vector<1x2x2xf32> to vector<2x2xf32>
    %cst_140 = arith.constant dense<0.000000e+00> : vector<2x128xf32>
    %358 = tpu.matmul %357, %12, %cst_140 {dimension_numbers = #tpu.dot_dimension_numbers<[1], [0], [0], [1], [0, 0, 1, 1], [], []>} : vector<2x2xf32>, vector<2x128xf32>, vector<2x128xf32> -> vector<2x128xf32>
    %359 = arith.addf %358, %48 : vector<2x128xf32>
    %cst_141 = arith.constant dense<0.000000e+00> : vector<20x128xf32>
    %360 = tpu.matmul %4, %359, %cst_141 {dimension_numbers = #tpu.dot_dimension_numbers<[1], [0], [0], [1], [0, 0, 1, 1], [], []>} : vector<20x2xf32>, vector<2x128xf32>, vector<20x128xf32> -> vector<20x128xf32>
    %c1_142 = arith.constant 1 : index
    %c0_143 = arith.constant 0 : index
    %c0_144 = arith.constant 0 : index
    %361 = vector.load %arg3[%c1_142, %c0_143, %c0_144] : memref<4x2x2xf32, #tpu.memory_space<vmem>>, vector<1x2x2xf32>
    %362 = vector.shape_cast %361 : vector<1x2x2xf32> to vector<2x2xf32>
    %cst_145 = arith.constant dense<0.000000e+00> : vector<2x128xf32>
    %363 = tpu.matmul %362, %12, %cst_145 {dimension_numbers = #tpu.dot_dimension_numbers<[1], [0], [0], [1], [0, 0, 1, 1], [], []>} : vector<2x2xf32>, vector<2x128xf32>, vector<2x128xf32> -> vector<2x128xf32>
    %364 = arith.addf %363, %48 : vector<2x128xf32>
    %cst_146 = arith.constant dense<0.000000e+00> : vector<20x128xf32>
    %365 = tpu.matmul %4, %364, %cst_146 {dimension_numbers = #tpu.dot_dimension_numbers<[1], [0], [0], [1], [0, 0, 1, 1], [], []>} : vector<20x2xf32>, vector<2x128xf32>, vector<20x128xf32> -> vector<20x128xf32>
    %c2_147 = arith.constant 2 : index
    %c0_148 = arith.constant 0 : index
    %c0_149 = arith.constant 0 : index
    %366 = vector.load %arg3[%c2_147, %c0_148, %c0_149] : memref<4x2x2xf32, #tpu.memory_space<vmem>>, vector<1x2x2xf32>
    %367 = vector.shape_cast %366 : vector<1x2x2xf32> to vector<2x2xf32>
    %cst_150 = arith.constant dense<0.000000e+00> : vector<2x128xf32>
    %368 = tpu.matmul %367, %12, %cst_150 {dimension_numbers = #tpu.dot_dimension_numbers<[1], [0], [0], [1], [0, 0, 1, 1], [], []>} : vector<2x2xf32>, vector<2x128xf32>, vector<2x128xf32> -> vector<2x128xf32>
    %369 = arith.addf %368, %48 : vector<2x128xf32>
    %cst_151 = arith.constant dense<0.000000e+00> : vector<20x128xf32>
    %370 = tpu.matmul %4, %369, %cst_151 {dimension_numbers = #tpu.dot_dimension_numbers<[1], [0], [0], [1], [0, 0, 1, 1], [], []>} : vector<20x2xf32>, vector<2x128xf32>, vector<20x128xf32> -> vector<20x128xf32>
    %c3_152 = arith.constant 3 : index
    %c0_153 = arith.constant 0 : index
    %c0_154 = arith.constant 0 : index
    %371 = vector.load %arg3[%c3_152, %c0_153, %c0_154] : memref<4x2x2xf32, #tpu.memory_space<vmem>>, vector<1x2x2xf32>
    %372 = vector.shape_cast %371 : vector<1x2x2xf32> to vector<2x2xf32>
    %cst_155 = arith.constant dense<0.000000e+00> : vector<2x128xf32>
    %373 = tpu.matmul %372, %12, %cst_155 {dimension_numbers = #tpu.dot_dimension_numbers<[1], [0], [0], [1], [0, 0, 1, 1], [], []>} : vector<2x2xf32>, vector<2x128xf32>, vector<2x128xf32> -> vector<2x128xf32>
    %374 = arith.addf %373, %48 : vector<2x128xf32>
    %cst_156 = arith.constant dense<0.000000e+00> : vector<20x128xf32>
    %375 = tpu.matmul %4, %374, %cst_156 {dimension_numbers = #tpu.dot_dimension_numbers<[1], [0], [0], [1], [0, 0, 1, 1], [], []>} : vector<20x2xf32>, vector<2x128xf32>, vector<20x128xf32> -> vector<20x128xf32>
    %cst_157 = arith.constant dense<0.000000e+00> : vector<20x128xf32>
    %376 = tpu.matmul %347, %13, %cst_157 {dimension_numbers = #tpu.dot_dimension_numbers<[1], [0], [0], [1], [0, 0, 1, 1], [], []>} : vector<20x32xf32>, vector<32x128xf32>, vector<20x128xf32> -> vector<20x128xf32>
    %377 = arith.addf %360, %376 : vector<20x128xf32>
    %378 = arith.mulf %355, %352 : vector<20x4xf32>
    %cst_158 = arith.constant dense<0.000000e+00> : vector<20x128xf32>
    %379 = tpu.matmul %378, %6, %cst_158 {dimension_numbers = #tpu.dot_dimension_numbers<[1], [0], [0], [1], [0, 0, 1, 1], [], []>} : vector<20x4xf32>, vector<4x128xf32>, vector<20x128xf32> -> vector<20x128xf32>
    %380 = arith.addf %377, %379 : vector<20x128xf32>
    %381 = arith.mulf %354, %352 : vector<20x4xf32>
    %cst_159 = arith.constant dense<0.000000e+00> : vector<20x128xf32>
    %382 = tpu.matmul %381, %8, %cst_159 {dimension_numbers = #tpu.dot_dimension_numbers<[1], [0], [0], [1], [0, 0, 1, 1], [], []>} : vector<20x4xf32>, vector<4x128xf32>, vector<20x128xf32> -> vector<20x128xf32>
    %383 = arith.addf %380, %382 : vector<20x128xf32>
    %384 = arith.mulf %353, %352 : vector<20x4xf32>
    %cst_160 = arith.constant dense<0.000000e+00> : vector<20x128xf32>
    %385 = tpu.matmul %384, %10, %cst_160 {dimension_numbers = #tpu.dot_dimension_numbers<[1], [0], [0], [1], [0, 0, 1, 1], [], []>} : vector<20x4xf32>, vector<4x128xf32>, vector<20x128xf32> -> vector<20x128xf32>
    %386 = arith.addf %383, %385 : vector<20x128xf32>
    %387 = vector.extract_strided_slice %386 {offsets = [0, 0], sizes = [20, 96], strides = [1, 1]} : vector<20x128xf32> to vector<20x96xf32>
    %388 = arith.negf %387 : vector<20x96xf32>
    %389 = math.exp %388 : vector<20x96xf32>
    %cst_161 = arith.constant 1.000000e+00 : f32
    %390 = vector.broadcast %cst_161 : f32 to vector<20x96xf32>
    %391 = arith.addf %390, %389 : vector<20x96xf32>
    %392 = arith.divf %390, %391 : vector<20x96xf32>
    %393 = vector.extract_strided_slice %392 {offsets = [0, 0], sizes = [20, 32], strides = [1, 1]} : vector<20x96xf32> to vector<20x32xf32>
    %394 = vector.extract_strided_slice %392 {offsets = [0, 32], sizes = [20, 32], strides = [1, 1]} : vector<20x96xf32> to vector<20x32xf32>
    %395 = vector.extract_strided_slice %392 {offsets = [0, 64], sizes = [20, 32], strides = [1, 1]} : vector<20x96xf32> to vector<20x32xf32>
    %396 = vector.extract_strided_slice %386 {offsets = [0, 96], sizes = [20, 32], strides = [1, 1]} : vector<20x128xf32> to vector<20x32xf32>
    %397 = math.tanh %396 : vector<20x32xf32>
    %398 = arith.mulf %394, %348 : vector<20x32xf32>
    %399 = arith.mulf %393, %397 : vector<20x32xf32>
    %400 = arith.addf %398, %399 : vector<20x32xf32>
    %401 = math.tanh %400 : vector<20x32xf32>
    %402 = arith.mulf %395, %401 : vector<20x32xf32>
    %cst_162 = arith.constant dense<0.000000e+00> : vector<20x128xf32>
    %403 = tpu.matmul %402, %14, %cst_162 {dimension_numbers = #tpu.dot_dimension_numbers<[1], [0], [0], [1], [0, 0, 1, 1], [], []>} : vector<20x32xf32>, vector<32x128xf32>, vector<20x128xf32> -> vector<20x128xf32>
    %cst_163 = arith.constant dense<0.000000e+00> : vector<20x128xf32>
    %404 = tpu.matmul %349, %15, %cst_163 {dimension_numbers = #tpu.dot_dimension_numbers<[1], [0], [0], [1], [0, 0, 1, 1], [], []>} : vector<20x32xf32>, vector<32x128xf32>, vector<20x128xf32> -> vector<20x128xf32>
    %405 = arith.addf %403, %404 : vector<20x128xf32>
    %406 = vector.broadcast %16 : vector<1x128xf32> to vector<20x128xf32>
    %407 = arith.addf %405, %406 : vector<20x128xf32>
    %408 = vector.extract_strided_slice %407 {offsets = [0, 0], sizes = [20, 96], strides = [1, 1]} : vector<20x128xf32> to vector<20x96xf32>
    %409 = arith.negf %408 : vector<20x96xf32>
    %410 = math.exp %409 : vector<20x96xf32>
    %cst_164 = arith.constant 1.000000e+00 : f32
    %411 = vector.broadcast %cst_164 : f32 to vector<20x96xf32>
    %412 = arith.addf %411, %410 : vector<20x96xf32>
    %413 = arith.divf %411, %412 : vector<20x96xf32>
    %414 = vector.extract_strided_slice %413 {offsets = [0, 0], sizes = [20, 32], strides = [1, 1]} : vector<20x96xf32> to vector<20x32xf32>
    %415 = vector.extract_strided_slice %413 {offsets = [0, 32], sizes = [20, 32], strides = [1, 1]} : vector<20x96xf32> to vector<20x32xf32>
    %416 = vector.extract_strided_slice %413 {offsets = [0, 64], sizes = [20, 32], strides = [1, 1]} : vector<20x96xf32> to vector<20x32xf32>
    %417 = vector.extract_strided_slice %407 {offsets = [0, 96], sizes = [20, 32], strides = [1, 1]} : vector<20x128xf32> to vector<20x32xf32>
    %418 = math.tanh %417 : vector<20x32xf32>
    %419 = arith.mulf %415, %350 : vector<20x32xf32>
    %420 = arith.mulf %414, %418 : vector<20x32xf32>
    %421 = arith.addf %419, %420 : vector<20x32xf32>
    %422 = math.tanh %421 : vector<20x32xf32>
    %423 = arith.mulf %416, %422 : vector<20x32xf32>
    %cst_165 = arith.constant dense<0.000000e+00> : vector<20x8xf32>
    %424 = tpu.matmul %423, %17, %cst_165 {dimension_numbers = #tpu.dot_dimension_numbers<[1], [0], [0], [1], [0, 0, 1, 1], [], []>} : vector<20x32xf32>, vector<32x8xf32>, vector<20x8xf32> -> vector<20x8xf32>
    %425 = vector.broadcast %18 : vector<1x8xf32> to vector<20x8xf32>
    %426 = arith.addf %424, %425 : vector<20x8xf32>
    %427 = vector.extract_strided_slice %426 {offsets = [0, 0], sizes = [20, 4], strides = [1, 1]} : vector<20x8xf32> to vector<20x4xf32>
    %428 = vector.extract_strided_slice %426 {offsets = [0, 4], sizes = [20, 4], strides = [1, 1]} : vector<20x8xf32> to vector<20x4xf32>
    %cst_166 = arith.constant 0.000000e+00 : f32
    %429 = vector.broadcast %cst_166 : f32 to vector<20x4xf32>
    %430 = arith.maximumf %428, %429 : vector<20x4xf32>
    %431 = vector.broadcast %cst_166 : f32 to vector<20x4xf32>
    %432 = arith.subf %428, %431 : vector<20x4xf32>
    %433 = arith.cmpf one, %432, %432 : vector<20x4xf32>
    %434 = vector.broadcast %cst_166 : f32 to vector<20x4xf32>
    %435 = arith.addf %428, %434 : vector<20x4xf32>
    %436 = math.absf %432 : vector<20x4xf32>
    %cst_167 = arith.constant 0.000000e+00 : f32
    %437 = vector.broadcast %cst_167 : f32 to vector<20x4xf32>
    %438 = arith.subf %437, %436 : vector<20x4xf32>
    %439 = math.exp %438 : vector<20x4xf32>
    %440 = math.log1p %439 : vector<20x4xf32>
    %441 = arith.addf %430, %440 : vector<20x4xf32>
    %442 = arith.select %433, %435, %441 : vector<20x4xi1>, vector<20x4xf32>
    %c0_168 = arith.constant 0 : index
    %c0_169 = arith.constant 0 : index
    %c0_170 = arith.constant 0 : index
    %443 = vector.load %arg7[%c0_168, %c0_169, %c0_170] : memref<4x20x4xf32, #tpu.memory_space<vmem>>, vector<1x20x4xf32>
    %444 = vector.shape_cast %443 : vector<1x20x4xf32> to vector<20x4xf32>
    %445 = arith.mulf %442, %444 : vector<20x4xf32>
    %446 = arith.addf %427, %445 : vector<20x4xf32>
    %447 = arith.mulf %351, %446 : vector<20x4xf32>
    %c0_171 = arith.constant 0 : index
    %c0_172 = arith.constant 0 : index
    %c0_173 = arith.constant 0 : index
    %448 = vector.load %arg18[%c0_171, %c0_172, %c0_173] : memref<4x20x4xf32, #tpu.memory_space<vmem>>, vector<1x20x4xf32>
    %449 = vector.shape_cast %448 : vector<1x20x4xf32> to vector<20x4xf32>
    %450 = vector.shape_cast %447 : vector<20x4xf32> to vector<1x20x4xf32>
    tpu.vector_store %arg18[%c0_171, %c0_172, %c0_173], %450 {strides = array<i32>} : memref<4x20x4xf32, #tpu.memory_space<vmem>>, vector<1x20x4xf32>,
    %cst_174 = arith.constant dense<0.000000e+00> : vector<20x128xf32>
    %451 = tpu.matmul %402, %13, %cst_174 {dimension_numbers = #tpu.dot_dimension_numbers<[1], [0], [0], [1], [0, 0, 1, 1], [], []>} : vector<20x32xf32>, vector<32x128xf32>, vector<20x128xf32> -> vector<20x128xf32>
    %452 = arith.addf %365, %451 : vector<20x128xf32>
    %453 = arith.mulf %447, %352 : vector<20x4xf32>
    %cst_175 = arith.constant dense<0.000000e+00> : vector<20x128xf32>
    %454 = tpu.matmul %453, %6, %cst_175 {dimension_numbers = #tpu.dot_dimension_numbers<[1], [0], [0], [1], [0, 0, 1, 1], [], []>} : vector<20x4xf32>, vector<4x128xf32>, vector<20x128xf32> -> vector<20x128xf32>
    %455 = arith.addf %452, %454 : vector<20x128xf32>
    %456 = arith.mulf %355, %352 : vector<20x4xf32>
    %cst_176 = arith.constant dense<0.000000e+00> : vector<20x128xf32>
    %457 = tpu.matmul %456, %8, %cst_176 {dimension_numbers = #tpu.dot_dimension_numbers<[1], [0], [0], [1], [0, 0, 1, 1], [], []>} : vector<20x4xf32>, vector<4x128xf32>, vector<20x128xf32> -> vector<20x128xf32>
    %458 = arith.addf %455, %457 : vector<20x128xf32>
    %459 = arith.mulf %354, %352 : vector<20x4xf32>
    %cst_177 = arith.constant dense<0.000000e+00> : vector<20x128xf32>
    %460 = tpu.matmul %459, %10, %cst_177 {dimension_numbers = #tpu.dot_dimension_numbers<[1], [0], [0], [1], [0, 0, 1, 1], [], []>} : vector<20x4xf32>, vector<4x128xf32>, vector<20x128xf32> -> vector<20x128xf32>
    %461 = arith.addf %458, %460 : vector<20x128xf32>
    %462 = vector.extract_strided_slice %461 {offsets = [0, 0], sizes = [20, 96], strides = [1, 1]} : vector<20x128xf32> to vector<20x96xf32>
    %463 = arith.negf %462 : vector<20x96xf32>
    %464 = math.exp %463 : vector<20x96xf32>
    %cst_178 = arith.constant 1.000000e+00 : f32
    %465 = vector.broadcast %cst_178 : f32 to vector<20x96xf32>
    %466 = arith.addf %465, %464 : vector<20x96xf32>
    %467 = arith.divf %465, %466 : vector<20x96xf32>
    %468 = vector.extract_strided_slice %467 {offsets = [0, 0], sizes = [20, 32], strides = [1, 1]} : vector<20x96xf32> to vector<20x32xf32>
    %469 = vector.extract_strided_slice %467 {offsets = [0, 32], sizes = [20, 32], strides = [1, 1]} : vector<20x96xf32> to vector<20x32xf32>
    %470 = vector.extract_strided_slice %467 {offsets = [0, 64], sizes = [20, 32], strides = [1, 1]} : vector<20x96xf32> to vector<20x32xf32>
    %471 = vector.extract_strided_slice %461 {offsets = [0, 96], sizes = [20, 32], strides = [1, 1]} : vector<20x128xf32> to vector<20x32xf32>
    %472 = math.tanh %471 : vector<20x32xf32>
    %473 = arith.mulf %469, %400 : vector<20x32xf32>
    %474 = arith.mulf %468, %472 : vector<20x32xf32>
    %475 = arith.addf %473, %474 : vector<20x32xf32>
    %476 = math.tanh %475 : vector<20x32xf32>
    %477 = arith.mulf %470, %476 : vector<20x32xf32>
    %cst_179 = arith.constant dense<0.000000e+00> : vector<20x128xf32>
    %478 = tpu.matmul %477, %14, %cst_179 {dimension_numbers = #tpu.dot_dimension_numbers<[1], [0], [0], [1], [0, 0, 1, 1], [], []>} : vector<20x32xf32>, vector<32x128xf32>, vector<20x128xf32> -> vector<20x128xf32>
    %cst_180 = arith.constant dense<0.000000e+00> : vector<20x128xf32>
    %479 = tpu.matmul %423, %15, %cst_180 {dimension_numbers = #tpu.dot_dimension_numbers<[1], [0], [0], [1], [0, 0, 1, 1], [], []>} : vector<20x32xf32>, vector<32x128xf32>, vector<20x128xf32> -> vector<20x128xf32>
    %480 = arith.addf %478, %479 : vector<20x128xf32>
    %481 = vector.broadcast %16 : vector<1x128xf32> to vector<20x128xf32>
    %482 = arith.addf %480, %481 : vector<20x128xf32>
    %483 = vector.extract_strided_slice %482 {offsets = [0, 0], sizes = [20, 96], strides = [1, 1]} : vector<20x128xf32> to vector<20x96xf32>
    %484 = arith.negf %483 : vector<20x96xf32>
    %485 = math.exp %484 : vector<20x96xf32>
    %cst_181 = arith.constant 1.000000e+00 : f32
    %486 = vector.broadcast %cst_181 : f32 to vector<20x96xf32>
    %487 = arith.addf %486, %485 : vector<20x96xf32>
    %488 = arith.divf %486, %487 : vector<20x96xf32>
    %489 = vector.extract_strided_slice %488 {offsets = [0, 0], sizes = [20, 32], strides = [1, 1]} : vector<20x96xf32> to vector<20x32xf32>
    %490 = vector.extract_strided_slice %488 {offsets = [0, 32], sizes = [20, 32], strides = [1, 1]} : vector<20x96xf32> to vector<20x32xf32>
    %491 = vector.extract_strided_slice %488 {offsets = [0, 64], sizes = [20, 32], strides = [1, 1]} : vector<20x96xf32> to vector<20x32xf32>
    %492 = vector.extract_strided_slice %482 {offsets = [0, 96], sizes = [20, 32], strides = [1, 1]} : vector<20x128xf32> to vector<20x32xf32>
    %493 = math.tanh %492 : vector<20x32xf32>
    %494 = arith.mulf %490, %421 : vector<20x32xf32>
    %495 = arith.mulf %489, %493 : vector<20x32xf32>
    %496 = arith.addf %494, %495 : vector<20x32xf32>
    %497 = math.tanh %496 : vector<20x32xf32>
    %498 = arith.mulf %491, %497 : vector<20x32xf32>
    %cst_182 = arith.constant dense<0.000000e+00> : vector<20x8xf32>
    %499 = tpu.matmul %498, %17, %cst_182 {dimension_numbers = #tpu.dot_dimension_numbers<[1], [0], [0], [1], [0, 0, 1, 1], [], []>} : vector<20x32xf32>, vector<32x8xf32>, vector<20x8xf32> -> vector<20x8xf32>
    %500 = vector.broadcast %18 : vector<1x8xf32> to vector<20x8xf32>
    %501 = arith.addf %499, %500 : vector<20x8xf32>
    %502 = vector.extract_strided_slice %501 {offsets = [0, 0], sizes = [20, 4], strides = [1, 1]} : vector<20x8xf32> to vector<20x4xf32>
    %503 = vector.extract_strided_slice %501 {offsets = [0, 4], sizes = [20, 4], strides = [1, 1]} : vector<20x8xf32> to vector<20x4xf32>
    %cst_183 = arith.constant 0.000000e+00 : f32
    %504 = vector.broadcast %cst_183 : f32 to vector<20x4xf32>
    %505 = arith.maximumf %503, %504 : vector<20x4xf32>
    %506 = vector.broadcast %cst_183 : f32 to vector<20x4xf32>
    %507 = arith.subf %503, %506 : vector<20x4xf32>
    %508 = arith.cmpf one, %507, %507 : vector<20x4xf32>
    %509 = vector.broadcast %cst_183 : f32 to vector<20x4xf32>
    %510 = arith.addf %503, %509 : vector<20x4xf32>
    %511 = math.absf %507 : vector<20x4xf32>
    %cst_184 = arith.constant 0.000000e+00 : f32
    %512 = vector.broadcast %cst_184 : f32 to vector<20x4xf32>
    %513 = arith.subf %512, %511 : vector<20x4xf32>
    %514 = math.exp %513 : vector<20x4xf32>
    %515 = math.log1p %514 : vector<20x4xf32>
    %516 = arith.addf %505, %515 : vector<20x4xf32>
    %517 = arith.select %508, %510, %516 : vector<20x4xi1>, vector<20x4xf32>
    %c1_185 = arith.constant 1 : index
    %c0_186 = arith.constant 0 : index
    %c0_187 = arith.constant 0 : index
    %518 = vector.load %arg7[%c1_185, %c0_186, %c0_187] : memref<4x20x4xf32, #tpu.memory_space<vmem>>, vector<1x20x4xf32>
    %519 = vector.shape_cast %518 : vector<1x20x4xf32> to vector<20x4xf32>
    %520 = arith.mulf %517, %519 : vector<20x4xf32>
    %521 = arith.addf %502, %520 : vector<20x4xf32>
    %522 = arith.mulf %351, %521 : vector<20x4xf32>
    %c1_188 = arith.constant 1 : index
    %c0_189 = arith.constant 0 : index
    %c0_190 = arith.constant 0 : index
    %523 = vector.load %arg18[%c1_188, %c0_189, %c0_190] : memref<4x20x4xf32, #tpu.memory_space<vmem>>, vector<1x20x4xf32>
    %524 = vector.shape_cast %523 : vector<1x20x4xf32> to vector<20x4xf32>
    %525 = vector.shape_cast %522 : vector<20x4xf32> to vector<1x20x4xf32>
    tpu.vector_store %arg18[%c1_188, %c0_189, %c0_190], %525 {strides = array<i32>} : memref<4x20x4xf32, #tpu.memory_space<vmem>>, vector<1x20x4xf32>,
    %cst_191 = arith.constant dense<0.000000e+00> : vector<20x128xf32>
    %526 = tpu.matmul %477, %13, %cst_191 {dimension_numbers = #tpu.dot_dimension_numbers<[1], [0], [0], [1], [0, 0, 1, 1], [], []>} : vector<20x32xf32>, vector<32x128xf32>, vector<20x128xf32> -> vector<20x128xf32>
    %527 = arith.addf %370, %526 : vector<20x128xf32>
    %528 = arith.mulf %522, %352 : vector<20x4xf32>
    %cst_192 = arith.constant dense<0.000000e+00> : vector<20x128xf32>
    %529 = tpu.matmul %528, %6, %cst_192 {dimension_numbers = #tpu.dot_dimension_numbers<[1], [0], [0], [1], [0, 0, 1, 1], [], []>} : vector<20x4xf32>, vector<4x128xf32>, vector<20x128xf32> -> vector<20x128xf32>
    %530 = arith.addf %527, %529 : vector<20x128xf32>
    %531 = arith.mulf %447, %352 : vector<20x4xf32>
    %cst_193 = arith.constant dense<0.000000e+00> : vector<20x128xf32>
    %532 = tpu.matmul %531, %8, %cst_193 {dimension_numbers = #tpu.dot_dimension_numbers<[1], [0], [0], [1], [0, 0, 1, 1], [], []>} : vector<20x4xf32>, vector<4x128xf32>, vector<20x128xf32> -> vector<20x128xf32>
    %533 = arith.addf %530, %532 : vector<20x128xf32>
    %534 = arith.mulf %355, %352 : vector<20x4xf32>
    %cst_194 = arith.constant dense<0.000000e+00> : vector<20x128xf32>
    %535 = tpu.matmul %534, %10, %cst_194 {dimension_numbers = #tpu.dot_dimension_numbers<[1], [0], [0], [1], [0, 0, 1, 1], [], []>} : vector<20x4xf32>, vector<4x128xf32>, vector<20x128xf32> -> vector<20x128xf32>
    %536 = arith.addf %533, %535 : vector<20x128xf32>
    %537 = vector.extract_strided_slice %536 {offsets = [0, 0], sizes = [20, 96], strides = [1, 1]} : vector<20x128xf32> to vector<20x96xf32>
    %538 = arith.negf %537 : vector<20x96xf32>
    %539 = math.exp %538 : vector<20x96xf32>
    %cst_195 = arith.constant 1.000000e+00 : f32
    %540 = vector.broadcast %cst_195 : f32 to vector<20x96xf32>
    %541 = arith.addf %540, %539 : vector<20x96xf32>
    %542 = arith.divf %540, %541 : vector<20x96xf32>
    %543 = vector.extract_strided_slice %542 {offsets = [0, 0], sizes = [20, 32], strides = [1, 1]} : vector<20x96xf32> to vector<20x32xf32>
    %544 = vector.extract_strided_slice %542 {offsets = [0, 32], sizes = [20, 32], strides = [1, 1]} : vector<20x96xf32> to vector<20x32xf32>
    %545 = vector.extract_strided_slice %542 {offsets = [0, 64], sizes = [20, 32], strides = [1, 1]} : vector<20x96xf32> to vector<20x32xf32>
    %546 = vector.extract_strided_slice %536 {offsets = [0, 96], sizes = [20, 32], strides = [1, 1]} : vector<20x128xf32> to vector<20x32xf32>
    %547 = math.tanh %546 : vector<20x32xf32>
    %548 = arith.mulf %544, %475 : vector<20x32xf32>
    %549 = arith.mulf %543, %547 : vector<20x32xf32>
    %550 = arith.addf %548, %549 : vector<20x32xf32>
    %551 = math.tanh %550 : vector<20x32xf32>
    %552 = arith.mulf %545, %551 : vector<20x32xf32>
    %cst_196 = arith.constant dense<0.000000e+00> : vector<20x128xf32>
    %553 = tpu.matmul %552, %14, %cst_196 {dimension_numbers = #tpu.dot_dimension_numbers<[1], [0], [0], [1], [0, 0, 1, 1], [], []>} : vector<20x32xf32>, vector<32x128xf32>, vector<20x128xf32> -> vector<20x128xf32>
    %cst_197 = arith.constant dense<0.000000e+00> : vector<20x128xf32>
    %554 = tpu.matmul %498, %15, %cst_197 {dimension_numbers = #tpu.dot_dimension_numbers<[1], [0], [0], [1], [0, 0, 1, 1], [], []>} : vector<20x32xf32>, vector<32x128xf32>, vector<20x128xf32> -> vector<20x128xf32>
    %555 = arith.addf %553, %554 : vector<20x128xf32>
    %556 = vector.broadcast %16 : vector<1x128xf32> to vector<20x128xf32>
    %557 = arith.addf %555, %556 : vector<20x128xf32>
    %558 = vector.extract_strided_slice %557 {offsets = [0, 0], sizes = [20, 96], strides = [1, 1]} : vector<20x128xf32> to vector<20x96xf32>
    %559 = arith.negf %558 : vector<20x96xf32>
    %560 = math.exp %559 : vector<20x96xf32>
    %cst_198 = arith.constant 1.000000e+00 : f32
    %561 = vector.broadcast %cst_198 : f32 to vector<20x96xf32>
    %562 = arith.addf %561, %560 : vector<20x96xf32>
    %563 = arith.divf %561, %562 : vector<20x96xf32>
    %564 = vector.extract_strided_slice %563 {offsets = [0, 0], sizes = [20, 32], strides = [1, 1]} : vector<20x96xf32> to vector<20x32xf32>
    %565 = vector.extract_strided_slice %563 {offsets = [0, 32], sizes = [20, 32], strides = [1, 1]} : vector<20x96xf32> to vector<20x32xf32>
    %566 = vector.extract_strided_slice %563 {offsets = [0, 64], sizes = [20, 32], strides = [1, 1]} : vector<20x96xf32> to vector<20x32xf32>
    %567 = vector.extract_strided_slice %557 {offsets = [0, 96], sizes = [20, 32], strides = [1, 1]} : vector<20x128xf32> to vector<20x32xf32>
    %568 = math.tanh %567 : vector<20x32xf32>
    %569 = arith.mulf %565, %496 : vector<20x32xf32>
    %570 = arith.mulf %564, %568 : vector<20x32xf32>
    %571 = arith.addf %569, %570 : vector<20x32xf32>
    %572 = math.tanh %571 : vector<20x32xf32>
    %573 = arith.mulf %566, %572 : vector<20x32xf32>
    %cst_199 = arith.constant dense<0.000000e+00> : vector<20x8xf32>
    %574 = tpu.matmul %573, %17, %cst_199 {dimension_numbers = #tpu.dot_dimension_numbers<[1], [0], [0], [1], [0, 0, 1, 1], [], []>} : vector<20x32xf32>, vector<32x8xf32>, vector<20x8xf32> -> vector<20x8xf32>
    %575 = vector.broadcast %18 : vector<1x8xf32> to vector<20x8xf32>
    %576 = arith.addf %574, %575 : vector<20x8xf32>
    %577 = vector.extract_strided_slice %576 {offsets = [0, 0], sizes = [20, 4], strides = [1, 1]} : vector<20x8xf32> to vector<20x4xf32>
    %578 = vector.extract_strided_slice %576 {offsets = [0, 4], sizes = [20, 4], strides = [1, 1]} : vector<20x8xf32> to vector<20x4xf32>
    %cst_200 = arith.constant 0.000000e+00 : f32
    %579 = vector.broadcast %cst_200 : f32 to vector<20x4xf32>
    %580 = arith.maximumf %578, %579 : vector<20x4xf32>
    %581 = vector.broadcast %cst_200 : f32 to vector<20x4xf32>
    %582 = arith.subf %578, %581 : vector<20x4xf32>
    %583 = arith.cmpf one, %582, %582 : vector<20x4xf32>
    %584 = vector.broadcast %cst_200 : f32 to vector<20x4xf32>
    %585 = arith.addf %578, %584 : vector<20x4xf32>
    %586 = math.absf %582 : vector<20x4xf32>
    %cst_201 = arith.constant 0.000000e+00 : f32
    %587 = vector.broadcast %cst_201 : f32 to vector<20x4xf32>
    %588 = arith.subf %587, %586 : vector<20x4xf32>
    %589 = math.exp %588 : vector<20x4xf32>
    %590 = math.log1p %589 : vector<20x4xf32>
    %591 = arith.addf %580, %590 : vector<20x4xf32>
    %592 = arith.select %583, %585, %591 : vector<20x4xi1>, vector<20x4xf32>
    %c2_202 = arith.constant 2 : index
    %c0_203 = arith.constant 0 : index
    %c0_204 = arith.constant 0 : index
    %593 = vector.load %arg7[%c2_202, %c0_203, %c0_204] : memref<4x20x4xf32, #tpu.memory_space<vmem>>, vector<1x20x4xf32>
    %594 = vector.shape_cast %593 : vector<1x20x4xf32> to vector<20x4xf32>
    %595 = arith.mulf %592, %594 : vector<20x4xf32>
    %596 = arith.addf %577, %595 : vector<20x4xf32>
    %597 = arith.mulf %351, %596 : vector<20x4xf32>
    %c2_205 = arith.constant 2 : index
    %c0_206 = arith.constant 0 : index
    %c0_207 = arith.constant 0 : index
    %598 = vector.load %arg18[%c2_205, %c0_206, %c0_207] : memref<4x20x4xf32, #tpu.memory_space<vmem>>, vector<1x20x4xf32>
    %599 = vector.shape_cast %598 : vector<1x20x4xf32> to vector<20x4xf32>
    %600 = vector.shape_cast %597 : vector<20x4xf32> to vector<1x20x4xf32>
    tpu.vector_store %arg18[%c2_205, %c0_206, %c0_207], %600 {strides = array<i32>} : memref<4x20x4xf32, #tpu.memory_space<vmem>>, vector<1x20x4xf32>,
    %cst_208 = arith.constant dense<0.000000e+00> : vector<20x128xf32>
    %601 = tpu.matmul %552, %13, %cst_208 {dimension_numbers = #tpu.dot_dimension_numbers<[1], [0], [0], [1], [0, 0, 1, 1], [], []>} : vector<20x32xf32>, vector<32x128xf32>, vector<20x128xf32> -> vector<20x128xf32>
    %602 = arith.addf %375, %601 : vector<20x128xf32>
    %603 = arith.mulf %597, %352 : vector<20x4xf32>
    %cst_209 = arith.constant dense<0.000000e+00> : vector<20x128xf32>
    %604 = tpu.matmul %603, %6, %cst_209 {dimension_numbers = #tpu.dot_dimension_numbers<[1], [0], [0], [1], [0, 0, 1, 1], [], []>} : vector<20x4xf32>, vector<4x128xf32>, vector<20x128xf32> -> vector<20x128xf32>
    %605 = arith.addf %602, %604 : vector<20x128xf32>
    %606 = arith.mulf %522, %352 : vector<20x4xf32>
    %cst_210 = arith.constant dense<0.000000e+00> : vector<20x128xf32>
    %607 = tpu.matmul %606, %8, %cst_210 {dimension_numbers = #tpu.dot_dimension_numbers<[1], [0], [0], [1], [0, 0, 1, 1], [], []>} : vector<20x4xf32>, vector<4x128xf32>, vector<20x128xf32> -> vector<20x128xf32>
    %608 = arith.addf %605, %607 : vector<20x128xf32>
    %609 = arith.mulf %447, %352 : vector<20x4xf32>
    %cst_211 = arith.constant dense<0.000000e+00> : vector<20x128xf32>
    %610 = tpu.matmul %609, %10, %cst_211 {dimension_numbers = #tpu.dot_dimension_numbers<[1], [0], [0], [1], [0, 0, 1, 1], [], []>} : vector<20x4xf32>, vector<4x128xf32>, vector<20x128xf32> -> vector<20x128xf32>
    %611 = arith.addf %608, %610 : vector<20x128xf32>
    %612 = vector.extract_strided_slice %611 {offsets = [0, 0], sizes = [20, 96], strides = [1, 1]} : vector<20x128xf32> to vector<20x96xf32>
    %613 = arith.negf %612 : vector<20x96xf32>
    %614 = math.exp %613 : vector<20x96xf32>
    %cst_212 = arith.constant 1.000000e+00 : f32
    %615 = vector.broadcast %cst_212 : f32 to vector<20x96xf32>
    %616 = arith.addf %615, %614 : vector<20x96xf32>
    %617 = arith.divf %615, %616 : vector<20x96xf32>
    %618 = vector.extract_strided_slice %617 {offsets = [0, 0], sizes = [20, 32], strides = [1, 1]} : vector<20x96xf32> to vector<20x32xf32>
    %619 = vector.extract_strided_slice %617 {offsets = [0, 32], sizes = [20, 32], strides = [1, 1]} : vector<20x96xf32> to vector<20x32xf32>
    %620 = vector.extract_strided_slice %617 {offsets = [0, 64], sizes = [20, 32], strides = [1, 1]} : vector<20x96xf32> to vector<20x32xf32>
    %621 = vector.extract_strided_slice %611 {offsets = [0, 96], sizes = [20, 32], strides = [1, 1]} : vector<20x128xf32> to vector<20x32xf32>
    %622 = math.tanh %621 : vector<20x32xf32>
    %623 = arith.mulf %619, %550 : vector<20x32xf32>
    %624 = arith.mulf %618, %622 : vector<20x32xf32>
    %625 = arith.addf %623, %624 : vector<20x32xf32>
    %626 = math.tanh %625 : vector<20x32xf32>
    %627 = arith.mulf %620, %626 : vector<20x32xf32>
    %cst_213 = arith.constant dense<0.000000e+00> : vector<20x128xf32>
    %628 = tpu.matmul %627, %14, %cst_213 {dimension_numbers = #tpu.dot_dimension_numbers<[1], [0], [0], [1], [0, 0, 1, 1], [], []>} : vector<20x32xf32>, vector<32x128xf32>, vector<20x128xf32> -> vector<20x128xf32>
    %cst_214 = arith.constant dense<0.000000e+00> : vector<20x128xf32>
    %629 = tpu.matmul %573, %15, %cst_214 {dimension_numbers = #tpu.dot_dimension_numbers<[1], [0], [0], [1], [0, 0, 1, 1], [], []>} : vector<20x32xf32>, vector<32x128xf32>, vector<20x128xf32> -> vector<20x128xf32>
    %630 = arith.addf %628, %629 : vector<20x128xf32>
    %631 = vector.broadcast %16 : vector<1x128xf32> to vector<20x128xf32>
    %632 = arith.addf %630, %631 : vector<20x128xf32>
    %633 = vector.extract_strided_slice %632 {offsets = [0, 0], sizes = [20, 96], strides = [1, 1]} : vector<20x128xf32> to vector<20x96xf32>
    %634 = arith.negf %633 : vector<20x96xf32>
    %635 = math.exp %634 : vector<20x96xf32>
    %cst_215 = arith.constant 1.000000e+00 : f32
    %636 = vector.broadcast %cst_215 : f32 to vector<20x96xf32>
    %637 = arith.addf %636, %635 : vector<20x96xf32>
    %638 = arith.divf %636, %637 : vector<20x96xf32>
    %639 = vector.extract_strided_slice %638 {offsets = [0, 0], sizes = [20, 32], strides = [1, 1]} : vector<20x96xf32> to vector<20x32xf32>
    %640 = vector.extract_strided_slice %638 {offsets = [0, 32], sizes = [20, 32], strides = [1, 1]} : vector<20x96xf32> to vector<20x32xf32>
    %641 = vector.extract_strided_slice %638 {offsets = [0, 64], sizes = [20, 32], strides = [1, 1]} : vector<20x96xf32> to vector<20x32xf32>
    %642 = vector.extract_strided_slice %632 {offsets = [0, 96], sizes = [20, 32], strides = [1, 1]} : vector<20x128xf32> to vector<20x32xf32>
    %643 = math.tanh %642 : vector<20x32xf32>
    %644 = arith.mulf %640, %571 : vector<20x32xf32>
    %645 = arith.mulf %639, %643 : vector<20x32xf32>
    %646 = arith.addf %644, %645 : vector<20x32xf32>
    %647 = math.tanh %646 : vector<20x32xf32>
    %648 = arith.mulf %641, %647 : vector<20x32xf32>
    %cst_216 = arith.constant dense<0.000000e+00> : vector<20x8xf32>
    %649 = tpu.matmul %648, %17, %cst_216 {dimension_numbers = #tpu.dot_dimension_numbers<[1], [0], [0], [1], [0, 0, 1, 1], [], []>} : vector<20x32xf32>, vector<32x8xf32>, vector<20x8xf32> -> vector<20x8xf32>
    %650 = vector.broadcast %18 : vector<1x8xf32> to vector<20x8xf32>
    %651 = arith.addf %649, %650 : vector<20x8xf32>
    %652 = vector.extract_strided_slice %651 {offsets = [0, 0], sizes = [20, 4], strides = [1, 1]} : vector<20x8xf32> to vector<20x4xf32>
    %653 = vector.extract_strided_slice %651 {offsets = [0, 4], sizes = [20, 4], strides = [1, 1]} : vector<20x8xf32> to vector<20x4xf32>
    %cst_217 = arith.constant 0.000000e+00 : f32
    %654 = vector.broadcast %cst_217 : f32 to vector<20x4xf32>
    %655 = arith.maximumf %653, %654 : vector<20x4xf32>
    %656 = vector.broadcast %cst_217 : f32 to vector<20x4xf32>
    %657 = arith.subf %653, %656 : vector<20x4xf32>
    %658 = arith.cmpf one, %657, %657 : vector<20x4xf32>
    %659 = vector.broadcast %cst_217 : f32 to vector<20x4xf32>
    %660 = arith.addf %653, %659 : vector<20x4xf32>
    %661 = math.absf %657 : vector<20x4xf32>
    %cst_218 = arith.constant 0.000000e+00 : f32
    %662 = vector.broadcast %cst_218 : f32 to vector<20x4xf32>
    %663 = arith.subf %662, %661 : vector<20x4xf32>
    %664 = math.exp %663 : vector<20x4xf32>
    %665 = math.log1p %664 : vector<20x4xf32>
    %666 = arith.addf %655, %665 : vector<20x4xf32>
    %667 = arith.select %658, %660, %666 : vector<20x4xi1>, vector<20x4xf32>
    %c3_219 = arith.constant 3 : index
    %c0_220 = arith.constant 0 : index
    %c0_221 = arith.constant 0 : index
    %668 = vector.load %arg7[%c3_219, %c0_220, %c0_221] : memref<4x20x4xf32, #tpu.memory_space<vmem>>, vector<1x20x4xf32>
    %669 = vector.shape_cast %668 : vector<1x20x4xf32> to vector<20x4xf32>
    %670 = arith.mulf %667, %669 : vector<20x4xf32>
    %671 = arith.addf %652, %670 : vector<20x4xf32>
    %672 = arith.mulf %351, %671 : vector<20x4xf32>
    %c3_222 = arith.constant 3 : index
    %c0_223 = arith.constant 0 : index
    %c0_224 = arith.constant 0 : index
    %673 = vector.load %arg18[%c3_222, %c0_223, %c0_224] : memref<4x20x4xf32, #tpu.memory_space<vmem>>, vector<1x20x4xf32>
    %674 = vector.shape_cast %673 : vector<1x20x4xf32> to vector<20x4xf32>
    %675 = vector.shape_cast %672 : vector<20x4xf32> to vector<1x20x4xf32>
    tpu.vector_store %arg18[%c3_222, %c0_223, %c0_224], %675 {strides = array<i32>} : memref<4x20x4xf32, #tpu.memory_space<vmem>>, vector<1x20x4xf32>,
    return
  }
  func.func @transform_0(%arg0: i32) -> (i32, i32, i32) {
    %c0_i32 = arith.constant 0 : i32
    %c0_i32_0 = arith.constant 0 : i32
    %c0_i32_1 = arith.constant 0 : i32
    %c0_i32_2 = arith.constant 0 : i32
    return %c0_i32, %c0_i32_0, %c0_i32_1 : i32, i32, i32
  }
  func.func @transform_1(%arg0: i32) -> (i32, i32, i32) {
    %c0_i32 = arith.constant 0 : i32
    %c0_i32_0 = arith.constant 0 : i32
    %c0_i32_1 = arith.constant 0 : i32
    %c0_i32_2 = arith.constant 0 : i32
    return %c0_i32, %c0_i32_0, %c0_i32_1 : i32, i32, i32
  }
  func.func @transform_2(%arg0: i32) -> (i32, i32, i32) {
    %c0_i32 = arith.constant 0 : i32
    %c0_i32_0 = arith.constant 0 : i32
    %c0_i32_1 = arith.constant 0 : i32
    %c0_i32_2 = arith.constant 0 : i32
    return %c0_i32, %c0_i32_0, %c0_i32_1 : i32, i32, i32
  }
  func.func @transform_3(%arg0: i32) -> (i32, i32) {
    %c0_i32 = arith.constant 0 : i32
    %c0_i32_0 = arith.constant 0 : i32
    %c0_i32_1 = arith.constant 0 : i32
    return %c0_i32, %c0_i32_0 : i32, i32
  }
  func.func @transform_4(%arg0: i32) -> (i32, i32) {
    %c0_i32 = arith.constant 0 : i32
    %c0_i32_0 = arith.constant 0 : i32
    %c0_i32_1 = arith.constant 0 : i32
    return %c0_i32, %c0_i32_0 : i32, i32
  }
  func.func @transform_5(%arg0: i32) -> (i32, i32) {
    %c0_i32 = arith.constant 0 : i32
    %c0_i32_0 = arith.constant 0 : i32
    %c0_i32_1 = arith.constant 0 : i32
    return %c0_i32, %c0_i32_0 : i32, i32
  }
  func.func @transform_6(%arg0: i32) -> (i32, i32, i32) {
    %c0_i32 = arith.constant 0 : i32
    %c0_i32_0 = arith.constant 0 : i32
    %c0_i32_1 = arith.constant 0 : i32
    %c0_i32_2 = arith.constant 0 : i32
    return %c0_i32, %c0_i32_0, %c0_i32_1 : i32, i32, i32
  }
  func.func @transform_7(%arg0: i32) -> (i32, i32, i32) {
    %c0_i32 = arith.constant 0 : i32
    %c0_i32_0 = arith.constant 0 : i32
    %c0_i32_1 = arith.constant 0 : i32
    %c0_i32_2 = arith.constant 0 : i32
    return %c0_i32, %c0_i32_0, %c0_i32_1 : i32, i32, i32
  }
  func.func @transform_8(%arg0: i32) -> (i32, i32) {
    %c0_i32 = arith.constant 0 : i32
    %c0_i32_0 = arith.constant 0 : i32
    %c0_i32_1 = arith.constant 0 : i32
    return %c0_i32, %c0_i32_0 : i32, i32
  }
  func.func @transform_9(%arg0: i32) -> (i32, i32) {
    %c0_i32 = arith.constant 0 : i32
    %c0_i32_0 = arith.constant 0 : i32
    %c0_i32_1 = arith.constant 0 : i32
    return %c0_i32, %c0_i32_0 : i32, i32
  }
  func.func @transform_10(%arg0: i32) -> (i32, i32) {
    %c0_i32 = arith.constant 0 : i32
    %c0_i32_0 = arith.constant 0 : i32
    %c0_i32_1 = arith.constant 0 : i32
    return %c0_i32, %c0_i32_0 : i32, i32
  }
  func.func @transform_11(%arg0: i32) -> (i32, i32) {
    %c0_i32 = arith.constant 0 : i32
    %c0_i32_0 = arith.constant 0 : i32
    %c0_i32_1 = arith.constant 0 : i32
    return %c0_i32, %c0_i32_0 : i32, i32
  }
  func.func @transform_12(%arg0: i32) -> (i32, i32) {
    %c0_i32 = arith.constant 0 : i32
    %c0_i32_0 = arith.constant 0 : i32
    %c0_i32_1 = arith.constant 0 : i32
    return %c0_i32, %c0_i32_0 : i32, i32
  }
  func.func @transform_13(%arg0: i32) -> (i32, i32) {
    %c0_i32 = arith.constant 0 : i32
    %c0_i32_0 = arith.constant 0 : i32
    %c0_i32_1 = arith.constant 0 : i32
    return %c0_i32, %c0_i32_0 : i32, i32
  }
  func.func @transform_14(%arg0: i32) -> (i32, i32) {
    %c0_i32 = arith.constant 0 : i32
    %c0_i32_0 = arith.constant 0 : i32
    %c0_i32_1 = arith.constant 0 : i32
    return %c0_i32, %c0_i32_0 : i32, i32
  }
  func.func @transform_15(%arg0: i32) -> (i32, i32) {
    %c0_i32 = arith.constant 0 : i32
    %c0_i32_0 = arith.constant 0 : i32
    %c0_i32_1 = arith.constant 0 : i32
    return %c0_i32, %c0_i32_0 : i32, i32
  }
  func.func @transform_16(%arg0: i32) -> (i32, i32) {
    %c0_i32 = arith.constant 0 : i32
    %c0_i32_0 = arith.constant 0 : i32
    %c0_i32_1 = arith.constant 0 : i32
    return %c0_i32, %c0_i32_0 : i32, i32
  }
  func.func @transform_17(%arg0: i32) -> (i32, i32, i32) {
    %c0_i32 = arith.constant 0 : i32
    %c0_i32_0 = arith.constant 0 : i32
    %c0_i32_1 = arith.constant 0 : i32
    %c0_i32_2 = arith.constant 0 : i32
    return %c0_i32, %c0_i32_0, %c0_i32_1 : i32, i32, i32
  }
}

</mosaic_0001>

<llo_original>
// kernel: forward.1
$region0: #{forward.1}
  #allocation0 [shape = 'u32[]', space=smem, size = 0x4, offset = 0x4, fixed_abs, tag = 'smem constant byte address 0x4 - core index']
  #allocation1 [shape = 'u32[144,128]{1,0:T(1,128)}', space=vmem, size = 0x12000, scoped, tag = 'internal scratch']
  %s0 = inlined_call_operand.vmem [shape: f32[9,2,4], index: 0, kind: input, shape index: {}]
  %s1 = inlined_call_operand.vmem [shape: f32[6,2,2], index: 1, kind: input, shape index: {}]
  %s2 = inlined_call_operand.vmem [shape: f32[4,2,2], index: 2, kind: input, shape index: {}]
  %s3 = inlined_call_operand.vmem [shape: f32[2,8], index: 3, kind: input, shape index: {}]
  %s4 = inlined_call_operand.vmem [shape: f32[2,4], index: 4, kind: input, shape index: {}]
  %s5 = inlined_call_operand.vmem [shape: f32[20,2], index: 5, kind: input, shape index: {}]
  %s6 = inlined_call_operand.vmem [shape: f32[4,20,4], index: 6, kind: input, shape index: {}]
  %s7 = inlined_call_operand.vmem [shape: f32[3,4,128], index: 7, kind: input, shape index: {}]
  %s8 = inlined_call_operand.vmem [shape: f32[8,128], index: 8, kind: input, shape index: {}]
  %s9 = inlined_call_operand.vmem [shape: f32[2,128], index: 9, kind: input, shape index: {}]
  %s10 = inlined_call_operand.vmem [shape: f32[32,128], index: 10, kind: input, shape index: {}]
  %s11 = inlined_call_operand.vmem [shape: f32[1,128], index: 11, kind: input, shape index: {}]
  %s12 = inlined_call_operand.vmem [shape: f32[32,128], index: 12, kind: input, shape index: {}]
  %s13 = inlined_call_operand.vmem [shape: f32[32,128], index: 13, kind: input, shape index: {}]
  %s14 = inlined_call_operand.vmem [shape: f32[1,128], index: 14, kind: input, shape index: {}]
  %s15 = inlined_call_operand.vmem [shape: f32[32,8], index: 15, kind: input, shape index: {}]
  %s16 = inlined_call_operand.vmem [shape: f32[1,8], index: 16, kind: input, shape index: {}]
  %s17 = inlined_call_operand.vmem [shape: f32[4,20,4], index: 17, kind: output, shape index: {}]
  %s18 = sld [smem:[#allocation0]]
  $region78: #{forward.1} parent=0
    _
  %s20 = ssub.s32 1, %s18
  %s21 = scalar_select 0, %s20, %s18
  // Predicated region
  $region2: #{forward.1} parent=0 // pred_check
    _
  $region3: #{forward.1} parent=0 // pred_check_branch
    %23 = sbr.rel (0) target = $region5
  $region4: #{forward.1} parent=0 // pred_region
    _
  $region5: #{forward.1} parent=0 // pred_fallthru
    _
  // Predicated region
  $region6: #{forward.1} parent=0 // pred_check
    _
  $region7: #{forward.1} parent=0 // pred_check_branch
    %25 = sbr.rel (0) target = $region9
  $region8: #{forward.1} parent=0 // pred_region
    _
  $region9: #{forward.1} parent=0 // pred_fallthru
    _
  // Predicated region
  $region10: #{forward.1} parent=0 // pred_check
    _
  $region11: #{forward.1} parent=0 // pred_check_branch
    %27 = sbr.rel (0) target = $region13
  $region12: #{forward.1} parent=0 // pred_region
    _
  $region13: #{forward.1} parent=0 // pred_fallthru
    _
  // Predicated region
  $region14: #{forward.1} parent=0 // pred_check
    _
  $region15: #{forward.1} parent=0 // pred_check_branch
    %29 = sbr.rel (0) target = $region17
  $region16: #{forward.1} parent=0 // pred_region
    _
  $region17: #{forward.1} parent=0 // pred_fallthru
    _
  // Predicated region
  $region18: #{forward.1} parent=0 // pred_check
    _
  $region19: #{forward.1} parent=0 // pred_check_branch
    %31 = sbr.rel (0) target = $region21
  $region20: #{forward.1} parent=0 // pred_region
    _
  $region21: #{forward.1} parent=0 // pred_fallthru
    _
  // Predicated region
  $region22: #{forward.1} parent=0 // pred_check
    _
  $region23: #{forward.1} parent=0 // pred_check_branch
    %33 = sbr.rel (0) target = $region25
  $region24: #{forward.1} parent=0 // pred_region
    _
  $region25: #{forward.1} parent=0 // pred_fallthru
    _
  // Predicated region
  $region26: #{forward.1} parent=0 // pred_check
    _
  $region27: #{forward.1} parent=0 // pred_check_branch
    %35 = sbr.rel (0) target = $region29
  $region28: #{forward.1} parent=0 // pred_region
    _
  $region29: #{forward.1} parent=0 // pred_fallthru
    _
  // Predicated region
  $region30: #{forward.1} parent=0 // pred_check
    _
  $region31: #{forward.1} parent=0 // pred_check_branch
    %37 = sbr.rel (0) target = $region33
  $region32: #{forward.1} parent=0 // pred_region
    _
  $region33: #{forward.1} parent=0 // pred_fallthru
    _
  // Predicated region
  $region34: #{forward.1} parent=0 // pred_check
    _
  $region35: #{forward.1} parent=0 // pred_check_branch
    %39 = sbr.rel (0) target = $region37
  $region36: #{forward.1} parent=0 // pred_region
    _
  $region37: #{forward.1} parent=0 // pred_fallthru
    _
  // Predicated region
  $region38: #{forward.1} parent=0 // pred_check
    _
  $region39: #{forward.1} parent=0 // pred_check_branch
    %41 = sbr.rel (0) target = $region41
  $region40: #{forward.1} parent=0 // pred_region
    _
  $region41: #{forward.1} parent=0 // pred_fallthru
    _
  // Predicated region
  $region42: #{forward.1} parent=0 // pred_check
    _
  $region43: #{forward.1} parent=0 // pred_check_branch
    %43 = sbr.rel (0) target = $region45
  $region44: #{forward.1} parent=0 // pred_region
    _
  $region45: #{forward.1} parent=0 // pred_fallthru
    _
  // Predicated region
  $region46: #{forward.1} parent=0 // pred_check
    _
  $region47: #{forward.1} parent=0 // pred_check_branch
    %45 = sbr.rel (0) target = $region49
  $region48: #{forward.1} parent=0 // pred_region
    _
  $region49: #{forward.1} parent=0 // pred_fallthru
    _
  // Predicated region
  $region50: #{forward.1} parent=0 // pred_check
    _
  $region51: #{forward.1} parent=0 // pred_check_branch
    %47 = sbr.rel (0) target = $region53
  $region52: #{forward.1} parent=0 // pred_region
    _
  $region53: #{forward.1} parent=0 // pred_fallthru
    _
  // Predicated region
  $region54: #{forward.1} parent=0 // pred_check
    _
  $region55: #{forward.1} parent=0 // pred_check_branch
    %49 = sbr.rel (0) target = $region57
  $region56: #{forward.1} parent=0 // pred_region
    _
  $region57: #{forward.1} parent=0 // pred_fallthru
    _
  // Predicated region
  $region58: #{forward.1} parent=0 // pred_check
    _
  $region59: #{forward.1} parent=0 // pred_check_branch
    %51 = sbr.rel (0) target = $region61
  $region60: #{forward.1} parent=0 // pred_region
    _
  $region61: #{forward.1} parent=0 // pred_fallthru
    _
  // Predicated region
  $region62: #{forward.1} parent=0 // pred_check
    _
  $region63: #{forward.1} parent=0 // pred_check_branch
    %53 = sbr.rel (0) target = $region65
  $region64: #{forward.1} parent=0 // pred_region
    _
  $region65: #{forward.1} parent=0 // pred_fallthru
    _
  // Predicated region
  $region66: #{forward.1} parent=0 // pred_check
    _
  $region67: #{forward.1} parent=0 // pred_check_branch
    %55 = sbr.rel (0) target = $region69
  $region68: #{forward.1} parent=0 // pred_region
    _
  $region69: #{forward.1} parent=0 // pred_fallthru
    _
  %v56 = vld [vmem:[%s4] sm:$0x3]
  %v57 = vrcp.pop %v56
  %v58 = vmul.f32 1.0, %v57
  %v59 = vld [vmem:[%s3] sm:$0x3]
  %v60 = vld [vmem:[%s5] sm:$0xff]
  %v61 = vld [vmem:[%s5 + $0x8] sm:$0xff]
  %v62 = vld [vmem:[%s5 + $0x10] sm:$0xf]
  %v63 = vld [vmem:[%s7] sm:$0xf]
  %s64 = scalar_lea.vmem %s7, 4
  %v65 = vld [vmem:[%s64] sm:$0xf]
  %s66 = scalar_lea.vmem %s7, 8
  %v67 = vld [vmem:[%s66] sm:$0xf]
  %v68 = vld [vmem:[%s8] sm:$0xff]
  %v69 = vld [vmem:[%s9] sm:$0x3]
  %v70 = vld [vmem:[%s10] sm:$0xff]
  %v71 = vld [vmem:[%s10 + $0x8] sm:$0xff]
  %v72 = vld [vmem:[%s10 + $0x10] sm:$0xff]
  %v73 = vld [vmem:[%s10 + $0x18] sm:$0xff]
  %v74 = vld [vmem:[%s12] sm:$0xff]
  %v75 = vld [vmem:[%s12 + $0x8] sm:$0xff]
  %v76 = vld [vmem:[%s12 + $0x10] sm:$0xff]
  %v77 = vld [vmem:[%s12 + $0x18] sm:$0xff]
  %v78 = vld [vmem:[%s13] sm:$0xff]
  %v79 = vld [vmem:[%s13 + $0x8] sm:$0xff]
  %v80 = vld [vmem:[%s13 + $0x10] sm:$0xff]
  %v81 = vld [vmem:[%s13 + $0x18] sm:$0xff]
  %v82 = vld [vmem:[%s14] sm:$0x1]
  %v83 = vld [vmem:[%s15] sm:$0xff]
  %v84 = vld [vmem:[%s15 + $0x8] sm:$0xff]
  %v85 = vld [vmem:[%s15 + $0x10] sm:$0xff]
  %v86 = vld [vmem:[%s15 + $0x18] sm:$0xff]
  %v87 = vld [vmem:[%s16] sm:$0x1]
  %v88 = vld [vmem:[%s0] sm:$0x3]
  %s89 = scalar_lea.vmem %s0, 2
  %v90 = vld [vmem:[%s89] sm:$0x3]
  %s91 = scalar_lea.vmem %s0, 4
  %v92 = vld [vmem:[%s91] sm:$0x3]
  %s93 = scalar_lea.vmem %s0, 6
  %v94 = vld [vmem:[%s93] sm:$0x3]
  %s95 = scalar_lea.vmem %s0, 8
  %v96 = vld [vmem:[%s95] sm:$0x3]
  %s97 = scalar_lea.vmem %s0, 10
  %v98 = vld [vmem:[%s97] sm:$0x3]
  %s99 = scalar_lea.vmem %s0, 12
  %v100 = vld [vmem:[%s99] sm:$0x3]
  %s101 = scalar_lea.vmem %s0, 14
  %v102 = vld [vmem:[%s101] sm:$0x3]
  %s103 = scalar_lea.vmem %s0, 16
  %v104 = vld [vmem:[%s103] sm:$0x3]
  %v105 = vmul.f32 %v88, %v58
  %v106 = vmul.f32 %v90, %v58
  %v107 = vmul.f32 %v92, %v58
  %v108 = vmul.f32 %v94, %v58
  %v109 = vmul.f32 %v96, %v58
  %v110 = vmul.f32 %v98, %v58
  %v111 = vmul.f32 %v100, %v58
  %v112 = vmul.f32 %v102, %v58
  %v113 = vld [vmem:[%s11] sm:$0x1]
  %v115 = vlaneseq
  %v116 = vshrl.u32 %v115, 7
  %v117 = vsub.s32 0, %v116
  %v118 = vrot.slane %v113, %v117
  %vm120 = vcmask 64512
  %v122 = vsel %vm120, %v59, 0
  %124 = vmatprep.subr.mxu0 0.0
  %125 = vmatpush1.msra.mxu0 %v68
  %126 = vmatprep.subr.mxu0 0.0
  %127 = vmatpush1.msra.mxu0 0.0
  %128 = vmatprep.subr.mxu0 0.0
  %129 = vmatpush1.msra.mxu0 0.0
  %130 = vmatprep.subr.mxu0 0.0
  %131 = vmatpush1.msra.mxu0 0.0
  %132 = vmatprep.subr.mxu0 0.0
  %133 = vmatpush1.msra.mxu0 0.0
  %134 = vmatprep.subr.mxu0 0.0
  %135 = vmatpush1.msra.mxu0 0.0
  %136 = vmatprep.subr.mxu0 0.0
  %137 = vmatpush1.msra.mxu0 0.0
  %138 = vmatprep.subr.mxu0 0.0
  %139 = vmatpush1.msra.mxu0 0.0
  %140 = vmatprep.subr.mxu0 0.0
  %141 = vmatpush1.msra.mxu0 0.0
  %142 = vmatprep.subr.mxu0 0.0
  %143 = vmatpush1.msra.mxu0 0.0
  %144 = vmatprep.subr.mxu0 0.0
  %145 = vmatpush1.msra.mxu0 0.0
  %146 = vmatprep.subr.mxu0 0.0
  %147 = vmatpush1.msra.mxu0 0.0
  %148 = vmatprep.subr.mxu0 0.0
  %149 = vmatpush1.msra.mxu0 0.0
  %150 = vmatprep.subr.mxu0 0.0
  %151 = vmatpush1.msra.mxu0 0.0
  %152 = vmatprep.subr.mxu0 0.0
  %153 = vmatpush1.msra.mxu0 0.0
  %154 = vmatprep.subr.mxu0 0.0
  %155 = vmatpush1.msra.mxu0 0.0
  %156 = vmatprep.subr.mxu0 0.0
  %157 = vmatpush1.msra.mxu0 0.0
  %158 = vmatprep.subr.mxu0 0.0
  %159 = vmatpush1.msra.mxu0 0.0
  %160 = vmatprep.subr.mxu0 0.0
  %161 = vmatpush1.msra.mxu0 0.0
  %162 = vmatprep.subr.mxu0 0.0
  %163 = vmatpush1.msra.mxu0 0.0
  %164 = vmatprep.subr.mxu0 0.0
  %165 = vmatpush1.msra.mxu0 0.0
  %166 = vmatprep.subr.mxu0 0.0
  %167 = vmatpush1.msra.mxu0 0.0
  %168 = vmatprep.subr.mxu0 0.0
  %169 = vmatpush1.msra.mxu0 0.0
  %170 = vmatprep.subr.mxu0 0.0
  %171 = vmatpush1.msra.mxu0 0.0
  %172 = vmatprep.subr.mxu0 0.0
  %173 = vmatpush1.msra.mxu0 0.0
  %174 = vmatprep.subr.mxu0 0.0
  %175 = vmatpush1.msra.mxu0 0.0
  %176 = vmatprep.subr.mxu0 0.0
  %177 = vmatpush1.msra.mxu0 0.0
  %178 = vmatprep.subr.mxu0 0.0
  %179 = vmatpush1.msra.mxu0 0.0
  %180 = vmatprep.subr.mxu0 0.0
  %181 = vmatpush1.msra.mxu0 0.0
  %182 = vmatprep.subr.mxu0 0.0
  %183 = vmatpush1.msra.mxu0 0.0
  %184 = vmatprep.subr.mxu0 0.0
  %185 = vmatpush1.msra.mxu0 0.0
  %186 = vmatprep.subr.mxu0 0.0
  %187 = vmatpush1.msra.mxu0 0.0
  %188 = vmatprep.mubr.f32.mxu0 0.0
  %189 = vmatmul.mubr.f32.gmra.mrb[0].mxu0 %v122
  %v190 = vpop.f32.mrb[0].mxu0
  %v191 = vadd.f32 %v118, %v190
  %v192 = vpop.f32.mrb[0].mxu0
  %193 = vdwg.mxu0
  %v194 = vld [vmem:[%s1] sm:$0x3]
  %vm195 = vcmask 15360
  %v197 = vsel %vm195, %v194, 0
  %vm199 = vcmask 1041408
  %v201 = vsel %vm199, %v69, 0
  %203 = vmatprep.subr.mxu0 0.0
  %204 = vmatpush1.msra.mxu0 %v201
  %205 = vmatprep.subr.mxu0 0.0
  %206 = vmatpush1.msra.mxu0 0.0
  %207 = vmatprep.subr.mxu0 0.0
  %208 = vmatpush1.msra.mxu0 0.0
  %209 = vmatprep.subr.mxu0 0.0
  %210 = vmatpush1.msra.mxu0 0.0
  %211 = vmatprep.subr.mxu0 0.0
  %212 = vmatpush1.msra.mxu0 0.0
  %213 = vmatprep.subr.mxu0 0.0
  %214 = vmatpush1.msra.mxu0 0.0
  %215 = vmatprep.subr.mxu0 0.0
  %216 = vmatpush1.msra.mxu0 0.0
  %217 = vmatprep.subr.mxu0 0.0
  %218 = vmatpush1.msra.mxu0 0.0
  %219 = vmatprep.subr.mxu0 0.0
  %220 = vmatpush1.msra.mxu0 0.0
  %221 = vmatprep.subr.mxu0 0.0
  %222 = vmatpush1.msra.mxu0 0.0
  %223 = vmatprep.subr.mxu0 0.0
  %224 = vmatpush1.msra.mxu0 0.0
  %225 = vmatprep.subr.mxu0 0.0
  %226 = vmatpush1.msra.mxu0 0.0
  %227 = vmatprep.subr.mxu0 0.0
  %228 = vmatpush1.msra.mxu0 0.0
  %229 = vmatprep.subr.mxu0 0.0
  %230 = vmatpush1.msra.mxu0 0.0
  %231 = vmatprep.subr.mxu0 0.0
  %232 = vmatpush1.msra.mxu0 0.0
  %233 = vmatprep.subr.mxu0 0.0
  %234 = vmatpush1.msra.mxu0 0.0
  %235 = vmatprep.subr.mxu0 0.0
  %236 = vmatpush1.msra.mxu0 0.0
  %237 = vmatprep.subr.mxu0 0.0
  %238 = vmatpush1.msra.mxu0 0.0
  %239 = vmatprep.subr.mxu0 0.0
  %240 = vmatpush1.msra.mxu0 0.0
  %241 = vmatprep.subr.mxu0 0.0
  %242 = vmatpush1.msra.mxu0 0.0
  %243 = vmatprep.subr.mxu0 0.0
  %244 = vmatpush1.msra.mxu0 0.0
  %245 = vmatprep.subr.mxu0 0.0
  %246 = vmatpush1.msra.mxu0 0.0
  %247 = vmatprep.subr.mxu0 0.0
  %248 = vmatpush1.msra.mxu0 0.0
  %249 = vmatprep.subr.mxu0 0.0
  %250 = vmatpush1.msra.mxu0 0.0
  %251 = vmatprep.subr.mxu0 0.0
  %252 = vmatpush1.msra.mxu0 0.0
  %253 = vmatprep.subr.mxu0 0.0
  %254 = vmatpush1.msra.mxu0 0.0
  %255 = vmatprep.subr.mxu0 0.0
  %256 = vmatpush1.msra.mxu0 0.0
  %257 = vmatprep.subr.mxu0 0.0
  %258 = vmatpush1.msra.mxu0 0.0
  %259 = vmatprep.subr.mxu0 0.0
  %260 = vmatpush1.msra.mxu0 0.0
  %261 = vmatprep.subr.mxu0 0.0
  %262 = vmatpush1.msra.mxu0 0.0
  %263 = vmatprep.subr.mxu0 0.0
  %264 = vmatpush1.msra.mxu0 0.0
  %265 = vmatprep.subr.mxu0 0.0
  %266 = vmatpush1.msra.mxu0 0.0
  %267 = vmatprep.mubr.f32.mxu0 0.0
  %268 = vmatmul.mubr.f32.gmra.mrb[0].mxu0 %v197
  %v269 = vpop.f32.mrb[0].mxu0
  %v270 = vadd.f32 %v191, %v269
  %v271 = vpop.f32.mrb[0].mxu0
  %272 = vdwg.mxu0
  %vm273 = vcmask 31744
  %v275 = vsel %vm273, %v107, 0
  %vm277 = vcmask 1043456
  %v279 = vsel %vm277, %v63, 0
  %281 = vmatprep.subr.mxu0 0.0
  %282 = vmatpush1.msra.mxu0 %v279
  %283 = vmatprep.subr.mxu0 0.0
  %284 = vmatpush1.msra.mxu0 0.0
  %285 = vmatprep.subr.mxu0 0.0
  %286 = vmatpush1.msra.mxu0 0.0
  %287 = vmatprep.subr.mxu0 0.0
  %288 = vmatpush1.msra.mxu0 0.0
  %289 = vmatprep.subr.mxu0 0.0
  %290 = vmatpush1.msra.mxu0 0.0
  %291 = vmatprep.subr.mxu0 0.0
  %292 = vmatpush1.msra.mxu0 0.0
  %293 = vmatprep.subr.mxu0 0.0
  %294 = vmatpush1.msra.mxu0 0.0
  %295 = vmatprep.subr.mxu0 0.0
  %296 = vmatpush1.msra.mxu0 0.0
  %297 = vmatprep.subr.mxu0 0.0
  %298 = vmatpush1.msra.mxu0 0.0
  %299 = vmatprep.subr.mxu0 0.0
  %300 = vmatpush1.msra.mxu0 0.0
  %301 = vmatprep.subr.mxu0 0.0
  %302 = vmatpush1.msra.mxu0 0.0
  %303 = vmatprep.subr.mxu0 0.0
  %304 = vmatpush1.msra.mxu0 0.0
  %305 = vmatprep.subr.mxu0 0.0
  %306 = vmatpush1.msra.mxu0 0.0
  %307 = vmatprep.subr.mxu0 0.0
  %308 = vmatpush1.msra.mxu0 0.0
  %309 = vmatprep.subr.mxu0 0.0
  %310 = vmatpush1.msra.mxu0 0.0
  %311 = vmatprep.subr.mxu0 0.0
  %312 = vmatpush1.msra.mxu0 0.0
  %313 = vmatprep.subr.mxu0 0.0
  %314 = vmatpush1.msra.mxu0 0.0
  %315 = vmatprep.subr.mxu0 0.0
  %316 = vmatpush1.msra.mxu0 0.0
  %317 = vmatprep.subr.mxu0 0.0
  %318 = vmatpush1.msra.mxu0 0.0
  %319 = vmatprep.subr.mxu0 0.0
  %320 = vmatpush1.msra.mxu0 0.0
  %321 = vmatprep.subr.mxu0 0.0
  %322 = vmatpush1.msra.mxu0 0.0
  %323 = vmatprep.subr.mxu0 0.0
  %324 = vmatpush1.msra.mxu0 0.0
  %325 = vmatprep.subr.mxu0 0.0
  %326 = vmatpush1.msra.mxu0 0.0
  %327 = vmatprep.subr.mxu0 0.0
  %328 = vmatpush1.msra.mxu0 0.0
  %329 = vmatprep.subr.mxu0 0.0
  %330 = vmatpush1.msra.mxu0 0.0
  %331 = vmatprep.subr.mxu0 0.0
  %332 = vmatpush1.msra.mxu0 0.0
  %333 = vmatprep.subr.mxu0 0.0
  %334 = vmatpush1.msra.mxu0 0.0
  %335 = vmatprep.subr.mxu0 0.0
  %336 = vmatpush1.msra.mxu0 0.0
  %337 = vmatprep.subr.mxu0 0.0
  %338 = vmatpush1.msra.mxu0 0.0
  %339 = vmatprep.subr.mxu0 0.0
  %340 = vmatpush1.msra.mxu0 0.0
  %341 = vmatprep.subr.mxu0 0.0
  %342 = vmatpush1.msra.mxu0 0.0
  %343 = vmatprep.subr.mxu0 0.0
  %344 = vmatpush1.msra.mxu0 0.0
  %345 = vmatprep.mubr.f32.mxu0 0.0
  %346 = vmatmul.mubr.f32.gmra.mrb[0].mxu0 %v275
  %v347 = vpop.f32.mrb[0].mxu0
  %v348 = vadd.f32 0.0, %v347
  %v349 = vpop.f32.mrb[0].mxu0
  %350 = vdwg.mxu0
  %v351 = vadd.f32 %v270, %v348
  %v353 = vsel %vm273, %v106, 0
  %v356 = vsel %vm277, %v65, 0
  %358 = vmatprep.subr.mxu0 0.0
  %359 = vmatpush1.msra.mxu0 %v356
  %360 = vmatprep.subr.mxu0 0.0
  %361 = vmatpush1.msra.mxu0 0.0
  %362 = vmatprep.subr.mxu0 0.0
  %363 = vmatpush1.msra.mxu0 0.0
  %364 = vmatprep.subr.mxu0 0.0
  %365 = vmatpush1.msra.mxu0 0.0
  %366 = vmatprep.subr.mxu0 0.0
  %367 = vmatpush1.msra.mxu0 0.0
  %368 = vmatprep.subr.mxu0 0.0
  %369 = vmatpush1.msra.mxu0 0.0
  %370 = vmatprep.subr.mxu0 0.0
  %371 = vmatpush1.msra.mxu0 0.0
  %372 = vmatprep.subr.mxu0 0.0
  %373 = vmatpush1.msra.mxu0 0.0
  %374 = vmatprep.subr.mxu0 0.0
  %375 = vmatpush1.msra.mxu0 0.0
  %376 = vmatprep.subr.mxu0 0.0
  %377 = vmatpush1.msra.mxu0 0.0
  %378 = vmatprep.subr.mxu0 0.0
  %379 = vmatpush1.msra.mxu0 0.0
  %380 = vmatprep.subr.mxu0 0.0
  %381 = vmatpush1.msra.mxu0 0.0
  %382 = vmatprep.subr.mxu0 0.0
  %383 = vmatpush1.msra.mxu0 0.0
  %384 = vmatprep.subr.mxu0 0.0
  %385 = vmatpush1.msra.mxu0 0.0
  %386 = vmatprep.subr.mxu0 0.0
  %387 = vmatpush1.msra.mxu0 0.0
  %388 = vmatprep.subr.mxu0 0.0
  %389 = vmatpush1.msra.mxu0 0.0
  %390 = vmatprep.subr.mxu0 0.0
  %391 = vmatpush1.msra.mxu0 0.0
  %392 = vmatprep.subr.mxu0 0.0
  %393 = vmatpush1.msra.mxu0 0.0
  %394 = vmatprep.subr.mxu0 0.0
  %395 = vmatpush1.msra.mxu0 0.0
  %396 = vmatprep.subr.mxu0 0.0
  %397 = vmatpush1.msra.mxu0 0.0
  %398 = vmatprep.subr.mxu0 0.0
  %399 = vmatpush1.msra.mxu0 0.0
  %400 = vmatprep.subr.mxu0 0.0
  %401 = vmatpush1.msra.mxu0 0.0
  %402 = vmatprep.subr.mxu0 0.0
  %403 = vmatpush1.msra.mxu0 0.0
  %404 = vmatprep.subr.mxu0 0.0
  %405 = vmatpush1.msra.mxu0 0.0
  %406 = vmatprep.subr.mxu0 0.0
  %407 = vmatpush1.msra.mxu0 0.0
  %408 = vmatprep.subr.mxu0 0.0
  %409 = vmatpush1.msra.mxu0 0.0
  %410 = vmatprep.subr.mxu0 0.0
  %411 = vmatpush1.msra.mxu0 0.0
  %412 = vmatprep.subr.mxu0 0.0
  %413 = vmatpush1.msra.mxu0 0.0
  %414 = vmatprep.subr.mxu0 0.0
  %415 = vmatpush1.msra.mxu0 0.0
  %416 = vmatprep.subr.mxu0 0.0
  %417 = vmatpush1.msra.mxu0 0.0
  %418 = vmatprep.subr.mxu0 0.0
  %419 = vmatpush1.msra.mxu0 0.0
  %420 = vmatprep.subr.mxu0 0.0
  %421 = vmatpush1.msra.mxu0 0.0
  %422 = vmatprep.mubr.f32.mxu0 0.0
  %423 = vmatmul.mubr.f32.gmra.mrb[0].mxu0 %v353
  %v424 = vpop.f32.mrb[0].mxu0
  %v425 = vadd.f32 0.0, %v424
  %v426 = vpop.f32.mrb[0].mxu0
  %427 = vdwg.mxu0
  %v428 = vadd.f32 %v351, %v425
  %v430 = vsel %vm273, %v105, 0
  %v433 = vsel %vm277, %v67, 0
  %435 = vmatprep.subr.mxu0 0.0
  %436 = vmatpush1.msra.mxu0 %v433
  %437 = vmatprep.subr.mxu0 0.0
  %438 = vmatpush1.msra.mxu0 0.0
  %439 = vmatprep.subr.mxu0 0.0
  %440 = vmatpush1.msra.mxu0 0.0
  %441 = vmatprep.subr.mxu0 0.0
  %442 = vmatpush1.msra.mxu0 0.0
  %443 = vmatprep.subr.mxu0 0.0
  %444 = vmatpush1.msra.mxu0 0.0
  %445 = vmatprep.subr.mxu0 0.0
  %446 = vmatpush1.msra.mxu0 0.0
  %447 = vmatprep.subr.mxu0 0.0
  %448 = vmatpush1.msra.mxu0 0.0
  %449 = vmatprep.subr.mxu0 0.0
  %450 = vmatpush1.msra.mxu0 0.0
  %451 = vmatprep.subr.mxu0 0.0
  %452 = vmatpush1.msra.mxu0 0.0
  %453 = vmatprep.subr.mxu0 0.0
  %454 = vmatpush1.msra.mxu0 0.0
  %455 = vmatprep.subr.mxu0 0.0
  %456 = vmatpush1.msra.mxu0 0.0
  %457 = vmatprep.subr.mxu0 0.0
  %458 = vmatpush1.msra.mxu0 0.0
  %459 = vmatprep.subr.mxu0 0.0
  %460 = vmatpush1.msra.mxu0 0.0
  %461 = vmatprep.subr.mxu0 0.0
  %462 = vmatpush1.msra.mxu0 0.0
  %463 = vmatprep.subr.mxu0 0.0
  %464 = vmatpush1.msra.mxu0 0.0
  %465 = vmatprep.subr.mxu0 0.0
  %466 = vmatpush1.msra.mxu0 0.0
  %467 = vmatprep.subr.mxu0 0.0
  %468 = vmatpush1.msra.mxu0 0.0
  %469 = vmatprep.subr.mxu0 0.0
  %470 = vmatpush1.msra.mxu0 0.0
  %471 = vmatprep.subr.mxu0 0.0
  %472 = vmatpush1.msra.mxu0 0.0
  %473 = vmatprep.subr.mxu0 0.0
  %474 = vmatpush1.msra.mxu0 0.0
  %475 = vmatprep.subr.mxu0 0.0
  %476 = vmatpush1.msra.mxu0 0.0
  %477 = vmatprep.subr.mxu0 0.0
  %478 = vmatpush1.msra.mxu0 0.0
  %479 = vmatprep.subr.mxu0 0.0
  %480 = vmatpush1.msra.mxu0 0.0
  %481 = vmatprep.subr.mxu0 0.0
  %482 = vmatpush1.msra.mxu0 0.0
  %483 = vmatprep.subr.mxu0 0.0
  %484 = vmatpush1.msra.mxu0 0.0
  %485 = vmatprep.subr.mxu0 0.0
  %486 = vmatpush1.msra.mxu0 0.0
  %487 = vmatprep.subr.mxu0 0.0
  %488 = vmatpush1.msra.mxu0 0.0
  %489 = vmatprep.subr.mxu0 0.0
  %490 = vmatpush1.msra.mxu0 0.0
  %491 = vmatprep.subr.mxu0 0.0
  %492 = vmatpush1.msra.mxu0 0.0
  %493 = vmatprep.subr.mxu0 0.0
  %494 = vmatpush1.msra.mxu0 0.0
  %495 = vmatprep.subr.mxu0 0.0
  %496 = vmatpush1.msra.mxu0 0.0
  %497 = vmatprep.subr.mxu0 0.0
  %498 = vmatpush1.msra.mxu0 0.0
  %499 = vmatprep.mubr.f32.mxu0 0.0
  %500 = vmatmul.mubr.f32.gmra.mrb[0].mxu0 %v430
  %v501 = vpop.f32.mrb[0].mxu0
  %v502 = vadd.f32 0.0, %v501
  %v503 = vpop.f32.mrb[0].mxu0
  %504 = vdwg.mxu0
  %v505 = vadd.f32 %v428, %v502
  %s506 = scalar_lea.vmem %s1, 2
  %v507 = vld [vmem:[%s506] sm:$0x3]
  %v509 = vsel %vm195, %v507, 0
  %511 = vmatprep.subr.mxu0 0.0
  %512 = vmatpush1.msra.mxu0 %v201
  %513 = vmatprep.subr.mxu0 0.0
  %514 = vmatpush1.msra.mxu0 0.0
  %515 = vmatprep.subr.mxu0 0.0
  %516 = vmatpush1.msra.mxu0 0.0
  %517 = vmatprep.subr.mxu0 0.0
  %518 = vmatpush1.msra.mxu0 0.0
  %519 = vmatprep.subr.mxu0 0.0
  %520 = vmatpush1.msra.mxu0 0.0
  %521 = vmatprep.subr.mxu0 0.0
  %522 = vmatpush1.msra.mxu0 0.0
  %523 = vmatprep.subr.mxu0 0.0
  %524 = vmatpush1.msra.mxu0 0.0
  %525 = vmatprep.subr.mxu0 0.0
  %526 = vmatpush1.msra.mxu0 0.0
  %527 = vmatprep.subr.mxu0 0.0
  %528 = vmatpush1.msra.mxu0 0.0
  %529 = vmatprep.subr.mxu0 0.0
  %530 = vmatpush1.msra.mxu0 0.0
  %531 = vmatprep.subr.mxu0 0.0
  %532 = vmatpush1.msra.mxu0 0.0
  %533 = vmatprep.subr.mxu0 0.0
  %534 = vmatpush1.msra.mxu0 0.0
  %535 = vmatprep.subr.mxu0 0.0
  %536 = vmatpush1.msra.mxu0 0.0
  %537 = vmatprep.subr.mxu0 0.0
  %538 = vmatpush1.msra.mxu0 0.0
  %539 = vmatprep.subr.mxu0 0.0
  %540 = vmatpush1.msra.mxu0 0.0
  %541 = vmatprep.subr.mxu0 0.0
  %542 = vmatpush1.msra.mxu0 0.0
  %543 = vmatprep.subr.mxu0 0.0
  %544 = vmatpush1.msra.mxu0 0.0
  %545 = vmatprep.subr.mxu0 0.0
  %546 = vmatpush1.msra.mxu0 0.0
  %547 = vmatprep.subr.mxu0 0.0
  %548 = vmatpush1.msra.mxu0 0.0
  %549 = vmatprep.subr.mxu0 0.0
  %550 = vmatpush1.msra.mxu0 0.0
  %551 = vmatprep.subr.mxu0 0.0
  %552 = vmatpush1.msra.mxu0 0.0
  %553 = vmatprep.subr.mxu0 0.0
  %554 = vmatpush1.msra.mxu0 0.0
  %555 = vmatprep.subr.mxu0 0.0
  %556 = vmatpush1.msra.mxu0 0.0
  %557 = vmatprep.subr.mxu0 0.0
  %558 = vmatpush1.msra.mxu0 0.0
  %559 = vmatprep.subr.mxu0 0.0
  %560 = vmatpush1.msra.mxu0 0.0
  %561 = vmatprep.subr.mxu0 0.0
  %562 = vmatpush1.msra.mxu0 0.0
  %563 = vmatprep.subr.mxu0 0.0
  %564 = vmatpush1.msra.mxu0 0.0
  %565 = vmatprep.subr.mxu0 0.0
  %566 = vmatpush1.msra.mxu0 0.0
  %567 = vmatprep.subr.mxu0 0.0
  %568 = vmatpush1.msra.mxu0 0.0
  %569 = vmatprep.subr.mxu0 0.0
  %570 = vmatpush1.msra.mxu0 0.0
  %571 = vmatprep.subr.mxu0 0.0
  %572 = vmatpush1.msra.mxu0 0.0
  %573 = vmatprep.subr.mxu0 0.0
  %574 = vmatpush1.msra.mxu0 0.0
  %575 = vmatprep.mubr.f32.mxu0 0.0
  %576 = vmatmul.mubr.f32.gmra.mrb[0].mxu0 %v509
  %v577 = vpop.f32.mrb[0].mxu0
  %v578 = vadd.f32 %v191, %v577
  %v579 = vpop.f32.mrb[0].mxu0
  %580 = vdwg.mxu0
  %v582 = vsel %vm273, %v108, 0
  %584 = vmatprep.subr.mxu0 0.0
  %585 = vmatpush1.msra.mxu0 %v279
  %586 = vmatprep.subr.mxu0 0.0
  %587 = vmatpush1.msra.mxu0 0.0
  %588 = vmatprep.subr.mxu0 0.0
  %589 = vmatpush1.msra.mxu0 0.0
  %590 = vmatprep.subr.mxu0 0.0
  %591 = vmatpush1.msra.mxu0 0.0
  %592 = vmatprep.subr.mxu0 0.0
  %593 = vmatpush1.msra.mxu0 0.0
  %594 = vmatprep.subr.mxu0 0.0
  %595 = vmatpush1.msra.mxu0 0.0
  %596 = vmatprep.subr.mxu0 0.0
  %597 = vmatpush1.msra.mxu0 0.0
  %598 = vmatprep.subr.mxu0 0.0
  %599 = vmatpush1.msra.mxu0 0.0
  %600 = vmatprep.subr.mxu0 0.0
  %601 = vmatpush1.msra.mxu0 0.0
  %602 = vmatprep.subr.mxu0 0.0
  %603 = vmatpush1.msra.mxu0 0.0
  %604 = vmatprep.subr.mxu0 0.0
  %605 = vmatpush1.msra.mxu0 0.0
  %606 = vmatprep.subr.mxu0 0.0
  %607 = vmatpush1.msra.mxu0 0.0
  %608 = vmatprep.subr.mxu0 0.0
  %609 = vmatpush1.msra.mxu0 0.0
  %610 = vmatprep.subr.mxu0 0.0
  %611 = vmatpush1.msra.mxu0 0.0
  %612 = vmatprep.subr.mxu0 0.0
  %613 = vmatpush1.msra.mxu0 0.0
  %614 = vmatprep.subr.mxu0 0.0
  %615 = vmatpush1.msra.mxu0 0.0
  %616 = vmatprep.subr.mxu0 0.0
  %617 = vmatpush1.msra.mxu0 0.0
  %618 = vmatprep.subr.mxu0 0.0
  %619 = vmatpush1.msra.mxu0 0.0
  %620 = vmatprep.subr.mxu0 0.0
  %621 = vmatpush1.msra.mxu0 0.0
  %622 = vmatprep.subr.mxu0 0.0
  %623 = vmatpush1.msra.mxu0 0.0
  %624 = vmatprep.subr.mxu0 0.0
  %625 = vmatpush1.msra.mxu0 0.0
  %626 = vmatprep.subr.mxu0 0.0
  %627 = vmatpush1.msra.mxu0 0.0
  %628 = vmatprep.subr.mxu0 0.0
  %629 = vmatpush1.msra.mxu0 0.0
  %630 = vmatprep.subr.mxu0 0.0
  %631 = vmatpush1.msra.mxu0 0.0
  %632 = vmatprep.subr.mxu0 0.0
  %633 = vmatpush1.msra.mxu0 0.0
  %634 = vmatprep.subr.mxu0 0.0
  %635 = vmatpush1.msra.mxu0 0.0
  %636 = vmatprep.subr.mxu0 0.0
  %637 = vmatpush1.msra.mxu0 0.0
  %638 = vmatprep.subr.mxu0 0.0
  %639 = vmatpush1.msra.mxu0 0.0
  %640 = vmatprep.subr.mxu0 0.0
  %641 = vmatpush1.msra.mxu0 0.0
  %642 = vmatprep.subr.mxu0 0.0
  %643 = vmatpush1.msra.mxu0 0.0
  %644 = vmatprep.subr.mxu0 0.0
  %645 = vmatpush1.msra.mxu0 0.0
  %646 = vmatprep.subr.mxu0 0.0
  %647 = vmatpush1.msra.mxu0 0.0
  %648 = vmatprep.mubr.f32.mxu0 0.0
  %649 = vmatmul.mubr.f32.gmra.mrb[0].mxu0 %v582
  %v650 = vpop.f32.mrb[0].mxu0
  %v651 = vadd.f32 0.0, %v650
  %v652 = vpop.f32.mrb[0].mxu0
  %653 = vdwg.mxu0
  %v654 = vadd.f32 %v578, %v651
  %655 = vmatprep.subr.mxu0 0.0
  %656 = vmatpush1.msra.mxu0 %v356
  %657 = vmatprep.subr.mxu0 0.0
  %658 = vmatpush1.msra.mxu0 0.0
  %659 = vmatprep.subr.mxu0 0.0
  %660 = vmatpush1.msra.mxu0 0.0
  %661 = vmatprep.subr.mxu0 0.0
  %662 = vmatpush1.msra.mxu0 0.0
  %663 = vmatprep.subr.mxu0 0.0
  %664 = vmatpush1.msra.mxu0 0.0
  %665 = vmatprep.subr.mxu0 0.0
  %666 = vmatpush1.msra.mxu0 0.0
  %667 = vmatprep.subr.mxu0 0.0
  %668 = vmatpush1.msra.mxu0 0.0
  %669 = vmatprep.subr.mxu0 0.0
  %670 = vmatpush1.msra.mxu0 0.0
  %671 = vmatprep.subr.mxu0 0.0
  %672 = vmatpush1.msra.mxu0 0.0
  %673 = vmatprep.subr.mxu0 0.0
  %674 = vmatpush1.msra.mxu0 0.0
  %675 = vmatprep.subr.mxu0 0.0
  %676 = vmatpush1.msra.mxu0 0.0
  %677 = vmatprep.subr.mxu0 0.0
  %678 = vmatpush1.msra.mxu0 0.0
  %679 = vmatprep.subr.mxu0 0.0
  %680 = vmatpush1.msra.mxu0 0.0
  %681 = vmatprep.subr.mxu0 0.0
  %682 = vmatpush1.msra.mxu0 0.0
  %683 = vmatprep.subr.mxu0 0.0
  %684 = vmatpush1.msra.mxu0 0.0
  %685 = vmatprep.subr.mxu0 0.0
  %686 = vmatpush1.msra.mxu0 0.0
  %687 = vmatprep.subr.mxu0 0.0
  %688 = vmatpush1.msra.mxu0 0.0
  %689 = vmatprep.subr.mxu0 0.0
  %690 = vmatpush1.msra.mxu0 0.0
  %691 = vmatprep.subr.mxu0 0.0
  %692 = vmatpush1.msra.mxu0 0.0
  %693 = vmatprep.subr.mxu0 0.0
  %694 = vmatpush1.msra.mxu0 0.0
  %695 = vmatprep.subr.mxu0 0.0
  %696 = vmatpush1.msra.mxu0 0.0
  %697 = vmatprep.subr.mxu0 0.0
  %698 = vmatpush1.msra.mxu0 0.0
  %699 = vmatprep.subr.mxu0 0.0
  %700 = vmatpush1.msra.mxu0 0.0
  %701 = vmatprep.subr.mxu0 0.0
  %702 = vmatpush1.msra.mxu0 0.0
  %703 = vmatprep.subr.mxu0 0.0
  %704 = vmatpush1.msra.mxu0 0.0
  %705 = vmatprep.subr.mxu0 0.0
  %706 = vmatpush1.msra.mxu0 0.0
  %707 = vmatprep.subr.mxu0 0.0
  %708 = vmatpush1.msra.mxu0 0.0
  %709 = vmatprep.subr.mxu0 0.0
  %710 = vmatpush1.msra.mxu0 0.0
  %711 = vmatprep.subr.mxu0 0.0
  %712 = vmatpush1.msra.mxu0 0.0
  %713 = vmatprep.subr.mxu0 0.0
  %714 = vmatpush1.msra.mxu0 0.0
  %715 = vmatprep.subr.mxu0 0.0
  %716 = vmatpush1.msra.mxu0 0.0
  %717 = vmatprep.subr.mxu0 0.0
  %718 = vmatpush1.msra.mxu0 0.0
  %719 = vmatprep.mubr.f32.mxu0 0.0
  %720 = vmatmul.mubr.f32.gmra.mrb[0].mxu0 %v275
  %v721 = vpop.f32.mrb[0].mxu0
  %v722 = vadd.f32 0.0, %v721
  %v723 = vpop.f32.mrb[0].mxu0
  %724 = vdwg.mxu0
  %v725 = vadd.f32 %v654, %v722
  %726 = vmatprep.subr.mxu0 0.0
  %727 = vmatpush1.msra.mxu0 %v433
  %728 = vmatprep.subr.mxu0 0.0
  %729 = vmatpush1.msra.mxu0 0.0
  %730 = vmatprep.subr.mxu0 0.0
  %731 = vmatpush1.msra.mxu0 0.0
  %732 = vmatprep.subr.mxu0 0.0
  %733 = vmatpush1.msra.mxu0 0.0
  %734 = vmatprep.subr.mxu0 0.0
  %735 = vmatpush1.msra.mxu0 0.0
  %736 = vmatprep.subr.mxu0 0.0
  %737 = vmatpush1.msra.mxu0 0.0
  %738 = vmatprep.subr.mxu0 0.0
  %739 = vmatpush1.msra.mxu0 0.0
  %740 = vmatprep.subr.mxu0 0.0
  %741 = vmatpush1.msra.mxu0 0.0
  %742 = vmatprep.subr.mxu0 0.0
  %743 = vmatpush1.msra.mxu0 0.0
  %744 = vmatprep.subr.mxu0 0.0
  %745 = vmatpush1.msra.mxu0 0.0
  %746 = vmatprep.subr.mxu0 0.0
  %747 = vmatpush1.msra.mxu0 0.0
  %748 = vmatprep.subr.mxu0 0.0
  %749 = vmatpush1.msra.mxu0 0.0
  %750 = vmatprep.subr.mxu0 0.0
  %751 = vmatpush1.msra.mxu0 0.0
  %752 = vmatprep.subr.mxu0 0.0
  %753 = vmatpush1.msra.mxu0 0.0
  %754 = vmatprep.subr.mxu0 0.0
  %755 = vmatpush1.msra.mxu0 0.0
  %756 = vmatprep.subr.mxu0 0.0
  %757 = vmatpush1.msra.mxu0 0.0
  %758 = vmatprep.subr.mxu0 0.0
  %759 = vmatpush1.msra.mxu0 0.0
  %760 = vmatprep.subr.mxu0 0.0
  %761 = vmatpush1.msra.mxu0 0.0
  %762 = vmatprep.subr.mxu0 0.0
  %763 = vmatpush1.msra.mxu0 0.0
  %764 = vmatprep.subr.mxu0 0.0
  %765 = vmatpush1.msra.mxu0 0.0
  %766 = vmatprep.subr.mxu0 0.0
  %767 = vmatpush1.msra.mxu0 0.0
  %768 = vmatprep.subr.mxu0 0.0
  %769 = vmatpush1.msra.mxu0 0.0
  %770 = vmatprep.subr.mxu0 0.0
  %771 = vmatpush1.msra.mxu0 0.0
  %772 = vmatprep.subr.mxu0 0.0
  %773 = vmatpush1.msra.mxu0 0.0
  %774 = vmatprep.subr.mxu0 0.0
  %775 = vmatpush1.msra.mxu0 0.0
  %776 = vmatprep.subr.mxu0 0.0
  %777 = vmatpush1.msra.mxu0 0.0
  %778 = vmatprep.subr.mxu0 0.0
  %779 = vmatpush1.msra.mxu0 0.0
  %780 = vmatprep.subr.mxu0 0.0
  %781 = vmatpush1.msra.mxu0 0.0
  %782 = vmatprep.subr.mxu0 0.0
  %783 = vmatpush1.msra.mxu0 0.0
  %784 = vmatprep.subr.mxu0 0.0
  %785 = vmatpush1.msra.mxu0 0.0
  %786 = vmatprep.subr.mxu0 0.0
  %787 = vmatpush1.msra.mxu0 0.0
  %788 = vmatprep.subr.mxu0 0.0
  %789 = vmatpush1.msra.mxu0 0.0
  %790 = vmatprep.mubr.f32.mxu0 0.0
  %791 = vmatmul.mubr.f32.gmra.mrb[0].mxu0 %v353
  %v792 = vpop.f32.mrb[0].mxu0
  %v793 = vadd.f32 0.0, %v792
  %v794 = vpop.f32.mrb[0].mxu0
  %795 = vdwg.mxu0
  %v796 = vadd.f32 %v725, %v793
  %s797 = scalar_lea.vmem %s1, 4
  %v798 = vld [vmem:[%s797] sm:$0x3]
  %v800 = vsel %vm195, %v798, 0
  %802 = vmatprep.subr.mxu0 0.0
  %803 = vmatpush1.msra.mxu0 %v201
  %804 = vmatprep.subr.mxu0 0.0
  %805 = vmatpush1.msra.mxu0 0.0
  %806 = vmatprep.subr.mxu0 0.0
  %807 = vmatpush1.msra.mxu0 0.0
  %808 = vmatprep.subr.mxu0 0.0
  %809 = vmatpush1.msra.mxu0 0.0
  %810 = vmatprep.subr.mxu0 0.0
  %811 = vmatpush1.msra.mxu0 0.0
  %812 = vmatprep.subr.mxu0 0.0
  %813 = vmatpush1.msra.mxu0 0.0
  %814 = vmatprep.subr.mxu0 0.0
  %815 = vmatpush1.msra.mxu0 0.0
  %816 = vmatprep.subr.mxu0 0.0
  %817 = vmatpush1.msra.mxu0 0.0
  %818 = vmatprep.subr.mxu0 0.0
  %819 = vmatpush1.msra.mxu0 0.0
  %820 = vmatprep.subr.mxu0 0.0
  %821 = vmatpush1.msra.mxu0 0.0
  %822 = vmatprep.subr.mxu0 0.0
  %823 = vmatpush1.msra.mxu0 0.0
  %824 = vmatprep.subr.mxu0 0.0
  %825 = vmatpush1.msra.mxu0 0.0
  %826 = vmatprep.subr.mxu0 0.0
  %827 = vmatpush1.msra.mxu0 0.0
  %828 = vmatprep.subr.mxu0 0.0
  %829 = vmatpush1.msra.mxu0 0.0
  %830 = vmatprep.subr.mxu0 0.0
  %831 = vmatpush1.msra.mxu0 0.0
  %832 = vmatprep.subr.mxu0 0.0
  %833 = vmatpush1.msra.mxu0 0.0
  %834 = vmatprep.subr.mxu0 0.0
  %835 = vmatpush1.msra.mxu0 0.0
  %836 = vmatprep.subr.mxu0 0.0
  %837 = vmatpush1.msra.mxu0 0.0
  %838 = vmatprep.subr.mxu0 0.0
  %839 = vmatpush1.msra.mxu0 0.0
  %840 = vmatprep.subr.mxu0 0.0
  %841 = vmatpush1.msra.mxu0 0.0
  %842 = vmatprep.subr.mxu0 0.0
  %843 = vmatpush1.msra.mxu0 0.0
  %844 = vmatprep.subr.mxu0 0.0
  %845 = vmatpush1.msra.mxu0 0.0
  %846 = vmatprep.subr.mxu0 0.0
  %847 = vmatpush1.msra.mxu0 0.0
  %848 = vmatprep.subr.mxu0 0.0
  %849 = vmatpush1.msra.mxu0 0.0
  %850 = vmatprep.subr.mxu0 0.0
  %851 = vmatpush1.msra.mxu0 0.0
  %852 = vmatprep.subr.mxu0 0.0
  %853 = vmatpush1.msra.mxu0 0.0
  %854 = vmatprep.subr.mxu0 0.0
  %855 = vmatpush1.msra.mxu0 0.0
  %856 = vmatprep.subr.mxu0 0.0
  %857 = vmatpush1.msra.mxu0 0.0
  %858 = vmatprep.subr.mxu0 0.0
  %859 = vmatpush1.msra.mxu0 0.0
  %860 = vmatprep.subr.mxu0 0.0
  %861 = vmatpush1.msra.mxu0 0.0
  %862 = vmatprep.subr.mxu0 0.0
  %863 = vmatpush1.msra.mxu0 0.0
  %864 = vmatprep.subr.mxu0 0.0
  %865 = vmatpush1.msra.mxu0 0.0
  %866 = vmatprep.mubr.f32.mxu0 0.0
  %867 = vmatmul.mubr.f32.gmra.mrb[0].mxu0 %v800
  %v868 = vpop.f32.mrb[0].mxu0
  %v869 = vadd.f32 %v191, %v868
  %v870 = vpop.f32.mrb[0].mxu0
  %871 = vdwg.mxu0
  %v873 = vsel %vm273, %v109, 0
  %875 = vmatprep.subr.mxu0 0.0
  %876 = vmatpush1.msra.mxu0 %v279
  %877 = vmatprep.subr.mxu0 0.0
  %878 = vmatpush1.msra.mxu0 0.0
  %879 = vmatprep.subr.mxu0 0.0
  %880 = vmatpush1.msra.mxu0 0.0
  %881 = vmatprep.subr.mxu0 0.0
  %882 = vmatpush1.msra.mxu0 0.0
  %883 = vmatprep.subr.mxu0 0.0
  %884 = vmatpush1.msra.mxu0 0.0
  %885 = vmatprep.subr.mxu0 0.0
  %886 = vmatpush1.msra.mxu0 0.0
  %887 = vmatprep.subr.mxu0 0.0
  %888 = vmatpush1.msra.mxu0 0.0
  %889 = vmatprep.subr.mxu0 0.0
  %890 = vmatpush1.msra.mxu0 0.0
  %891 = vmatprep.subr.mxu0 0.0
  %892 = vmatpush1.msra.mxu0 0.0
  %893 = vmatprep.subr.mxu0 0.0
  %894 = vmatpush1.msra.mxu0 0.0
  %895 = vmatprep.subr.mxu0 0.0
  %896 = vmatpush1.msra.mxu0 0.0
  %897 = vmatprep.subr.mxu0 0.0
  %898 = vmatpush1.msra.mxu0 0.0
  %899 = vmatprep.subr.mxu0 0.0
  %900 = vmatpush1.msra.mxu0 0.0
  %901 = vmatprep.subr.mxu0 0.0
  %902 = vmatpush1.msra.mxu0 0.0
  %903 = vmatprep.subr.mxu0 0.0
  %904 = vmatpush1.msra.mxu0 0.0
  %905 = vmatprep.subr.mxu0 0.0
  %906 = vmatpush1.msra.mxu0 0.0
  %907 = vmatprep.subr.mxu0 0.0
  %908 = vmatpush1.msra.mxu0 0.0
  %909 = vmatprep.subr.mxu0 0.0
  %910 = vmatpush1.msra.mxu0 0.0
  %911 = vmatprep.subr.mxu0 0.0
  %912 = vmatpush1.msra.mxu0 0.0
  %913 = vmatprep.subr.mxu0 0.0
  %914 = vmatpush1.msra.mxu0 0.0
  %915 = vmatprep.subr.mxu0 0.0
  %916 = vmatpush1.msra.mxu0 0.0
  %917 = vmatprep.subr.mxu0 0.0
  %918 = vmatpush1.msra.mxu0 0.0
  %919 = vmatprep.subr.mxu0 0.0
  %920 = vmatpush1.msra.mxu0 0.0
  %921 = vmatprep.subr.mxu0 0.0
  %922 = vmatpush1.msra.mxu0 0.0
  %923 = vmatprep.subr.mxu0 0.0
  %924 = vmatpush1.msra.mxu0 0.0
  %925 = vmatprep.subr.mxu0 0.0
  %926 = vmatpush1.msra.mxu0 0.0
  %927 = vmatprep.subr.mxu0 0.0
  %928 = vmatpush1.msra.mxu0 0.0
  %929 = vmatprep.subr.mxu0 0.0
  %930 = vmatpush1.msra.mxu0 0.0
  %931 = vmatprep.subr.mxu0 0.0
  %932 = vmatpush1.msra.mxu0 0.0
  %933 = vmatprep.subr.mxu0 0.0
  %934 = vmatpush1.msra.mxu0 0.0
  %935 = vmatprep.subr.mxu0 0.0
  %936 = vmatpush1.msra.mxu0 0.0
  %937 = vmatprep.subr.mxu0 0.0
  %938 = vmatpush1.msra.mxu0 0.0
  %939 = vmatprep.mubr.f32.mxu0 0.0
  %940 = vmatmul.mubr.f32.gmra.mrb[0].mxu0 %v873
  %v941 = vpop.f32.mrb[0].mxu0
  %v942 = vadd.f32 0.0, %v941
  %v943 = vpop.f32.mrb[0].mxu0
  %944 = vdwg.mxu0
  %v945 = vadd.f32 %v869, %v942
  %946 = vmatprep.subr.mxu0 0.0
  %947 = vmatpush1.msra.mxu0 %v356
  %948 = vmatprep.subr.mxu0 0.0
  %949 = vmatpush1.msra.mxu0 0.0
  %950 = vmatprep.subr.mxu0 0.0
  %951 = vmatpush1.msra.mxu0 0.0
  %952 = vmatprep.subr.mxu0 0.0
  %953 = vmatpush1.msra.mxu0 0.0
  %954 = vmatprep.subr.mxu0 0.0
  %955 = vmatpush1.msra.mxu0 0.0
  %956 = vmatprep.subr.mxu0 0.0
  %957 = vmatpush1.msra.mxu0 0.0
  %958 = vmatprep.subr.mxu0 0.0
  %959 = vmatpush1.msra.mxu0 0.0
  %960 = vmatprep.subr.mxu0 0.0
  %961 = vmatpush1.msra.mxu0 0.0
  %962 = vmatprep.subr.mxu0 0.0
  %963 = vmatpush1.msra.mxu0 0.0
  %964 = vmatprep.subr.mxu0 0.0
  %965 = vmatpush1.msra.mxu0 0.0
  %966 = vmatprep.subr.mxu0 0.0
  %967 = vmatpush1.msra.mxu0 0.0
  %968 = vmatprep.subr.mxu0 0.0
  %969 = vmatpush1.msra.mxu0 0.0
  %970 = vmatprep.subr.mxu0 0.0
  %971 = vmatpush1.msra.mxu0 0.0
  %972 = vmatprep.subr.mxu0 0.0
  %973 = vmatpush1.msra.mxu0 0.0
  %974 = vmatprep.subr.mxu0 0.0
  %975 = vmatpush1.msra.mxu0 0.0
  %976 = vmatprep.subr.mxu0 0.0
  %977 = vmatpush1.msra.mxu0 0.0
  %978 = vmatprep.subr.mxu0 0.0
  %979 = vmatpush1.msra.mxu0 0.0
  %980 = vmatprep.subr.mxu0 0.0
  %981 = vmatpush1.msra.mxu0 0.0
  %982 = vmatprep.subr.mxu0 0.0
  %983 = vmatpush1.msra.mxu0 0.0
  %984 = vmatprep.subr.mxu0 0.0
  %985 = vmatpush1.msra.mxu0 0.0
  %986 = vmatprep.subr.mxu0 0.0
  %987 = vmatpush1.msra.mxu0 0.0
  %988 = vmatprep.subr.mxu0 0.0
  %989 = vmatpush1.msra.mxu0 0.0
  %990 = vmatprep.subr.mxu0 0.0
  %991 = vmatpush1.msra.mxu0 0.0
  %992 = vmatprep.subr.mxu0 0.0
  %993 = vmatpush1.msra.mxu0 0.0
  %994 = vmatprep.subr.mxu0 0.0
  %995 = vmatpush1.msra.mxu0 0.0
  %996 = vmatprep.subr.mxu0 0.0
  %997 = vmatpush1.msra.mxu0 0.0
  %998 = vmatprep.subr.mxu0 0.0
  %999 = vmatpush1.msra.mxu0 0.0
  %1000 = vmatprep.subr.mxu0 0.0
  %1001 = vmatpush1.msra.mxu0 0.0
  %1002 = vmatprep.subr.mxu0 0.0
  %1003 = vmatpush1.msra.mxu0 0.0
  %1004 = vmatprep.subr.mxu0 0.0
  %1005 = vmatpush1.msra.mxu0 0.0
  %1006 = vmatprep.subr.mxu0 0.0
  %1007 = vmatpush1.msra.mxu0 0.0
  %1008 = vmatprep.subr.mxu0 0.0
  %1009 = vmatpush1.msra.mxu0 0.0
  %1010 = vmatprep.mubr.f32.mxu0 0.0
  %1011 = vmatmul.mubr.f32.gmra.mrb[0].mxu0 %v582
  %v1012 = vpop.f32.mrb[0].mxu0
  %v1013 = vadd.f32 0.0, %v1012
  %v1014 = vpop.f32.mrb[0].mxu0
  %1015 = vdwg.mxu0
  %v1016 = vadd.f32 %v945, %v1013
  %1017 = vmatprep.subr.mxu0 0.0
  %1018 = vmatpush1.msra.mxu0 %v433
  %1019 = vmatprep.subr.mxu0 0.0
  %1020 = vmatpush1.msra.mxu0 0.0
  %1021 = vmatprep.subr.mxu0 0.0
  %1022 = vmatpush1.msra.mxu0 0.0
  %1023 = vmatprep.subr.mxu0 0.0
  %1024 = vmatpush1.msra.mxu0 0.0
  %1025 = vmatprep.subr.mxu0 0.0
  %1026 = vmatpush1.msra.mxu0 0.0
  %1027 = vmatprep.subr.mxu0 0.0
  %1028 = vmatpush1.msra.mxu0 0.0
  %1029 = vmatprep.subr.mxu0 0.0
  %1030 = vmatpush1.msra.mxu0 0.0
  %1031 = vmatprep.subr.mxu0 0.0
  %1032 = vmatpush1.msra.mxu0 0.0
  %1033 = vmatprep.subr.mxu0 0.0
  %1034 = vmatpush1.msra.mxu0 0.0
  %1035 = vmatprep.subr.mxu0 0.0
  %1036 = vmatpush1.msra.mxu0 0.0
  %1037 = vmatprep.subr.mxu0 0.0
  %1038 = vmatpush1.msra.mxu0 0.0
  %1039 = vmatprep.subr.mxu0 0.0
  %1040 = vmatpush1.msra.mxu0 0.0
  %1041 = vmatprep.subr.mxu0 0.0
  %1042 = vmatpush1.msra.mxu0 0.0
  %1043 = vmatprep.subr.mxu0 0.0
  %1044 = vmatpush1.msra.mxu0 0.0
  %1045 = vmatprep.subr.mxu0 0.0
  %1046 = vmatpush1.msra.mxu0 0.0
  %1047 = vmatprep.subr.mxu0 0.0
  %1048 = vmatpush1.msra.mxu0 0.0
  %1049 = vmatprep.subr.mxu0 0.0
  %1050 = vmatpush1.msra.mxu0 0.0
  %1051 = vmatprep.subr.mxu0 0.0
  %1052 = vmatpush1.msra.mxu0 0.0
  %1053 = vmatprep.subr.mxu0 0.0
  %1054 = vmatpush1.msra.mxu0 0.0
  %1055 = vmatprep.subr.mxu0 0.0
  %1056 = vmatpush1.msra.mxu0 0.0
  %1057 = vmatprep.subr.mxu0 0.0
  %1058 = vmatpush1.msra.mxu0 0.0
  %1059 = vmatprep.subr.mxu0 0.0
  %1060 = vmatpush1.msra.mxu0 0.0
  %1061 = vmatprep.subr.mxu0 0.0
  %1062 = vmatpush1.msra.mxu0 0.0
  %1063 = vmatprep.subr.mxu0 0.0
  %1064 = vmatpush1.msra.mxu0 0.0
  %1065 = vmatprep.subr.mxu0 0.0
  %1066 = vmatpush1.msra.mxu0 0.0
  %1067 = vmatprep.subr.mxu0 0.0
  %1068 = vmatpush1.msra.mxu0 0.0
  %1069 = vmatprep.subr.mxu0 0.0
  %1070 = vmatpush1.msra.mxu0 0.0
  %1071 = vmatprep.subr.mxu0 0.0
  %1072 = vmatpush1.msra.mxu0 0.0
  %1073 = vmatprep.subr.mxu0 0.0
  %1074 = vmatpush1.msra.mxu0 0.0
  %1075 = vmatprep.subr.mxu0 0.0
  %1076 = vmatpush1.msra.mxu0 0.0
  %1077 = vmatprep.subr.mxu0 0.0
  %1078 = vmatpush1.msra.mxu0 0.0
  %1079 = vmatprep.subr.mxu0 0.0
  %1080 = vmatpush1.msra.mxu0 0.0
  %1081 = vmatprep.mubr.f32.mxu0 0.0
  %1082 = vmatmul.mubr.f32.gmra.mrb[0].mxu0 %v275
  %v1083 = vpop.f32.mrb[0].mxu0
  %v1084 = vadd.f32 0.0, %v1083
  %v1085 = vpop.f32.mrb[0].mxu0
  %1086 = vdwg.mxu0
  %v1087 = vadd.f32 %v1016, %v1084
  %s1088 = scalar_lea.vmem %s1, 6
  %v1089 = vld [vmem:[%s1088] sm:$0x3]
  %v1091 = vsel %vm195, %v1089, 0
  %1093 = vmatprep.subr.mxu0 0.0
  %1094 = vmatpush1.msra.mxu0 %v201
  %1095 = vmatprep.subr.mxu0 0.0
  %1096 = vmatpush1.msra.mxu0 0.0
  %1097 = vmatprep.subr.mxu0 0.0
  %1098 = vmatpush1.msra.mxu0 0.0
  %1099 = vmatprep.subr.mxu0 0.0
  %1100 = vmatpush1.msra.mxu0 0.0
  %1101 = vmatprep.subr.mxu0 0.0
  %1102 = vmatpush1.msra.mxu0 0.0
  %1103 = vmatprep.subr.mxu0 0.0
  %1104 = vmatpush1.msra.mxu0 0.0
  %1105 = vmatprep.subr.mxu0 0.0
  %1106 = vmatpush1.msra.mxu0 0.0
  %1107 = vmatprep.subr.mxu0 0.0
  %1108 = vmatpush1.msra.mxu0 0.0
  %1109 = vmatprep.subr.mxu0 0.0
  %1110 = vmatpush1.msra.mxu0 0.0
  %1111 = vmatprep.subr.mxu0 0.0
  %1112 = vmatpush1.msra.mxu0 0.0
  %1113 = vmatprep.subr.mxu0 0.0
  %1114 = vmatpush1.msra.mxu0 0.0
  %1115 = vmatprep.subr.mxu0 0.0
  %1116 = vmatpush1.msra.mxu0 0.0
  %1117 = vmatprep.subr.mxu0 0.0
  %1118 = vmatpush1.msra.mxu0 0.0
  %1119 = vmatprep.subr.mxu0 0.0
  %1120 = vmatpush1.msra.mxu0 0.0
  %1121 = vmatprep.subr.mxu0 0.0
  %1122 = vmatpush1.msra.mxu0 0.0
  %1123 = vmatprep.subr.mxu0 0.0
  %1124 = vmatpush1.msra.mxu0 0.0
  %1125 = vmatprep.subr.mxu0 0.0
  %1126 = vmatpush1.msra.mxu0 0.0
  %1127 = vmatprep.subr.mxu0 0.0
  %1128 = vmatpush1.msra.mxu0 0.0
  %1129 = vmatprep.subr.mxu0 0.0
  %1130 = vmatpush1.msra.mxu0 0.0
  %1131 = vmatprep.subr.mxu0 0.0
  %1132 = vmatpush1.msra.mxu0 0.0
  %1133 = vmatprep.subr.mxu0 0.0
  %1134 = vmatpush1.msra.mxu0 0.0
  %1135 = vmatprep.subr.mxu0 0.0
  %1136 = vmatpush1.msra.mxu0 0.0
  %1137 = vmatprep.subr.mxu0 0.0
  %1138 = vmatpush1.msra.mxu0 0.0
  %1139 = vmatprep.subr.mxu0 0.0
  %1140 = vmatpush1.msra.mxu0 0.0
  %1141 = vmatprep.subr.mxu0 0.0
  %1142 = vmatpush1.msra.mxu0 0.0
  %1143 = vmatprep.subr.mxu0 0.0
  %1144 = vmatpush1.msra.mxu0 0.0
  %1145 = vmatprep.subr.mxu0 0.0
  %1146 = vmatpush1.msra.mxu0 0.0
  %1147 = vmatprep.subr.mxu0 0.0
  %1148 = vmatpush1.msra.mxu0 0.0
  %1149 = vmatprep.subr.mxu0 0.0
  %1150 = vmatpush1.msra.mxu0 0.0
  %1151 = vmatprep.subr.mxu0 0.0
  %1152 = vmatpush1.msra.mxu0 0.0
  %1153 = vmatprep.subr.mxu0 0.0
  %1154 = vmatpush1.msra.mxu0 0.0
  %1155 = vmatprep.subr.mxu0 0.0
  %1156 = vmatpush1.msra.mxu0 0.0
  %1157 = vmatprep.mubr.f32.mxu0 0.0
  %1158 = vmatmul.mubr.f32.gmra.mrb[0].mxu0 %v1091
  %v1159 = vpop.f32.mrb[0].mxu0
  %v1160 = vadd.f32 %v191, %v1159
  %v1161 = vpop.f32.mrb[0].mxu0
  %1162 = vdwg.mxu0
  %v1164 = vsel %vm273, %v110, 0
  %1166 = vmatprep.subr.mxu0 0.0
  %1167 = vmatpush1.msra.mxu0 %v279
  %1168 = vmatprep.subr.mxu0 0.0
  %1169 = vmatpush1.msra.mxu0 0.0
  %1170 = vmatprep.subr.mxu0 0.0
  %1171 = vmatpush1.msra.mxu0 0.0
  %1172 = vmatprep.subr.mxu0 0.0
  %1173 = vmatpush1.msra.mxu0 0.0
  %1174 = vmatprep.subr.mxu0 0.0
  %1175 = vmatpush1.msra.mxu0 0.0
  %1176 = vmatprep.subr.mxu0 0.0
  %1177 = vmatpush1.msra.mxu0 0.0
  %1178 = vmatprep.subr.mxu0 0.0
  %1179 = vmatpush1.msra.mxu0 0.0
  %1180 = vmatprep.subr.mxu0 0.0
  %1181 = vmatpush1.msra.mxu0 0.0
  %1182 = vmatprep.subr.mxu0 0.0
  %1183 = vmatpush1.msra.mxu0 0.0
  %1184 = vmatprep.subr.mxu0 0.0
  %1185 = vmatpush1.msra.mxu0 0.0
  %1186 = vmatprep.subr.mxu0 0.0
  %1187 = vmatpush1.msra.mxu0 0.0
  %1188 = vmatprep.subr.mxu0 0.0
  %1189 = vmatpush1.msra.mxu0 0.0
  %1190 = vmatprep.subr.mxu0 0.0
  %1191 = vmatpush1.msra.mxu0 0.0
  %1192 = vmatprep.subr.mxu0 0.0
  %1193 = vmatpush1.msra.mxu0 0.0
  %1194 = vmatprep.subr.mxu0 0.0
  %1195 = vmatpush1.msra.mxu0 0.0
  %1196 = vmatprep.subr.mxu0 0.0
  %1197 = vmatpush1.msra.mxu0 0.0
  %1198 = vmatprep.subr.mxu0 0.0
  %1199 = vmatpush1.msra.mxu0 0.0
  %1200 = vmatprep.subr.mxu0 0.0
  %1201 = vmatpush1.msra.mxu0 0.0
  %1202 = vmatprep.subr.mxu0 0.0
  %1203 = vmatpush1.msra.mxu0 0.0
  %1204 = vmatprep.subr.mxu0 0.0
  %1205 = vmatpush1.msra.mxu0 0.0
  %1206 = vmatprep.subr.mxu0 0.0
  %1207 = vmatpush1.msra.mxu0 0.0
  %1208 = vmatprep.subr.mxu0 0.0
  %1209 = vmatpush1.msra.mxu0 0.0
  %1210 = vmatprep.subr.mxu0 0.0
  %1211 = vmatpush1.msra.mxu0 0.0
  %1212 = vmatprep.subr.mxu0 0.0
  %1213 = vmatpush1.msra.mxu0 0.0
  %1214 = vmatprep.subr.mxu0 0.0
  %1215 = vmatpush1.msra.mxu0 0.0
  %1216 = vmatprep.subr.mxu0 0.0
  %1217 = vmatpush1.msra.mxu0 0.0
  %1218 = vmatprep.subr.mxu0 0.0
  %1219 = vmatpush1.msra.mxu0 0.0
  %1220 = vmatprep.subr.mxu0 0.0
  %1221 = vmatpush1.msra.mxu0 0.0
  %1222 = vmatprep.subr.mxu0 0.0
  %1223 = vmatpush1.msra.mxu0 0.0
  %1224 = vmatprep.subr.mxu0 0.0
  %1225 = vmatpush1.msra.mxu0 0.0
  %1226 = vmatprep.subr.mxu0 0.0
  %1227 = vmatpush1.msra.mxu0 0.0
  %1228 = vmatprep.subr.mxu0 0.0
  %1229 = vmatpush1.msra.mxu0 0.0
  %1230 = vmatprep.mubr.f32.mxu0 0.0
  %1231 = vmatmul.mubr.f32.gmra.mrb[0].mxu0 %v1164
  %v1232 = vpop.f32.mrb[0].mxu0
  %v1233 = vadd.f32 0.0, %v1232
  %v1234 = vpop.f32.mrb[0].mxu0
  %1235 = vdwg.mxu0
  %v1236 = vadd.f32 %v1160, %v1233
  %1237 = vmatprep.subr.mxu0 0.0
  %1238 = vmatpush1.msra.mxu0 %v356
  %1239 = vmatprep.subr.mxu0 0.0
  %1240 = vmatpush1.msra.mxu0 0.0
  %1241 = vmatprep.subr.mxu0 0.0
  %1242 = vmatpush1.msra.mxu0 0.0
  %1243 = vmatprep.subr.mxu0 0.0
  %1244 = vmatpush1.msra.mxu0 0.0
  %1245 = vmatprep.subr.mxu0 0.0
  %1246 = vmatpush1.msra.mxu0 0.0
  %1247 = vmatprep.subr.mxu0 0.0
  %1248 = vmatpush1.msra.mxu0 0.0
  %1249 = vmatprep.subr.mxu0 0.0
  %1250 = vmatpush1.msra.mxu0 0.0
  %1251 = vmatprep.subr.mxu0 0.0
  %1252 = vmatpush1.msra.mxu0 0.0
  %1253 = vmatprep.subr.mxu0 0.0
  %1254 = vmatpush1.msra.mxu0 0.0
  %1255 = vmatprep.subr.mxu0 0.0
  %1256 = vmatpush1.msra.mxu0 0.0
  %1257 = vmatprep.subr.mxu0 0.0
  %1258 = vmatpush1.msra.mxu0 0.0
  %1259 = vmatprep.subr.mxu0 0.0
  %1260 = vmatpush1.msra.mxu0 0.0
  %1261 = vmatprep.subr.mxu0 0.0
  %1262 = vmatpush1.msra.mxu0 0.0
  %1263 = vmatprep.subr.mxu0 0.0
  %1264 = vmatpush1.msra.mxu0 0.0
  %1265 = vmatprep.subr.mxu0 0.0
  %1266 = vmatpush1.msra.mxu0 0.0
  %1267 = vmatprep.subr.mxu0 0.0
  %1268 = vmatpush1.msra.mxu0 0.0
  %1269 = vmatprep.subr.mxu0 0.0
  %1270 = vmatpush1.msra.mxu0 0.0
  %1271 = vmatprep.subr.mxu0 0.0
  %1272 = vmatpush1.msra.mxu0 0.0
  %1273 = vmatprep.subr.mxu0 0.0
  %1274 = vmatpush1.msra.mxu0 0.0
  %1275 = vmatprep.subr.mxu0 0.0
  %1276 = vmatpush1.msra.mxu0 0.0
  %1277 = vmatprep.subr.mxu0 0.0
  %1278 = vmatpush1.msra.mxu0 0.0
  %1279 = vmatprep.subr.mxu0 0.0
  %1280 = vmatpush1.msra.mxu0 0.0
  %1281 = vmatprep.subr.mxu0 0.0
  %1282 = vmatpush1.msra.mxu0 0.0
  %1283 = vmatprep.subr.mxu0 0.0
  %1284 = vmatpush1.msra.mxu0 0.0
  %1285 = vmatprep.subr.mxu0 0.0
  %1286 = vmatpush1.msra.mxu0 0.0
  %1287 = vmatprep.subr.mxu0 0.0
  %1288 = vmatpush1.msra.mxu0 0.0
  %1289 = vmatprep.subr.mxu0 0.0
  %1290 = vmatpush1.msra.mxu0 0.0
  %1291 = vmatprep.subr.mxu0 0.0
  %1292 = vmatpush1.msra.mxu0 0.0
  %1293 = vmatprep.subr.mxu0 0.0
  %1294 = vmatpush1.msra.mxu0 0.0
  %1295 = vmatprep.subr.mxu0 0.0
  %1296 = vmatpush1.msra.mxu0 0.0
  %1297 = vmatprep.subr.mxu0 0.0
  %1298 = vmatpush1.msra.mxu0 0.0
  %1299 = vmatprep.subr.mxu0 0.0
  %1300 = vmatpush1.msra.mxu0 0.0
  %1301 = vmatprep.mubr.f32.mxu0 0.0
  %1302 = vmatmul.mubr.f32.gmra.mrb[0].mxu0 %v873
  %v1303 = vpop.f32.mrb[0].mxu0
  %v1304 = vadd.f32 0.0, %v1303
  %v1305 = vpop.f32.mrb[0].mxu0
  %1306 = vdwg.mxu0
  %v1307 = vadd.f32 %v1236, %v1304
  %1308 = vmatprep.subr.mxu0 0.0
  %1309 = vmatpush1.msra.mxu0 %v433
  %1310 = vmatprep.subr.mxu0 0.0
  %1311 = vmatpush1.msra.mxu0 0.0
  %1312 = vmatprep.subr.mxu0 0.0
  %1313 = vmatpush1.msra.mxu0 0.0
  %1314 = vmatprep.subr.mxu0 0.0
  %1315 = vmatpush1.msra.mxu0 0.0
  %1316 = vmatprep.subr.mxu0 0.0
  %1317 = vmatpush1.msra.mxu0 0.0
  %1318 = vmatprep.subr.mxu0 0.0
  %1319 = vmatpush1.msra.mxu0 0.0
  %1320 = vmatprep.subr.mxu0 0.0
  %1321 = vmatpush1.msra.mxu0 0.0
  %1322 = vmatprep.subr.mxu0 0.0
  %1323 = vmatpush1.msra.mxu0 0.0
  %1324 = vmatprep.subr.mxu0 0.0
  %1325 = vmatpush1.msra.mxu0 0.0
  %1326 = vmatprep.subr.mxu0 0.0
  %1327 = vmatpush1.msra.mxu0 0.0
  %1328 = vmatprep.subr.mxu0 0.0
  %1329 = vmatpush1.msra.mxu0 0.0
  %1330 = vmatprep.subr.mxu0 0.0
  %1331 = vmatpush1.msra.mxu0 0.0
  %1332 = vmatprep.subr.mxu0 0.0
  %1333 = vmatpush1.msra.mxu0 0.0
  %1334 = vmatprep.subr.mxu0 0.0
  %1335 = vmatpush1.msra.mxu0 0.0
  %1336 = vmatprep.subr.mxu0 0.0
  %1337 = vmatpush1.msra.mxu0 0.0
  %1338 = vmatprep.subr.mxu0 0.0
  %1339 = vmatpush1.msra.mxu0 0.0
  %1340 = vmatprep.subr.mxu0 0.0
  %1341 = vmatpush1.msra.mxu0 0.0
  %1342 = vmatprep.subr.mxu0 0.0
  %1343 = vmatpush1.msra.mxu0 0.0
  %1344 = vmatprep.subr.mxu0 0.0
  %1345 = vmatpush1.msra.mxu0 0.0
  %1346 = vmatprep.subr.mxu0 0.0
  %1347 = vmatpush1.msra.mxu0 0.0
  %1348 = vmatprep.subr.mxu0 0.0
  %1349 = vmatpush1.msra.mxu0 0.0
  %1350 = vmatprep.subr.mxu0 0.0
  %1351 = vmatpush1.msra.mxu0 0.0
  %1352 = vmatprep.subr.mxu0 0.0
  %1353 = vmatpush1.msra.mxu0 0.0
  %1354 = vmatprep.subr.mxu0 0.0
  %1355 = vmatpush1.msra.mxu0 0.0
  %1356 = vmatprep.subr.mxu0 0.0
  %1357 = vmatpush1.msra.mxu0 0.0
  %1358 = vmatprep.subr.mxu0 0.0
  %1359 = vmatpush1.msra.mxu0 0.0
  %1360 = vmatprep.subr.mxu0 0.0
  %1361 = vmatpush1.msra.mxu0 0.0
  %1362 = vmatprep.subr.mxu0 0.0
  %1363 = vmatpush1.msra.mxu0 0.0
  %1364 = vmatprep.subr.mxu0 0.0
  %1365 = vmatpush1.msra.mxu0 0.0
  %1366 = vmatprep.subr.mxu0 0.0
  %1367 = vmatpush1.msra.mxu0 0.0
  %1368 = vmatprep.subr.mxu0 0.0
  %1369 = vmatpush1.msra.mxu0 0.0
  %1370 = vmatprep.subr.mxu0 0.0
  %1371 = vmatpush1.msra.mxu0 0.0
  %1372 = vmatprep.mubr.f32.mxu0 0.0
  %1373 = vmatmul.mubr.f32.gmra.mrb[0].mxu0 %v582
  %v1374 = vpop.f32.mrb[0].mxu0
  %v1375 = vadd.f32 0.0, %v1374
  %v1376 = vpop.f32.mrb[0].mxu0
  %1377 = vdwg.mxu0
  %v1378 = vadd.f32 %v1307, %v1375
  %s1379 = scalar_lea.vmem %s1, 8
  %v1380 = vld [vmem:[%s1379] sm:$0x3]
  %v1382 = vsel %vm195, %v1380, 0
  %1384 = vmatprep.subr.mxu0 0.0
  %1385 = vmatpush1.msra.mxu0 %v201
  %1386 = vmatprep.subr.mxu0 0.0
  %1387 = vmatpush1.msra.mxu0 0.0
  %1388 = vmatprep.subr.mxu0 0.0
  %1389 = vmatpush1.msra.mxu0 0.0
  %1390 = vmatprep.subr.mxu0 0.0
  %1391 = vmatpush1.msra.mxu0 0.0
  %1392 = vmatprep.subr.mxu0 0.0
  %1393 = vmatpush1.msra.mxu0 0.0
  %1394 = vmatprep.subr.mxu0 0.0
  %1395 = vmatpush1.msra.mxu0 0.0
  %1396 = vmatprep.subr.mxu0 0.0
  %1397 = vmatpush1.msra.mxu0 0.0
  %1398 = vmatprep.subr.mxu0 0.0
  %1399 = vmatpush1.msra.mxu0 0.0
  %1400 = vmatprep.subr.mxu0 0.0
  %1401 = vmatpush1.msra.mxu0 0.0
  %1402 = vmatprep.subr.mxu0 0.0
  %1403 = vmatpush1.msra.mxu0 0.0
  %1404 = vmatprep.subr.mxu0 0.0
  %1405 = vmatpush1.msra.mxu0 0.0
  %1406 = vmatprep.subr.mxu0 0.0
  %1407 = vmatpush1.msra.mxu0 0.0
  %1408 = vmatprep.subr.mxu0 0.0
  %1409 = vmatpush1.msra.mxu0 0.0
  %1410 = vmatprep.subr.mxu0 0.0
  %1411 = vmatpush1.msra.mxu0 0.0
  %1412 = vmatprep.subr.mxu0 0.0
  %1413 = vmatpush1.msra.mxu0 0.0
  %1414 = vmatprep.subr.mxu0 0.0
  %1415 = vmatpush1.msra.mxu0 0.0
  %1416 = vmatprep.subr.mxu0 0.0
  %1417 = vmatpush1.msra.mxu0 0.0
  %1418 = vmatprep.subr.mxu0 0.0
  %1419 = vmatpush1.msra.mxu0 0.0
  %1420 = vmatprep.subr.mxu0 0.0
  %1421 = vmatpush1.msra.mxu0 0.0
  %1422 = vmatprep.subr.mxu0 0.0
  %1423 = vmatpush1.msra.mxu0 0.0
  %1424 = vmatprep.subr.mxu0 0.0
  %1425 = vmatpush1.msra.mxu0 0.0
  %1426 = vmatprep.subr.mxu0 0.0
  %1427 = vmatpush1.msra.mxu0 0.0
  %1428 = vmatprep.subr.mxu0 0.0
  %1429 = vmatpush1.msra.mxu0 0.0
  %1430 = vmatprep.subr.mxu0 0.0
  %1431 = vmatpush1.msra.mxu0 0.0
  %1432 = vmatprep.subr.mxu0 0.0
  %1433 = vmatpush1.msra.mxu0 0.0
  %1434 = vmatprep.subr.mxu0 0.0
  %1435 = vmatpush1.msra.mxu0 0.0
  %1436 = vmatprep.subr.mxu0 0.0
  %1437 = vmatpush1.msra.mxu0 0.0
  %1438 = vmatprep.subr.mxu0 0.0
  %1439 = vmatpush1.msra.mxu0 0.0
  %1440 = vmatprep.subr.mxu0 0.0
  %1441 = vmatpush1.msra.mxu0 0.0
  %1442 = vmatprep.subr.mxu0 0.0
  %1443 = vmatpush1.msra.mxu0 0.0
  %1444 = vmatprep.subr.mxu0 0.0
  %1445 = vmatpush1.msra.mxu0 0.0
  %1446 = vmatprep.subr.mxu0 0.0
  %1447 = vmatpush1.msra.mxu0 0.0
  %1448 = vmatprep.mubr.f32.mxu0 0.0
  %1449 = vmatmul.mubr.f32.gmra.mrb[0].mxu0 %v1382
  %v1450 = vpop.f32.mrb[0].mxu0
  %v1451 = vadd.f32 %v191, %v1450
  %v1452 = vpop.f32.mrb[0].mxu0
  %1453 = vdwg.mxu0
  %v1455 = vsel %vm273, %v111, 0
  %1457 = vmatprep.subr.mxu0 0.0
  %1458 = vmatpush1.msra.mxu0 %v279
  %1459 = vmatprep.subr.mxu0 0.0
  %1460 = vmatpush1.msra.mxu0 0.0
  %1461 = vmatprep.subr.mxu0 0.0
  %1462 = vmatpush1.msra.mxu0 0.0
  %1463 = vmatprep.subr.mxu0 0.0
  %1464 = vmatpush1.msra.mxu0 0.0
  %1465 = vmatprep.subr.mxu0 0.0
  %1466 = vmatpush1.msra.mxu0 0.0
  %1467 = vmatprep.subr.mxu0 0.0
  %1468 = vmatpush1.msra.mxu0 0.0
  %1469 = vmatprep.subr.mxu0 0.0
  %1470 = vmatpush1.msra.mxu0 0.0
  %1471 = vmatprep.subr.mxu0 0.0
  %1472 = vmatpush1.msra.mxu0 0.0
  %1473 = vmatprep.subr.mxu0 0.0
  %1474 = vmatpush1.msra.mxu0 0.0
  %1475 = vmatprep.subr.mxu0 0.0
  %1476 = vmatpush1.msra.mxu0 0.0
  %1477 = vmatprep.subr.mxu0 0.0
  %1478 = vmatpush1.msra.mxu0 0.0
  %1479 = vmatprep.subr.mxu0 0.0
  %1480 = vmatpush1.msra.mxu0 0.0
  %1481 = vmatprep.subr.mxu0 0.0
  %1482 = vmatpush1.msra.mxu0 0.0
  %1483 = vmatprep.subr.mxu0 0.0
  %1484 = vmatpush1.msra.mxu0 0.0
  %1485 = vmatprep.subr.mxu0 0.0
  %1486 = vmatpush1.msra.mxu0 0.0
  %1487 = vmatprep.subr.mxu0 0.0
  %1488 = vmatpush1.msra.mxu0 0.0
  %1489 = vmatprep.subr.mxu0 0.0
  %1490 = vmatpush1.msra.mxu0 0.0
  %1491 = vmatprep.subr.mxu0 0.0
  %1492 = vmatpush1.msra.mxu0 0.0
  %1493 = vmatprep.subr.mxu0 0.0
  %1494 = vmatpush1.msra.mxu0 0.0
  %1495 = vmatprep.subr.mxu0 0.0
  %1496 = vmatpush1.msra.mxu0 0.0
  %1497 = vmatprep.subr.mxu0 0.0
  %1498 = vmatpush1.msra.mxu0 0.0
  %1499 = vmatprep.subr.mxu0 0.0
  %1500 = vmatpush1.msra.mxu0 0.0
  %1501 = vmatprep.subr.mxu0 0.0
  %1502 = vmatpush1.msra.mxu0 0.0
  %1503 = vmatprep.subr.mxu0 0.0
  %1504 = vmatpush1.msra.mxu0 0.0
  %1505 = vmatprep.subr.mxu0 0.0
  %1506 = vmatpush1.msra.mxu0 0.0
  %1507 = vmatprep.subr.mxu0 0.0
  %1508 = vmatpush1.msra.mxu0 0.0
  %1509 = vmatprep.subr.mxu0 0.0
  %1510 = vmatpush1.msra.mxu0 0.0
  %1511 = vmatprep.subr.mxu0 0.0
  %1512 = vmatpush1.msra.mxu0 0.0
  %1513 = vmatprep.subr.mxu0 0.0
  %1514 = vmatpush1.msra.mxu0 0.0
  %1515 = vmatprep.subr.mxu0 0.0
  %1516 = vmatpush1.msra.mxu0 0.0
  %1517 = vmatprep.subr.mxu0 0.0
  %1518 = vmatpush1.msra.mxu0 0.0
  %1519 = vmatprep.subr.mxu0 0.0
  %1520 = vmatpush1.msra.mxu0 0.0
  %1521 = vmatprep.mubr.f32.mxu0 0.0
  %1522 = vmatmul.mubr.f32.gmra.mrb[0].mxu0 %v1455
  %v1523 = vpop.f32.mrb[0].mxu0
  %v1524 = vadd.f32 0.0, %v1523
  %v1525 = vpop.f32.mrb[0].mxu0
  %1526 = vdwg.mxu0
  %v1527 = vadd.f32 %v1451, %v1524
  %1528 = vmatprep.subr.mxu0 0.0
  %1529 = vmatpush1.msra.mxu0 %v356
  %1530 = vmatprep.subr.mxu0 0.0
  %1531 = vmatpush1.msra.mxu0 0.0
  %1532 = vmatprep.subr.mxu0 0.0
  %1533 = vmatpush1.msra.mxu0 0.0
  %1534 = vmatprep.subr.mxu0 0.0
  %1535 = vmatpush1.msra.mxu0 0.0
  %1536 = vmatprep.subr.mxu0 0.0
  %1537 = vmatpush1.msra.mxu0 0.0
  %1538 = vmatprep.subr.mxu0 0.0
  %1539 = vmatpush1.msra.mxu0 0.0
  %1540 = vmatprep.subr.mxu0 0.0
  %1541 = vmatpush1.msra.mxu0 0.0
  %1542 = vmatprep.subr.mxu0 0.0
  %1543 = vmatpush1.msra.mxu0 0.0
  %1544 = vmatprep.subr.mxu0 0.0
  %1545 = vmatpush1.msra.mxu0 0.0
  %1546 = vmatprep.subr.mxu0 0.0
  %1547 = vmatpush1.msra.mxu0 0.0
  %1548 = vmatprep.subr.mxu0 0.0
  %1549 = vmatpush1.msra.mxu0 0.0
  %1550 = vmatprep.subr.mxu0 0.0
  %1551 = vmatpush1.msra.mxu0 0.0
  %1552 = vmatprep.subr.mxu0 0.0
  %1553 = vmatpush1.msra.mxu0 0.0
  %1554 = vmatprep.subr.mxu0 0.0
  %1555 = vmatpush1.msra.mxu0 0.0
  %1556 = vmatprep.subr.mxu0 0.0
  %1557 = vmatpush1.msra.mxu0 0.0
  %1558 = vmatprep.subr.mxu0 0.0
  %1559 = vmatpush1.msra.mxu0 0.0
  %1560 = vmatprep.subr.mxu0 0.0
  %1561 = vmatpush1.msra.mxu0 0.0
  %1562 = vmatprep.subr.mxu0 0.0
  %1563 = vmatpush1.msra.mxu0 0.0
  %1564 = vmatprep.subr.mxu0 0.0
  %1565 = vmatpush1.msra.mxu0 0.0
  %1566 = vmatprep.subr.mxu0 0.0
  %1567 = vmatpush1.msra.mxu0 0.0
  %1568 = vmatprep.subr.mxu0 0.0
  %1569 = vmatpush1.msra.mxu0 0.0
  %1570 = vmatprep.subr.mxu0 0.0
  %1571 = vmatpush1.msra.mxu0 0.0
  %1572 = vmatprep.subr.mxu0 0.0
  %1573 = vmatpush1.msra.mxu0 0.0
  %1574 = vmatprep.subr.mxu0 0.0
  %1575 = vmatpush1.msra.mxu0 0.0
  %1576 = vmatprep.subr.mxu0 0.0
  %1577 = vmatpush1.msra.mxu0 0.0
  %1578 = vmatprep.subr.mxu0 0.0
  %1579 = vmatpush1.msra.mxu0 0.0
  %1580 = vmatprep.subr.mxu0 0.0
  %1581 = vmatpush1.msra.mxu0 0.0
  %1582 = vmatprep.subr.mxu0 0.0
  %1583 = vmatpush1.msra.mxu0 0.0
  %1584 = vmatprep.subr.mxu0 0.0
  %1585 = vmatpush1.msra.mxu0 0.0
  %1586 = vmatprep.subr.mxu0 0.0
  %1587 = vmatpush1.msra.mxu0 0.0
  %1588 = vmatprep.subr.mxu0 0.0
  %1589 = vmatpush1.msra.mxu0 0.0
  %1590 = vmatprep.subr.mxu0 0.0
  %1591 = vmatpush1.msra.mxu0 0.0
  %1592 = vmatprep.mubr.f32.mxu0 0.0
  %1593 = vmatmul.mubr.f32.gmra.mrb[0].mxu0 %v1164
  %v1594 = vpop.f32.mrb[0].mxu0
  %v1595 = vadd.f32 0.0, %v1594
  %v1596 = vpop.f32.mrb[0].mxu0
  %1597 = vdwg.mxu0
  %v1598 = vadd.f32 %v1527, %v1595
  %1599 = vmatprep.subr.mxu0 0.0
  %1600 = vmatpush1.msra.mxu0 %v433
  %1601 = vmatprep.subr.mxu0 0.0
  %1602 = vmatpush1.msra.mxu0 0.0
  %1603 = vmatprep.subr.mxu0 0.0
  %1604 = vmatpush1.msra.mxu0 0.0
  %1605 = vmatprep.subr.mxu0 0.0
  %1606 = vmatpush1.msra.mxu0 0.0
  %1607 = vmatprep.subr.mxu0 0.0
  %1608 = vmatpush1.msra.mxu0 0.0
  %1609 = vmatprep.subr.mxu0 0.0
  %1610 = vmatpush1.msra.mxu0 0.0
  %1611 = vmatprep.subr.mxu0 0.0
  %1612 = vmatpush1.msra.mxu0 0.0
  %1613 = vmatprep.subr.mxu0 0.0
  %1614 = vmatpush1.msra.mxu0 0.0
  %1615 = vmatprep.subr.mxu0 0.0
  %1616 = vmatpush1.msra.mxu0 0.0
  %1617 = vmatprep.subr.mxu0 0.0
  %1618 = vmatpush1.msra.mxu0 0.0
  %1619 = vmatprep.subr.mxu0 0.0
  %1620 = vmatpush1.msra.mxu0 0.0
  %1621 = vmatprep.subr.mxu0 0.0
  %1622 = vmatpush1.msra.mxu0 0.0
  %1623 = vmatprep.subr.mxu0 0.0
  %1624 = vmatpush1.msra.mxu0 0.0
  %1625 = vmatprep.subr.mxu0 0.0
  %1626 = vmatpush1.msra.mxu0 0.0
  %1627 = vmatprep.subr.mxu0 0.0
  %1628 = vmatpush1.msra.mxu0 0.0
  %1629 = vmatprep.subr.mxu0 0.0
  %1630 = vmatpush1.msra.mxu0 0.0
  %1631 = vmatprep.subr.mxu0 0.0
  %1632 = vmatpush1.msra.mxu0 0.0
  %1633 = vmatprep.subr.mxu0 0.0
  %1634 = vmatpush1.msra.mxu0 0.0
  %1635 = vmatprep.subr.mxu0 0.0
  %1636 = vmatpush1.msra.mxu0 0.0
  %1637 = vmatprep.subr.mxu0 0.0
  %1638 = vmatpush1.msra.mxu0 0.0
  %1639 = vmatprep.subr.mxu0 0.0
  %1640 = vmatpush1.msra.mxu0 0.0
  %1641 = vmatprep.subr.mxu0 0.0
  %1642 = vmatpush1.msra.mxu0 0.0
  %1643 = vmatprep.subr.mxu0 0.0
  %1644 = vmatpush1.msra.mxu0 0.0
  %1645 = vmatprep.subr.mxu0 0.0
  %1646 = vmatpush1.msra.mxu0 0.0
  %1647 = vmatprep.subr.mxu0 0.0
  %1648 = vmatpush1.msra.mxu0 0.0
  %1649 = vmatprep.subr.mxu0 0.0
  %1650 = vmatpush1.msra.mxu0 0.0
  %1651 = vmatprep.subr.mxu0 0.0
  %1652 = vmatpush1.msra.mxu0 0.0
  %1653 = vmatprep.subr.mxu0 0.0
  %1654 = vmatpush1.msra.mxu0 0.0
  %1655 = vmatprep.subr.mxu0 0.0
  %1656 = vmatpush1.msra.mxu0 0.0
  %1657 = vmatprep.subr.mxu0 0.0
  %1658 = vmatpush1.msra.mxu0 0.0
  %1659 = vmatprep.subr.mxu0 0.0
  %1660 = vmatpush1.msra.mxu0 0.0
  %1661 = vmatprep.subr.mxu0 0.0
  %1662 = vmatpush1.msra.mxu0 0.0
  %1663 = vmatprep.mubr.f32.mxu0 0.0
  %1664 = vmatmul.mubr.f32.gmra.mrb[0].mxu0 %v873
  %v1665 = vpop.f32.mrb[0].mxu0
  %v1666 = vadd.f32 0.0, %v1665
  %v1667 = vpop.f32.mrb[0].mxu0
  %1668 = vdwg.mxu0
  %v1669 = vadd.f32 %v1598, %v1666
  %s1670 = scalar_lea.vmem %s1, 10
  %v1671 = vld [vmem:[%s1670] sm:$0x3]
  %v1673 = vsel %vm195, %v1671, 0
  %1675 = vmatprep.subr.mxu0 0.0
  %1676 = vmatpush1.msra.mxu0 %v201
  %1677 = vmatprep.subr.mxu0 0.0
  %1678 = vmatpush1.msra.mxu0 0.0
  %1679 = vmatprep.subr.mxu0 0.0
  %1680 = vmatpush1.msra.mxu0 0.0
  %1681 = vmatprep.subr.mxu0 0.0
  %1682 = vmatpush1.msra.mxu0 0.0
  %1683 = vmatprep.subr.mxu0 0.0
  %1684 = vmatpush1.msra.mxu0 0.0
  %1685 = vmatprep.subr.mxu0 0.0
  %1686 = vmatpush1.msra.mxu0 0.0
  %1687 = vmatprep.subr.mxu0 0.0
  %1688 = vmatpush1.msra.mxu0 0.0
  %1689 = vmatprep.subr.mxu0 0.0
  %1690 = vmatpush1.msra.mxu0 0.0
  %1691 = vmatprep.subr.mxu0 0.0
  %1692 = vmatpush1.msra.mxu0 0.0
  %1693 = vmatprep.subr.mxu0 0.0
  %1694 = vmatpush1.msra.mxu0 0.0
  %1695 = vmatprep.subr.mxu0 0.0
  %1696 = vmatpush1.msra.mxu0 0.0
  %1697 = vmatprep.subr.mxu0 0.0
  %1698 = vmatpush1.msra.mxu0 0.0
  %1699 = vmatprep.subr.mxu0 0.0
  %1700 = vmatpush1.msra.mxu0 0.0
  %1701 = vmatprep.subr.mxu0 0.0
  %1702 = vmatpush1.msra.mxu0 0.0
  %1703 = vmatprep.subr.mxu0 0.0
  %1704 = vmatpush1.msra.mxu0 0.0
  %1705 = vmatprep.subr.mxu0 0.0
  %1706 = vmatpush1.msra.mxu0 0.0
  %1707 = vmatprep.subr.mxu0 0.0
  %1708 = vmatpush1.msra.mxu0 0.0
  %1709 = vmatprep.subr.mxu0 0.0
  %1710 = vmatpush1.msra.mxu0 0.0
  %1711 = vmatprep.subr.mxu0 0.0
  %1712 = vmatpush1.msra.mxu0 0.0
  %1713 = vmatprep.subr.mxu0 0.0
  %1714 = vmatpush1.msra.mxu0 0.0
  %1715 = vmatprep.subr.mxu0 0.0
  %1716 = vmatpush1.msra.mxu0 0.0
  %1717 = vmatprep.subr.mxu0 0.0
  %1718 = vmatpush1.msra.mxu0 0.0
  %1719 = vmatprep.subr.mxu0 0.0
  %1720 = vmatpush1.msra.mxu0 0.0
  %1721 = vmatprep.subr.mxu0 0.0
  %1722 = vmatpush1.msra.mxu0 0.0
  %1723 = vmatprep.subr.mxu0 0.0
  %1724 = vmatpush1.msra.mxu0 0.0
  %1725 = vmatprep.subr.mxu0 0.0
  %1726 = vmatpush1.msra.mxu0 0.0
  %1727 = vmatprep.subr.mxu0 0.0
  %1728 = vmatpush1.msra.mxu0 0.0
  %1729 = vmatprep.subr.mxu0 0.0
  %1730 = vmatpush1.msra.mxu0 0.0
  %1731 = vmatprep.subr.mxu0 0.0
  %1732 = vmatpush1.msra.mxu0 0.0
  %1733 = vmatprep.subr.mxu0 0.0
  %1734 = vmatpush1.msra.mxu0 0.0
  %1735 = vmatprep.subr.mxu0 0.0
  %1736 = vmatpush1.msra.mxu0 0.0
  %1737 = vmatprep.subr.mxu0 0.0
  %1738 = vmatpush1.msra.mxu0 0.0
  %1739 = vmatprep.mubr.f32.mxu0 0.0
  %1740 = vmatmul.mubr.f32.gmra.mrb[0].mxu0 %v1673
  %v1741 = vpop.f32.mrb[0].mxu0
  %v1742 = vadd.f32 %v191, %v1741
  %v1743 = vpop.f32.mrb[0].mxu0
  %1744 = vdwg.mxu0
  %v1746 = vsel %vm273, %v112, 0
  %1748 = vmatprep.subr.mxu0 0.0
  %1749 = vmatpush1.msra.mxu0 %v279
  %1750 = vmatprep.subr.mxu0 0.0
  %1751 = vmatpush1.msra.mxu0 0.0
  %1752 = vmatprep.subr.mxu0 0.0
  %1753 = vmatpush1.msra.mxu0 0.0
  %1754 = vmatprep.subr.mxu0 0.0
  %1755 = vmatpush1.msra.mxu0 0.0
  %1756 = vmatprep.subr.mxu0 0.0
  %1757 = vmatpush1.msra.mxu0 0.0
  %1758 = vmatprep.subr.mxu0 0.0
  %1759 = vmatpush1.msra.mxu0 0.0
  %1760 = vmatprep.subr.mxu0 0.0
  %1761 = vmatpush1.msra.mxu0 0.0
  %1762 = vmatprep.subr.mxu0 0.0
  %1763 = vmatpush1.msra.mxu0 0.0
  %1764 = vmatprep.subr.mxu0 0.0
  %1765 = vmatpush1.msra.mxu0 0.0
  %1766 = vmatprep.subr.mxu0 0.0
  %1767 = vmatpush1.msra.mxu0 0.0
  %1768 = vmatprep.subr.mxu0 0.0
  %1769 = vmatpush1.msra.mxu0 0.0
  %1770 = vmatprep.subr.mxu0 0.0
  %1771 = vmatpush1.msra.mxu0 0.0
  %1772 = vmatprep.subr.mxu0 0.0
  %1773 = vmatpush1.msra.mxu0 0.0
  %1774 = vmatprep.subr.mxu0 0.0
  %1775 = vmatpush1.msra.mxu0 0.0
  %1776 = vmatprep.subr.mxu0 0.0
  %1777 = vmatpush1.msra.mxu0 0.0
  %1778 = vmatprep.subr.mxu0 0.0
  %1779 = vmatpush1.msra.mxu0 0.0
  %1780 = vmatprep.subr.mxu0 0.0
  %1781 = vmatpush1.msra.mxu0 0.0
  %1782 = vmatprep.subr.mxu0 0.0
  %1783 = vmatpush1.msra.mxu0 0.0
  %1784 = vmatprep.subr.mxu0 0.0
  %1785 = vmatpush1.msra.mxu0 0.0
  %1786 = vmatprep.subr.mxu0 0.0
  %1787 = vmatpush1.msra.mxu0 0.0
  %1788 = vmatprep.subr.mxu0 0.0
  %1789 = vmatpush1.msra.mxu0 0.0
  %1790 = vmatprep.subr.mxu0 0.0
  %1791 = vmatpush1.msra.mxu0 0.0
  %1792 = vmatprep.subr.mxu0 0.0
  %1793 = vmatpush1.msra.mxu0 0.0
  %1794 = vmatprep.subr.mxu0 0.0
  %1795 = vmatpush1.msra.mxu0 0.0
  %1796 = vmatprep.subr.mxu0 0.0
  %1797 = vmatpush1.msra.mxu0 0.0
  %1798 = vmatprep.subr.mxu0 0.0
  %1799 = vmatpush1.msra.mxu0 0.0
  %1800 = vmatprep.subr.mxu0 0.0
  %1801 = vmatpush1.msra.mxu0 0.0
  %1802 = vmatprep.subr.mxu0 0.0
  %1803 = vmatpush1.msra.mxu0 0.0
  %1804 = vmatprep.subr.mxu0 0.0
  %1805 = vmatpush1.msra.mxu0 0.0
  %1806 = vmatprep.subr.mxu0 0.0
  %1807 = vmatpush1.msra.mxu0 0.0
  %1808 = vmatprep.subr.mxu0 0.0
  %1809 = vmatpush1.msra.mxu0 0.0
  %1810 = vmatprep.subr.mxu0 0.0
  %1811 = vmatpush1.msra.mxu0 0.0
  %1812 = vmatprep.mubr.f32.mxu0 0.0
  %1813 = vmatmul.mubr.f32.gmra.mrb[0].mxu0 %v1746
  %v1814 = vpop.f32.mrb[0].mxu0
  %v1815 = vadd.f32 0.0, %v1814
  %v1816 = vpop.f32.mrb[0].mxu0
  %1817 = vdwg.mxu0
  %v1818 = vadd.f32 %v1742, %v1815
  %1819 = vmatprep.subr.mxu0 0.0
  %1820 = vmatpush1.msra.mxu0 %v356
  %1821 = vmatprep.subr.mxu0 0.0
  %1822 = vmatpush1.msra.mxu0 0.0
  %1823 = vmatprep.subr.mxu0 0.0
  %1824 = vmatpush1.msra.mxu0 0.0
  %1825 = vmatprep.subr.mxu0 0.0
  %1826 = vmatpush1.msra.mxu0 0.0
  %1827 = vmatprep.subr.mxu0 0.0
  %1828 = vmatpush1.msra.mxu0 0.0
  %1829 = vmatprep.subr.mxu0 0.0
  %1830 = vmatpush1.msra.mxu0 0.0
  %1831 = vmatprep.subr.mxu0 0.0
  %1832 = vmatpush1.msra.mxu0 0.0
  %1833 = vmatprep.subr.mxu0 0.0
  %1834 = vmatpush1.msra.mxu0 0.0
  %1835 = vmatprep.subr.mxu0 0.0
  %1836 = vmatpush1.msra.mxu0 0.0
  %1837 = vmatprep.subr.mxu0 0.0
  %1838 = vmatpush1.msra.mxu0 0.0
  %1839 = vmatprep.subr.mxu0 0.0
  %1840 = vmatpush1.msra.mxu0 0.0
  %1841 = vmatprep.subr.mxu0 0.0
  %1842 = vmatpush1.msra.mxu0 0.0
  %1843 = vmatprep.subr.mxu0 0.0
  %1844 = vmatpush1.msra.mxu0 0.0
  %1845 = vmatprep.subr.mxu0 0.0
  %1846 = vmatpush1.msra.mxu0 0.0
  %1847 = vmatprep.subr.mxu0 0.0
  %1848 = vmatpush1.msra.mxu0 0.0
  %1849 = vmatprep.subr.mxu0 0.0
  %1850 = vmatpush1.msra.mxu0 0.0
  %1851 = vmatprep.subr.mxu0 0.0
  %1852 = vmatpush1.msra.mxu0 0.0
  %1853 = vmatprep.subr.mxu0 0.0
  %1854 = vmatpush1.msra.mxu0 0.0
  %1855 = vmatprep.subr.mxu0 0.0
  %1856 = vmatpush1.msra.mxu0 0.0
  %1857 = vmatprep.subr.mxu0 0.0
  %1858 = vmatpush1.msra.mxu0 0.0
  %1859 = vmatprep.subr.mxu0 0.0
  %1860 = vmatpush1.msra.mxu0 0.0
  %1861 = vmatprep.subr.mxu0 0.0
  %1862 = vmatpush1.msra.mxu0 0.0
  %1863 = vmatprep.subr.mxu0 0.0
  %1864 = vmatpush1.msra.mxu0 0.0
  %1865 = vmatprep.subr.mxu0 0.0
  %1866 = vmatpush1.msra.mxu0 0.0
  %1867 = vmatprep.subr.mxu0 0.0
  %1868 = vmatpush1.msra.mxu0 0.0
  %1869 = vmatprep.subr.mxu0 0.0
  %1870 = vmatpush1.msra.mxu0 0.0
  %1871 = vmatprep.subr.mxu0 0.0
  %1872 = vmatpush1.msra.mxu0 0.0
  %1873 = vmatprep.subr.mxu0 0.0
  %1874 = vmatpush1.msra.mxu0 0.0
  %1875 = vmatprep.subr.mxu0 0.0
  %1876 = vmatpush1.msra.mxu0 0.0
  %1877 = vmatprep.subr.mxu0 0.0
  %1878 = vmatpush1.msra.mxu0 0.0
  %1879 = vmatprep.subr.mxu0 0.0
  %1880 = vmatpush1.msra.mxu0 0.0
  %1881 = vmatprep.subr.mxu0 0.0
  %1882 = vmatpush1.msra.mxu0 0.0
  %1883 = vmatprep.mubr.f32.mxu0 0.0
  %1884 = vmatmul.mubr.f32.gmra.mrb[0].mxu0 %v1455
  %v1885 = vpop.f32.mrb[0].mxu0
  %v1886 = vadd.f32 0.0, %v1885
  %v1887 = vpop.f32.mrb[0].mxu0
  %1888 = vdwg.mxu0
  %v1889 = vadd.f32 %v1818, %v1886
  %1890 = vmatprep.subr.mxu0 0.0
  %1891 = vmatpush1.msra.mxu0 %v433
  %1892 = vmatprep.subr.mxu0 0.0
  %1893 = vmatpush1.msra.mxu0 0.0
  %1894 = vmatprep.subr.mxu0 0.0
  %1895 = vmatpush1.msra.mxu0 0.0
  %1896 = vmatprep.subr.mxu0 0.0
  %1897 = vmatpush1.msra.mxu0 0.0
  %1898 = vmatprep.subr.mxu0 0.0
  %1899 = vmatpush1.msra.mxu0 0.0
  %1900 = vmatprep.subr.mxu0 0.0
  %1901 = vmatpush1.msra.mxu0 0.0
  %1902 = vmatprep.subr.mxu0 0.0
  %1903 = vmatpush1.msra.mxu0 0.0
  %1904 = vmatprep.subr.mxu0 0.0
  %1905 = vmatpush1.msra.mxu0 0.0
  %1906 = vmatprep.subr.mxu0 0.0
  %1907 = vmatpush1.msra.mxu0 0.0
  %1908 = vmatprep.subr.mxu0 0.0
  %1909 = vmatpush1.msra.mxu0 0.0
  %1910 = vmatprep.subr.mxu0 0.0
  %1911 = vmatpush1.msra.mxu0 0.0
  %1912 = vmatprep.subr.mxu0 0.0
  %1913 = vmatpush1.msra.mxu0 0.0
  %1914 = vmatprep.subr.mxu0 0.0
  %1915 = vmatpush1.msra.mxu0 0.0
  %1916 = vmatprep.subr.mxu0 0.0
  %1917 = vmatpush1.msra.mxu0 0.0
  %1918 = vmatprep.subr.mxu0 0.0
  %1919 = vmatpush1.msra.mxu0 0.0
  %1920 = vmatprep.subr.mxu0 0.0
  %1921 = vmatpush1.msra.mxu0 0.0
  %1922 = vmatprep.subr.mxu0 0.0
  %1923 = vmatpush1.msra.mxu0 0.0
  %1924 = vmatprep.subr.mxu0 0.0
  %1925 = vmatpush1.msra.mxu0 0.0
  %1926 = vmatprep.subr.mxu0 0.0
  %1927 = vmatpush1.msra.mxu0 0.0
  %1928 = vmatprep.subr.mxu0 0.0
  %1929 = vmatpush1.msra.mxu0 0.0
  %1930 = vmatprep.subr.mxu0 0.0
  %1931 = vmatpush1.msra.mxu0 0.0
  %1932 = vmatprep.subr.mxu0 0.0
  %1933 = vmatpush1.msra.mxu0 0.0
  %1934 = vmatprep.subr.mxu0 0.0
  %1935 = vmatpush1.msra.mxu0 0.0
  %1936 = vmatprep.subr.mxu0 0.0
  %1937 = vmatpush1.msra.mxu0 0.0
  %1938 = vmatprep.subr.mxu0 0.0
  %1939 = vmatpush1.msra.mxu0 0.0
  %1940 = vmatprep.subr.mxu0 0.0
  %1941 = vmatpush1.msra.mxu0 0.0
  %1942 = vmatprep.subr.mxu0 0.0
  %1943 = vmatpush1.msra.mxu0 0.0
  %1944 = vmatprep.subr.mxu0 0.0
  %1945 = vmatpush1.msra.mxu0 0.0
  %1946 = vmatprep.subr.mxu0 0.0
  %1947 = vmatpush1.msra.mxu0 0.0
  %1948 = vmatprep.subr.mxu0 0.0
  %1949 = vmatpush1.msra.mxu0 0.0
  %1950 = vmatprep.subr.mxu0 0.0
  %1951 = vmatpush1.msra.mxu0 0.0
  %1952 = vmatprep.subr.mxu0 0.0
  %1953 = vmatpush1.msra.mxu0 0.0
  %1954 = vmatprep.mubr.f32.mxu0 0.0
  %1955 = vmatmul.mubr.f32.gmra.mrb[0].mxu0 %v1164
  %v1956 = vpop.f32.mrb[0].mxu0
  %v1957 = vadd.f32 0.0, %v1956
  %v1958 = vpop.f32.mrb[0].mxu0
  %1959 = vdwg.mxu0
  %v1960 = vadd.f32 %v1889, %v1957
  %vm1961 = vcmask 261120
  %v1963 = vsel %vm1961, 0.0, 0
  %1965 = vmatprep.subr.mxu0 0.0
  %1966 = vmatpush1.msra.mxu0 %v70
  %1967 = vmatprep.subr.mxu0 0.0
  %1968 = vmatpush1.msra.mxu0 %v71
  %1969 = vmatprep.subr.mxu0 0.0
  %1970 = vmatpush1.msra.mxu0 %v72
  %1971 = vmatprep.subr.mxu0 0.0
  %1972 = vmatpush1.msra.mxu0 %v73
  %1973 = vmatprep.subr.mxu0 0.0
  %1974 = vmatpush1.msra.mxu0 0.0
  %1975 = vmatprep.subr.mxu0 0.0
  %1976 = vmatpush1.msra.mxu0 0.0
  %1977 = vmatprep.subr.mxu0 0.0
  %1978 = vmatpush1.msra.mxu0 0.0
  %1979 = vmatprep.subr.mxu0 0.0
  %1980 = vmatpush1.msra.mxu0 0.0
  %1981 = vmatprep.subr.mxu0 0.0
  %1982 = vmatpush1.msra.mxu0 0.0
  %1983 = vmatprep.subr.mxu0 0.0
  %1984 = vmatpush1.msra.mxu0 0.0
  %1985 = vmatprep.subr.mxu0 0.0
  %1986 = vmatpush1.msra.mxu0 0.0
  %1987 = vmatprep.subr.mxu0 0.0
  %1988 = vmatpush1.msra.mxu0 0.0
  %1989 = vmatprep.subr.mxu0 0.0
  %1990 = vmatpush1.msra.mxu0 0.0
  %1991 = vmatprep.subr.mxu0 0.0
  %1992 = vmatpush1.msra.mxu0 0.0
  %1993 = vmatprep.subr.mxu0 0.0
  %1994 = vmatpush1.msra.mxu0 0.0
  %1995 = vmatprep.subr.mxu0 0.0
  %1996 = vmatpush1.msra.mxu0 0.0
  %1997 = vmatprep.subr.mxu0 0.0
  %1998 = vmatpush1.msra.mxu0 0.0
  %1999 = vmatprep.subr.mxu0 0.0
  %2000 = vmatpush1.msra.mxu0 0.0
  %2001 = vmatprep.subr.mxu0 0.0
  %2002 = vmatpush1.msra.mxu0 0.0
  %2003 = vmatprep.subr.mxu0 0.0
  %2004 = vmatpush1.msra.mxu0 0.0
  %2005 = vmatprep.subr.mxu0 0.0
  %2006 = vmatpush1.msra.mxu0 0.0
  %2007 = vmatprep.subr.mxu0 0.0
  %2008 = vmatpush1.msra.mxu0 0.0
  %2009 = vmatprep.subr.mxu0 0.0
  %2010 = vmatpush1.msra.mxu0 0.0
  %2011 = vmatprep.subr.mxu0 0.0
  %2012 = vmatpush1.msra.mxu0 0.0
  %2013 = vmatprep.subr.mxu0 0.0
  %2014 = vmatpush1.msra.mxu0 0.0
  %2015 = vmatprep.subr.mxu0 0.0
  %2016 = vmatpush1.msra.mxu0 0.0
  %2017 = vmatprep.subr.mxu0 0.0
  %2018 = vmatpush1.msra.mxu0 0.0
  %2019 = vmatprep.subr.mxu0 0.0
  %2020 = vmatpush1.msra.mxu0 0.0
  %2021 = vmatprep.subr.mxu0 0.0
  %2022 = vmatpush1.msra.mxu0 0.0
  %2023 = vmatprep.subr.mxu0 0.0
  %2024 = vmatpush1.msra.mxu0 0.0
  %2025 = vmatprep.subr.mxu0 0.0
  %2026 = vmatpush1.msra.mxu0 0.0
  %2027 = vmatprep.subr.mxu0 0.0
  %2028 = vmatpush1.msra.mxu0 0.0
  %2029 = vmatprep.mubr.f32.mxu0 0.0
  %2030 = vmatmul.mubr.f32.gmra.mrb[0].mxu0 %v1963
  %v2031 = vpop.f32.mrb[0].mxu0
  %v2032 = vadd.f32 0.0, %v2031
  %v2033 = vpop.f32.mrb[0].mxu0
  %2034 = vdwg.mxu0
  %v2035 = vadd.f32 %v505, %v2032
  %v2036 = vxor.u32 %v2035, 2147483648
  %v2037 = vmul.f32 %v2036, 1.442695
  %v2038 = vpow.pop %v2037
  %v2039 = vadd.f32 %v2038, 1.0
  %v2040 = vrcp.pop %v2039
  %v2041 = vmul.f32 1.0, %v2040
  %v2042 = vtanh.pop %v2035
  %v2043 = vmul.f32 %v2041, 0.0
  %2045 = vrot.lane.b32.xlu0 %v2042, 32
  %v2046 = vpop.permute.xlu0 %2045
  %v2048 = vmul.f32 %v2041, %v2046
  %2050 = vrot.lane.b32.xlu0 %v2048, 32
  %v2051 = vpop.permute.xlu0 %2050
  %v2053 = vadd.f32 %v2043, %v2051
  %v2054 = vtanh.pop %v2053
  %2056 = vrot.lane.b32.xlu0 %v2054, 32
  %v2057 = vpop.permute.xlu0 %2056
  %v2059 = vmul.f32 %v2041, %v2057
  %2060 = vmatprep.subr.mxu0 0.0
  %2061 = vmatpush1.msra.mxu0 %v78
  %2062 = vmatprep.subr.mxu0 0.0
  %2063 = vmatpush1.msra.mxu0 %v79
  %2064 = vmatprep.subr.mxu0 0.0
  %2065 = vmatpush1.msra.mxu0 %v80
  %2066 = vmatprep.subr.mxu0 0.0
  %2067 = vmatpush1.msra.mxu0 %v81
  %2068 = vmatprep.subr.mxu0 0.0
  %2069 = vmatpush1.msra.mxu0 0.0
  %2070 = vmatprep.subr.mxu0 0.0
  %2071 = vmatpush1.msra.mxu0 0.0
  %2072 = vmatprep.subr.mxu0 0.0
  %2073 = vmatpush1.msra.mxu0 0.0
  %2074 = vmatprep.subr.mxu0 0.0
  %2075 = vmatpush1.msra.mxu0 0.0
  %2076 = vmatprep.subr.mxu0 0.0
  %2077 = vmatpush1.msra.mxu0 0.0
  %2078 = vmatprep.subr.mxu0 0.0
  %2079 = vmatpush1.msra.mxu0 0.0
  %2080 = vmatprep.subr.mxu0 0.0
  %2081 = vmatpush1.msra.mxu0 0.0
  %2082 = vmatprep.subr.mxu0 0.0
  %2083 = vmatpush1.msra.mxu0 0.0
  %2084 = vmatprep.subr.mxu0 0.0
  %2085 = vmatpush1.msra.mxu0 0.0
  %2086 = vmatprep.subr.mxu0 0.0
  %2087 = vmatpush1.msra.mxu0 0.0
  %2088 = vmatprep.subr.mxu0 0.0
  %2089 = vmatpush1.msra.mxu0 0.0
  %2090 = vmatprep.subr.mxu0 0.0
  %2091 = vmatpush1.msra.mxu0 0.0
  %2092 = vmatprep.subr.mxu0 0.0
  %2093 = vmatpush1.msra.mxu0 0.0
  %2094 = vmatprep.subr.mxu0 0.0
  %2095 = vmatpush1.msra.mxu0 0.0
  %2096 = vmatprep.subr.mxu0 0.0
  %2097 = vmatpush1.msra.mxu0 0.0
  %2098 = vmatprep.subr.mxu0 0.0
  %2099 = vmatpush1.msra.mxu0 0.0
  %2100 = vmatprep.subr.mxu0 0.0
  %2101 = vmatpush1.msra.mxu0 0.0
  %2102 = vmatprep.subr.mxu0 0.0
  %2103 = vmatpush1.msra.mxu0 0.0
  %2104 = vmatprep.subr.mxu0 0.0
  %2105 = vmatpush1.msra.mxu0 0.0
  %2106 = vmatprep.subr.mxu0 0.0
  %2107 = vmatpush1.msra.mxu0 0.0
  %2108 = vmatprep.subr.mxu0 0.0
  %2109 = vmatpush1.msra.mxu0 0.0
  %2110 = vmatprep.subr.mxu0 0.0
  %2111 = vmatpush1.msra.mxu0 0.0
  %2112 = vmatprep.subr.mxu0 0.0
  %2113 = vmatpush1.msra.mxu0 0.0
  %2114 = vmatprep.subr.mxu0 0.0
  %2115 = vmatpush1.msra.mxu0 0.0
  %2116 = vmatprep.subr.mxu0 0.0
  %2117 = vmatpush1.msra.mxu0 0.0
  %2118 = vmatprep.subr.mxu0 0.0
  %2119 = vmatpush1.msra.mxu0 0.0
  %2120 = vmatprep.subr.mxu0 0.0
  %2121 = vmatpush1.msra.mxu0 0.0
  %2122 = vmatprep.subr.mxu0 0.0
  %2123 = vmatpush1.msra.mxu0 0.0
  %2124 = vmatprep.mubr.f32.mxu0 0.0
  %2125 = vmatmul.mubr.f32.gmra.mrb[0].mxu0 %v1963
  %v2126 = vpop.f32.mrb[0].mxu0
  %v2127 = vadd.f32 0.0, %v2126
  %v2128 = vpop.f32.mrb[0].mxu0
  %2129 = vdwg.mxu0
  %2131 = vrot.lane.b32.xlu0 %v2059, 64
  %v2132 = vpop.permute.xlu0 %2131
  %v2133 = vsel %vm1961, %v2132, 0
  %2135 = vmatprep.subr.mxu0 0.0
  %2136 = vmatpush1.msra.mxu0 %v74
  %2137 = vmatprep.subr.mxu0 0.0
  %2138 = vmatpush1.msra.mxu0 %v75
  %2139 = vmatprep.subr.mxu0 0.0
  %2140 = vmatpush1.msra.mxu0 %v76
  %2141 = vmatprep.subr.mxu0 0.0
  %2142 = vmatpush1.msra.mxu0 %v77
  %2143 = vmatprep.subr.mxu0 0.0
  %2144 = vmatpush1.msra.mxu0 0.0
  %2145 = vmatprep.subr.mxu0 0.0
  %2146 = vmatpush1.msra.mxu0 0.0
  %2147 = vmatprep.subr.mxu0 0.0
  %2148 = vmatpush1.msra.mxu0 0.0
  %2149 = vmatprep.subr.mxu0 0.0
  %2150 = vmatpush1.msra.mxu0 0.0
  %2151 = vmatprep.subr.mxu0 0.0
  %2152 = vmatpush1.msra.mxu0 0.0
  %2153 = vmatprep.subr.mxu0 0.0
  %2154 = vmatpush1.msra.mxu0 0.0
  %2155 = vmatprep.subr.mxu0 0.0
  %2156 = vmatpush1.msra.mxu0 0.0
  %2157 = vmatprep.subr.mxu0 0.0
  %2158 = vmatpush1.msra.mxu0 0.0
  %2159 = vmatprep.subr.mxu0 0.0
  %2160 = vmatpush1.msra.mxu0 0.0
  %2161 = vmatprep.subr.mxu0 0.0
  %2162 = vmatpush1.msra.mxu0 0.0
  %2163 = vmatprep.subr.mxu0 0.0
  %2164 = vmatpush1.msra.mxu0 0.0
  %2165 = vmatprep.subr.mxu0 0.0
  %2166 = vmatpush1.msra.mxu0 0.0
  %2167 = vmatprep.subr.mxu0 0.0
  %2168 = vmatpush1.msra.mxu0 0.0
  %2169 = vmatprep.subr.mxu0 0.0
  %2170 = vmatpush1.msra.mxu0 0.0
  %2171 = vmatprep.subr.mxu0 0.0
  %2172 = vmatpush1.msra.mxu0 0.0
  %2173 = vmatprep.subr.mxu0 0.0
  %2174 = vmatpush1.msra.mxu0 0.0
  %2175 = vmatprep.subr.mxu0 0.0
  %2176 = vmatpush1.msra.mxu0 0.0
  %2177 = vmatprep.subr.mxu0 0.0
  %2178 = vmatpush1.msra.mxu0 0.0
  %2179 = vmatprep.subr.mxu0 0.0
  %2180 = vmatpush1.msra.mxu0 0.0
  %2181 = vmatprep.subr.mxu0 0.0
  %2182 = vmatpush1.msra.mxu0 0.0
  %2183 = vmatprep.subr.mxu0 0.0
  %2184 = vmatpush1.msra.mxu0 0.0
  %2185 = vmatprep.subr.mxu0 0.0
  %2186 = vmatpush1.msra.mxu0 0.0
  %2187 = vmatprep.subr.mxu0 0.0
  %2188 = vmatpush1.msra.mxu0 0.0
  %2189 = vmatprep.subr.mxu0 0.0
  %2190 = vmatpush1.msra.mxu0 0.0
  %2191 = vmatprep.subr.mxu0 0.0
  %2192 = vmatpush1.msra.mxu0 0.0
  %2193 = vmatprep.subr.mxu0 0.0
  %2194 = vmatpush1.msra.mxu0 0.0
  %2195 = vmatprep.subr.mxu0 0.0
  %2196 = vmatpush1.msra.mxu0 0.0
  %2197 = vmatprep.subr.mxu0 0.0
  %2198 = vmatpush1.msra.mxu0 0.0
  %2199 = vmatprep.mubr.f32.mxu0 0.0
  %2200 = vmatmul.mubr.f32.gmra.mrb[0].mxu0 %v2133
  %v2201 = vpop.f32.mrb[0].mxu0
  %v2202 = vadd.f32 %v2127, %v2201
  %v2203 = vpop.f32.mrb[0].mxu0
  %2204 = vdwg.mxu0
  %v2206 = vlaneseq
  %v2207 = vshrl.u32 %v2206, 7
  %v2208 = vsub.s32 0, %v2207
  %v2209 = vrot.slane %v82, %v2208
  %v2211 = vadd.f32 %v2202, %v2209
  %v2212 = vxor.u32 %v2211, 2147483648
  %v2213 = vmul.f32 %v2212, 1.442695
  %v2214 = vpow.pop %v2213
  %v2215 = vadd.f32 %v2214, 1.0
  %v2216 = vrcp.pop %v2215
  %v2217 = vmul.f32 1.0, %v2216
  %v2218 = vtanh.pop %v2211
  %v2219 = vmul.f32 %v2217, 0.0
  %2221 = vrot.lane.b32.xlu0 %v2218, 32
  %v2222 = vpop.permute.xlu0 %2221
  %v2224 = vmul.f32 %v2217, %v2222
  %2226 = vrot.lane.b32.xlu0 %v2224, 32
  %v2227 = vpop.permute.xlu0 %2226
  %v2229 = vadd.f32 %v2219, %v2227
  %v2230 = vtanh.pop %v2229
  %2232 = vrot.lane.b32.xlu0 %v2230, 32
  %v2233 = vpop.permute.xlu0 %2232
  %v2235 = vmul.f32 %v2217, %v2233
  %2236 = vmatprep.subr.mxu0 0.0
  %2237 = vmatpush1.msra.mxu0 %v70
  %2238 = vmatprep.subr.mxu0 0.0
  %2239 = vmatpush1.msra.mxu0 %v71
  %2240 = vmatprep.subr.mxu0 0.0
  %2241 = vmatpush1.msra.mxu0 %v72
  %2242 = vmatprep.subr.mxu0 0.0
  %2243 = vmatpush1.msra.mxu0 %v73
  %2244 = vmatprep.subr.mxu0 0.0
  %2245 = vmatpush1.msra.mxu0 0.0
  %2246 = vmatprep.subr.mxu0 0.0
  %2247 = vmatpush1.msra.mxu0 0.0
  %2248 = vmatprep.subr.mxu0 0.0
  %2249 = vmatpush1.msra.mxu0 0.0
  %2250 = vmatprep.subr.mxu0 0.0
  %2251 = vmatpush1.msra.mxu0 0.0
  %2252 = vmatprep.subr.mxu0 0.0
  %2253 = vmatpush1.msra.mxu0 0.0
  %2254 = vmatprep.subr.mxu0 0.0
  %2255 = vmatpush1.msra.mxu0 0.0
  %2256 = vmatprep.subr.mxu0 0.0
  %2257 = vmatpush1.msra.mxu0 0.0
  %2258 = vmatprep.subr.mxu0 0.0
  %2259 = vmatpush1.msra.mxu0 0.0
  %2260 = vmatprep.subr.mxu0 0.0
  %2261 = vmatpush1.msra.mxu0 0.0
  %2262 = vmatprep.subr.mxu0 0.0
  %2263 = vmatpush1.msra.mxu0 0.0
  %2264 = vmatprep.subr.mxu0 0.0
  %2265 = vmatpush1.msra.mxu0 0.0
  %2266 = vmatprep.subr.mxu0 0.0
  %2267 = vmatpush1.msra.mxu0 0.0
  %2268 = vmatprep.subr.mxu0 0.0
  %2269 = vmatpush1.msra.mxu0 0.0
  %2270 = vmatprep.subr.mxu0 0.0
  %2271 = vmatpush1.msra.mxu0 0.0
  %2272 = vmatprep.subr.mxu0 0.0
  %2273 = vmatpush1.msra.mxu0 0.0
  %2274 = vmatprep.subr.mxu0 0.0
  %2275 = vmatpush1.msra.mxu0 0.0
  %2276 = vmatprep.subr.mxu0 0.0
  %2277 = vmatpush1.msra.mxu0 0.0
  %2278 = vmatprep.subr.mxu0 0.0
  %2279 = vmatpush1.msra.mxu0 0.0
  %2280 = vmatprep.subr.mxu0 0.0
  %2281 = vmatpush1.msra.mxu0 0.0
  %2282 = vmatprep.subr.mxu0 0.0
  %2283 = vmatpush1.msra.mxu0 0.0
  %2284 = vmatprep.subr.mxu0 0.0
  %2285 = vmatpush1.msra.mxu0 0.0
  %2286 = vmatprep.subr.mxu0 0.0
  %2287 = vmatpush1.msra.mxu0 0.0
  %2288 = vmatprep.subr.mxu0 0.0
  %2289 = vmatpush1.msra.mxu0 0.0
  %2290 = vmatprep.subr.mxu0 0.0
  %2291 = vmatpush1.msra.mxu0 0.0
  %2292 = vmatprep.subr.mxu0 0.0
  %2293 = vmatpush1.msra.mxu0 0.0
  %2294 = vmatprep.subr.mxu0 0.0
  %2295 = vmatpush1.msra.mxu0 0.0
  %2296 = vmatprep.subr.mxu0 0.0
  %2297 = vmatpush1.msra.mxu0 0.0
  %2298 = vmatprep.subr.mxu0 0.0
  %2299 = vmatpush1.msra.mxu0 0.0
  %2300 = vmatprep.mubr.f32.mxu0 0.0
  %2301 = vmatmul.mubr.f32.gmra.mrb[0].mxu0 %v2133
  %v2302 = vpop.f32.mrb[0].mxu0
  %v2303 = vadd.f32 0.0, %v2302
  %v2304 = vpop.f32.mrb[0].mxu0
  %2305 = vdwg.mxu0
  %v2306 = vadd.f32 %v796, %v2303
  %v2307 = vxor.u32 %v2306, 2147483648
  %v2308 = vmul.f32 %v2307, 1.442695
  %v2309 = vpow.pop %v2308
  %v2310 = vadd.f32 %v2309, 1.0
  %v2311 = vrcp.pop %v2310
  %v2312 = vmul.f32 1.0, %v2311
  %v2313 = vtanh.pop %v2306
  %v2314 = vmul.f32 %v2312, %v2053
  %2316 = vrot.lane.b32.xlu0 %v2313, 32
  %v2317 = vpop.permute.xlu0 %2316
  %v2319 = vmul.f32 %v2312, %v2317
  %2321 = vrot.lane.b32.xlu0 %v2319, 32
  %v2322 = vpop.permute.xlu0 %2321
  %v2324 = vadd.f32 %v2314, %v2322
  %v2325 = vtanh.pop %v2324
  %2327 = vrot.lane.b32.xlu0 %v2325, 32
  %v2328 = vpop.permute.xlu0 %2327
  %v2330 = vmul.f32 %v2312, %v2328
  %2332 = vrot.lane.b32.xlu0 %v2235, 64
  %v2333 = vpop.permute.xlu0 %2332
  %v2334 = vsel %vm1961, %v2333, 0
  %2336 = vmatprep.subr.mxu0 0.0
  %2337 = vmatpush1.msra.mxu0 %v78
  %2338 = vmatprep.subr.mxu0 0.0
  %2339 = vmatpush1.msra.mxu0 %v79
  %2340 = vmatprep.subr.mxu0 0.0
  %2341 = vmatpush1.msra.mxu0 %v80
  %2342 = vmatprep.subr.mxu0 0.0
  %2343 = vmatpush1.msra.mxu0 %v81
  %2344 = vmatprep.subr.mxu0 0.0
  %2345 = vmatpush1.msra.mxu0 0.0
  %2346 = vmatprep.subr.mxu0 0.0
  %2347 = vmatpush1.msra.mxu0 0.0
  %2348 = vmatprep.subr.mxu0 0.0
  %2349 = vmatpush1.msra.mxu0 0.0
  %2350 = vmatprep.subr.mxu0 0.0
  %2351 = vmatpush1.msra.mxu0 0.0
  %2352 = vmatprep.subr.mxu0 0.0
  %2353 = vmatpush1.msra.mxu0 0.0
  %2354 = vmatprep.subr.mxu0 0.0
  %2355 = vmatpush1.msra.mxu0 0.0
  %2356 = vmatprep.subr.mxu0 0.0
  %2357 = vmatpush1.msra.mxu0 0.0
  %2358 = vmatprep.subr.mxu0 0.0
  %2359 = vmatpush1.msra.mxu0 0.0
  %2360 = vmatprep.subr.mxu0 0.0
  %2361 = vmatpush1.msra.mxu0 0.0
  %2362 = vmatprep.subr.mxu0 0.0
  %2363 = vmatpush1.msra.mxu0 0.0
  %2364 = vmatprep.subr.mxu0 0.0
  %2365 = vmatpush1.msra.mxu0 0.0
  %2366 = vmatprep.subr.mxu0 0.0
  %2367 = vmatpush1.msra.mxu0 0.0
  %2368 = vmatprep.subr.mxu0 0.0
  %2369 = vmatpush1.msra.mxu0 0.0
  %2370 = vmatprep.subr.mxu0 0.0
  %2371 = vmatpush1.msra.mxu0 0.0
  %2372 = vmatprep.subr.mxu0 0.0
  %2373 = vmatpush1.msra.mxu0 0.0
  %2374 = vmatprep.subr.mxu0 0.0
  %2375 = vmatpush1.msra.mxu0 0.0
  %2376 = vmatprep.subr.mxu0 0.0
  %2377 = vmatpush1.msra.mxu0 0.0
  %2378 = vmatprep.subr.mxu0 0.0
  %2379 = vmatpush1.msra.mxu0 0.0
  %2380 = vmatprep.subr.mxu0 0.0
  %2381 = vmatpush1.msra.mxu0 0.0
  %2382 = vmatprep.subr.mxu0 0.0
  %2383 = vmatpush1.msra.mxu0 0.0
  %2384 = vmatprep.subr.mxu0 0.0
  %2385 = vmatpush1.msra.mxu0 0.0
  %2386 = vmatprep.subr.mxu0 0.0
  %2387 = vmatpush1.msra.mxu0 0.0
  %2388 = vmatprep.subr.mxu0 0.0
  %2389 = vmatpush1.msra.mxu0 0.0
  %2390 = vmatprep.subr.mxu0 0.0
  %2391 = vmatpush1.msra.mxu0 0.0
  %2392 = vmatprep.subr.mxu0 0.0
  %2393 = vmatpush1.msra.mxu0 0.0
  %2394 = vmatprep.subr.mxu0 0.0
  %2395 = vmatpush1.msra.mxu0 0.0
  %2396 = vmatprep.subr.mxu0 0.0
  %2397 = vmatpush1.msra.mxu0 0.0
  %2398 = vmatprep.subr.mxu0 0.0
  %2399 = vmatpush1.msra.mxu0 0.0
  %2400 = vmatprep.mubr.f32.mxu0 0.0
  %2401 = vmatmul.mubr.f32.gmra.mrb[0].mxu0 %v2334
  %v2402 = vpop.f32.mrb[0].mxu0
  %v2403 = vadd.f32 0.0, %v2402
  %v2404 = vpop.f32.mrb[0].mxu0
  %2405 = vdwg.mxu0
  %2407 = vrot.lane.b32.xlu0 %v2330, 64
  %v2408 = vpop.permute.xlu0 %2407
  %v2409 = vsel %vm1961, %v2408, 0
  %2411 = vmatprep.subr.mxu0 0.0
  %2412 = vmatpush1.msra.mxu0 %v74
  %2413 = vmatprep.subr.mxu0 0.0
  %2414 = vmatpush1.msra.mxu0 %v75
  %2415 = vmatprep.subr.mxu0 0.0
  %2416 = vmatpush1.msra.mxu0 %v76
  %2417 = vmatprep.subr.mxu0 0.0
  %2418 = vmatpush1.msra.mxu0 %v77
  %2419 = vmatprep.subr.mxu0 0.0
  %2420 = vmatpush1.msra.mxu0 0.0
  %2421 = vmatprep.subr.mxu0 0.0
  %2422 = vmatpush1.msra.mxu0 0.0
  %2423 = vmatprep.subr.mxu0 0.0
  %2424 = vmatpush1.msra.mxu0 0.0
  %2425 = vmatprep.subr.mxu0 0.0
  %2426 = vmatpush1.msra.mxu0 0.0
  %2427 = vmatprep.subr.mxu0 0.0
  %2428 = vmatpush1.msra.mxu0 0.0
  %2429 = vmatprep.subr.mxu0 0.0
  %2430 = vmatpush1.msra.mxu0 0.0
  %2431 = vmatprep.subr.mxu0 0.0
  %2432 = vmatpush1.msra.mxu0 0.0
  %2433 = vmatprep.subr.mxu0 0.0
  %2434 = vmatpush1.msra.mxu0 0.0
  %2435 = vmatprep.subr.mxu0 0.0
  %2436 = vmatpush1.msra.mxu0 0.0
  %2437 = vmatprep.subr.mxu0 0.0
  %2438 = vmatpush1.msra.mxu0 0.0
  %2439 = vmatprep.subr.mxu0 0.0
  %2440 = vmatpush1.msra.mxu0 0.0
  %2441 = vmatprep.subr.mxu0 0.0
  %2442 = vmatpush1.msra.mxu0 0.0
  %2443 = vmatprep.subr.mxu0 0.0
  %2444 = vmatpush1.msra.mxu0 0.0
  %2445 = vmatprep.subr.mxu0 0.0
  %2446 = vmatpush1.msra.mxu0 0.0
  %2447 = vmatprep.subr.mxu0 0.0
  %2448 = vmatpush1.msra.mxu0 0.0
  %2449 = vmatprep.subr.mxu0 0.0
  %2450 = vmatpush1.msra.mxu0 0.0
  %2451 = vmatprep.subr.mxu0 0.0
  %2452 = vmatpush1.msra.mxu0 0.0
  %2453 = vmatprep.subr.mxu0 0.0
  %2454 = vmatpush1.msra.mxu0 0.0
  %2455 = vmatprep.subr.mxu0 0.0
  %2456 = vmatpush1.msra.mxu0 0.0
  %2457 = vmatprep.subr.mxu0 0.0
  %2458 = vmatpush1.msra.mxu0 0.0
  %2459 = vmatprep.subr.mxu0 0.0
  %2460 = vmatpush1.msra.mxu0 0.0
  %2461 = vmatprep.subr.mxu0 0.0
  %2462 = vmatpush1.msra.mxu0 0.0
  %2463 = vmatprep.subr.mxu0 0.0
  %2464 = vmatpush1.msra.mxu0 0.0
  %2465 = vmatprep.subr.mxu0 0.0
  %2466 = vmatpush1.msra.mxu0 0.0
  %2467 = vmatprep.subr.mxu0 0.0
  %2468 = vmatpush1.msra.mxu0 0.0
  %2469 = vmatprep.subr.mxu0 0.0
  %2470 = vmatpush1.msra.mxu0 0.0
  %2471 = vmatprep.subr.mxu0 0.0
  %2472 = vmatpush1.msra.mxu0 0.0
  %2473 = vmatprep.subr.mxu0 0.0
  %2474 = vmatpush1.msra.mxu0 0.0
  %2475 = vmatprep.mubr.f32.mxu0 0.0
  %2476 = vmatmul.mubr.f32.gmra.mrb[0].mxu0 %v2409
  %v2477 = vpop.f32.mrb[0].mxu0
  %v2478 = vadd.f32 %v2403, %v2477
  %v2479 = vpop.f32.mrb[0].mxu0
  %2480 = vdwg.mxu0
  %v2481 = vadd.f32 %v2478, %v2209
  %v2482 = vxor.u32 %v2481, 2147483648
  %v2483 = vmul.f32 %v2482, 1.442695
  %v2484 = vpow.pop %v2483
  %v2485 = vadd.f32 %v2484, 1.0
  %v2486 = vrcp.pop %v2485
  %v2487 = vmul.f32 1.0, %v2486
  %v2488 = vtanh.pop %v2481
  %v2489 = vmul.f32 %v2487, %v2229
  %2491 = vrot.lane.b32.xlu0 %v2488, 32
  %v2492 = vpop.permute.xlu0 %2491
  %v2494 = vmul.f32 %v2487, %v2492
  %2496 = vrot.lane.b32.xlu0 %v2494, 32
  %v2497 = vpop.permute.xlu0 %2496
  %v2499 = vadd.f32 %v2489, %v2497
  %v2500 = vtanh.pop %v2499
  %2502 = vrot.lane.b32.xlu0 %v2500, 32
  %v2503 = vpop.permute.xlu0 %2502
  %v2505 = vmul.f32 %v2487, %v2503
  %2506 = vmatprep.subr.mxu0 0.0
  %2507 = vmatpush1.msra.mxu0 %v70
  %2508 = vmatprep.subr.mxu0 0.0
  %2509 = vmatpush1.msra.mxu0 %v71
  %2510 = vmatprep.subr.mxu0 0.0
  %2511 = vmatpush1.msra.mxu0 %v72
  %2512 = vmatprep.subr.mxu0 0.0
  %2513 = vmatpush1.msra.mxu0 %v73
  %2514 = vmatprep.subr.mxu0 0.0
  %2515 = vmatpush1.msra.mxu0 0.0
  %2516 = vmatprep.subr.mxu0 0.0
  %2517 = vmatpush1.msra.mxu0 0.0
  %2518 = vmatprep.subr.mxu0 0.0
  %2519 = vmatpush1.msra.mxu0 0.0
  %2520 = vmatprep.subr.mxu0 0.0
  %2521 = vmatpush1.msra.mxu0 0.0
  %2522 = vmatprep.subr.mxu0 0.0
  %2523 = vmatpush1.msra.mxu0 0.0
  %2524 = vmatprep.subr.mxu0 0.0
  %2525 = vmatpush1.msra.mxu0 0.0
  %2526 = vmatprep.subr.mxu0 0.0
  %2527 = vmatpush1.msra.mxu0 0.0
  %2528 = vmatprep.subr.mxu0 0.0
  %2529 = vmatpush1.msra.mxu0 0.0
  %2530 = vmatprep.subr.mxu0 0.0
  %2531 = vmatpush1.msra.mxu0 0.0
  %2532 = vmatprep.subr.mxu0 0.0
  %2533 = vmatpush1.msra.mxu0 0.0
  %2534 = vmatprep.subr.mxu0 0.0
  %2535 = vmatpush1.msra.mxu0 0.0
  %2536 = vmatprep.subr.mxu0 0.0
  %2537 = vmatpush1.msra.mxu0 0.0
  %2538 = vmatprep.subr.mxu0 0.0
  %2539 = vmatpush1.msra.mxu0 0.0
  %2540 = vmatprep.subr.mxu0 0.0
  %2541 = vmatpush1.msra.mxu0 0.0
  %2542 = vmatprep.subr.mxu0 0.0
  %2543 = vmatpush1.msra.mxu0 0.0
  %2544 = vmatprep.subr.mxu0 0.0
  %2545 = vmatpush1.msra.mxu0 0.0
  %2546 = vmatprep.subr.mxu0 0.0
  %2547 = vmatpush1.msra.mxu0 0.0
  %2548 = vmatprep.subr.mxu0 0.0
  %2549 = vmatpush1.msra.mxu0 0.0
  %2550 = vmatprep.subr.mxu0 0.0
  %2551 = vmatpush1.msra.mxu0 0.0
  %2552 = vmatprep.subr.mxu0 0.0
  %2553 = vmatpush1.msra.mxu0 0.0
  %2554 = vmatprep.subr.mxu0 0.0
  %2555 = vmatpush1.msra.mxu0 0.0
  %2556 = vmatprep.subr.mxu0 0.0
  %2557 = vmatpush1.msra.mxu0 0.0
  %2558 = vmatprep.subr.mxu0 0.0
  %2559 = vmatpush1.msra.mxu0 0.0
  %2560 = vmatprep.subr.mxu0 0.0
  %2561 = vmatpush1.msra.mxu0 0.0
  %2562 = vmatprep.subr.mxu0 0.0
  %2563 = vmatpush1.msra.mxu0 0.0
  %2564 = vmatprep.subr.mxu0 0.0
  %2565 = vmatpush1.msra.mxu0 0.0
  %2566 = vmatprep.subr.mxu0 0.0
  %2567 = vmatpush1.msra.mxu0 0.0
  %2568 = vmatprep.subr.mxu0 0.0
  %2569 = vmatpush1.msra.mxu0 0.0
  %2570 = vmatprep.mubr.f32.mxu0 0.0
  %2571 = vmatmul.mubr.f32.gmra.mrb[0].mxu0 %v2409
  %v2572 = vpop.f32.mrb[0].mxu0
  %v2573 = vadd.f32 0.0, %v2572
  %v2574 = vpop.f32.mrb[0].mxu0
  %2575 = vdwg.mxu0
  %v2576 = vadd.f32 %v1087, %v2573
  %v2577 = vxor.u32 %v2576, 2147483648
  %v2578 = vmul.f32 %v2577, 1.442695
  %v2579 = vpow.pop %v2578
  %v2580 = vadd.f32 %v2579, 1.0
  %v2581 = vrcp.pop %v2580
  %v2582 = vmul.f32 1.0, %v2581
  %v2583 = vtanh.pop %v2576
  %v2584 = vmul.f32 %v2582, %v2324
  %2586 = vrot.lane.b32.xlu0 %v2583, 32
  %v2587 = vpop.permute.xlu0 %2586
  %v2589 = vmul.f32 %v2582, %v2587
  %2591 = vrot.lane.b32.xlu0 %v2589, 32
  %v2592 = vpop.permute.xlu0 %2591
  %v2594 = vadd.f32 %v2584, %v2592
  %v2595 = vtanh.pop %v2594
  %2597 = vrot.lane.b32.xlu0 %v2595, 32
  %v2598 = vpop.permute.xlu0 %2597
  %v2600 = vmul.f32 %v2582, %v2598
  %2602 = vrot.lane.b32.xlu0 %v2505, 64
  %v2603 = vpop.permute.xlu0 %2602
  %v2604 = vsel %vm1961, %v2603, 0
  %2606 = vmatprep.subr.mxu0 0.0
  %2607 = vmatpush1.msra.mxu0 %v78
  %2608 = vmatprep.subr.mxu0 0.0
  %2609 = vmatpush1.msra.mxu0 %v79
  %2610 = vmatprep.subr.mxu0 0.0
  %2611 = vmatpush1.msra.mxu0 %v80
  %2612 = vmatprep.subr.mxu0 0.0
  %2613 = vmatpush1.msra.mxu0 %v81
  %2614 = vmatprep.subr.mxu0 0.0
  %2615 = vmatpush1.msra.mxu0 0.0
  %2616 = vmatprep.subr.mxu0 0.0
  %2617 = vmatpush1.msra.mxu0 0.0
  %2618 = vmatprep.subr.mxu0 0.0
  %2619 = vmatpush1.msra.mxu0 0.0
  %2620 = vmatprep.subr.mxu0 0.0
  %2621 = vmatpush1.msra.mxu0 0.0
  %2622 = vmatprep.subr.mxu0 0.0
  %2623 = vmatpush1.msra.mxu0 0.0
  %2624 = vmatprep.subr.mxu0 0.0
  %2625 = vmatpush1.msra.mxu0 0.0
  %2626 = vmatprep.subr.mxu0 0.0
  %2627 = vmatpush1.msra.mxu0 0.0
  %2628 = vmatprep.subr.mxu0 0.0
  %2629 = vmatpush1.msra.mxu0 0.0
  %2630 = vmatprep.subr.mxu0 0.0
  %2631 = vmatpush1.msra.mxu0 0.0
  %2632 = vmatprep.subr.mxu0 0.0
  %2633 = vmatpush1.msra.mxu0 0.0
  %2634 = vmatprep.subr.mxu0 0.0
  %2635 = vmatpush1.msra.mxu0 0.0
  %2636 = vmatprep.subr.mxu0 0.0
  %2637 = vmatpush1.msra.mxu0 0.0
  %2638 = vmatprep.subr.mxu0 0.0
  %2639 = vmatpush1.msra.mxu0 0.0
  %2640 = vmatprep.subr.mxu0 0.0
  %2641 = vmatpush1.msra.mxu0 0.0
  %2642 = vmatprep.subr.mxu0 0.0
  %2643 = vmatpush1.msra.mxu0 0.0
  %2644 = vmatprep.subr.mxu0 0.0
  %2645 = vmatpush1.msra.mxu0 0.0
  %2646 = vmatprep.subr.mxu0 0.0
  %2647 = vmatpush1.msra.mxu0 0.0
  %2648 = vmatprep.subr.mxu0 0.0
  %2649 = vmatpush1.msra.mxu0 0.0
  %2650 = vmatprep.subr.mxu0 0.0
  %2651 = vmatpush1.msra.mxu0 0.0
  %2652 = vmatprep.subr.mxu0 0.0
  %2653 = vmatpush1.msra.mxu0 0.0
  %2654 = vmatprep.subr.mxu0 0.0
  %2655 = vmatpush1.msra.mxu0 0.0
  %2656 = vmatprep.subr.mxu0 0.0
  %2657 = vmatpush1.msra.mxu0 0.0
  %2658 = vmatprep.subr.mxu0 0.0
  %2659 = vmatpush1.msra.mxu0 0.0
  %2660 = vmatprep.subr.mxu0 0.0
  %2661 = vmatpush1.msra.mxu0 0.0
  %2662 = vmatprep.subr.mxu0 0.0
  %2663 = vmatpush1.msra.mxu0 0.0
  %2664 = vmatprep.subr.mxu0 0.0
  %2665 = vmatpush1.msra.mxu0 0.0
  %2666 = vmatprep.subr.mxu0 0.0
  %2667 = vmatpush1.msra.mxu0 0.0
  %2668 = vmatprep.subr.mxu0 0.0
  %2669 = vmatpush1.msra.mxu0 0.0
  %2670 = vmatprep.mubr.f32.mxu0 0.0
  %2671 = vmatmul.mubr.f32.gmra.mrb[0].mxu0 %v2604
  %v2672 = vpop.f32.mrb[0].mxu0
  %v2673 = vadd.f32 0.0, %v2672
  %v2674 = vpop.f32.mrb[0].mxu0
  %2675 = vdwg.mxu0
  %2677 = vrot.lane.b32.xlu0 %v2600, 64
  %v2678 = vpop.permute.xlu0 %2677
  %v2679 = vsel %vm1961, %v2678, 0
  %2681 = vmatprep.subr.mxu0 0.0
  %2682 = vmatpush1.msra.mxu0 %v74
  %2683 = vmatprep.subr.mxu0 0.0
  %2684 = vmatpush1.msra.mxu0 %v75
  %2685 = vmatprep.subr.mxu0 0.0
  %2686 = vmatpush1.msra.mxu0 %v76
  %2687 = vmatprep.subr.mxu0 0.0
  %2688 = vmatpush1.msra.mxu0 %v77
  %2689 = vmatprep.subr.mxu0 0.0
  %2690 = vmatpush1.msra.mxu0 0.0
  %2691 = vmatprep.subr.mxu0 0.0
  %2692 = vmatpush1.msra.mxu0 0.0
  %2693 = vmatprep.subr.mxu0 0.0
  %2694 = vmatpush1.msra.mxu0 0.0
  %2695 = vmatprep.subr.mxu0 0.0
  %2696 = vmatpush1.msra.mxu0 0.0
  %2697 = vmatprep.subr.mxu0 0.0
  %2698 = vmatpush1.msra.mxu0 0.0
  %2699 = vmatprep.subr.mxu0 0.0
  %2700 = vmatpush1.msra.mxu0 0.0
  %2701 = vmatprep.subr.mxu0 0.0
  %2702 = vmatpush1.msra.mxu0 0.0
  %2703 = vmatprep.subr.mxu0 0.0
  %2704 = vmatpush1.msra.mxu0 0.0
  %2705 = vmatprep.subr.mxu0 0.0
  %2706 = vmatpush1.msra.mxu0 0.0
  %2707 = vmatprep.subr.mxu0 0.0
  %2708 = vmatpush1.msra.mxu0 0.0
  %2709 = vmatprep.subr.mxu0 0.0
  %2710 = vmatpush1.msra.mxu0 0.0
  %2711 = vmatprep.subr.mxu0 0.0
  %2712 = vmatpush1.msra.mxu0 0.0
  %2713 = vmatprep.subr.mxu0 0.0
  %2714 = vmatpush1.msra.mxu0 0.0
  %2715 = vmatprep.subr.mxu0 0.0
  %2716 = vmatpush1.msra.mxu0 0.0
  %2717 = vmatprep.subr.mxu0 0.0
  %2718 = vmatpush1.msra.mxu0 0.0
  %2719 = vmatprep.subr.mxu0 0.0
  %2720 = vmatpush1.msra.mxu0 0.0
  %2721 = vmatprep.subr.mxu0 0.0
  %2722 = vmatpush1.msra.mxu0 0.0
  %2723 = vmatprep.subr.mxu0 0.0
  %2724 = vmatpush1.msra.mxu0 0.0
  %2725 = vmatprep.subr.mxu0 0.0
  %2726 = vmatpush1.msra.mxu0 0.0
  %2727 = vmatprep.subr.mxu0 0.0
  %2728 = vmatpush1.msra.mxu0 0.0
  %2729 = vmatprep.subr.mxu0 0.0
  %2730 = vmatpush1.msra.mxu0 0.0
  %2731 = vmatprep.subr.mxu0 0.0
  %2732 = vmatpush1.msra.mxu0 0.0
  %2733 = vmatprep.subr.mxu0 0.0
  %2734 = vmatpush1.msra.mxu0 0.0
  %2735 = vmatprep.subr.mxu0 0.0
  %2736 = vmatpush1.msra.mxu0 0.0
  %2737 = vmatprep.subr.mxu0 0.0
  %2738 = vmatpush1.msra.mxu0 0.0
  %2739 = vmatprep.subr.mxu0 0.0
  %2740 = vmatpush1.msra.mxu0 0.0
  %2741 = vmatprep.subr.mxu0 0.0
  %2742 = vmatpush1.msra.mxu0 0.0
  %2743 = vmatprep.subr.mxu0 0.0
  %2744 = vmatpush1.msra.mxu0 0.0
  %2745 = vmatprep.mubr.f32.mxu0 0.0
  %2746 = vmatmul.mubr.f32.gmra.mrb[0].mxu0 %v2679
  %v2747 = vpop.f32.mrb[0].mxu0
  %v2748 = vadd.f32 %v2673, %v2747
  %v2749 = vpop.f32.mrb[0].mxu0
  %2750 = vdwg.mxu0
  %v2751 = vadd.f32 %v2748, %v2209
  %v2752 = vxor.u32 %v2751, 2147483648
  %v2753 = vmul.f32 %v2752, 1.442695
  %v2754 = vpow.pop %v2753
  %v2755 = vadd.f32 %v2754, 1.0
  %v2756 = vrcp.pop %v2755
  %v2757 = vmul.f32 1.0, %v2756
  %v2758 = vtanh.pop %v2751
  %v2759 = vmul.f32 %v2757, %v2499
  %2761 = vrot.lane.b32.xlu0 %v2758, 32
  %v2762 = vpop.permute.xlu0 %2761
  %v2764 = vmul.f32 %v2757, %v2762
  %2766 = vrot.lane.b32.xlu0 %v2764, 32
  %v2767 = vpop.permute.xlu0 %2766
  %v2769 = vadd.f32 %v2759, %v2767
  %v2770 = vtanh.pop %v2769
  %2772 = vrot.lane.b32.xlu0 %v2770, 32
  %v2773 = vpop.permute.xlu0 %2772
  %v2775 = vmul.f32 %v2757, %v2773
  %2776 = vmatprep.subr.mxu0 0.0
  %2777 = vmatpush1.msra.mxu0 %v70
  %2778 = vmatprep.subr.mxu0 0.0
  %2779 = vmatpush1.msra.mxu0 %v71
  %2780 = vmatprep.subr.mxu0 0.0
  %2781 = vmatpush1.msra.mxu0 %v72
  %2782 = vmatprep.subr.mxu0 0.0
  %2783 = vmatpush1.msra.mxu0 %v73
  %2784 = vmatprep.subr.mxu0 0.0
  %2785 = vmatpush1.msra.mxu0 0.0
  %2786 = vmatprep.subr.mxu0 0.0
  %2787 = vmatpush1.msra.mxu0 0.0
  %2788 = vmatprep.subr.mxu0 0.0
  %2789 = vmatpush1.msra.mxu0 0.0
  %2790 = vmatprep.subr.mxu0 0.0
  %2791 = vmatpush1.msra.mxu0 0.0
  %2792 = vmatprep.subr.mxu0 0.0
  %2793 = vmatpush1.msra.mxu0 0.0
  %2794 = vmatprep.subr.mxu0 0.0
  %2795 = vmatpush1.msra.mxu0 0.0
  %2796 = vmatprep.subr.mxu0 0.0
  %2797 = vmatpush1.msra.mxu0 0.0
  %2798 = vmatprep.subr.mxu0 0.0
  %2799 = vmatpush1.msra.mxu0 0.0
  %2800 = vmatprep.subr.mxu0 0.0
  %2801 = vmatpush1.msra.mxu0 0.0
  %2802 = vmatprep.subr.mxu0 0.0
  %2803 = vmatpush1.msra.mxu0 0.0
  %2804 = vmatprep.subr.mxu0 0.0
  %2805 = vmatpush1.msra.mxu0 0.0
  %2806 = vmatprep.subr.mxu0 0.0
  %2807 = vmatpush1.msra.mxu0 0.0
  %2808 = vmatprep.subr.mxu0 0.0
  %2809 = vmatpush1.msra.mxu0 0.0
  %2810 = vmatprep.subr.mxu0 0.0
  %2811 = vmatpush1.msra.mxu0 0.0
  %2812 = vmatprep.subr.mxu0 0.0
  %2813 = vmatpush1.msra.mxu0 0.0
  %2814 = vmatprep.subr.mxu0 0.0
  %2815 = vmatpush1.msra.mxu0 0.0
  %2816 = vmatprep.subr.mxu0 0.0
  %2817 = vmatpush1.msra.mxu0 0.0
  %2818 = vmatprep.subr.mxu0 0.0
  %2819 = vmatpush1.msra.mxu0 0.0
  %2820 = vmatprep.subr.mxu0 0.0
  %2821 = vmatpush1.msra.mxu0 0.0
  %2822 = vmatprep.subr.mxu0 0.0
  %2823 = vmatpush1.msra.mxu0 0.0
  %2824 = vmatprep.subr.mxu0 0.0
  %2825 = vmatpush1.msra.mxu0 0.0
  %2826 = vmatprep.subr.mxu0 0.0
  %2827 = vmatpush1.msra.mxu0 0.0
  %2828 = vmatprep.subr.mxu0 0.0
  %2829 = vmatpush1.msra.mxu0 0.0
  %2830 = vmatprep.subr.mxu0 0.0
  %2831 = vmatpush1.msra.mxu0 0.0
  %2832 = vmatprep.subr.mxu0 0.0
  %2833 = vmatpush1.msra.mxu0 0.0
  %2834 = vmatprep.subr.mxu0 0.0
  %2835 = vmatpush1.msra.mxu0 0.0
  %2836 = vmatprep.subr.mxu0 0.0
  %2837 = vmatpush1.msra.mxu0 0.0
  %2838 = vmatprep.subr.mxu0 0.0
  %2839 = vmatpush1.msra.mxu0 0.0
  %2840 = vmatprep.mubr.f32.mxu0 0.0
  %2841 = vmatmul.mubr.f32.gmra.mrb[0].mxu0 %v2679
  %v2842 = vpop.f32.mrb[0].mxu0
  %v2843 = vadd.f32 0.0, %v2842
  %v2844 = vpop.f32.mrb[0].mxu0
  %2845 = vdwg.mxu0
  %v2846 = vadd.f32 %v1378, %v2843
  %v2847 = vxor.u32 %v2846, 2147483648
  %v2848 = vmul.f32 %v2847, 1.442695
  %v2849 = vpow.pop %v2848
  %v2850 = vadd.f32 %v2849, 1.0
  %v2851 = vrcp.pop %v2850
  %v2852 = vmul.f32 1.0, %v2851
  %v2853 = vtanh.pop %v2846
  %v2854 = vmul.f32 %v2852, %v2594
  %2856 = vrot.lane.b32.xlu0 %v2853, 32
  %v2857 = vpop.permute.xlu0 %2856
  %v2859 = vmul.f32 %v2852, %v2857
  %2861 = vrot.lane.b32.xlu0 %v2859, 32
  %v2862 = vpop.permute.xlu0 %2861
  %v2864 = vadd.f32 %v2854, %v2862
  %v2865 = vtanh.pop %v2864
  %2867 = vrot.lane.b32.xlu0 %v2865, 32
  %v2868 = vpop.permute.xlu0 %2867
  %v2870 = vmul.f32 %v2852, %v2868
  %2872 = vrot.lane.b32.xlu0 %v2775, 64
  %v2873 = vpop.permute.xlu0 %2872
  %v2874 = vsel %vm1961, %v2873, 0
  %2876 = vmatprep.subr.mxu0 0.0
  %2877 = vmatpush1.msra.mxu0 %v78
  %2878 = vmatprep.subr.mxu0 0.0
  %2879 = vmatpush1.msra.mxu0 %v79
  %2880 = vmatprep.subr.mxu0 0.0
  %2881 = vmatpush1.msra.mxu0 %v80
  %2882 = vmatprep.subr.mxu0 0.0
  %2883 = vmatpush1.msra.mxu0 %v81
  %2884 = vmatprep.subr.mxu0 0.0
  %2885 = vmatpush1.msra.mxu0 0.0
  %2886 = vmatprep.subr.mxu0 0.0
  %2887 = vmatpush1.msra.mxu0 0.0
  %2888 = vmatprep.subr.mxu0 0.0
  %2889 = vmatpush1.msra.mxu0 0.0
  %2890 = vmatprep.subr.mxu0 0.0
  %2891 = vmatpush1.msra.mxu0 0.0
  %2892 = vmatprep.subr.mxu0 0.0
  %2893 = vmatpush1.msra.mxu0 0.0
  %2894 = vmatprep.subr.mxu0 0.0
  %2895 = vmatpush1.msra.mxu0 0.0
  %2896 = vmatprep.subr.mxu0 0.0
  %2897 = vmatpush1.msra.mxu0 0.0
  %2898 = vmatprep.subr.mxu0 0.0
  %2899 = vmatpush1.msra.mxu0 0.0
  %2900 = vmatprep.subr.mxu0 0.0
  %2901 = vmatpush1.msra.mxu0 0.0
  %2902 = vmatprep.subr.mxu0 0.0
  %2903 = vmatpush1.msra.mxu0 0.0
  %2904 = vmatprep.subr.mxu0 0.0
  %2905 = vmatpush1.msra.mxu0 0.0
  %2906 = vmatprep.subr.mxu0 0.0
  %2907 = vmatpush1.msra.mxu0 0.0
  %2908 = vmatprep.subr.mxu0 0.0
  %2909 = vmatpush1.msra.mxu0 0.0
  %2910 = vmatprep.subr.mxu0 0.0
  %2911 = vmatpush1.msra.mxu0 0.0
  %2912 = vmatprep.subr.mxu0 0.0
  %2913 = vmatpush1.msra.mxu0 0.0
  %2914 = vmatprep.subr.mxu0 0.0
  %2915 = vmatpush1.msra.mxu0 0.0
  %2916 = vmatprep.subr.mxu0 0.0
  %2917 = vmatpush1.msra.mxu0 0.0
  %2918 = vmatprep.subr.mxu0 0.0
  %2919 = vmatpush1.msra.mxu0 0.0
  %2920 = vmatprep.subr.mxu0 0.0
  %2921 = vmatpush1.msra.mxu0 0.0
  %2922 = vmatprep.subr.mxu0 0.0
  %2923 = vmatpush1.msra.mxu0 0.0
  %2924 = vmatprep.subr.mxu0 0.0
  %2925 = vmatpush1.msra.mxu0 0.0
  %2926 = vmatprep.subr.mxu0 0.0
  %2927 = vmatpush1.msra.mxu0 0.0
  %2928 = vmatprep.subr.mxu0 0.0
  %2929 = vmatpush1.msra.mxu0 0.0
  %2930 = vmatprep.subr.mxu0 0.0
  %2931 = vmatpush1.msra.mxu0 0.0
  %2932 = vmatprep.subr.mxu0 0.0
  %2933 = vmatpush1.msra.mxu0 0.0
  %2934 = vmatprep.subr.mxu0 0.0
  %2935 = vmatpush1.msra.mxu0 0.0
  %2936 = vmatprep.subr.mxu0 0.0
  %2937 = vmatpush1.msra.mxu0 0.0
  %2938 = vmatprep.subr.mxu0 0.0
  %2939 = vmatpush1.msra.mxu0 0.0
  %2940 = vmatprep.mubr.f32.mxu0 0.0
  %2941 = vmatmul.mubr.f32.gmra.mrb[0].mxu0 %v2874
  %v2942 = vpop.f32.mrb[0].mxu0
  %v2943 = vadd.f32 0.0, %v2942
  %v2944 = vpop.f32.mrb[0].mxu0
  %2945 = vdwg.mxu0
  %2947 = vrot.lane.b32.xlu0 %v2870, 64
  %v2948 = vpop.permute.xlu0 %2947
  %v2949 = vsel %vm1961, %v2948, 0
  %2951 = vmatprep.subr.mxu0 0.0
  %2952 = vmatpush1.msra.mxu0 %v74
  %2953 = vmatprep.subr.mxu0 0.0
  %2954 = vmatpush1.msra.mxu0 %v75
  %2955 = vmatprep.subr.mxu0 0.0
  %2956 = vmatpush1.msra.mxu0 %v76
  %2957 = vmatprep.subr.mxu0 0.0
  %2958 = vmatpush1.msra.mxu0 %v77
  %2959 = vmatprep.subr.mxu0 0.0
  %2960 = vmatpush1.msra.mxu0 0.0
  %2961 = vmatprep.subr.mxu0 0.0
  %2962 = vmatpush1.msra.mxu0 0.0
  %2963 = vmatprep.subr.mxu0 0.0
  %2964 = vmatpush1.msra.mxu0 0.0
  %2965 = vmatprep.subr.mxu0 0.0
  %2966 = vmatpush1.msra.mxu0 0.0
  %2967 = vmatprep.subr.mxu0 0.0
  %2968 = vmatpush1.msra.mxu0 0.0
  %2969 = vmatprep.subr.mxu0 0.0
  %2970 = vmatpush1.msra.mxu0 0.0
  %2971 = vmatprep.subr.mxu0 0.0
  %2972 = vmatpush1.msra.mxu0 0.0
  %2973 = vmatprep.subr.mxu0 0.0
  %2974 = vmatpush1.msra.mxu0 0.0
  %2975 = vmatprep.subr.mxu0 0.0
  %2976 = vmatpush1.msra.mxu0 0.0
  %2977 = vmatprep.subr.mxu0 0.0
  %2978 = vmatpush1.msra.mxu0 0.0
  %2979 = vmatprep.subr.mxu0 0.0
  %2980 = vmatpush1.msra.mxu0 0.0
  %2981 = vmatprep.subr.mxu0 0.0
  %2982 = vmatpush1.msra.mxu0 0.0
  %2983 = vmatprep.subr.mxu0 0.0
  %2984 = vmatpush1.msra.mxu0 0.0
  %2985 = vmatprep.subr.mxu0 0.0
  %2986 = vmatpush1.msra.mxu0 0.0
  %2987 = vmatprep.subr.mxu0 0.0
  %2988 = vmatpush1.msra.mxu0 0.0
  %2989 = vmatprep.subr.mxu0 0.0
  %2990 = vmatpush1.msra.mxu0 0.0
  %2991 = vmatprep.subr.mxu0 0.0
  %2992 = vmatpush1.msra.mxu0 0.0
  %2993 = vmatprep.subr.mxu0 0.0
  %2994 = vmatpush1.msra.mxu0 0.0
  %2995 = vmatprep.subr.mxu0 0.0
  %2996 = vmatpush1.msra.mxu0 0.0
  %2997 = vmatprep.subr.mxu0 0.0
  %2998 = vmatpush1.msra.mxu0 0.0
  %2999 = vmatprep.subr.mxu0 0.0
  %3000 = vmatpush1.msra.mxu0 0.0
  %3001 = vmatprep.subr.mxu0 0.0
  %3002 = vmatpush1.msra.mxu0 0.0
  %3003 = vmatprep.subr.mxu0 0.0
  %3004 = vmatpush1.msra.mxu0 0.0
  %3005 = vmatprep.subr.mxu0 0.0
  %3006 = vmatpush1.msra.mxu0 0.0
  %3007 = vmatprep.subr.mxu0 0.0
  %3008 = vmatpush1.msra.mxu0 0.0
  %3009 = vmatprep.subr.mxu0 0.0
  %3010 = vmatpush1.msra.mxu0 0.0
  %3011 = vmatprep.subr.mxu0 0.0
  %3012 = vmatpush1.msra.mxu0 0.0
  %3013 = vmatprep.subr.mxu0 0.0
  %3014 = vmatpush1.msra.mxu0 0.0
  %3015 = vmatprep.mubr.f32.mxu0 0.0
  %3016 = vmatmul.mubr.f32.gmra.mrb[0].mxu0 %v2949
  %v3017 = vpop.f32.mrb[0].mxu0
  %v3018 = vadd.f32 %v2943, %v3017
  %v3019 = vpop.f32.mrb[0].mxu0
  %3020 = vdwg.mxu0
  %v3021 = vadd.f32 %v3018, %v2209
  %v3022 = vxor.u32 %v3021, 2147483648
  %v3023 = vmul.f32 %v3022, 1.442695
  %v3024 = vpow.pop %v3023
  %v3025 = vadd.f32 %v3024, 1.0
  %v3026 = vrcp.pop %v3025
  %v3027 = vmul.f32 1.0, %v3026
  %v3028 = vtanh.pop %v3021
  %v3029 = vmul.f32 %v3027, %v2769
  %3031 = vrot.lane.b32.xlu0 %v3028, 32
  %v3032 = vpop.permute.xlu0 %3031
  %v3034 = vmul.f32 %v3027, %v3032
  %3036 = vrot.lane.b32.xlu0 %v3034, 32
  %v3037 = vpop.permute.xlu0 %3036
  %v3039 = vadd.f32 %v3029, %v3037
  %v3040 = vtanh.pop %v3039
  %3042 = vrot.lane.b32.xlu0 %v3040, 32
  %v3043 = vpop.permute.xlu0 %3042
  %v3045 = vmul.f32 %v3027, %v3043
  %3046 = vmatprep.subr.mxu0 0.0
  %3047 = vmatpush1.msra.mxu0 %v70
  %3048 = vmatprep.subr.mxu0 0.0
  %3049 = vmatpush1.msra.mxu0 %v71
  %3050 = vmatprep.subr.mxu0 0.0
  %3051 = vmatpush1.msra.mxu0 %v72
  %3052 = vmatprep.subr.mxu0 0.0
  %3053 = vmatpush1.msra.mxu0 %v73
  %3054 = vmatprep.subr.mxu0 0.0
  %3055 = vmatpush1.msra.mxu0 0.0
  %3056 = vmatprep.subr.mxu0 0.0
  %3057 = vmatpush1.msra.mxu0 0.0
  %3058 = vmatprep.subr.mxu0 0.0
  %3059 = vmatpush1.msra.mxu0 0.0
  %3060 = vmatprep.subr.mxu0 0.0
  %3061 = vmatpush1.msra.mxu0 0.0
  %3062 = vmatprep.subr.mxu0 0.0
  %3063 = vmatpush1.msra.mxu0 0.0
  %3064 = vmatprep.subr.mxu0 0.0
  %3065 = vmatpush1.msra.mxu0 0.0
  %3066 = vmatprep.subr.mxu0 0.0
  %3067 = vmatpush1.msra.mxu0 0.0
  %3068 = vmatprep.subr.mxu0 0.0
  %3069 = vmatpush1.msra.mxu0 0.0
  %3070 = vmatprep.subr.mxu0 0.0
  %3071 = vmatpush1.msra.mxu0 0.0
  %3072 = vmatprep.subr.mxu0 0.0
  %3073 = vmatpush1.msra.mxu0 0.0
  %3074 = vmatprep.subr.mxu0 0.0
  %3075 = vmatpush1.msra.mxu0 0.0
  %3076 = vmatprep.subr.mxu0 0.0
  %3077 = vmatpush1.msra.mxu0 0.0
  %3078 = vmatprep.subr.mxu0 0.0
  %3079 = vmatpush1.msra.mxu0 0.0
  %3080 = vmatprep.subr.mxu0 0.0
  %3081 = vmatpush1.msra.mxu0 0.0
  %3082 = vmatprep.subr.mxu0 0.0
  %3083 = vmatpush1.msra.mxu0 0.0
  %3084 = vmatprep.subr.mxu0 0.0
  %3085 = vmatpush1.msra.mxu0 0.0
  %3086 = vmatprep.subr.mxu0 0.0
  %3087 = vmatpush1.msra.mxu0 0.0
  %3088 = vmatprep.subr.mxu0 0.0
  %3089 = vmatpush1.msra.mxu0 0.0
  %3090 = vmatprep.subr.mxu0 0.0
  %3091 = vmatpush1.msra.mxu0 0.0
  %3092 = vmatprep.subr.mxu0 0.0
  %3093 = vmatpush1.msra.mxu0 0.0
  %3094 = vmatprep.subr.mxu0 0.0
  %3095 = vmatpush1.msra.mxu0 0.0
  %3096 = vmatprep.subr.mxu0 0.0
  %3097 = vmatpush1.msra.mxu0 0.0
  %3098 = vmatprep.subr.mxu0 0.0
  %3099 = vmatpush1.msra.mxu0 0.0
  %3100 = vmatprep.subr.mxu0 0.0
  %3101 = vmatpush1.msra.mxu0 0.0
  %3102 = vmatprep.subr.mxu0 0.0
  %3103 = vmatpush1.msra.mxu0 0.0
  %3104 = vmatprep.subr.mxu0 0.0
  %3105 = vmatpush1.msra.mxu0 0.0
  %3106 = vmatprep.subr.mxu0 0.0
  %3107 = vmatpush1.msra.mxu0 0.0
  %3108 = vmatprep.subr.mxu0 0.0
  %3109 = vmatpush1.msra.mxu0 0.0
  %3110 = vmatprep.mubr.f32.mxu0 0.0
  %3111 = vmatmul.mubr.f32.gmra.mrb[0].mxu0 %v2949
  %v3112 = vpop.f32.mrb[0].mxu0
  %v3113 = vadd.f32 0.0, %v3112
  %v3114 = vpop.f32.mrb[0].mxu0
  %3115 = vdwg.mxu0
  %v3116 = vadd.f32 %v1669, %v3113
  %v3117 = vxor.u32 %v3116, 2147483648
  %v3118 = vmul.f32 %v3117, 1.442695
  %v3119 = vpow.pop %v3118
  %v3120 = vadd.f32 %v3119, 1.0
  %v3121 = vrcp.pop %v3120
  %v3122 = vmul.f32 1.0, %v3121
  %v3123 = vtanh.pop %v3116
  %v3124 = vmul.f32 %v3122, %v2864
  %3126 = vrot.lane.b32.xlu0 %v3123, 32
  %v3127 = vpop.permute.xlu0 %3126
  %v3129 = vmul.f32 %v3122, %v3127
  %3131 = vrot.lane.b32.xlu0 %v3129, 32
  %v3132 = vpop.permute.xlu0 %3131
  %v3134 = vadd.f32 %v3124, %v3132
  %v3135 = vtanh.pop %v3134
  %3137 = vrot.lane.b32.xlu0 %v3135, 32
  %v3138 = vpop.permute.xlu0 %3137
  %v3140 = vmul.f32 %v3122, %v3138
  %3142 = vrot.lane.b32.xlu0 %v3045, 64
  %v3143 = vpop.permute.xlu0 %3142
  %v3144 = vsel %vm1961, %v3143, 0
  %3146 = vmatprep.subr.mxu0 0.0
  %3147 = vmatpush1.msra.mxu0 %v78
  %3148 = vmatprep.subr.mxu0 0.0
  %3149 = vmatpush1.msra.mxu0 %v79
  %3150 = vmatprep.subr.mxu0 0.0
  %3151 = vmatpush1.msra.mxu0 %v80
  %3152 = vmatprep.subr.mxu0 0.0
  %3153 = vmatpush1.msra.mxu0 %v81
  %3154 = vmatprep.subr.mxu0 0.0
  %3155 = vmatpush1.msra.mxu0 0.0
  %3156 = vmatprep.subr.mxu0 0.0
  %3157 = vmatpush1.msra.mxu0 0.0
  %3158 = vmatprep.subr.mxu0 0.0
  %3159 = vmatpush1.msra.mxu0 0.0
  %3160 = vmatprep.subr.mxu0 0.0
  %3161 = vmatpush1.msra.mxu0 0.0
  %3162 = vmatprep.subr.mxu0 0.0
  %3163 = vmatpush1.msra.mxu0 0.0
  %3164 = vmatprep.subr.mxu0 0.0
  %3165 = vmatpush1.msra.mxu0 0.0
  %3166 = vmatprep.subr.mxu0 0.0
  %3167 = vmatpush1.msra.mxu0 0.0
  %3168 = vmatprep.subr.mxu0 0.0
  %3169 = vmatpush1.msra.mxu0 0.0
  %3170 = vmatprep.subr.mxu0 0.0
  %3171 = vmatpush1.msra.mxu0 0.0
  %3172 = vmatprep.subr.mxu0 0.0
  %3173 = vmatpush1.msra.mxu0 0.0
  %3174 = vmatprep.subr.mxu0 0.0
  %3175 = vmatpush1.msra.mxu0 0.0
  %3176 = vmatprep.subr.mxu0 0.0
  %3177 = vmatpush1.msra.mxu0 0.0
  %3178 = vmatprep.subr.mxu0 0.0
  %3179 = vmatpush1.msra.mxu0 0.0
  %3180 = vmatprep.subr.mxu0 0.0
  %3181 = vmatpush1.msra.mxu0 0.0
  %3182 = vmatprep.subr.mxu0 0.0
  %3183 = vmatpush1.msra.mxu0 0.0
  %3184 = vmatprep.subr.mxu0 0.0
  %3185 = vmatpush1.msra.mxu0 0.0
  %3186 = vmatprep.subr.mxu0 0.0
  %3187 = vmatpush1.msra.mxu0 0.0
  %3188 = vmatprep.subr.mxu0 0.0
  %3189 = vmatpush1.msra.mxu0 0.0
  %3190 = vmatprep.subr.mxu0 0.0
  %3191 = vmatpush1.msra.mxu0 0.0
  %3192 = vmatprep.subr.mxu0 0.0
  %3193 = vmatpush1.msra.mxu0 0.0
  %3194 = vmatprep.subr.mxu0 0.0
  %3195 = vmatpush1.msra.mxu0 0.0
  %3196 = vmatprep.subr.mxu0 0.0
  %3197 = vmatpush1.msra.mxu0 0.0
  %3198 = vmatprep.subr.mxu0 0.0
  %3199 = vmatpush1.msra.mxu0 0.0
  %3200 = vmatprep.subr.mxu0 0.0
  %3201 = vmatpush1.msra.mxu0 0.0
  %3202 = vmatprep.subr.mxu0 0.0
  %3203 = vmatpush1.msra.mxu0 0.0
  %3204 = vmatprep.subr.mxu0 0.0
  %3205 = vmatpush1.msra.mxu0 0.0
  %3206 = vmatprep.subr.mxu0 0.0
  %3207 = vmatpush1.msra.mxu0 0.0
  %3208 = vmatprep.subr.mxu0 0.0
  %3209 = vmatpush1.msra.mxu0 0.0
  %3210 = vmatprep.mubr.f32.mxu0 0.0
  %3211 = vmatmul.mubr.f32.gmra.mrb[0].mxu0 %v3144
  %v3212 = vpop.f32.mrb[0].mxu0
  %v3213 = vadd.f32 0.0, %v3212
  %v3214 = vpop.f32.mrb[0].mxu0
  %3215 = vdwg.mxu0
  %3217 = vrot.lane.b32.xlu0 %v3140, 64
  %v3218 = vpop.permute.xlu0 %3217
  %v3219 = vsel %vm1961, %v3218, 0
  %3221 = vmatprep.subr.mxu0 0.0
  %3222 = vmatpush1.msra.mxu0 %v74
  %3223 = vmatprep.subr.mxu0 0.0
  %3224 = vmatpush1.msra.mxu0 %v75
  %3225 = vmatprep.subr.mxu0 0.0
  %3226 = vmatpush1.msra.mxu0 %v76
  %3227 = vmatprep.subr.mxu0 0.0
  %3228 = vmatpush1.msra.mxu0 %v77
  %3229 = vmatprep.subr.mxu0 0.0
  %3230 = vmatpush1.msra.mxu0 0.0
  %3231 = vmatprep.subr.mxu0 0.0
  %3232 = vmatpush1.msra.mxu0 0.0
  %3233 = vmatprep.subr.mxu0 0.0
  %3234 = vmatpush1.msra.mxu0 0.0
  %3235 = vmatprep.subr.mxu0 0.0
  %3236 = vmatpush1.msra.mxu0 0.0
  %3237 = vmatprep.subr.mxu0 0.0
  %3238 = vmatpush1.msra.mxu0 0.0
  %3239 = vmatprep.subr.mxu0 0.0
  %3240 = vmatpush1.msra.mxu0 0.0
  %3241 = vmatprep.subr.mxu0 0.0
  %3242 = vmatpush1.msra.mxu0 0.0
  %3243 = vmatprep.subr.mxu0 0.0
  %3244 = vmatpush1.msra.mxu0 0.0
  %3245 = vmatprep.subr.mxu0 0.0
  %3246 = vmatpush1.msra.mxu0 0.0
  %3247 = vmatprep.subr.mxu0 0.0
  %3248 = vmatpush1.msra.mxu0 0.0
  %3249 = vmatprep.subr.mxu0 0.0
  %3250 = vmatpush1.msra.mxu0 0.0
  %3251 = vmatprep.subr.mxu0 0.0
  %3252 = vmatpush1.msra.mxu0 0.0
  %3253 = vmatprep.subr.mxu0 0.0
  %3254 = vmatpush1.msra.mxu0 0.0
  %3255 = vmatprep.subr.mxu0 0.0
  %3256 = vmatpush1.msra.mxu0 0.0
  %3257 = vmatprep.subr.mxu0 0.0
  %3258 = vmatpush1.msra.mxu0 0.0
  %3259 = vmatprep.subr.mxu0 0.0
  %3260 = vmatpush1.msra.mxu0 0.0
  %3261 = vmatprep.subr.mxu0 0.0
  %3262 = vmatpush1.msra.mxu0 0.0
  %3263 = vmatprep.subr.mxu0 0.0
  %3264 = vmatpush1.msra.mxu0 0.0
  %3265 = vmatprep.subr.mxu0 0.0
  %3266 = vmatpush1.msra.mxu0 0.0
  %3267 = vmatprep.subr.mxu0 0.0
  %3268 = vmatpush1.msra.mxu0 0.0
  %3269 = vmatprep.subr.mxu0 0.0
  %3270 = vmatpush1.msra.mxu0 0.0
  %3271 = vmatprep.subr.mxu0 0.0
  %3272 = vmatpush1.msra.mxu0 0.0
  %3273 = vmatprep.subr.mxu0 0.0
  %3274 = vmatpush1.msra.mxu0 0.0
  %3275 = vmatprep.subr.mxu0 0.0
  %3276 = vmatpush1.msra.mxu0 0.0
  %3277 = vmatprep.subr.mxu0 0.0
  %3278 = vmatpush1.msra.mxu0 0.0
  %3279 = vmatprep.subr.mxu0 0.0
  %3280 = vmatpush1.msra.mxu0 0.0
  %3281 = vmatprep.subr.mxu0 0.0
  %3282 = vmatpush1.msra.mxu0 0.0
  %3283 = vmatprep.subr.mxu0 0.0
  %3284 = vmatpush1.msra.mxu0 0.0
  %3285 = vmatprep.mubr.f32.mxu0 0.0
  %3286 = vmatmul.mubr.f32.gmra.mrb[0].mxu0 %v3219
  %v3287 = vpop.f32.mrb[0].mxu0
  %v3288 = vadd.f32 %v3213, %v3287
  %v3289 = vpop.f32.mrb[0].mxu0
  %3290 = vdwg.mxu0
  %v3291 = vadd.f32 %v3288, %v2209
  %v3292 = vxor.u32 %v3291, 2147483648
  %v3293 = vmul.f32 %v3292, 1.442695
  %v3294 = vpow.pop %v3293
  %v3295 = vadd.f32 %v3294, 1.0
  %v3296 = vrcp.pop %v3295
  %v3297 = vmul.f32 1.0, %v3296
  %v3298 = vtanh.pop %v3291
  %v3299 = vmul.f32 %v3297, %v3039
  %3301 = vrot.lane.b32.xlu0 %v3298, 32
  %v3302 = vpop.permute.xlu0 %3301
  %v3304 = vmul.f32 %v3297, %v3302
  %3306 = vrot.lane.b32.xlu0 %v3304, 32
  %v3307 = vpop.permute.xlu0 %3306
  %v3309 = vadd.f32 %v3299, %v3307
  %v3310 = vtanh.pop %v3309
  %3312 = vrot.lane.b32.xlu0 %v3310, 32
  %v3313 = vpop.permute.xlu0 %3312
  %v3315 = vmul.f32 %v3297, %v3313
  %3316 = vmatprep.subr.mxu0 0.0
  %3317 = vmatpush1.msra.mxu0 %v70
  %3318 = vmatprep.subr.mxu0 0.0
  %3319 = vmatpush1.msra.mxu0 %v71
  %3320 = vmatprep.subr.mxu0 0.0
  %3321 = vmatpush1.msra.mxu0 %v72
  %3322 = vmatprep.subr.mxu0 0.0
  %3323 = vmatpush1.msra.mxu0 %v73
  %3324 = vmatprep.subr.mxu0 0.0
  %3325 = vmatpush1.msra.mxu0 0.0
  %3326 = vmatprep.subr.mxu0 0.0
  %3327 = vmatpush1.msra.mxu0 0.0
  %3328 = vmatprep.subr.mxu0 0.0
  %3329 = vmatpush1.msra.mxu0 0.0
  %3330 = vmatprep.subr.mxu0 0.0
  %3331 = vmatpush1.msra.mxu0 0.0
  %3332 = vmatprep.subr.mxu0 0.0
  %3333 = vmatpush1.msra.mxu0 0.0
  %3334 = vmatprep.subr.mxu0 0.0
  %3335 = vmatpush1.msra.mxu0 0.0
  %3336 = vmatprep.subr.mxu0 0.0
  %3337 = vmatpush1.msra.mxu0 0.0
  %3338 = vmatprep.subr.mxu0 0.0
  %3339 = vmatpush1.msra.mxu0 0.0
  %3340 = vmatprep.subr.mxu0 0.0
  %3341 = vmatpush1.msra.mxu0 0.0
  %3342 = vmatprep.subr.mxu0 0.0
  %3343 = vmatpush1.msra.mxu0 0.0
  %3344 = vmatprep.subr.mxu0 0.0
  %3345 = vmatpush1.msra.mxu0 0.0
  %3346 = vmatprep.subr.mxu0 0.0
  %3347 = vmatpush1.msra.mxu0 0.0
  %3348 = vmatprep.subr.mxu0 0.0
  %3349 = vmatpush1.msra.mxu0 0.0
  %3350 = vmatprep.subr.mxu0 0.0
  %3351 = vmatpush1.msra.mxu0 0.0
  %3352 = vmatprep.subr.mxu0 0.0
  %3353 = vmatpush1.msra.mxu0 0.0
  %3354 = vmatprep.subr.mxu0 0.0
  %3355 = vmatpush1.msra.mxu0 0.0
  %3356 = vmatprep.subr.mxu0 0.0
  %3357 = vmatpush1.msra.mxu0 0.0
  %3358 = vmatprep.subr.mxu0 0.0
  %3359 = vmatpush1.msra.mxu0 0.0
  %3360 = vmatprep.subr.mxu0 0.0
  %3361 = vmatpush1.msra.mxu0 0.0
  %3362 = vmatprep.subr.mxu0 0.0
  %3363 = vmatpush1.msra.mxu0 0.0
  %3364 = vmatprep.subr.mxu0 0.0
  %3365 = vmatpush1.msra.mxu0 0.0
  %3366 = vmatprep.subr.mxu0 0.0
  %3367 = vmatpush1.msra.mxu0 0.0
  %3368 = vmatprep.subr.mxu0 0.0
  %3369 = vmatpush1.msra.mxu0 0.0
  %3370 = vmatprep.subr.mxu0 0.0
  %3371 = vmatpush1.msra.mxu0 0.0
  %3372 = vmatprep.subr.mxu0 0.0
  %3373 = vmatpush1.msra.mxu0 0.0
  %3374 = vmatprep.subr.mxu0 0.0
  %3375 = vmatpush1.msra.mxu0 0.0
  %3376 = vmatprep.subr.mxu0 0.0
  %3377 = vmatpush1.msra.mxu0 0.0
  %3378 = vmatprep.subr.mxu0 0.0
  %3379 = vmatpush1.msra.mxu0 0.0
  %3380 = vmatprep.mubr.f32.mxu0 0.0
  %3381 = vmatmul.mubr.f32.gmra.mrb[0].mxu0 %v3219
  %v3382 = vpop.f32.mrb[0].mxu0
  %v3383 = vadd.f32 0.0, %v3382
  %v3384 = vpop.f32.mrb[0].mxu0
  %3385 = vdwg.mxu0
  %v3386 = vadd.f32 %v1960, %v3383
  %v3387 = vxor.u32 %v3386, 2147483648
  %v3388 = vmul.f32 %v3387, 1.442695
  %v3389 = vpow.pop %v3388
  %v3390 = vadd.f32 %v3389, 1.0
  %v3391 = vrcp.pop %v3390
  %v3392 = vmul.f32 1.0, %v3391
  %v3393 = vtanh.pop %v3386
  %v3394 = vmul.f32 %v3392, %v3134
  %3396 = vrot.lane.b32.xlu0 %v3393, 32
  %v3397 = vpop.permute.xlu0 %3396
  %v3399 = vmul.f32 %v3392, %v3397
  %3401 = vrot.lane.b32.xlu0 %v3399, 32
  %v3402 = vpop.permute.xlu0 %3401
  %v3404 = vadd.f32 %v3394, %v3402
  %v3405 = vtanh.pop %v3404
  %3407 = vrot.lane.b32.xlu0 %v3405, 32
  %v3408 = vpop.permute.xlu0 %3407
  %v3410 = vmul.f32 %v3392, %v3408
  %3412 = vrot.lane.b32.xlu0 %v3315, 64
  %v3413 = vpop.permute.xlu0 %3412
  %v3414 = vsel %vm1961, %v3413, 0
  %3416 = vmatprep.subr.mxu0 0.0
  %3417 = vmatpush1.msra.mxu0 %v78
  %3418 = vmatprep.subr.mxu0 0.0
  %3419 = vmatpush1.msra.mxu0 %v79
  %3420 = vmatprep.subr.mxu0 0.0
  %3421 = vmatpush1.msra.mxu0 %v80
  %3422 = vmatprep.subr.mxu0 0.0
  %3423 = vmatpush1.msra.mxu0 %v81
  %3424 = vmatprep.subr.mxu0 0.0
  %3425 = vmatpush1.msra.mxu0 0.0
  %3426 = vmatprep.subr.mxu0 0.0
  %3427 = vmatpush1.msra.mxu0 0.0
  %3428 = vmatprep.subr.mxu0 0.0
  %3429 = vmatpush1.msra.mxu0 0.0
  %3430 = vmatprep.subr.mxu0 0.0
  %3431 = vmatpush1.msra.mxu0 0.0
  %3432 = vmatprep.subr.mxu0 0.0
  %3433 = vmatpush1.msra.mxu0 0.0
  %3434 = vmatprep.subr.mxu0 0.0
  %3435 = vmatpush1.msra.mxu0 0.0
  %3436 = vmatprep.subr.mxu0 0.0
  %3437 = vmatpush1.msra.mxu0 0.0
  %3438 = vmatprep.subr.mxu0 0.0
  %3439 = vmatpush1.msra.mxu0 0.0
  %3440 = vmatprep.subr.mxu0 0.0
  %3441 = vmatpush1.msra.mxu0 0.0
  %3442 = vmatprep.subr.mxu0 0.0
  %3443 = vmatpush1.msra.mxu0 0.0
  %3444 = vmatprep.subr.mxu0 0.0
  %3445 = vmatpush1.msra.mxu0 0.0
  %3446 = vmatprep.subr.mxu0 0.0
  %3447 = vmatpush1.msra.mxu0 0.0
  %3448 = vmatprep.subr.mxu0 0.0
  %3449 = vmatpush1.msra.mxu0 0.0
  %3450 = vmatprep.subr.mxu0 0.0
  %3451 = vmatpush1.msra.mxu0 0.0
  %3452 = vmatprep.subr.mxu0 0.0
  %3453 = vmatpush1.msra.mxu0 0.0
  %3454 = vmatprep.subr.mxu0 0.0
  %3455 = vmatpush1.msra.mxu0 0.0
  %3456 = vmatprep.subr.mxu0 0.0
  %3457 = vmatpush1.msra.mxu0 0.0
  %3458 = vmatprep.subr.mxu0 0.0
  %3459 = vmatpush1.msra.mxu0 0.0
  %3460 = vmatprep.subr.mxu0 0.0
  %3461 = vmatpush1.msra.mxu0 0.0
  %3462 = vmatprep.subr.mxu0 0.0
  %3463 = vmatpush1.msra.mxu0 0.0
  %3464 = vmatprep.subr.mxu0 0.0
  %3465 = vmatpush1.msra.mxu0 0.0
  %3466 = vmatprep.subr.mxu0 0.0
  %3467 = vmatpush1.msra.mxu0 0.0
  %3468 = vmatprep.subr.mxu0 0.0
  %3469 = vmatpush1.msra.mxu0 0.0
  %3470 = vmatprep.subr.mxu0 0.0
  %3471 = vmatpush1.msra.mxu0 0.0
  %3472 = vmatprep.subr.mxu0 0.0
  %3473 = vmatpush1.msra.mxu0 0.0
  %3474 = vmatprep.subr.mxu0 0.0
  %3475 = vmatpush1.msra.mxu0 0.0
  %3476 = vmatprep.subr.mxu0 0.0
  %3477 = vmatpush1.msra.mxu0 0.0
  %3478 = vmatprep.subr.mxu0 0.0
  %3479 = vmatpush1.msra.mxu0 0.0
  %3480 = vmatprep.mubr.f32.mxu0 0.0
  %3481 = vmatmul.mubr.f32.gmra.mrb[0].mxu0 %v3414
  %v3482 = vpop.f32.mrb[0].mxu0
  %v3483 = vadd.f32 0.0, %v3482
  %v3484 = vpop.f32.mrb[0].mxu0
  %3485 = vdwg.mxu0
  %3487 = vrot.lane.b32.xlu0 %v3410, 64
  %v3488 = vpop.permute.xlu0 %3487
  %v3489 = vsel %vm1961, %v3488, 0
  %3491 = vmatprep.subr.mxu0 0.0
  %3492 = vmatpush1.msra.mxu0 %v74
  %3493 = vmatprep.subr.mxu0 0.0
  %3494 = vmatpush1.msra.mxu0 %v75
  %3495 = vmatprep.subr.mxu0 0.0
  %3496 = vmatpush1.msra.mxu0 %v76
  %3497 = vmatprep.subr.mxu0 0.0
  %3498 = vmatpush1.msra.mxu0 %v77
  %3499 = vmatprep.subr.mxu0 0.0
  %3500 = vmatpush1.msra.mxu0 0.0
  %3501 = vmatprep.subr.mxu0 0.0
  %3502 = vmatpush1.msra.mxu0 0.0
  %3503 = vmatprep.subr.mxu0 0.0
  %3504 = vmatpush1.msra.mxu0 0.0
  %3505 = vmatprep.subr.mxu0 0.0
  %3506 = vmatpush1.msra.mxu0 0.0
  %3507 = vmatprep.subr.mxu0 0.0
  %3508 = vmatpush1.msra.mxu0 0.0
  %3509 = vmatprep.subr.mxu0 0.0
  %3510 = vmatpush1.msra.mxu0 0.0
  %3511 = vmatprep.subr.mxu0 0.0
  %3512 = vmatpush1.msra.mxu0 0.0
  %3513 = vmatprep.subr.mxu0 0.0
  %3514 = vmatpush1.msra.mxu0 0.0
  %3515 = vmatprep.subr.mxu0 0.0
  %3516 = vmatpush1.msra.mxu0 0.0
  %3517 = vmatprep.subr.mxu0 0.0
  %3518 = vmatpush1.msra.mxu0 0.0
  %3519 = vmatprep.subr.mxu0 0.0
  %3520 = vmatpush1.msra.mxu0 0.0
  %3521 = vmatprep.subr.mxu0 0.0
  %3522 = vmatpush1.msra.mxu0 0.0
  %3523 = vmatprep.subr.mxu0 0.0
  %3524 = vmatpush1.msra.mxu0 0.0
  %3525 = vmatprep.subr.mxu0 0.0
  %3526 = vmatpush1.msra.mxu0 0.0
  %3527 = vmatprep.subr.mxu0 0.0
  %3528 = vmatpush1.msra.mxu0 0.0
  %3529 = vmatprep.subr.mxu0 0.0
  %3530 = vmatpush1.msra.mxu0 0.0
  %3531 = vmatprep.subr.mxu0 0.0
  %3532 = vmatpush1.msra.mxu0 0.0
  %3533 = vmatprep.subr.mxu0 0.0
  %3534 = vmatpush1.msra.mxu0 0.0
  %3535 = vmatprep.subr.mxu0 0.0
  %3536 = vmatpush1.msra.mxu0 0.0
  %3537 = vmatprep.subr.mxu0 0.0
  %3538 = vmatpush1.msra.mxu0 0.0
  %3539 = vmatprep.subr.mxu0 0.0
  %3540 = vmatpush1.msra.mxu0 0.0
  %3541 = vmatprep.subr.mxu0 0.0
  %3542 = vmatpush1.msra.mxu0 0.0
  %3543 = vmatprep.subr.mxu0 0.0
  %3544 = vmatpush1.msra.mxu0 0.0
  %3545 = vmatprep.subr.mxu0 0.0
  %3546 = vmatpush1.msra.mxu0 0.0
  %3547 = vmatprep.subr.mxu0 0.0
  %3548 = vmatpush1.msra.mxu0 0.0
  %3549 = vmatprep.subr.mxu0 0.0
  %3550 = vmatpush1.msra.mxu0 0.0
  %3551 = vmatprep.subr.mxu0 0.0
  %3552 = vmatpush1.msra.mxu0 0.0
  %3553 = vmatprep.subr.mxu0 0.0
  %3554 = vmatpush1.msra.mxu0 0.0
  %3555 = vmatprep.mubr.f32.mxu0 0.0
  %3556 = vmatmul.mubr.f32.gmra.mrb[0].mxu0 %v3489
  %v3557 = vpop.f32.mrb[0].mxu0
  %v3558 = vadd.f32 %v3483, %v3557
  %v3559 = vpop.f32.mrb[0].mxu0
  %3560 = vdwg.mxu0
  %v3561 = vadd.f32 %v3558, %v2209
  %v3562 = vxor.u32 %v3561, 2147483648
  %v3563 = vmul.f32 %v3562, 1.442695
  %v3564 = vpow.pop %v3563
  %v3565 = vadd.f32 %v3564, 1.0
  %v3566 = vrcp.pop %v3565
  %v3567 = vmul.f32 1.0, %v3566
  %v3568 = vtanh.pop %v3561
  %v3569 = vmul.f32 %v3567, %v3309
  %3571 = vrot.lane.b32.xlu0 %v3568, 32
  %v3572 = vpop.permute.xlu0 %3571
  %v3574 = vmul.f32 %v3567, %v3572
  %3576 = vrot.lane.b32.xlu0 %v3574, 32
  %v3577 = vpop.permute.xlu0 %3576
  %v3579 = vadd.f32 %v3569, %v3577
  %v3580 = vtanh.pop %v3579
  %3582 = vrot.lane.b32.xlu0 %v3580, 32
  %v3583 = vpop.permute.xlu0 %3582
  %v3585 = vmul.f32 %v3567, %v3583
  %v3587 = vsel %vm195, %v60, 0
  %v3590 = vsel %vm195, %v61, 0
  %v3593 = vsel %vm195, %v62, 0
  %v3595 = vsel %vm199, %v3488, 0
  %3597 = vmatprep.subr.mxu0 0.0
  %3598 = vmatpush1.msra.mxu0 %v3595
  %3599 = vmatprep.subr.mxu0 0.0
  %3600 = vmatpush1.msra.mxu0 0.0
  %3601 = vmatprep.subr.mxu0 0.0
  %3602 = vmatpush1.msra.mxu0 0.0
  %3603 = vmatprep.subr.mxu0 0.0
  %3604 = vmatpush1.msra.mxu0 0.0
  %3605 = vmatprep.subr.mxu0 0.0
  %3606 = vmatpush1.msra.mxu0 0.0
  %3607 = vmatprep.subr.mxu0 0.0
  %3608 = vmatpush1.msra.mxu0 0.0
  %3609 = vmatprep.subr.mxu0 0.0
  %3610 = vmatpush1.msra.mxu0 0.0
  %3611 = vmatprep.subr.mxu0 0.0
  %3612 = vmatpush1.msra.mxu0 0.0
  %3613 = vmatprep.subr.mxu0 0.0
  %3614 = vmatpush1.msra.mxu0 0.0
  %3615 = vmatprep.subr.mxu0 0.0
  %3616 = vmatpush1.msra.mxu0 0.0
  %3617 = vmatprep.subr.mxu0 0.0
  %3618 = vmatpush1.msra.mxu0 0.0
  %3619 = vmatprep.subr.mxu0 0.0
  %3620 = vmatpush1.msra.mxu0 0.0
  %3621 = vmatprep.subr.mxu0 0.0
  %3622 = vmatpush1.msra.mxu0 0.0
  %3623 = vmatprep.subr.mxu0 0.0
  %3624 = vmatpush1.msra.mxu0 0.0
  %3625 = vmatprep.subr.mxu0 0.0
  %3626 = vmatpush1.msra.mxu0 0.0
  %3627 = vmatprep.subr.mxu0 0.0
  %3628 = vmatpush1.msra.mxu0 0.0
  %3629 = vmatprep.subr.mxu0 0.0
  %3630 = vmatpush1.msra.mxu0 0.0
  %3631 = vmatprep.subr.mxu0 0.0
  %3632 = vmatpush1.msra.mxu0 0.0
  %3633 = vmatprep.subr.mxu0 0.0
  %3634 = vmatpush1.msra.mxu0 0.0
  %3635 = vmatprep.subr.mxu0 0.0
  %3636 = vmatpush1.msra.mxu0 0.0
  %3637 = vmatprep.subr.mxu0 0.0
  %3638 = vmatpush1.msra.mxu0 0.0
  %3639 = vmatprep.subr.mxu0 0.0
  %3640 = vmatpush1.msra.mxu0 0.0
  %3641 = vmatprep.subr.mxu0 0.0
  %3642 = vmatpush1.msra.mxu0 0.0
  %3643 = vmatprep.subr.mxu0 0.0
  %3644 = vmatpush1.msra.mxu0 0.0
  %3645 = vmatprep.subr.mxu0 0.0
  %3646 = vmatpush1.msra.mxu0 0.0
  %3647 = vmatprep.subr.mxu0 0.0
  %3648 = vmatpush1.msra.mxu0 0.0
  %3649 = vmatprep.subr.mxu0 0.0
  %3650 = vmatpush1.msra.mxu0 0.0
  %3651 = vmatprep.subr.mxu0 0.0
  %3652 = vmatpush1.msra.mxu0 0.0
  %3653 = vmatprep.subr.mxu0 0.0
  %3654 = vmatpush1.msra.mxu0 0.0
  %3655 = vmatprep.subr.mxu0 0.0
  %3656 = vmatpush1.msra.mxu0 0.0
  %3657 = vmatprep.subr.mxu0 0.0
  %3658 = vmatpush1.msra.mxu0 0.0
  %3659 = vmatprep.subr.mxu0 0.0
  %3660 = vmatpush1.msra.mxu0 0.0
  %3661 = vmatprep.mubr.f32.mxu0 0.0
  %3662 = vmatmul.mubr.f32.gmra.mrb[0].mxu0 %v3587
  %v3663 = vpop.f32.mrb[0].mxu0
  %v3664 = vadd.f32 0.0, %v3663
  %v3665 = vpop.f32.mrb[0].mxu0
  %3666 = vmatprep.mubr.f32.mxu0 0.0
  %3667 = vmatmul.mubr.f32.gmra.mrb[0].mxu0 %v3590
  %v3668 = vpop.f32.mrb[0].mxu0
  %v3669 = vadd.f32 0.0, %v3668
  %v3670 = vpop.f32.mrb[0].mxu0
  %3671 = vmatprep.mubr.f32.mxu0 0.0
  %3672 = vmatmul.mubr.f32.gmra.mrb[0].mxu0 %v3593
  %v3673 = vpop.f32.mrb[0].mxu0
  %v3674 = vadd.f32 0.0, %v3673
  %v3675 = vpop.f32.mrb[0].mxu0
  %3676 = vdwg.mxu0
  %3678 = vrot.lane.b32.xlu0 %v3404, 96
  %v3679 = vpop.permute.xlu0 %3678
  %v3680 = vsel %vm199, %v3679, 0
  %3682 = vmatprep.subr.mxu0 0.0
  %3683 = vmatpush1.msra.mxu0 %v3680
  %3684 = vmatprep.subr.mxu0 0.0
  %3685 = vmatpush1.msra.mxu0 0.0
  %3686 = vmatprep.subr.mxu0 0.0
  %3687 = vmatpush1.msra.mxu0 0.0
  %3688 = vmatprep.subr.mxu0 0.0
  %3689 = vmatpush1.msra.mxu0 0.0
  %3690 = vmatprep.subr.mxu0 0.0
  %3691 = vmatpush1.msra.mxu0 0.0
  %3692 = vmatprep.subr.mxu0 0.0
  %3693 = vmatpush1.msra.mxu0 0.0
  %3694 = vmatprep.subr.mxu0 0.0
  %3695 = vmatpush1.msra.mxu0 0.0
  %3696 = vmatprep.subr.mxu0 0.0
  %3697 = vmatpush1.msra.mxu0 0.0
  %3698 = vmatprep.subr.mxu0 0.0
  %3699 = vmatpush1.msra.mxu0 0.0
  %3700 = vmatprep.subr.mxu0 0.0
  %3701 = vmatpush1.msra.mxu0 0.0
  %3702 = vmatprep.subr.mxu0 0.0
  %3703 = vmatpush1.msra.mxu0 0.0
  %3704 = vmatprep.subr.mxu0 0.0
  %3705 = vmatpush1.msra.mxu0 0.0
  %3706 = vmatprep.subr.mxu0 0.0
  %3707 = vmatpush1.msra.mxu0 0.0
  %3708 = vmatprep.subr.mxu0 0.0
  %3709 = vmatpush1.msra.mxu0 0.0
  %3710 = vmatprep.subr.mxu0 0.0
  %3711 = vmatpush1.msra.mxu0 0.0
  %3712 = vmatprep.subr.mxu0 0.0
  %3713 = vmatpush1.msra.mxu0 0.0
  %3714 = vmatprep.subr.mxu0 0.0
  %3715 = vmatpush1.msra.mxu0 0.0
  %3716 = vmatprep.subr.mxu0 0.0
  %3717 = vmatpush1.msra.mxu0 0.0
  %3718 = vmatprep.subr.mxu0 0.0
  %3719 = vmatpush1.msra.mxu0 0.0
  %3720 = vmatprep.subr.mxu0 0.0
  %3721 = vmatpush1.msra.mxu0 0.0
  %3722 = vmatprep.subr.mxu0 0.0
  %3723 = vmatpush1.msra.mxu0 0.0
  %3724 = vmatprep.subr.mxu0 0.0
  %3725 = vmatpush1.msra.mxu0 0.0
  %3726 = vmatprep.subr.mxu0 0.0
  %3727 = vmatpush1.msra.mxu0 0.0
  %3728 = vmatprep.subr.mxu0 0.0
  %3729 = vmatpush1.msra.mxu0 0.0
  %3730 = vmatprep.subr.mxu0 0.0
  %3731 = vmatpush1.msra.mxu0 0.0
  %3732 = vmatprep.subr.mxu0 0.0
  %3733 = vmatpush1.msra.mxu0 0.0
  %3734 = vmatprep.subr.mxu0 0.0
  %3735 = vmatpush1.msra.mxu0 0.0
  %3736 = vmatprep.subr.mxu0 0.0
  %3737 = vmatpush1.msra.mxu0 0.0
  %3738 = vmatprep.subr.mxu0 0.0
  %3739 = vmatpush1.msra.mxu0 0.0
  %3740 = vmatprep.subr.mxu0 0.0
  %3741 = vmatpush1.msra.mxu0 0.0
  %3742 = vmatprep.subr.mxu0 0.0
  %3743 = vmatpush1.msra.mxu0 0.0
  %3744 = vmatprep.subr.mxu0 0.0
  %3745 = vmatpush1.msra.mxu0 0.0
  %3746 = vmatprep.mubr.f32.mxu0 0.0
  %3747 = vmatmul.mubr.f32.gmra.mrb[0].mxu0 %v3587
  %v3748 = vpop.f32.mrb[0].mxu0
  %v3749 = vadd.f32 0.0, %v3748
  %v3750 = vpop.f32.mrb[0].mxu0
  %3751 = vmatprep.mubr.f32.mxu0 0.0
  %3752 = vmatmul.mubr.f32.gmra.mrb[0].mxu0 %v3590
  %v3753 = vpop.f32.mrb[0].mxu0
  %v3754 = vadd.f32 0.0, %v3753
  %v3755 = vpop.f32.mrb[0].mxu0
  %3756 = vmatprep.mubr.f32.mxu0 0.0
  %3757 = vmatmul.mubr.f32.gmra.mrb[0].mxu0 %v3593
  %v3758 = vpop.f32.mrb[0].mxu0
  %v3759 = vadd.f32 0.0, %v3758
  %v3760 = vpop.f32.mrb[0].mxu0
  %3761 = vdwg.mxu0
  %3763 = vrot.lane.b32.xlu0 %v3585, 64
  %v3764 = vpop.permute.xlu0 %3763
  %v3765 = vsel %vm199, %v3764, 0
  %3767 = vmatprep.subr.mxu0 0.0
  %3768 = vmatpush1.msra.mxu0 %v3765
  %3769 = vmatprep.subr.mxu0 0.0
  %3770 = vmatpush1.msra.mxu0 0.0
  %3771 = vmatprep.subr.mxu0 0.0
  %3772 = vmatpush1.msra.mxu0 0.0
  %3773 = vmatprep.subr.mxu0 0.0
  %3774 = vmatpush1.msra.mxu0 0.0
  %3775 = vmatprep.subr.mxu0 0.0
  %3776 = vmatpush1.msra.mxu0 0.0
  %3777 = vmatprep.subr.mxu0 0.0
  %3778 = vmatpush1.msra.mxu0 0.0
  %3779 = vmatprep.subr.mxu0 0.0
  %3780 = vmatpush1.msra.mxu0 0.0
  %3781 = vmatprep.subr.mxu0 0.0
  %3782 = vmatpush1.msra.mxu0 0.0
  %3783 = vmatprep.subr.mxu0 0.0
  %3784 = vmatpush1.msra.mxu0 0.0
  %3785 = vmatprep.subr.mxu0 0.0
  %3786 = vmatpush1.msra.mxu0 0.0
  %3787 = vmatprep.subr.mxu0 0.0
  %3788 = vmatpush1.msra.mxu0 0.0
  %3789 = vmatprep.subr.mxu0 0.0
  %3790 = vmatpush1.msra.mxu0 0.0
  %3791 = vmatprep.subr.mxu0 0.0
  %3792 = vmatpush1.msra.mxu0 0.0
  %3793 = vmatprep.subr.mxu0 0.0
  %3794 = vmatpush1.msra.mxu0 0.0
  %3795 = vmatprep.subr.mxu0 0.0
  %3796 = vmatpush1.msra.mxu0 0.0
  %3797 = vmatprep.subr.mxu0 0.0
  %3798 = vmatpush1.msra.mxu0 0.0
  %3799 = vmatprep.subr.mxu0 0.0
  %3800 = vmatpush1.msra.mxu0 0.0
  %3801 = vmatprep.subr.mxu0 0.0
  %3802 = vmatpush1.msra.mxu0 0.0
  %3803 = vmatprep.subr.mxu0 0.0
  %3804 = vmatpush1.msra.mxu0 0.0
  %3805 = vmatprep.subr.mxu0 0.0
  %3806 = vmatpush1.msra.mxu0 0.0
  %3807 = vmatprep.subr.mxu0 0.0
  %3808 = vmatpush1.msra.mxu0 0.0
  %3809 = vmatprep.subr.mxu0 0.0
  %3810 = vmatpush1.msra.mxu0 0.0
  %3811 = vmatprep.subr.mxu0 0.0
  %3812 = vmatpush1.msra.mxu0 0.0
  %3813 = vmatprep.subr.mxu0 0.0
  %3814 = vmatpush1.msra.mxu0 0.0
  %3815 = vmatprep.subr.mxu0 0.0
  %3816 = vmatpush1.msra.mxu0 0.0
  %3817 = vmatprep.subr.mxu0 0.0
  %3818 = vmatpush1.msra.mxu0 0.0
  %3819 = vmatprep.subr.mxu0 0.0
  %3820 = vmatpush1.msra.mxu0 0.0
  %3821 = vmatprep.subr.mxu0 0.0
  %3822 = vmatpush1.msra.mxu0 0.0
  %3823 = vmatprep.subr.mxu0 0.0
  %3824 = vmatpush1.msra.mxu0 0.0
  %3825 = vmatprep.subr.mxu0 0.0
  %3826 = vmatpush1.msra.mxu0 0.0
  %3827 = vmatprep.subr.mxu0 0.0
  %3828 = vmatpush1.msra.mxu0 0.0
  %3829 = vmatprep.subr.mxu0 0.0
  %3830 = vmatpush1.msra.mxu0 0.0
  %3831 = vmatprep.mubr.f32.mxu0 0.0
  %3832 = vmatmul.mubr.f32.gmra.mrb[0].mxu0 %v3587
  %v3833 = vpop.f32.mrb[0].mxu0
  %v3834 = vadd.f32 0.0, %v3833
  %v3835 = vpop.f32.mrb[0].mxu0
  %3836 = vmatprep.mubr.f32.mxu0 0.0
  %3837 = vmatmul.mubr.f32.gmra.mrb[0].mxu0 %v3590
  %v3838 = vpop.f32.mrb[0].mxu0
  %v3839 = vadd.f32 0.0, %v3838
  %v3840 = vpop.f32.mrb[0].mxu0
  %3841 = vmatprep.mubr.f32.mxu0 0.0
  %3842 = vmatmul.mubr.f32.gmra.mrb[0].mxu0 %v3593
  %v3843 = vpop.f32.mrb[0].mxu0
  %v3844 = vadd.f32 0.0, %v3843
  %v3845 = vpop.f32.mrb[0].mxu0
  %3846 = vdwg.mxu0
  %3848 = vrot.lane.b32.xlu0 %v3579, 96
  %v3849 = vpop.permute.xlu0 %3848
  %v3850 = vsel %vm199, %v3849, 0
  %3852 = vmatprep.subr.mxu0 0.0
  %3853 = vmatpush1.msra.mxu0 %v3850
  %3854 = vmatprep.subr.mxu0 0.0
  %3855 = vmatpush1.msra.mxu0 0.0
  %3856 = vmatprep.subr.mxu0 0.0
  %3857 = vmatpush1.msra.mxu0 0.0
  %3858 = vmatprep.subr.mxu0 0.0
  %3859 = vmatpush1.msra.mxu0 0.0
  %3860 = vmatprep.subr.mxu0 0.0
  %3861 = vmatpush1.msra.mxu0 0.0
  %3862 = vmatprep.subr.mxu0 0.0
  %3863 = vmatpush1.msra.mxu0 0.0
  %3864 = vmatprep.subr.mxu0 0.0
  %3865 = vmatpush1.msra.mxu0 0.0
  %3866 = vmatprep.subr.mxu0 0.0
  %3867 = vmatpush1.msra.mxu0 0.0
  %3868 = vmatprep.subr.mxu0 0.0
  %3869 = vmatpush1.msra.mxu0 0.0
  %3870 = vmatprep.subr.mxu0 0.0
  %3871 = vmatpush1.msra.mxu0 0.0
  %3872 = vmatprep.subr.mxu0 0.0
  %3873 = vmatpush1.msra.mxu0 0.0
  %3874 = vmatprep.subr.mxu0 0.0
  %3875 = vmatpush1.msra.mxu0 0.0
  %3876 = vmatprep.subr.mxu0 0.0
  %3877 = vmatpush1.msra.mxu0 0.0
  %3878 = vmatprep.subr.mxu0 0.0
  %3879 = vmatpush1.msra.mxu0 0.0
  %3880 = vmatprep.subr.mxu0 0.0
  %3881 = vmatpush1.msra.mxu0 0.0
  %3882 = vmatprep.subr.mxu0 0.0
  %3883 = vmatpush1.msra.mxu0 0.0
  %3884 = vmatprep.subr.mxu0 0.0
  %3885 = vmatpush1.msra.mxu0 0.0
  %3886 = vmatprep.subr.mxu0 0.0
  %3887 = vmatpush1.msra.mxu0 0.0
  %3888 = vmatprep.subr.mxu0 0.0
  %3889 = vmatpush1.msra.mxu0 0.0
  %3890 = vmatprep.subr.mxu0 0.0
  %3891 = vmatpush1.msra.mxu0 0.0
  %3892 = vmatprep.subr.mxu0 0.0
  %3893 = vmatpush1.msra.mxu0 0.0
  %3894 = vmatprep.subr.mxu0 0.0
  %3895 = vmatpush1.msra.mxu0 0.0
  %3896 = vmatprep.subr.mxu0 0.0
  %3897 = vmatpush1.msra.mxu0 0.0
  %3898 = vmatprep.subr.mxu0 0.0
  %3899 = vmatpush1.msra.mxu0 0.0
  %3900 = vmatprep.subr.mxu0 0.0
  %3901 = vmatpush1.msra.mxu0 0.0
  %3902 = vmatprep.subr.mxu0 0.0
  %3903 = vmatpush1.msra.mxu0 0.0
  %3904 = vmatprep.subr.mxu0 0.0
  %3905 = vmatpush1.msra.mxu0 0.0
  %3906 = vmatprep.subr.mxu0 0.0
  %3907 = vmatpush1.msra.mxu0 0.0
  %3908 = vmatprep.subr.mxu0 0.0
  %3909 = vmatpush1.msra.mxu0 0.0
  %3910 = vmatprep.subr.mxu0 0.0
  %3911 = vmatpush1.msra.mxu0 0.0
  %3912 = vmatprep.subr.mxu0 0.0
  %3913 = vmatpush1.msra.mxu0 0.0
  %3914 = vmatprep.subr.mxu0 0.0
  %3915 = vmatpush1.msra.mxu0 0.0
  %3916 = vmatprep.mubr.f32.mxu0 0.0
  %3917 = vmatmul.mubr.f32.gmra.mrb[0].mxu0 %v3587
  %v3918 = vpop.f32.mrb[0].mxu0
  %v3919 = vadd.f32 0.0, %v3918
  %v3920 = vpop.f32.mrb[0].mxu0
  %3921 = vmatprep.mubr.f32.mxu0 0.0
  %3922 = vmatmul.mubr.f32.gmra.mrb[0].mxu0 %v3590
  %v3923 = vpop.f32.mrb[0].mxu0
  %v3924 = vadd.f32 0.0, %v3923
  %v3925 = vpop.f32.mrb[0].mxu0
  %3926 = vmatprep.mubr.f32.mxu0 0.0
  %3927 = vmatmul.mubr.f32.gmra.mrb[0].mxu0 %v3593
  %v3928 = vpop.f32.mrb[0].mxu0
  %v3929 = vadd.f32 0.0, %v3928
  %v3930 = vpop.f32.mrb[0].mxu0
  %3931 = vdwg.mxu0
  %v3933 = vsel %vm199, %v56, 0
  %3935 = vmatprep.subr.mxu0 0.0
  %3936 = vmatpush1.msra.mxu0 %v3933
  %3937 = vmatprep.subr.mxu0 0.0
  %3938 = vmatpush1.msra.mxu0 0.0
  %3939 = vmatprep.subr.mxu0 0.0
  %3940 = vmatpush1.msra.mxu0 0.0
  %3941 = vmatprep.subr.mxu0 0.0
  %3942 = vmatpush1.msra.mxu0 0.0
  %3943 = vmatprep.subr.mxu0 0.0
  %3944 = vmatpush1.msra.mxu0 0.0
  %3945 = vmatprep.subr.mxu0 0.0
  %3946 = vmatpush1.msra.mxu0 0.0
  %3947 = vmatprep.subr.mxu0 0.0
  %3948 = vmatpush1.msra.mxu0 0.0
  %3949 = vmatprep.subr.mxu0 0.0
  %3950 = vmatpush1.msra.mxu0 0.0
  %3951 = vmatprep.subr.mxu0 0.0
  %3952 = vmatpush1.msra.mxu0 0.0
  %3953 = vmatprep.subr.mxu0 0.0
  %3954 = vmatpush1.msra.mxu0 0.0
  %3955 = vmatprep.subr.mxu0 0.0
  %3956 = vmatpush1.msra.mxu0 0.0
  %3957 = vmatprep.subr.mxu0 0.0
  %3958 = vmatpush1.msra.mxu0 0.0
  %3959 = vmatprep.subr.mxu0 0.0
  %3960 = vmatpush1.msra.mxu0 0.0
  %3961 = vmatprep.subr.mxu0 0.0
  %3962 = vmatpush1.msra.mxu0 0.0
  %3963 = vmatprep.subr.mxu0 0.0
  %3964 = vmatpush1.msra.mxu0 0.0
  %3965 = vmatprep.subr.mxu0 0.0
  %3966 = vmatpush1.msra.mxu0 0.0
  %3967 = vmatprep.subr.mxu0 0.0
  %3968 = vmatpush1.msra.mxu0 0.0
  %3969 = vmatprep.subr.mxu0 0.0
  %3970 = vmatpush1.msra.mxu0 0.0
  %3971 = vmatprep.subr.mxu0 0.0
  %3972 = vmatpush1.msra.mxu0 0.0
  %3973 = vmatprep.subr.mxu0 0.0
  %3974 = vmatpush1.msra.mxu0 0.0
  %3975 = vmatprep.subr.mxu0 0.0
  %3976 = vmatpush1.msra.mxu0 0.0
  %3977 = vmatprep.subr.mxu0 0.0
  %3978 = vmatpush1.msra.mxu0 0.0
  %3979 = vmatprep.subr.mxu0 0.0
  %3980 = vmatpush1.msra.mxu0 0.0
  %3981 = vmatprep.subr.mxu0 0.0
  %3982 = vmatpush1.msra.mxu0 0.0
  %3983 = vmatprep.subr.mxu0 0.0
  %3984 = vmatpush1.msra.mxu0 0.0
  %3985 = vmatprep.subr.mxu0 0.0
  %3986 = vmatpush1.msra.mxu0 0.0
  %3987 = vmatprep.subr.mxu0 0.0
  %3988 = vmatpush1.msra.mxu0 0.0
  %3989 = vmatprep.subr.mxu0 0.0
  %3990 = vmatpush1.msra.mxu0 0.0
  %3991 = vmatprep.subr.mxu0 0.0
  %3992 = vmatpush1.msra.mxu0 0.0
  %3993 = vmatprep.subr.mxu0 0.0
  %3994 = vmatpush1.msra.mxu0 0.0
  %3995 = vmatprep.subr.mxu0 0.0
  %3996 = vmatpush1.msra.mxu0 0.0
  %3997 = vmatprep.subr.mxu0 0.0
  %3998 = vmatpush1.msra.mxu0 0.0
  %3999 = vmatprep.mubr.f32.mxu0 0.0
  %4000 = vmatmul.mubr.f32.gmra.mrb[0].mxu0 %v3587
  %v4001 = vpop.f32.mrb[0].mxu0
  %v4002 = vadd.f32 0.0, %v4001
  %v4003 = vpop.f32.mrb[0].mxu0
  %4004 = vmatprep.mubr.f32.mxu0 0.0
  %4005 = vmatmul.mubr.f32.gmra.mrb[0].mxu0 %v3590
  %v4006 = vpop.f32.mrb[0].mxu0
  %v4007 = vadd.f32 0.0, %v4006
  %v4008 = vpop.f32.mrb[0].mxu0
  %4009 = vmatprep.mubr.f32.mxu0 0.0
  %4010 = vmatmul.mubr.f32.gmra.mrb[0].mxu0 %v3593
  %v4011 = vpop.f32.mrb[0].mxu0
  %v4012 = vadd.f32 0.0, %v4011
  %v4013 = vpop.f32.mrb[0].mxu0
  %4014 = vdwg.mxu0
  %v4016 = vsel %vm199, %v58, 0
  %4018 = vmatprep.subr.mxu0 0.0
  %4019 = vmatpush1.msra.mxu0 %v4016
  %4020 = vmatprep.subr.mxu0 0.0
  %4021 = vmatpush1.msra.mxu0 0.0
  %4022 = vmatprep.subr.mxu0 0.0
  %4023 = vmatpush1.msra.mxu0 0.0
  %4024 = vmatprep.subr.mxu0 0.0
  %4025 = vmatpush1.msra.mxu0 0.0
  %4026 = vmatprep.subr.mxu0 0.0
  %4027 = vmatpush1.msra.mxu0 0.0
  %4028 = vmatprep.subr.mxu0 0.0
  %4029 = vmatpush1.msra.mxu0 0.0
  %4030 = vmatprep.subr.mxu0 0.0
  %4031 = vmatpush1.msra.mxu0 0.0
  %4032 = vmatprep.subr.mxu0 0.0
  %4033 = vmatpush1.msra.mxu0 0.0
  %4034 = vmatprep.subr.mxu0 0.0
  %4035 = vmatpush1.msra.mxu0 0.0
  %4036 = vmatprep.subr.mxu0 0.0
  %4037 = vmatpush1.msra.mxu0 0.0
  %4038 = vmatprep.subr.mxu0 0.0
  %4039 = vmatpush1.msra.mxu0 0.0
  %4040 = vmatprep.subr.mxu0 0.0
  %4041 = vmatpush1.msra.mxu0 0.0
  %4042 = vmatprep.subr.mxu0 0.0
  %4043 = vmatpush1.msra.mxu0 0.0
  %4044 = vmatprep.subr.mxu0 0.0
  %4045 = vmatpush1.msra.mxu0 0.0
  %4046 = vmatprep.subr.mxu0 0.0
  %4047 = vmatpush1.msra.mxu0 0.0
  %4048 = vmatprep.subr.mxu0 0.0
  %4049 = vmatpush1.msra.mxu0 0.0
  %4050 = vmatprep.subr.mxu0 0.0
  %4051 = vmatpush1.msra.mxu0 0.0
  %4052 = vmatprep.subr.mxu0 0.0
  %4053 = vmatpush1.msra.mxu0 0.0
  %4054 = vmatprep.subr.mxu0 0.0
  %4055 = vmatpush1.msra.mxu0 0.0
  %4056 = vmatprep.subr.mxu0 0.0
  %4057 = vmatpush1.msra.mxu0 0.0
  %4058 = vmatprep.subr.mxu0 0.0
  %4059 = vmatpush1.msra.mxu0 0.0
  %4060 = vmatprep.subr.mxu0 0.0
  %4061 = vmatpush1.msra.mxu0 0.0
  %4062 = vmatprep.subr.mxu0 0.0
  %4063 = vmatpush1.msra.mxu0 0.0
  %4064 = vmatprep.subr.mxu0 0.0
  %4065 = vmatpush1.msra.mxu0 0.0
  %4066 = vmatprep.subr.mxu0 0.0
  %4067 = vmatpush1.msra.mxu0 0.0
  %4068 = vmatprep.subr.mxu0 0.0
  %4069 = vmatpush1.msra.mxu0 0.0
  %4070 = vmatprep.subr.mxu0 0.0
  %4071 = vmatpush1.msra.mxu0 0.0
  %4072 = vmatprep.subr.mxu0 0.0
  %4073 = vmatpush1.msra.mxu0 0.0
  %4074 = vmatprep.subr.mxu0 0.0
  %4075 = vmatpush1.msra.mxu0 0.0
  %4076 = vmatprep.subr.mxu0 0.0
  %4077 = vmatpush1.msra.mxu0 0.0
  %4078 = vmatprep.subr.mxu0 0.0
  %4079 = vmatpush1.msra.mxu0 0.0
  %4080 = vmatprep.subr.mxu0 0.0
  %4081 = vmatpush1.msra.mxu0 0.0
  %4082 = vmatprep.mubr.f32.mxu0 0.0
  %4083 = vmatmul.mubr.f32.gmra.mrb[0].mxu0 %v3587
  %v4084 = vpop.f32.mrb[0].mxu0
  %v4085 = vadd.f32 0.0, %v4084
  %v4086 = vpop.f32.mrb[0].mxu0
  %4087 = vmatprep.mubr.f32.mxu0 0.0
  %4088 = vmatmul.mubr.f32.gmra.mrb[0].mxu0 %v3590
  %v4089 = vpop.f32.mrb[0].mxu0
  %v4090 = vadd.f32 0.0, %v4089
  %v4091 = vpop.f32.mrb[0].mxu0
  %4092 = vmatprep.mubr.f32.mxu0 0.0
  %4093 = vmatmul.mubr.f32.gmra.mrb[0].mxu0 %v3593
  %v4094 = vpop.f32.mrb[0].mxu0
  %v4095 = vadd.f32 0.0, %v4094
  %v4096 = vpop.f32.mrb[0].mxu0
  %4097 = vdwg.mxu0
  %v4099 = vsel %vm199, %v100, 0
  %4101 = vmatprep.subr.mxu0 0.0
  %4102 = vmatpush1.msra.mxu0 %v4099
  %4103 = vmatprep.subr.mxu0 0.0
  %4104 = vmatpush1.msra.mxu0 0.0
  %4105 = vmatprep.subr.mxu0 0.0
  %4106 = vmatpush1.msra.mxu0 0.0
  %4107 = vmatprep.subr.mxu0 0.0
  %4108 = vmatpush1.msra.mxu0 0.0
  %4109 = vmatprep.subr.mxu0 0.0
  %4110 = vmatpush1.msra.mxu0 0.0
  %4111 = vmatprep.subr.mxu0 0.0
  %4112 = vmatpush1.msra.mxu0 0.0
  %4113 = vmatprep.subr.mxu0 0.0
  %4114 = vmatpush1.msra.mxu0 0.0
  %4115 = vmatprep.subr.mxu0 0.0
  %4116 = vmatpush1.msra.mxu0 0.0
  %4117 = vmatprep.subr.mxu0 0.0
  %4118 = vmatpush1.msra.mxu0 0.0
  %4119 = vmatprep.subr.mxu0 0.0
  %4120 = vmatpush1.msra.mxu0 0.0
  %4121 = vmatprep.subr.mxu0 0.0
  %4122 = vmatpush1.msra.mxu0 0.0
  %4123 = vmatprep.subr.mxu0 0.0
  %4124 = vmatpush1.msra.mxu0 0.0
  %4125 = vmatprep.subr.mxu0 0.0
  %4126 = vmatpush1.msra.mxu0 0.0
  %4127 = vmatprep.subr.mxu0 0.0
  %4128 = vmatpush1.msra.mxu0 0.0
  %4129 = vmatprep.subr.mxu0 0.0
  %4130 = vmatpush1.msra.mxu0 0.0
  %4131 = vmatprep.subr.mxu0 0.0
  %4132 = vmatpush1.msra.mxu0 0.0
  %4133 = vmatprep.subr.mxu0 0.0
  %4134 = vmatpush1.msra.mxu0 0.0
  %4135 = vmatprep.subr.mxu0 0.0
  %4136 = vmatpush1.msra.mxu0 0.0
  %4137 = vmatprep.subr.mxu0 0.0
  %4138 = vmatpush1.msra.mxu0 0.0
  %4139 = vmatprep.subr.mxu0 0.0
  %4140 = vmatpush1.msra.mxu0 0.0
  %4141 = vmatprep.subr.mxu0 0.0
  %4142 = vmatpush1.msra.mxu0 0.0
  %4143 = vmatprep.subr.mxu0 0.0
  %4144 = vmatpush1.msra.mxu0 0.0
  %4145 = vmatprep.subr.mxu0 0.0
  %4146 = vmatpush1.msra.mxu0 0.0
  %4147 = vmatprep.subr.mxu0 0.0
  %4148 = vmatpush1.msra.mxu0 0.0
  %4149 = vmatprep.subr.mxu0 0.0
  %4150 = vmatpush1.msra.mxu0 0.0
  %4151 = vmatprep.subr.mxu0 0.0
  %4152 = vmatpush1.msra.mxu0 0.0
  %4153 = vmatprep.subr.mxu0 0.0
  %4154 = vmatpush1.msra.mxu0 0.0
  %4155 = vmatprep.subr.mxu0 0.0
  %4156 = vmatpush1.msra.mxu0 0.0
  %4157 = vmatprep.subr.mxu0 0.0
  %4158 = vmatpush1.msra.mxu0 0.0
  %4159 = vmatprep.subr.mxu0 0.0
  %4160 = vmatpush1.msra.mxu0 0.0
  %4161 = vmatprep.subr.mxu0 0.0
  %4162 = vmatpush1.msra.mxu0 0.0
  %4163 = vmatprep.subr.mxu0 0.0
  %4164 = vmatpush1.msra.mxu0 0.0
  %4165 = vmatprep.mubr.f32.mxu0 0.0
  %4166 = vmatmul.mubr.f32.gmra.mrb[0].mxu0 %v3587
  %v4167 = vpop.f32.mrb[0].mxu0
  %v4168 = vadd.f32 0.0, %v4167
  %v4169 = vpop.f32.mrb[0].mxu0
  %4170 = vmatprep.mubr.f32.mxu0 0.0
  %4171 = vmatmul.mubr.f32.gmra.mrb[0].mxu0 %v3590
  %v4172 = vpop.f32.mrb[0].mxu0
  %v4173 = vadd.f32 0.0, %v4172
  %v4174 = vpop.f32.mrb[0].mxu0
  %4175 = vmatprep.mubr.f32.mxu0 0.0
  %4176 = vmatmul.mubr.f32.gmra.mrb[0].mxu0 %v3593
  %v4177 = vpop.f32.mrb[0].mxu0
  %v4178 = vadd.f32 0.0, %v4177
  %v4179 = vpop.f32.mrb[0].mxu0
  %4180 = vdwg.mxu0
  %v4182 = vsel %vm199, %v102, 0
  %4184 = vmatprep.subr.mxu0 0.0
  %4185 = vmatpush1.msra.mxu0 %v4182
  %4186 = vmatprep.subr.mxu0 0.0
  %4187 = vmatpush1.msra.mxu0 0.0
  %4188 = vmatprep.subr.mxu0 0.0
  %4189 = vmatpush1.msra.mxu0 0.0
  %4190 = vmatprep.subr.mxu0 0.0
  %4191 = vmatpush1.msra.mxu0 0.0
  %4192 = vmatprep.subr.mxu0 0.0
  %4193 = vmatpush1.msra.mxu0 0.0
  %4194 = vmatprep.subr.mxu0 0.0
  %4195 = vmatpush1.msra.mxu0 0.0
  %4196 = vmatprep.subr.mxu0 0.0
  %4197 = vmatpush1.msra.mxu0 0.0
  %4198 = vmatprep.subr.mxu0 0.0
  %4199 = vmatpush1.msra.mxu0 0.0
  %4200 = vmatprep.subr.mxu0 0.0
  %4201 = vmatpush1.msra.mxu0 0.0
  %4202 = vmatprep.subr.mxu0 0.0
  %4203 = vmatpush1.msra.mxu0 0.0
  %4204 = vmatprep.subr.mxu0 0.0
  %4205 = vmatpush1.msra.mxu0 0.0
  %4206 = vmatprep.subr.mxu0 0.0
  %4207 = vmatpush1.msra.mxu0 0.0
  %4208 = vmatprep.subr.mxu0 0.0
  %4209 = vmatpush1.msra.mxu0 0.0
  %4210 = vmatprep.subr.mxu0 0.0
  %4211 = vmatpush1.msra.mxu0 0.0
  %4212 = vmatprep.subr.mxu0 0.0
  %4213 = vmatpush1.msra.mxu0 0.0
  %4214 = vmatprep.subr.mxu0 0.0
  %4215 = vmatpush1.msra.mxu0 0.0
  %4216 = vmatprep.subr.mxu0 0.0
  %4217 = vmatpush1.msra.mxu0 0.0
  %4218 = vmatprep.subr.mxu0 0.0
  %4219 = vmatpush1.msra.mxu0 0.0
  %4220 = vmatprep.subr.mxu0 0.0
  %4221 = vmatpush1.msra.mxu0 0.0
  %4222 = vmatprep.subr.mxu0 0.0
  %4223 = vmatpush1.msra.mxu0 0.0
  %4224 = vmatprep.subr.mxu0 0.0
  %4225 = vmatpush1.msra.mxu0 0.0
  %4226 = vmatprep.subr.mxu0 0.0
  %4227 = vmatpush1.msra.mxu0 0.0
  %4228 = vmatprep.subr.mxu0 0.0
  %4229 = vmatpush1.msra.mxu0 0.0
  %4230 = vmatprep.subr.mxu0 0.0
  %4231 = vmatpush1.msra.mxu0 0.0
  %4232 = vmatprep.subr.mxu0 0.0
  %4233 = vmatpush1.msra.mxu0 0.0
  %4234 = vmatprep.subr.mxu0 0.0
  %4235 = vmatpush1.msra.mxu0 0.0
  %4236 = vmatprep.subr.mxu0 0.0
  %4237 = vmatpush1.msra.mxu0 0.0
  %4238 = vmatprep.subr.mxu0 0.0
  %4239 = vmatpush1.msra.mxu0 0.0
  %4240 = vmatprep.subr.mxu0 0.0
  %4241 = vmatpush1.msra.mxu0 0.0
  %4242 = vmatprep.subr.mxu0 0.0
  %4243 = vmatpush1.msra.mxu0 0.0
  %4244 = vmatprep.subr.mxu0 0.0
  %4245 = vmatpush1.msra.mxu0 0.0
  %4246 = vmatprep.subr.mxu0 0.0
  %4247 = vmatpush1.msra.mxu0 0.0
  %4248 = vmatprep.mubr.f32.mxu0 0.0
  %4249 = vmatmul.mubr.f32.gmra.mrb[0].mxu0 %v3587
  %v4250 = vpop.f32.mrb[0].mxu0
  %v4251 = vadd.f32 0.0, %v4250
  %v4252 = vpop.f32.mrb[0].mxu0
  %4253 = vmatprep.mubr.f32.mxu0 0.0
  %4254 = vmatmul.mubr.f32.gmra.mrb[0].mxu0 %v3590
  %v4255 = vpop.f32.mrb[0].mxu0
  %v4256 = vadd.f32 0.0, %v4255
  %v4257 = vpop.f32.mrb[0].mxu0
  %4258 = vmatprep.mubr.f32.mxu0 0.0
  %4259 = vmatmul.mubr.f32.gmra.mrb[0].mxu0 %v3593
  %v4260 = vpop.f32.mrb[0].mxu0
  %v4261 = vadd.f32 0.0, %v4260
  %v4262 = vpop.f32.mrb[0].mxu0
  %4263 = vdwg.mxu0
  %v4265 = vsel %vm199, %v104, 0
  %4267 = vmatprep.subr.mxu0 0.0
  %4268 = vmatpush1.msra.mxu0 %v4265
  %4269 = vmatprep.subr.mxu0 0.0
  %4270 = vmatpush1.msra.mxu0 0.0
  %4271 = vmatprep.subr.mxu0 0.0
  %4272 = vmatpush1.msra.mxu0 0.0
  %4273 = vmatprep.subr.mxu0 0.0
  %4274 = vmatpush1.msra.mxu0 0.0
  %4275 = vmatprep.subr.mxu0 0.0
  %4276 = vmatpush1.msra.mxu0 0.0
  %4277 = vmatprep.subr.mxu0 0.0
  %4278 = vmatpush1.msra.mxu0 0.0
  %4279 = vmatprep.subr.mxu0 0.0
  %4280 = vmatpush1.msra.mxu0 0.0
  %4281 = vmatprep.subr.mxu0 0.0
  %4282 = vmatpush1.msra.mxu0 0.0
  %4283 = vmatprep.subr.mxu0 0.0
  %4284 = vmatpush1.msra.mxu0 0.0
  %4285 = vmatprep.subr.mxu0 0.0
  %4286 = vmatpush1.msra.mxu0 0.0
  %4287 = vmatprep.subr.mxu0 0.0
  %4288 = vmatpush1.msra.mxu0 0.0
  %4289 = vmatprep.subr.mxu0 0.0
  %4290 = vmatpush1.msra.mxu0 0.0
  %4291 = vmatprep.subr.mxu0 0.0
  %4292 = vmatpush1.msra.mxu0 0.0
  %4293 = vmatprep.subr.mxu0 0.0
  %4294 = vmatpush1.msra.mxu0 0.0
  %4295 = vmatprep.subr.mxu0 0.0
  %4296 = vmatpush1.msra.mxu0 0.0
  %4297 = vmatprep.subr.mxu0 0.0
  %4298 = vmatpush1.msra.mxu0 0.0
  %4299 = vmatprep.subr.mxu0 0.0
  %4300 = vmatpush1.msra.mxu0 0.0
  %4301 = vmatprep.subr.mxu0 0.0
  %4302 = vmatpush1.msra.mxu0 0.0
  %4303 = vmatprep.subr.mxu0 0.0
  %4304 = vmatpush1.msra.mxu0 0.0
  %4305 = vmatprep.subr.mxu0 0.0
  %4306 = vmatpush1.msra.mxu0 0.0
  %4307 = vmatprep.subr.mxu0 0.0
  %4308 = vmatpush1.msra.mxu0 0.0
  %4309 = vmatprep.subr.mxu0 0.0
  %4310 = vmatpush1.msra.mxu0 0.0
  %4311 = vmatprep.subr.mxu0 0.0
  %4312 = vmatpush1.msra.mxu0 0.0
  %4313 = vmatprep.subr.mxu0 0.0
  %4314 = vmatpush1.msra.mxu0 0.0
  %4315 = vmatprep.subr.mxu0 0.0
  %4316 = vmatpush1.msra.mxu0 0.0
  %4317 = vmatprep.subr.mxu0 0.0
  %4318 = vmatpush1.msra.mxu0 0.0
  %4319 = vmatprep.subr.mxu0 0.0
  %4320 = vmatpush1.msra.mxu0 0.0
  %4321 = vmatprep.subr.mxu0 0.0
  %4322 = vmatpush1.msra.mxu0 0.0
  %4323 = vmatprep.subr.mxu0 0.0
  %4324 = vmatpush1.msra.mxu0 0.0
  %4325 = vmatprep.subr.mxu0 0.0
  %4326 = vmatpush1.msra.mxu0 0.0
  %4327 = vmatprep.subr.mxu0 0.0
  %4328 = vmatpush1.msra.mxu0 0.0
  %4329 = vmatprep.subr.mxu0 0.0
  %4330 = vmatpush1.msra.mxu0 0.0
  %4331 = vmatprep.mubr.f32.mxu0 0.0
  %4332 = vmatmul.mubr.f32.gmra.mrb[0].mxu0 %v3587
  %v4333 = vpop.f32.mrb[0].mxu0
  %v4334 = vadd.f32 0.0, %v4333
  %v4335 = vpop.f32.mrb[0].mxu0
  %4336 = vmatprep.mubr.f32.mxu0 0.0
  %4337 = vmatmul.mubr.f32.gmra.mrb[0].mxu0 %v3590
  %v4338 = vpop.f32.mrb[0].mxu0
  %v4339 = vadd.f32 0.0, %v4338
  %v4340 = vpop.f32.mrb[0].mxu0
  %4341 = vmatprep.mubr.f32.mxu0 0.0
  %4342 = vmatmul.mubr.f32.gmra.mrb[0].mxu0 %v3593
  %v4343 = vpop.f32.mrb[0].mxu0
  %v4344 = vadd.f32 0.0, %v4343
  %v4345 = vpop.f32.mrb[0].mxu0
  %4346 = vdwg.mxu0
  %v4347 = vld [vmem:[%s2] sm:$0x3]
  %v4349 = vsel %vm195, %v4347, 0
  %4351 = vmatprep.subr.mxu0 0.0
  %4352 = vmatpush1.msra.mxu0 %v201
  %4353 = vmatprep.subr.mxu0 0.0
  %4354 = vmatpush1.msra.mxu0 0.0
  %4355 = vmatprep.subr.mxu0 0.0
  %4356 = vmatpush1.msra.mxu0 0.0
  %4357 = vmatprep.subr.mxu0 0.0
  %4358 = vmatpush1.msra.mxu0 0.0
  %4359 = vmatprep.subr.mxu0 0.0
  %4360 = vmatpush1.msra.mxu0 0.0
  %4361 = vmatprep.subr.mxu0 0.0
  %4362 = vmatpush1.msra.mxu0 0.0
  %4363 = vmatprep.subr.mxu0 0.0
  %4364 = vmatpush1.msra.mxu0 0.0
  %4365 = vmatprep.subr.mxu0 0.0
  %4366 = vmatpush1.msra.mxu0 0.0
  %4367 = vmatprep.subr.mxu0 0.0
  %4368 = vmatpush1.msra.mxu0 0.0
  %4369 = vmatprep.subr.mxu0 0.0
  %4370 = vmatpush1.msra.mxu0 0.0
  %4371 = vmatprep.subr.mxu0 0.0
  %4372 = vmatpush1.msra.mxu0 0.0
  %4373 = vmatprep.subr.mxu0 0.0
  %4374 = vmatpush1.msra.mxu0 0.0
  %4375 = vmatprep.subr.mxu0 0.0
  %4376 = vmatpush1.msra.mxu0 0.0
  %4377 = vmatprep.subr.mxu0 0.0
  %4378 = vmatpush1.msra.mxu0 0.0
  %4379 = vmatprep.subr.mxu0 0.0
  %4380 = vmatpush1.msra.mxu0 0.0
  %4381 = vmatprep.subr.mxu0 0.0
  %4382 = vmatpush1.msra.mxu0 0.0
  %4383 = vmatprep.subr.mxu0 0.0
  %4384 = vmatpush1.msra.mxu0 0.0
  %4385 = vmatprep.subr.mxu0 0.0
  %4386 = vmatpush1.msra.mxu0 0.0
  %4387 = vmatprep.subr.mxu0 0.0
  %4388 = vmatpush1.msra.mxu0 0.0
  %4389 = vmatprep.subr.mxu0 0.0
  %4390 = vmatpush1.msra.mxu0 0.0
  %4391 = vmatprep.subr.mxu0 0.0
  %4392 = vmatpush1.msra.mxu0 0.0
  %4393 = vmatprep.subr.mxu0 0.0
  %4394 = vmatpush1.msra.mxu0 0.0
  %4395 = vmatprep.subr.mxu0 0.0
  %4396 = vmatpush1.msra.mxu0 0.0
  %4397 = vmatprep.subr.mxu0 0.0
  %4398 = vmatpush1.msra.mxu0 0.0
  %4399 = vmatprep.subr.mxu0 0.0
  %4400 = vmatpush1.msra.mxu0 0.0
  %4401 = vmatprep.subr.mxu0 0.0
  %4402 = vmatpush1.msra.mxu0 0.0
  %4403 = vmatprep.subr.mxu0 0.0
  %4404 = vmatpush1.msra.mxu0 0.0
  %4405 = vmatprep.subr.mxu0 0.0
  %4406 = vmatpush1.msra.mxu0 0.0
  %4407 = vmatprep.subr.mxu0 0.0
  %4408 = vmatpush1.msra.mxu0 0.0
  %4409 = vmatprep.subr.mxu0 0.0
  %4410 = vmatpush1.msra.mxu0 0.0
  %4411 = vmatprep.subr.mxu0 0.0
  %4412 = vmatpush1.msra.mxu0 0.0
  %4413 = vmatprep.subr.mxu0 0.0
  %4414 = vmatpush1.msra.mxu0 0.0
  %4415 = vmatprep.mubr.f32.mxu0 0.0
  %4416 = vmatmul.mubr.f32.gmra.mrb[0].mxu0 %v4349
  %v4417 = vpop.f32.mrb[0].mxu0
  %v4418 = vadd.f32 %v191, %v4417
  %v4419 = vpop.f32.mrb[0].mxu0
  %4420 = vdwg.mxu0
  %s4421 = scalar_lea.vmem %s2, 2
  %v4422 = vld [vmem:[%s4421] sm:$0x3]
  %v4424 = vsel %vm195, %v4422, 0
  %4426 = vmatprep.subr.mxu0 0.0
  %4427 = vmatpush1.msra.mxu0 %v201
  %4428 = vmatprep.subr.mxu0 0.0
  %4429 = vmatpush1.msra.mxu0 0.0
  %4430 = vmatprep.subr.mxu0 0.0
  %4431 = vmatpush1.msra.mxu0 0.0
  %4432 = vmatprep.subr.mxu0 0.0
  %4433 = vmatpush1.msra.mxu0 0.0
  %4434 = vmatprep.subr.mxu0 0.0
  %4435 = vmatpush1.msra.mxu0 0.0
  %4436 = vmatprep.subr.mxu0 0.0
  %4437 = vmatpush1.msra.mxu0 0.0
  %4438 = vmatprep.subr.mxu0 0.0
  %4439 = vmatpush1.msra.mxu0 0.0
  %4440 = vmatprep.subr.mxu0 0.0
  %4441 = vmatpush1.msra.mxu0 0.0
  %4442 = vmatprep.subr.mxu0 0.0
  %4443 = vmatpush1.msra.mxu0 0.0
  %4444 = vmatprep.subr.mxu0 0.0
  %4445 = vmatpush1.msra.mxu0 0.0
  %4446 = vmatprep.subr.mxu0 0.0
  %4447 = vmatpush1.msra.mxu0 0.0
  %4448 = vmatprep.subr.mxu0 0.0
  %4449 = vmatpush1.msra.mxu0 0.0
  %4450 = vmatprep.subr.mxu0 0.0
  %4451 = vmatpush1.msra.mxu0 0.0
  %4452 = vmatprep.subr.mxu0 0.0
  %4453 = vmatpush1.msra.mxu0 0.0
  %4454 = vmatprep.subr.mxu0 0.0
  %4455 = vmatpush1.msra.mxu0 0.0
  %4456 = vmatprep.subr.mxu0 0.0
  %4457 = vmatpush1.msra.mxu0 0.0
  %4458 = vmatprep.subr.mxu0 0.0
  %4459 = vmatpush1.msra.mxu0 0.0
  %4460 = vmatprep.subr.mxu0 0.0
  %4461 = vmatpush1.msra.mxu0 0.0
  %4462 = vmatprep.subr.mxu0 0.0
  %4463 = vmatpush1.msra.mxu0 0.0
  %4464 = vmatprep.subr.mxu0 0.0
  %4465 = vmatpush1.msra.mxu0 0.0
  %4466 = vmatprep.subr.mxu0 0.0
  %4467 = vmatpush1.msra.mxu0 0.0
  %4468 = vmatprep.subr.mxu0 0.0
  %4469 = vmatpush1.msra.mxu0 0.0
  %4470 = vmatprep.subr.mxu0 0.0
  %4471 = vmatpush1.msra.mxu0 0.0
  %4472 = vmatprep.subr.mxu0 0.0
  %4473 = vmatpush1.msra.mxu0 0.0
  %4474 = vmatprep.subr.mxu0 0.0
  %4475 = vmatpush1.msra.mxu0 0.0
  %4476 = vmatprep.subr.mxu0 0.0
  %4477 = vmatpush1.msra.mxu0 0.0
  %4478 = vmatprep.subr.mxu0 0.0
  %4479 = vmatpush1.msra.mxu0 0.0
  %4480 = vmatprep.subr.mxu0 0.0
  %4481 = vmatpush1.msra.mxu0 0.0
  %4482 = vmatprep.subr.mxu0 0.0
  %4483 = vmatpush1.msra.mxu0 0.0
  %4484 = vmatprep.subr.mxu0 0.0
  %4485 = vmatpush1.msra.mxu0 0.0
  %4486 = vmatprep.subr.mxu0 0.0
  %4487 = vmatpush1.msra.mxu0 0.0
  %4488 = vmatprep.subr.mxu0 0.0
  %4489 = vmatpush1.msra.mxu0 0.0
  %4490 = vmatprep.mubr.f32.mxu0 0.0
  %4491 = vmatmul.mubr.f32.gmra.mrb[0].mxu0 %v4424
  %v4492 = vpop.f32.mrb[0].mxu0
  %v4493 = vadd.f32 %v191, %v4492
  %v4494 = vpop.f32.mrb[0].mxu0
  %4495 = vdwg.mxu0
  %s4496 = scalar_lea.vmem %s2, 4
  %v4497 = vld [vmem:[%s4496] sm:$0x3]
  %v4499 = vsel %vm195, %v4497, 0
  %4501 = vmatprep.subr.mxu0 0.0
  %4502 = vmatpush1.msra.mxu0 %v201
  %4503 = vmatprep.subr.mxu0 0.0
  %4504 = vmatpush1.msra.mxu0 0.0
  %4505 = vmatprep.subr.mxu0 0.0
  %4506 = vmatpush1.msra.mxu0 0.0
  %4507 = vmatprep.subr.mxu0 0.0
  %4508 = vmatpush1.msra.mxu0 0.0
  %4509 = vmatprep.subr.mxu0 0.0
  %4510 = vmatpush1.msra.mxu0 0.0
  %4511 = vmatprep.subr.mxu0 0.0
  %4512 = vmatpush1.msra.mxu0 0.0
  %4513 = vmatprep.subr.mxu0 0.0
  %4514 = vmatpush1.msra.mxu0 0.0
  %4515 = vmatprep.subr.mxu0 0.0
  %4516 = vmatpush1.msra.mxu0 0.0
  %4517 = vmatprep.subr.mxu0 0.0
  %4518 = vmatpush1.msra.mxu0 0.0
  %4519 = vmatprep.subr.mxu0 0.0
  %4520 = vmatpush1.msra.mxu0 0.0
  %4521 = vmatprep.subr.mxu0 0.0
  %4522 = vmatpush1.msra.mxu0 0.0
  %4523 = vmatprep.subr.mxu0 0.0
  %4524 = vmatpush1.msra.mxu0 0.0
  %4525 = vmatprep.subr.mxu0 0.0
  %4526 = vmatpush1.msra.mxu0 0.0
  %4527 = vmatprep.subr.mxu0 0.0
  %4528 = vmatpush1.msra.mxu0 0.0
  %4529 = vmatprep.subr.mxu0 0.0
  %4530 = vmatpush1.msra.mxu0 0.0
  %4531 = vmatprep.subr.mxu0 0.0
  %4532 = vmatpush1.msra.mxu0 0.0
  %4533 = vmatprep.subr.mxu0 0.0
  %4534 = vmatpush1.msra.mxu0 0.0
  %4535 = vmatprep.subr.mxu0 0.0
  %4536 = vmatpush1.msra.mxu0 0.0
  %4537 = vmatprep.subr.mxu0 0.0
  %4538 = vmatpush1.msra.mxu0 0.0
  %4539 = vmatprep.subr.mxu0 0.0
  %4540 = vmatpush1.msra.mxu0 0.0
  %4541 = vmatprep.subr.mxu0 0.0
  %4542 = vmatpush1.msra.mxu0 0.0
  %4543 = vmatprep.subr.mxu0 0.0
  %4544 = vmatpush1.msra.mxu0 0.0
  %4545 = vmatprep.subr.mxu0 0.0
  %4546 = vmatpush1.msra.mxu0 0.0
  %4547 = vmatprep.subr.mxu0 0.0
  %4548 = vmatpush1.msra.mxu0 0.0
  %4549 = vmatprep.subr.mxu0 0.0
  %4550 = vmatpush1.msra.mxu0 0.0
  %4551 = vmatprep.subr.mxu0 0.0
  %4552 = vmatpush1.msra.mxu0 0.0
  %4553 = vmatprep.subr.mxu0 0.0
  %4554 = vmatpush1.msra.mxu0 0.0
  %4555 = vmatprep.subr.mxu0 0.0
  %4556 = vmatpush1.msra.mxu0 0.0
  %4557 = vmatprep.subr.mxu0 0.0
  %4558 = vmatpush1.msra.mxu0 0.0
  %4559 = vmatprep.subr.mxu0 0.0
  %4560 = vmatpush1.msra.mxu0 0.0
  %4561 = vmatprep.subr.mxu0 0.0
  %4562 = vmatpush1.msra.mxu0 0.0
  %4563 = vmatprep.subr.mxu0 0.0
  %4564 = vmatpush1.msra.mxu0 0.0
  %4565 = vmatprep.mubr.f32.mxu0 0.0
  %4566 = vmatmul.mubr.f32.gmra.mrb[0].mxu0 %v4499
  %v4567 = vpop.f32.mrb[0].mxu0
  %v4568 = vadd.f32 %v191, %v4567
  %v4569 = vpop.f32.mrb[0].mxu0
  %4570 = vdwg.mxu0
  %s4571 = scalar_lea.vmem %s2, 6
  %v4572 = vld [vmem:[%s4571] sm:$0x3]
  %v4574 = vsel %vm195, %v4572, 0
  %4576 = vmatprep.subr.mxu0 0.0
  %4577 = vmatpush1.msra.mxu0 %v201
  %4578 = vmatprep.subr.mxu0 0.0
  %4579 = vmatpush1.msra.mxu0 0.0
  %4580 = vmatprep.subr.mxu0 0.0
  %4581 = vmatpush1.msra.mxu0 0.0
  %4582 = vmatprep.subr.mxu0 0.0
  %4583 = vmatpush1.msra.mxu0 0.0
  %4584 = vmatprep.subr.mxu0 0.0
  %4585 = vmatpush1.msra.mxu0 0.0
  %4586 = vmatprep.subr.mxu0 0.0
  %4587 = vmatpush1.msra.mxu0 0.0
  %4588 = vmatprep.subr.mxu0 0.0
  %4589 = vmatpush1.msra.mxu0 0.0
  %4590 = vmatprep.subr.mxu0 0.0
  %4591 = vmatpush1.msra.mxu0 0.0
  %4592 = vmatprep.subr.mxu0 0.0
  %4593 = vmatpush1.msra.mxu0 0.0
  %4594 = vmatprep.subr.mxu0 0.0
  %4595 = vmatpush1.msra.mxu0 0.0
  %4596 = vmatprep.subr.mxu0 0.0
  %4597 = vmatpush1.msra.mxu0 0.0
  %4598 = vmatprep.subr.mxu0 0.0
  %4599 = vmatpush1.msra.mxu0 0.0
  %4600 = vmatprep.subr.mxu0 0.0
  %4601 = vmatpush1.msra.mxu0 0.0
  %4602 = vmatprep.subr.mxu0 0.0
  %4603 = vmatpush1.msra.mxu0 0.0
  %4604 = vmatprep.subr.mxu0 0.0
  %4605 = vmatpush1.msra.mxu0 0.0
  %4606 = vmatprep.subr.mxu0 0.0
  %4607 = vmatpush1.msra.mxu0 0.0
  %4608 = vmatprep.subr.mxu0 0.0
  %4609 = vmatpush1.msra.mxu0 0.0
  %4610 = vmatprep.subr.mxu0 0.0
  %4611 = vmatpush1.msra.mxu0 0.0
  %4612 = vmatprep.subr.mxu0 0.0
  %4613 = vmatpush1.msra.mxu0 0.0
  %4614 = vmatprep.subr.mxu0 0.0
  %4615 = vmatpush1.msra.mxu0 0.0
  %4616 = vmatprep.subr.mxu0 0.0
  %4617 = vmatpush1.msra.mxu0 0.0
  %4618 = vmatprep.subr.mxu0 0.0
  %4619 = vmatpush1.msra.mxu0 0.0
  %4620 = vmatprep.subr.mxu0 0.0
  %4621 = vmatpush1.msra.mxu0 0.0
  %4622 = vmatprep.subr.mxu0 0.0
  %4623 = vmatpush1.msra.mxu0 0.0
  %4624 = vmatprep.subr.mxu0 0.0
  %4625 = vmatpush1.msra.mxu0 0.0
  %4626 = vmatprep.subr.mxu0 0.0
  %4627 = vmatpush1.msra.mxu0 0.0
  %4628 = vmatprep.subr.mxu0 0.0
  %4629 = vmatpush1.msra.mxu0 0.0
  %4630 = vmatprep.subr.mxu0 0.0
  %4631 = vmatpush1.msra.mxu0 0.0
  %4632 = vmatprep.subr.mxu0 0.0
  %4633 = vmatpush1.msra.mxu0 0.0
  %4634 = vmatprep.subr.mxu0 0.0
  %4635 = vmatpush1.msra.mxu0 0.0
  %4636 = vmatprep.subr.mxu0 0.0
  %4637 = vmatpush1.msra.mxu0 0.0
  %4638 = vmatprep.subr.mxu0 0.0
  %4639 = vmatpush1.msra.mxu0 0.0
  %4640 = vmatprep.mubr.f32.mxu0 0.0
  %4641 = vmatmul.mubr.f32.gmra.mrb[0].mxu0 %v4574
  %v4642 = vpop.f32.mrb[0].mxu0
  %v4643 = vadd.f32 %v191, %v4642
  %v4644 = vpop.f32.mrb[0].mxu0
  %4645 = vdwg.mxu0
  %v4647 = vsel %vm1961, %v3664, 0
  %v4650 = vsel %vm1961, %v3669, 0
  %v4653 = vsel %vm1961, %v3674, 0
  %4655 = vmatprep.subr.mxu0 0.0
  %4656 = vmatpush1.msra.mxu0 %v70
  %4657 = vmatprep.subr.mxu0 0.0
  %4658 = vmatpush1.msra.mxu0 %v71
  %4659 = vmatprep.subr.mxu0 0.0
  %4660 = vmatpush1.msra.mxu0 %v72
  %4661 = vmatprep.subr.mxu0 0.0
  %4662 = vmatpush1.msra.mxu0 %v73
  %4663 = vmatprep.subr.mxu0 0.0
  %4664 = vmatpush1.msra.mxu0 0.0
  %4665 = vmatprep.subr.mxu0 0.0
  %4666 = vmatpush1.msra.mxu0 0.0
  %4667 = vmatprep.subr.mxu0 0.0
  %4668 = vmatpush1.msra.mxu0 0.0
  %4669 = vmatprep.subr.mxu0 0.0
  %4670 = vmatpush1.msra.mxu0 0.0
  %4671 = vmatprep.subr.mxu0 0.0
  %4672 = vmatpush1.msra.mxu0 0.0
  %4673 = vmatprep.subr.mxu0 0.0
  %4674 = vmatpush1.msra.mxu0 0.0
  %4675 = vmatprep.subr.mxu0 0.0
  %4676 = vmatpush1.msra.mxu0 0.0
  %4677 = vmatprep.subr.mxu0 0.0
  %4678 = vmatpush1.msra.mxu0 0.0
  %4679 = vmatprep.subr.mxu0 0.0
  %4680 = vmatpush1.msra.mxu0 0.0
  %4681 = vmatprep.subr.mxu0 0.0
  %4682 = vmatpush1.msra.mxu0 0.0
  %4683 = vmatprep.subr.mxu0 0.0
  %4684 = vmatpush1.msra.mxu0 0.0
  %4685 = vmatprep.subr.mxu0 0.0
  %4686 = vmatpush1.msra.mxu0 0.0
  %4687 = vmatprep.subr.mxu0 0.0
  %4688 = vmatpush1.msra.mxu0 0.0
  %4689 = vmatprep.subr.mxu0 0.0
  %4690 = vmatpush1.msra.mxu0 0.0
  %4691 = vmatprep.subr.mxu0 0.0
  %4692 = vmatpush1.msra.mxu0 0.0
  %4693 = vmatprep.subr.mxu0 0.0
  %4694 = vmatpush1.msra.mxu0 0.0
  %4695 = vmatprep.subr.mxu0 0.0
  %4696 = vmatpush1.msra.mxu0 0.0
  %4697 = vmatprep.subr.mxu0 0.0
  %4698 = vmatpush1.msra.mxu0 0.0
  %4699 = vmatprep.subr.mxu0 0.0
  %4700 = vmatpush1.msra.mxu0 0.0
  %4701 = vmatprep.subr.mxu0 0.0
  %4702 = vmatpush1.msra.mxu0 0.0
  %4703 = vmatprep.subr.mxu0 0.0
  %4704 = vmatpush1.msra.mxu0 0.0
  %4705 = vmatprep.subr.mxu0 0.0
  %4706 = vmatpush1.msra.mxu0 0.0
  %4707 = vmatprep.subr.mxu0 0.0
  %4708 = vmatpush1.msra.mxu0 0.0
  %4709 = vmatprep.subr.mxu0 0.0
  %4710 = vmatpush1.msra.mxu0 0.0
  %4711 = vmatprep.subr.mxu0 0.0
  %4712 = vmatpush1.msra.mxu0 0.0
  %4713 = vmatprep.subr.mxu0 0.0
  %4714 = vmatpush1.msra.mxu0 0.0
  %4715 = vmatprep.subr.mxu0 0.0
  %4716 = vmatpush1.msra.mxu0 0.0
  %4717 = vmatprep.subr.mxu0 0.0
  %4718 = vmatpush1.msra.mxu0 0.0
  %4719 = vmatprep.mubr.f32.mxu0 0.0
  %4720 = vmatmul.mubr.f32.gmra.mrb[0].mxu0 %v4647
  %v4721 = vpop.f32.mrb[0].mxu0
  %v4722 = vadd.f32 0.0, %v4721
  %v4723 = vpop.f32.mrb[0].mxu0
  %4724 = vmatprep.mubr.f32.mxu0 0.0
  %4725 = vmatmul.mubr.f32.gmra.mrb[0].mxu0 %v4650
  %v4726 = vpop.f32.mrb[0].mxu0
  %v4727 = vadd.f32 0.0, %v4726
  %v4728 = vpop.f32.mrb[0].mxu0
  %4729 = vmatprep.mubr.f32.mxu0 0.0
  %4730 = vmatmul.mubr.f32.gmra.mrb[0].mxu0 %v4653
  %v4731 = vpop.f32.mrb[0].mxu0
  %v4732 = vadd.f32 0.0, %v4731
  %v4733 = vpop.f32.mrb[0].mxu0
  %4734 = vdwg.mxu0
  %v4736 = vsel %vm199, %v4418, 0
  %4738 = vmatprep.subr.mxu0 0.0
  %4739 = vmatpush1.msra.mxu0 %v4736
  %4740 = vmatprep.subr.mxu0 0.0
  %4741 = vmatpush1.msra.mxu0 0.0
  %4742 = vmatprep.subr.mxu0 0.0
  %4743 = vmatpush1.msra.mxu0 0.0
  %4744 = vmatprep.subr.mxu0 0.0
  %4745 = vmatpush1.msra.mxu0 0.0
  %4746 = vmatprep.subr.mxu0 0.0
  %4747 = vmatpush1.msra.mxu0 0.0
  %4748 = vmatprep.subr.mxu0 0.0
  %4749 = vmatpush1.msra.mxu0 0.0
  %4750 = vmatprep.subr.mxu0 0.0
  %4751 = vmatpush1.msra.mxu0 0.0
  %4752 = vmatprep.subr.mxu0 0.0
  %4753 = vmatpush1.msra.mxu0 0.0
  %4754 = vmatprep.subr.mxu0 0.0
  %4755 = vmatpush1.msra.mxu0 0.0
  %4756 = vmatprep.subr.mxu0 0.0
  %4757 = vmatpush1.msra.mxu0 0.0
  %4758 = vmatprep.subr.mxu0 0.0
  %4759 = vmatpush1.msra.mxu0 0.0
  %4760 = vmatprep.subr.mxu0 0.0
  %4761 = vmatpush1.msra.mxu0 0.0
  %4762 = vmatprep.subr.mxu0 0.0
  %4763 = vmatpush1.msra.mxu0 0.0
  %4764 = vmatprep.subr.mxu0 0.0
  %4765 = vmatpush1.msra.mxu0 0.0
  %4766 = vmatprep.subr.mxu0 0.0
  %4767 = vmatpush1.msra.mxu0 0.0
  %4768 = vmatprep.subr.mxu0 0.0
  %4769 = vmatpush1.msra.mxu0 0.0
  %4770 = vmatprep.subr.mxu0 0.0
  %4771 = vmatpush1.msra.mxu0 0.0
  %4772 = vmatprep.subr.mxu0 0.0
  %4773 = vmatpush1.msra.mxu0 0.0
  %4774 = vmatprep.subr.mxu0 0.0
  %4775 = vmatpush1.msra.mxu0 0.0
  %4776 = vmatprep.subr.mxu0 0.0
  %4777 = vmatpush1.msra.mxu0 0.0
  %4778 = vmatprep.subr.mxu0 0.0
  %4779 = vmatpush1.msra.mxu0 0.0
  %4780 = vmatprep.subr.mxu0 0.0
  %4781 = vmatpush1.msra.mxu0 0.0
  %4782 = vmatprep.subr.mxu0 0.0
  %4783 = vmatpush1.msra.mxu0 0.0
  %4784 = vmatprep.subr.mxu0 0.0
  %4785 = vmatpush1.msra.mxu0 0.0
  %4786 = vmatprep.subr.mxu0 0.0
  %4787 = vmatpush1.msra.mxu0 0.0
  %4788 = vmatprep.subr.mxu0 0.0
  %4789 = vmatpush1.msra.mxu0 0.0
  %4790 = vmatprep.subr.mxu0 0.0
  %4791 = vmatpush1.msra.mxu0 0.0
  %4792 = vmatprep.subr.mxu0 0.0
  %4793 = vmatpush1.msra.mxu0 0.0
  %4794 = vmatprep.subr.mxu0 0.0
  %4795 = vmatpush1.msra.mxu0 0.0
  %4796 = vmatprep.subr.mxu0 0.0
  %4797 = vmatpush1.msra.mxu0 0.0
  %4798 = vmatprep.subr.mxu0 0.0
  %4799 = vmatpush1.msra.mxu0 0.0
  %4800 = vmatprep.subr.mxu0 0.0
  %4801 = vmatpush1.msra.mxu0 0.0
  %4802 = vmatprep.mubr.f32.mxu0 0.0
  %4803 = vmatmul.mubr.f32.gmra.mrb[0].mxu0 %v3587
  %v4804 = vpop.f32.mrb[0].mxu0
  %v4805 = vadd.f32 %v4722, %v4804
  %v4806 = vpop.f32.mrb[0].mxu0
  %4807 = vmatprep.mubr.f32.mxu0 0.0
  %4808 = vmatmul.mubr.f32.gmra.mrb[0].mxu0 %v3590
  %v4809 = vpop.f32.mrb[0].mxu0
  %v4810 = vadd.f32 %v4727, %v4809
  %v4811 = vpop.f32.mrb[0].mxu0
  %4812 = vmatprep.mubr.f32.mxu0 0.0
  %4813 = vmatmul.mubr.f32.gmra.mrb[0].mxu0 %v3593
  %v4814 = vpop.f32.mrb[0].mxu0
  %v4815 = vadd.f32 %v4732, %v4814
  %v4816 = vpop.f32.mrb[0].mxu0
  %4817 = vdwg.mxu0
  %v4818 = vmul.f32 %v4334, %v4085
  %v4819 = vmul.f32 %v4339, %v4090
  %v4820 = vmul.f32 %v4344, %v4095
  %v4822 = vsel %vm273, %v4818, 0
  %v4825 = vsel %vm273, %v4819, 0
  %v4828 = vsel %vm273, %v4820, 0
  %4830 = vmatprep.subr.mxu0 0.0
  %4831 = vmatpush1.msra.mxu0 %v279
  %4832 = vmatprep.subr.mxu0 0.0
  %4833 = vmatpush1.msra.mxu0 0.0
  %4834 = vmatprep.subr.mxu0 0.0
  %4835 = vmatpush1.msra.mxu0 0.0
  %4836 = vmatprep.subr.mxu0 0.0
  %4837 = vmatpush1.msra.mxu0 0.0
  %4838 = vmatprep.subr.mxu0 0.0
  %4839 = vmatpush1.msra.mxu0 0.0
  %4840 = vmatprep.subr.mxu0 0.0
  %4841 = vmatpush1.msra.mxu0 0.0
  %4842 = vmatprep.subr.mxu0 0.0
  %4843 = vmatpush1.msra.mxu0 0.0
  %4844 = vmatprep.subr.mxu0 0.0
  %4845 = vmatpush1.msra.mxu0 0.0
  %4846 = vmatprep.subr.mxu0 0.0
  %4847 = vmatpush1.msra.mxu0 0.0
  %4848 = vmatprep.subr.mxu0 0.0
  %4849 = vmatpush1.msra.mxu0 0.0
  %4850 = vmatprep.subr.mxu0 0.0
  %4851 = vmatpush1.msra.mxu0 0.0
  %4852 = vmatprep.subr.mxu0 0.0
  %4853 = vmatpush1.msra.mxu0 0.0
  %4854 = vmatprep.subr.mxu0 0.0
  %4855 = vmatpush1.msra.mxu0 0.0
  %4856 = vmatprep.subr.mxu0 0.0
  %4857 = vmatpush1.msra.mxu0 0.0
  %4858 = vmatprep.subr.mxu0 0.0
  %4859 = vmatpush1.msra.mxu0 0.0
  %4860 = vmatprep.subr.mxu0 0.0
  %4861 = vmatpush1.msra.mxu0 0.0
  %4862 = vmatprep.subr.mxu0 0.0
  %4863 = vmatpush1.msra.mxu0 0.0
  %4864 = vmatprep.subr.mxu0 0.0
  %4865 = vmatpush1.msra.mxu0 0.0
  %4866 = vmatprep.subr.mxu0 0.0
  %4867 = vmatpush1.msra.mxu0 0.0
  %4868 = vmatprep.subr.mxu0 0.0
  %4869 = vmatpush1.msra.mxu0 0.0
  %4870 = vmatprep.subr.mxu0 0.0
  %4871 = vmatpush1.msra.mxu0 0.0
  %4872 = vmatprep.subr.mxu0 0.0
  %4873 = vmatpush1.msra.mxu0 0.0
  %4874 = vmatprep.subr.mxu0 0.0
  %4875 = vmatpush1.msra.mxu0 0.0
  %4876 = vmatprep.subr.mxu0 0.0
  %4877 = vmatpush1.msra.mxu0 0.0
  %4878 = vmatprep.subr.mxu0 0.0
  %4879 = vmatpush1.msra.mxu0 0.0
  %4880 = vmatprep.subr.mxu0 0.0
  %4881 = vmatpush1.msra.mxu0 0.0
  %4882 = vmatprep.subr.mxu0 0.0
  %4883 = vmatpush1.msra.mxu0 0.0
  %4884 = vmatprep.subr.mxu0 0.0
  %4885 = vmatpush1.msra.mxu0 0.0
  %4886 = vmatprep.subr.mxu0 0.0
  %4887 = vmatpush1.msra.mxu0 0.0
  %4888 = vmatprep.subr.mxu0 0.0
  %4889 = vmatpush1.msra.mxu0 0.0
  %4890 = vmatprep.subr.mxu0 0.0
  %4891 = vmatpush1.msra.mxu0 0.0
  %4892 = vmatprep.subr.mxu0 0.0
  %4893 = vmatpush1.msra.mxu0 0.0
  %4894 = vmatprep.mubr.f32.mxu0 0.0
  %4895 = vmatmul.mubr.f32.gmra.mrb[0].mxu0 %v4822
  %v4896 = vpop.f32.mrb[0].mxu0
  %v4897 = vadd.f32 0.0, %v4896
  %v4898 = vpop.f32.mrb[0].mxu0
  %4899 = vmatprep.mubr.f32.mxu0 0.0
  %4900 = vmatmul.mubr.f32.gmra.mrb[0].mxu0 %v4825
  %v4901 = vpop.f32.mrb[0].mxu0
  %v4902 = vadd.f32 0.0, %v4901
  %v4903 = vpop.f32.mrb[0].mxu0
  %4904 = vmatprep.mubr.f32.mxu0 0.0
  %4905 = vmatmul.mubr.f32.gmra.mrb[0].mxu0 %v4828
  %v4906 = vpop.f32.mrb[0].mxu0
  %v4907 = vadd.f32 0.0, %v4906
  %v4908 = vpop.f32.mrb[0].mxu0
  %4909 = vdwg.mxu0
  %v4910 = vadd.f32 %v4805, %v4897
  %v4911 = vadd.f32 %v4810, %v4902
  %v4912 = vadd.f32 %v4815, %v4907
  %v4913 = vmul.f32 %v4251, %v4085
  %v4914 = vmul.f32 %v4256, %v4090
  %v4915 = vmul.f32 %v4261, %v4095
  %v4917 = vsel %vm273, %v4913, 0
  %v4920 = vsel %vm273, %v4914, 0
  %v4923 = vsel %vm273, %v4915, 0
  %4925 = vmatprep.subr.mxu0 0.0
  %4926 = vmatpush1.msra.mxu0 %v356
  %4927 = vmatprep.subr.mxu0 0.0
  %4928 = vmatpush1.msra.mxu0 0.0
  %4929 = vmatprep.subr.mxu0 0.0
  %4930 = vmatpush1.msra.mxu0 0.0
  %4931 = vmatprep.subr.mxu0 0.0
  %4932 = vmatpush1.msra.mxu0 0.0
  %4933 = vmatprep.subr.mxu0 0.0
  %4934 = vmatpush1.msra.mxu0 0.0
  %4935 = vmatprep.subr.mxu0 0.0
  %4936 = vmatpush1.msra.mxu0 0.0
  %4937 = vmatprep.subr.mxu0 0.0
  %4938 = vmatpush1.msra.mxu0 0.0
  %4939 = vmatprep.subr.mxu0 0.0
  %4940 = vmatpush1.msra.mxu0 0.0
  %4941 = vmatprep.subr.mxu0 0.0
  %4942 = vmatpush1.msra.mxu0 0.0
  %4943 = vmatprep.subr.mxu0 0.0
  %4944 = vmatpush1.msra.mxu0 0.0
  %4945 = vmatprep.subr.mxu0 0.0
  %4946 = vmatpush1.msra.mxu0 0.0
  %4947 = vmatprep.subr.mxu0 0.0
  %4948 = vmatpush1.msra.mxu0 0.0
  %4949 = vmatprep.subr.mxu0 0.0
  %4950 = vmatpush1.msra.mxu0 0.0
  %4951 = vmatprep.subr.mxu0 0.0
  %4952 = vmatpush1.msra.mxu0 0.0
  %4953 = vmatprep.subr.mxu0 0.0
  %4954 = vmatpush1.msra.mxu0 0.0
  %4955 = vmatprep.subr.mxu0 0.0
  %4956 = vmatpush1.msra.mxu0 0.0
  %4957 = vmatprep.subr.mxu0 0.0
  %4958 = vmatpush1.msra.mxu0 0.0
  %4959 = vmatprep.subr.mxu0 0.0
  %4960 = vmatpush1.msra.mxu0 0.0
  %4961 = vmatprep.subr.mxu0 0.0
  %4962 = vmatpush1.msra.mxu0 0.0
  %4963 = vmatprep.subr.mxu0 0.0
  %4964 = vmatpush1.msra.mxu0 0.0
  %4965 = vmatprep.subr.mxu0 0.0
  %4966 = vmatpush1.msra.mxu0 0.0
  %4967 = vmatprep.subr.mxu0 0.0
  %4968 = vmatpush1.msra.mxu0 0.0
  %4969 = vmatprep.subr.mxu0 0.0
  %4970 = vmatpush1.msra.mxu0 0.0
  %4971 = vmatprep.subr.mxu0 0.0
  %4972 = vmatpush1.msra.mxu0 0.0
  %4973 = vmatprep.subr.mxu0 0.0
  %4974 = vmatpush1.msra.mxu0 0.0
  %4975 = vmatprep.subr.mxu0 0.0
  %4976 = vmatpush1.msra.mxu0 0.0
  %4977 = vmatprep.subr.mxu0 0.0
  %4978 = vmatpush1.msra.mxu0 0.0
  %4979 = vmatprep.subr.mxu0 0.0
  %4980 = vmatpush1.msra.mxu0 0.0
  %4981 = vmatprep.subr.mxu0 0.0
  %4982 = vmatpush1.msra.mxu0 0.0
  %4983 = vmatprep.subr.mxu0 0.0
  %4984 = vmatpush1.msra.mxu0 0.0
  %4985 = vmatprep.subr.mxu0 0.0
  %4986 = vmatpush1.msra.mxu0 0.0
  %4987 = vmatprep.subr.mxu0 0.0
  %4988 = vmatpush1.msra.mxu0 0.0
  %4989 = vmatprep.mubr.f32.mxu0 0.0
  %4990 = vmatmul.mubr.f32.gmra.mrb[0].mxu0 %v4917
  %v4991 = vpop.f32.mrb[0].mxu0
  %v4992 = vadd.f32 0.0, %v4991
  %v4993 = vpop.f32.mrb[0].mxu0
  %4994 = vmatprep.mubr.f32.mxu0 0.0
  %4995 = vmatmul.mubr.f32.gmra.mrb[0].mxu0 %v4920
  %v4996 = vpop.f32.mrb[0].mxu0
  %v4997 = vadd.f32 0.0, %v4996
  %v4998 = vpop.f32.mrb[0].mxu0
  %4999 = vmatprep.mubr.f32.mxu0 0.0
  %5000 = vmatmul.mubr.f32.gmra.mrb[0].mxu0 %v4923
  %v5001 = vpop.f32.mrb[0].mxu0
  %v5002 = vadd.f32 0.0, %v5001
  %v5003 = vpop.f32.mrb[0].mxu0
  %5004 = vdwg.mxu0
  %v5005 = vadd.f32 %v4910, %v4992
  %v5006 = vadd.f32 %v4911, %v4997
  %v5007 = vadd.f32 %v4912, %v5002
  %v5008 = vmul.f32 %v4168, %v4085
  %v5009 = vmul.f32 %v4173, %v4090
  %v5010 = vmul.f32 %v4178, %v4095
  %v5012 = vsel %vm273, %v5008, 0
  %v5015 = vsel %vm273, %v5009, 0
  %v5018 = vsel %vm273, %v5010, 0
  %5020 = vmatprep.subr.mxu0 0.0
  %5021 = vmatpush1.msra.mxu0 %v433
  %5022 = vmatprep.subr.mxu0 0.0
  %5023 = vmatpush1.msra.mxu0 0.0
  %5024 = vmatprep.subr.mxu0 0.0
  %5025 = vmatpush1.msra.mxu0 0.0
  %5026 = vmatprep.subr.mxu0 0.0
  %5027 = vmatpush1.msra.mxu0 0.0
  %5028 = vmatprep.subr.mxu0 0.0
  %5029 = vmatpush1.msra.mxu0 0.0
  %5030 = vmatprep.subr.mxu0 0.0
  %5031 = vmatpush1.msra.mxu0 0.0
  %5032 = vmatprep.subr.mxu0 0.0
  %5033 = vmatpush1.msra.mxu0 0.0
  %5034 = vmatprep.subr.mxu0 0.0
  %5035 = vmatpush1.msra.mxu0 0.0
  %5036 = vmatprep.subr.mxu0 0.0
  %5037 = vmatpush1.msra.mxu0 0.0
  %5038 = vmatprep.subr.mxu0 0.0
  %5039 = vmatpush1.msra.mxu0 0.0
  %5040 = vmatprep.subr.mxu0 0.0
  %5041 = vmatpush1.msra.mxu0 0.0
  %5042 = vmatprep.subr.mxu0 0.0
  %5043 = vmatpush1.msra.mxu0 0.0
  %5044 = vmatprep.subr.mxu0 0.0
  %5045 = vmatpush1.msra.mxu0 0.0
  %5046 = vmatprep.subr.mxu0 0.0
  %5047 = vmatpush1.msra.mxu0 0.0
  %5048 = vmatprep.subr.mxu0 0.0
  %5049 = vmatpush1.msra.mxu0 0.0
  %5050 = vmatprep.subr.mxu0 0.0
  %5051 = vmatpush1.msra.mxu0 0.0
  %5052 = vmatprep.subr.mxu0 0.0
  %5053 = vmatpush1.msra.mxu0 0.0
  %5054 = vmatprep.subr.mxu0 0.0
  %5055 = vmatpush1.msra.mxu0 0.0
  %5056 = vmatprep.subr.mxu0 0.0
  %5057 = vmatpush1.msra.mxu0 0.0
  %5058 = vmatprep.subr.mxu0 0.0
  %5059 = vmatpush1.msra.mxu0 0.0
  %5060 = vmatprep.subr.mxu0 0.0
  %5061 = vmatpush1.msra.mxu0 0.0
  %5062 = vmatprep.subr.mxu0 0.0
  %5063 = vmatpush1.msra.mxu0 0.0
  %5064 = vmatprep.subr.mxu0 0.0
  %5065 = vmatpush1.msra.mxu0 0.0
  %5066 = vmatprep.subr.mxu0 0.0
  %5067 = vmatpush1.msra.mxu0 0.0
  %5068 = vmatprep.subr.mxu0 0.0
  %5069 = vmatpush1.msra.mxu0 0.0
  %5070 = vmatprep.subr.mxu0 0.0
  %5071 = vmatpush1.msra.mxu0 0.0
  %5072 = vmatprep.subr.mxu0 0.0
  %5073 = vmatpush1.msra.mxu0 0.0
  %5074 = vmatprep.subr.mxu0 0.0
  %5075 = vmatpush1.msra.mxu0 0.0
  %5076 = vmatprep.subr.mxu0 0.0
  %5077 = vmatpush1.msra.mxu0 0.0
  %5078 = vmatprep.subr.mxu0 0.0
  %5079 = vmatpush1.msra.mxu0 0.0
  %5080 = vmatprep.subr.mxu0 0.0
  %5081 = vmatpush1.msra.mxu0 0.0
  %5082 = vmatprep.subr.mxu0 0.0
  %5083 = vmatpush1.msra.mxu0 0.0
  %5084 = vmatprep.mubr.f32.mxu0 0.0
  %5085 = vmatmul.mubr.f32.gmra.mrb[0].mxu0 %v5012
  %v5086 = vpop.f32.mrb[0].mxu0
  %v5087 = vadd.f32 0.0, %v5086
  %v5088 = vpop.f32.mrb[0].mxu0
  %5089 = vmatprep.mubr.f32.mxu0 0.0
  %5090 = vmatmul.mubr.f32.gmra.mrb[0].mxu0 %v5015
  %v5091 = vpop.f32.mrb[0].mxu0
  %v5092 = vadd.f32 0.0, %v5091
  %v5093 = vpop.f32.mrb[0].mxu0
  %5094 = vmatprep.mubr.f32.mxu0 0.0
  %5095 = vmatmul.mubr.f32.gmra.mrb[0].mxu0 %v5018
  %v5096 = vpop.f32.mrb[0].mxu0
  %v5097 = vadd.f32 0.0, %v5096
  %v5098 = vpop.f32.mrb[0].mxu0
  %5099 = vdwg.mxu0
  %v5100 = vadd.f32 %v5005, %v5087
  %v5101 = vadd.f32 %v5006, %v5092
  %v5102 = vadd.f32 %v5007, %v5097
  %v5103 = vxor.u32 %v5100, 2147483648
  %v5104 = vxor.u32 %v5101, 2147483648
  %v5105 = vxor.u32 %v5102, 2147483648
  %v5106 = vmul.f32 %v5103, 1.442695
  %v5107 = vpow.pop %v5106
  %v5108 = vmul.f32 %v5104, 1.442695
  %v5109 = vpow.pop %v5108
  %v5110 = vmul.f32 %v5105, 1.442695
  %v5111 = vpow.pop %v5110
  %v5112 = vadd.f32 %v5107, 1.0
  %v5113 = vadd.f32 %v5109, 1.0
  %v5114 = vadd.f32 %v5111, 1.0
  %v5115 = vrcp.pop %v5112
  %v5116 = vmul.f32 1.0, %v5115
  %v5117 = vrcp.pop %v5113
  %v5118 = vmul.f32 1.0, %v5117
  %v5119 = vrcp.pop %v5114
  %v5120 = vmul.f32 1.0, %v5119
  %v5121 = vtanh.pop %v5100
  %v5122 = vtanh.pop %v5101
  %v5123 = vtanh.pop %v5102
  %5127 = vrot.lane.b32.xlu0 %v3749, 32
  %v5128 = vpop.permute.xlu0 %5127
  %5129 = vrot.lane.b32.xlu0 %v3754, 32
  %v5130 = vpop.permute.xlu0 %5129
  %5131 = vrot.lane.b32.xlu0 %v3759, 32
  %v5132 = vpop.permute.xlu0 %5131
  %v5136 = vmul.f32 %v5116, %v5128
  %v5137 = vmul.f32 %v5118, %v5130
  %v5138 = vmul.f32 %v5120, %v5132
  %5142 = vrot.lane.b32.xlu0 %v5121, 32
  %v5143 = vpop.permute.xlu0 %5142
  %5144 = vrot.lane.b32.xlu0 %v5122, 32
  %v5145 = vpop.permute.xlu0 %5144
  %5146 = vrot.lane.b32.xlu0 %v5123, 32
  %v5147 = vpop.permute.xlu0 %5146
  %v5151 = vmul.f32 %v5116, %v5143
  %v5152 = vmul.f32 %v5118, %v5145
  %v5153 = vmul.f32 %v5120, %v5147
  %5157 = vrot.lane.b32.xlu0 %v5151, 32
  %v5158 = vpop.permute.xlu0 %5157
  %5159 = vrot.lane.b32.xlu0 %v5152, 32
  %v5160 = vpop.permute.xlu0 %5159
  %5161 = vrot.lane.b32.xlu0 %v5153, 32
  %v5162 = vpop.permute.xlu0 %5161
  %v5166 = vadd.f32 %v5136, %v5158
  %v5167 = vadd.f32 %v5137, %v5160
  %v5168 = vadd.f32 %v5138, %v5162
  %v5169 = vtanh.pop %v5166
  %v5170 = vtanh.pop %v5167
  %v5171 = vtanh.pop %v5168
  %5175 = vrot.lane.b32.xlu0 %v5169, 32
  %v5176 = vpop.permute.xlu0 %5175
  %5177 = vrot.lane.b32.xlu0 %v5170, 32
  %v5178 = vpop.permute.xlu0 %5177
  %5179 = vrot.lane.b32.xlu0 %v5171, 32
  %v5180 = vpop.permute.xlu0 %5179
  %v5184 = vmul.f32 %v5116, %v5176
  %v5185 = vmul.f32 %v5118, %v5178
  %v5186 = vmul.f32 %v5120, %v5180
  %v5188 = vsel %vm1961, %v3834, 0
  %v5191 = vsel %vm1961, %v3839, 0
  %v5194 = vsel %vm1961, %v3844, 0
  %5196 = vmatprep.subr.mxu0 0.0
  %5197 = vmatpush1.msra.mxu0 %v78
  %5198 = vmatprep.subr.mxu0 0.0
  %5199 = vmatpush1.msra.mxu0 %v79
  %5200 = vmatprep.subr.mxu0 0.0
  %5201 = vmatpush1.msra.mxu0 %v80
  %5202 = vmatprep.subr.mxu0 0.0
  %5203 = vmatpush1.msra.mxu0 %v81
  %5204 = vmatprep.subr.mxu0 0.0
  %5205 = vmatpush1.msra.mxu0 0.0
  %5206 = vmatprep.subr.mxu0 0.0
  %5207 = vmatpush1.msra.mxu0 0.0
  %5208 = vmatprep.subr.mxu0 0.0
  %5209 = vmatpush1.msra.mxu0 0.0
  %5210 = vmatprep.subr.mxu0 0.0
  %5211 = vmatpush1.msra.mxu0 0.0
  %5212 = vmatprep.subr.mxu0 0.0
  %5213 = vmatpush1.msra.mxu0 0.0
  %5214 = vmatprep.subr.mxu0 0.0
  %5215 = vmatpush1.msra.mxu0 0.0
  %5216 = vmatprep.subr.mxu0 0.0
  %5217 = vmatpush1.msra.mxu0 0.0
  %5218 = vmatprep.subr.mxu0 0.0
  %5219 = vmatpush1.msra.mxu0 0.0
  %5220 = vmatprep.subr.mxu0 0.0
  %5221 = vmatpush1.msra.mxu0 0.0
  %5222 = vmatprep.subr.mxu0 0.0
  %5223 = vmatpush1.msra.mxu0 0.0
  %5224 = vmatprep.subr.mxu0 0.0
  %5225 = vmatpush1.msra.mxu0 0.0
  %5226 = vmatprep.subr.mxu0 0.0
  %5227 = vmatpush1.msra.mxu0 0.0
  %5228 = vmatprep.subr.mxu0 0.0
  %5229 = vmatpush1.msra.mxu0 0.0
  %5230 = vmatprep.subr.mxu0 0.0
  %5231 = vmatpush1.msra.mxu0 0.0
  %5232 = vmatprep.subr.mxu0 0.0
  %5233 = vmatpush1.msra.mxu0 0.0
  %5234 = vmatprep.subr.mxu0 0.0
  %5235 = vmatpush1.msra.mxu0 0.0
  %5236 = vmatprep.subr.mxu0 0.0
  %5237 = vmatpush1.msra.mxu0 0.0
  %5238 = vmatprep.subr.mxu0 0.0
  %5239 = vmatpush1.msra.mxu0 0.0
  %5240 = vmatprep.subr.mxu0 0.0
  %5241 = vmatpush1.msra.mxu0 0.0
  %5242 = vmatprep.subr.mxu0 0.0
  %5243 = vmatpush1.msra.mxu0 0.0
  %5244 = vmatprep.subr.mxu0 0.0
  %5245 = vmatpush1.msra.mxu0 0.0
  %5246 = vmatprep.subr.mxu0 0.0
  %5247 = vmatpush1.msra.mxu0 0.0
  %5248 = vmatprep.subr.mxu0 0.0
  %5249 = vmatpush1.msra.mxu0 0.0
  %5250 = vmatprep.subr.mxu0 0.0
  %5251 = vmatpush1.msra.mxu0 0.0
  %5252 = vmatprep.subr.mxu0 0.0
  %5253 = vmatpush1.msra.mxu0 0.0
  %5254 = vmatprep.subr.mxu0 0.0
  %5255 = vmatpush1.msra.mxu0 0.0
  %5256 = vmatprep.subr.mxu0 0.0
  %5257 = vmatpush1.msra.mxu0 0.0
  %5258 = vmatprep.subr.mxu0 0.0
  %5259 = vmatpush1.msra.mxu0 0.0
  %5260 = vmatprep.mubr.f32.mxu0 0.0
  %5261 = vmatmul.mubr.f32.gmra.mrb[0].mxu0 %v5188
  %v5262 = vpop.f32.mrb[0].mxu0
  %v5263 = vadd.f32 0.0, %v5262
  %v5264 = vpop.f32.mrb[0].mxu0
  %5265 = vmatprep.mubr.f32.mxu0 0.0
  %5266 = vmatmul.mubr.f32.gmra.mrb[0].mxu0 %v5191
  %v5267 = vpop.f32.mrb[0].mxu0
  %v5268 = vadd.f32 0.0, %v5267
  %v5269 = vpop.f32.mrb[0].mxu0
  %5270 = vmatprep.mubr.f32.mxu0 0.0
  %5271 = vmatmul.mubr.f32.gmra.mrb[0].mxu0 %v5194
  %v5272 = vpop.f32.mrb[0].mxu0
  %v5273 = vadd.f32 0.0, %v5272
  %v5274 = vpop.f32.mrb[0].mxu0
  %5275 = vdwg.mxu0
  %5279 = vrot.lane.b32.xlu0 %v5184, 64
  %v5280 = vpop.permute.xlu0 %5279
  %5281 = vrot.lane.b32.xlu0 %v5185, 64
  %v5282 = vpop.permute.xlu0 %5281
  %5283 = vrot.lane.b32.xlu0 %v5186, 64
  %v5284 = vpop.permute.xlu0 %5283
  %v5285 = vsel %vm1961, %v5280, 0
  %v5287 = vsel %vm1961, %v5282, 0
  %v5289 = vsel %vm1961, %v5284, 0
  %5291 = vmatprep.subr.mxu0 0.0
  %5292 = vmatpush1.msra.mxu0 %v74
  %5293 = vmatprep.subr.mxu0 0.0
  %5294 = vmatpush1.msra.mxu0 %v75
  %5295 = vmatprep.subr.mxu0 0.0
  %5296 = vmatpush1.msra.mxu0 %v76
  %5297 = vmatprep.subr.mxu0 0.0
  %5298 = vmatpush1.msra.mxu0 %v77
  %5299 = vmatprep.subr.mxu0 0.0
  %5300 = vmatpush1.msra.mxu0 0.0
  %5301 = vmatprep.subr.mxu0 0.0
  %5302 = vmatpush1.msra.mxu0 0.0
  %5303 = vmatprep.subr.mxu0 0.0
  %5304 = vmatpush1.msra.mxu0 0.0
  %5305 = vmatprep.subr.mxu0 0.0
  %5306 = vmatpush1.msra.mxu0 0.0
  %5307 = vmatprep.subr.mxu0 0.0
  %5308 = vmatpush1.msra.mxu0 0.0
  %5309 = vmatprep.subr.mxu0 0.0
  %5310 = vmatpush1.msra.mxu0 0.0
  %5311 = vmatprep.subr.mxu0 0.0
  %5312 = vmatpush1.msra.mxu0 0.0
  %5313 = vmatprep.subr.mxu0 0.0
  %5314 = vmatpush1.msra.mxu0 0.0
  %5315 = vmatprep.subr.mxu0 0.0
  %5316 = vmatpush1.msra.mxu0 0.0
  %5317 = vmatprep.subr.mxu0 0.0
  %5318 = vmatpush1.msra.mxu0 0.0
  %5319 = vmatprep.subr.mxu0 0.0
  %5320 = vmatpush1.msra.mxu0 0.0
  %5321 = vmatprep.subr.mxu0 0.0
  %5322 = vmatpush1.msra.mxu0 0.0
  %5323 = vmatprep.subr.mxu0 0.0
  %5324 = vmatpush1.msra.mxu0 0.0
  %5325 = vmatprep.subr.mxu0 0.0
  %5326 = vmatpush1.msra.mxu0 0.0
  %5327 = vmatprep.subr.mxu0 0.0
  %5328 = vmatpush1.msra.mxu0 0.0
  %5329 = vmatprep.subr.mxu0 0.0
  %5330 = vmatpush1.msra.mxu0 0.0
  %5331 = vmatprep.subr.mxu0 0.0
  %5332 = vmatpush1.msra.mxu0 0.0
  %5333 = vmatprep.subr.mxu0 0.0
  %5334 = vmatpush1.msra.mxu0 0.0
  %5335 = vmatprep.subr.mxu0 0.0
  %5336 = vmatpush1.msra.mxu0 0.0
  %5337 = vmatprep.subr.mxu0 0.0
  %5338 = vmatpush1.msra.mxu0 0.0
  %5339 = vmatprep.subr.mxu0 0.0
  %5340 = vmatpush1.msra.mxu0 0.0
  %5341 = vmatprep.subr.mxu0 0.0
  %5342 = vmatpush1.msra.mxu0 0.0
  %5343 = vmatprep.subr.mxu0 0.0
  %5344 = vmatpush1.msra.mxu0 0.0
  %5345 = vmatprep.subr.mxu0 0.0
  %5346 = vmatpush1.msra.mxu0 0.0
  %5347 = vmatprep.subr.mxu0 0.0
  %5348 = vmatpush1.msra.mxu0 0.0
  %5349 = vmatprep.subr.mxu0 0.0
  %5350 = vmatpush1.msra.mxu0 0.0
  %5351 = vmatprep.subr.mxu0 0.0
  %5352 = vmatpush1.msra.mxu0 0.0
  %5353 = vmatprep.subr.mxu0 0.0
  %5354 = vmatpush1.msra.mxu0 0.0
  %5355 = vmatprep.mubr.f32.mxu0 0.0
  %5356 = vmatmul.mubr.f32.gmra.mrb[0].mxu0 %v5285
  %v5357 = vpop.f32.mrb[0].mxu0
  %v5358 = vadd.f32 %v5263, %v5357
  %v5359 = vpop.f32.mrb[0].mxu0
  %5360 = vmatprep.mubr.f32.mxu0 0.0
  %5361 = vmatmul.mubr.f32.gmra.mrb[0].mxu0 %v5287
  %v5362 = vpop.f32.mrb[0].mxu0
  %v5363 = vadd.f32 %v5268, %v5362
  %v5364 = vpop.f32.mrb[0].mxu0
  %5365 = vmatprep.mubr.f32.mxu0 0.0
  %5366 = vmatmul.mubr.f32.gmra.mrb[0].mxu0 %v5289
  %v5367 = vpop.f32.mrb[0].mxu0
  %v5368 = vadd.f32 %v5273, %v5367
  %v5369 = vpop.f32.mrb[0].mxu0
  %5370 = vdwg.mxu0
  %v5371 = vadd.f32 %v5358, %v2209
  %v5372 = vadd.f32 %v5363, %v2209
  %v5373 = vadd.f32 %v5368, %v2209
  %v5374 = vxor.u32 %v5371, 2147483648
  %v5375 = vxor.u32 %v5372, 2147483648
  %v5376 = vxor.u32 %v5373, 2147483648
  %v5377 = vmul.f32 %v5374, 1.442695
  %v5378 = vpow.pop %v5377
  %v5379 = vmul.f32 %v5375, 1.442695
  %v5380 = vpow.pop %v5379
  %v5381 = vmul.f32 %v5376, 1.442695
  %v5382 = vpow.pop %v5381
  %v5383 = vadd.f32 %v5378, 1.0
  %v5384 = vadd.f32 %v5380, 1.0
  %v5385 = vadd.f32 %v5382, 1.0
  %v5386 = vrcp.pop %v5383
  %v5387 = vmul.f32 1.0, %v5386
  %v5388 = vrcp.pop %v5384
  %v5389 = vmul.f32 1.0, %v5388
  %v5390 = vrcp.pop %v5385
  %v5391 = vmul.f32 1.0, %v5390
  %v5392 = vtanh.pop %v5371
  %v5393 = vtanh.pop %v5372
  %v5394 = vtanh.pop %v5373
  %5398 = vrot.lane.b32.xlu0 %v3919, 32
  %v5399 = vpop.permute.xlu0 %5398
  %5400 = vrot.lane.b32.xlu0 %v3924, 32
  %v5401 = vpop.permute.xlu0 %5400
  %5402 = vrot.lane.b32.xlu0 %v3929, 32
  %v5403 = vpop.permute.xlu0 %5402
  %v5407 = vmul.f32 %v5387, %v5399
  %v5408 = vmul.f32 %v5389, %v5401
  %v5409 = vmul.f32 %v5391, %v5403
  %5413 = vrot.lane.b32.xlu0 %v5392, 32
  %v5414 = vpop.permute.xlu0 %5413
  %5415 = vrot.lane.b32.xlu0 %v5393, 32
  %v5416 = vpop.permute.xlu0 %5415
  %5417 = vrot.lane.b32.xlu0 %v5394, 32
  %v5418 = vpop.permute.xlu0 %5417
  %v5422 = vmul.f32 %v5387, %v5414
  %v5423 = vmul.f32 %v5389, %v5416
  %v5424 = vmul.f32 %v5391, %v5418
  %5428 = vrot.lane.b32.xlu0 %v5422, 32
  %v5429 = vpop.permute.xlu0 %5428
  %5430 = vrot.lane.b32.xlu0 %v5423, 32
  %v5431 = vpop.permute.xlu0 %5430
  %5432 = vrot.lane.b32.xlu0 %v5424, 32
  %v5433 = vpop.permute.xlu0 %5432
  %v5437 = vadd.f32 %v5407, %v5429
  %v5438 = vadd.f32 %v5408, %v5431
  %v5439 = vadd.f32 %v5409, %v5433
  %v5440 = vtanh.pop %v5437
  %v5441 = vtanh.pop %v5438
  %v5442 = vtanh.pop %v5439
  %5446 = vrot.lane.b32.xlu0 %v5440, 32
  %v5447 = vpop.permute.xlu0 %5446
  %5448 = vrot.lane.b32.xlu0 %v5441, 32
  %v5449 = vpop.permute.xlu0 %5448
  %5450 = vrot.lane.b32.xlu0 %v5442, 32
  %v5451 = vpop.permute.xlu0 %5450
  %v5455 = vmul.f32 %v5387, %v5447
  %v5456 = vmul.f32 %v5389, %v5449
  %v5457 = vmul.f32 %v5391, %v5451
  %v5459 = vlaneseq
  %v5460 = vshrl.u32 %v5459, 7
  %v5461 = vsub.s32 0, %v5460
  %v5462 = vrot.slane %v87, %v5461
  %5467 = vrot.lane.b32.xlu0 %v5455, 64
  %v5468 = vpop.permute.xlu0 %5467
  %5469 = vrot.lane.b32.xlu0 %v5456, 64
  %v5470 = vpop.permute.xlu0 %5469
  %5471 = vrot.lane.b32.xlu0 %v5457, 64
  %v5472 = vpop.permute.xlu0 %5471
  %v5473 = vsel %vm1961, %v5468, 0
  %v5475 = vsel %vm1961, %v5470, 0
  %v5477 = vsel %vm1961, %v5472, 0
  %5479 = vmatprep.subr.mxu0 0.0
  %5480 = vmatpush1.msra.mxu0 %v83
  %5481 = vmatprep.subr.mxu0 0.0
  %5482 = vmatpush1.msra.mxu0 %v84
  %5483 = vmatprep.subr.mxu0 0.0
  %5484 = vmatpush1.msra.mxu0 %v85
  %5485 = vmatprep.subr.mxu0 0.0
  %5486 = vmatpush1.msra.mxu0 %v86
  %5487 = vmatprep.subr.mxu0 0.0
  %5488 = vmatpush1.msra.mxu0 0.0
  %5489 = vmatprep.subr.mxu0 0.0
  %5490 = vmatpush1.msra.mxu0 0.0
  %5491 = vmatprep.subr.mxu0 0.0
  %5492 = vmatpush1.msra.mxu0 0.0
  %5493 = vmatprep.subr.mxu0 0.0
  %5494 = vmatpush1.msra.mxu0 0.0
  %5495 = vmatprep.subr.mxu0 0.0
  %5496 = vmatpush1.msra.mxu0 0.0
  %5497 = vmatprep.subr.mxu0 0.0
  %5498 = vmatpush1.msra.mxu0 0.0
  %5499 = vmatprep.subr.mxu0 0.0
  %5500 = vmatpush1.msra.mxu0 0.0
  %5501 = vmatprep.subr.mxu0 0.0
  %5502 = vmatpush1.msra.mxu0 0.0
  %5503 = vmatprep.subr.mxu0 0.0
  %5504 = vmatpush1.msra.mxu0 0.0
  %5505 = vmatprep.subr.mxu0 0.0
  %5506 = vmatpush1.msra.mxu0 0.0
  %5507 = vmatprep.subr.mxu0 0.0
  %5508 = vmatpush1.msra.mxu0 0.0
  %5509 = vmatprep.subr.mxu0 0.0
  %5510 = vmatpush1.msra.mxu0 0.0
  %5511 = vmatprep.subr.mxu0 0.0
  %5512 = vmatpush1.msra.mxu0 0.0
  %5513 = vmatprep.subr.mxu0 0.0
  %5514 = vmatpush1.msra.mxu0 0.0
  %5515 = vmatprep.subr.mxu0 0.0
  %5516 = vmatpush1.msra.mxu0 0.0
  %5517 = vmatprep.subr.mxu0 0.0
  %5518 = vmatpush1.msra.mxu0 0.0
  %5519 = vmatprep.subr.mxu0 0.0
  %5520 = vmatpush1.msra.mxu0 0.0
  %5521 = vmatprep.subr.mxu0 0.0
  %5522 = vmatpush1.msra.mxu0 0.0
  %5523 = vmatprep.subr.mxu0 0.0
  %5524 = vmatpush1.msra.mxu0 0.0
  %5525 = vmatprep.subr.mxu0 0.0
  %5526 = vmatpush1.msra.mxu0 0.0
  %5527 = vmatprep.subr.mxu0 0.0
  %5528 = vmatpush1.msra.mxu0 0.0
  %5529 = vmatprep.subr.mxu0 0.0
  %5530 = vmatpush1.msra.mxu0 0.0
  %5531 = vmatprep.subr.mxu0 0.0
  %5532 = vmatpush1.msra.mxu0 0.0
  %5533 = vmatprep.subr.mxu0 0.0
  %5534 = vmatpush1.msra.mxu0 0.0
  %5535 = vmatprep.subr.mxu0 0.0
  %5536 = vmatpush1.msra.mxu0 0.0
  %5537 = vmatprep.subr.mxu0 0.0
  %5538 = vmatpush1.msra.mxu0 0.0
  %5539 = vmatprep.subr.mxu0 0.0
  %5540 = vmatpush1.msra.mxu0 0.0
  %5541 = vmatprep.subr.mxu0 0.0
  %5542 = vmatpush1.msra.mxu0 0.0
  %5543 = vmatprep.mubr.f32.mxu0 0.0
  %5544 = vmatmul.mubr.f32.gmra.mrb[0].mxu0 %v5473
  %v5545 = vpop.f32.mrb[0].mxu0
  %v5546 = vadd.f32 %v5462, %v5545
  %v5547 = vpop.f32.mrb[0].mxu0
  %5548 = vmatprep.mubr.f32.mxu0 0.0
  %5549 = vmatmul.mubr.f32.gmra.mrb[0].mxu0 %v5475
  %v5550 = vpop.f32.mrb[0].mxu0
  %v5551 = vadd.f32 %v5462, %v5550
  %v5552 = vpop.f32.mrb[0].mxu0
  %5553 = vmatprep.mubr.f32.mxu0 0.0
  %5554 = vmatmul.mubr.f32.gmra.mrb[0].mxu0 %v5477
  %v5555 = vpop.f32.mrb[0].mxu0
  %v5556 = vadd.f32 %v5462, %v5555
  %v5557 = vpop.f32.mrb[0].mxu0
  %5558 = vdwg.mxu0
  %v5559 = vmax.f32 %v5546, 0.0
  %v5560 = vmax.f32 %v5551, 0.0
  %v5561 = vmax.f32 %v5556, 0.0
  %vm5562 = vcmp.ne.f32.partialorder %v5546, %v5546
  %vm5563 = vcmp.ne.f32.partialorder %v5551, %v5551
  %vm5564 = vcmp.ne.f32.partialorder %v5556, %v5556
  %v5565 = vadd.f32 %v5546, 0.0
  %v5566 = vadd.f32 %v5551, 0.0
  %v5567 = vadd.f32 %v5556, 0.0
  %v5568 = vand.u32 2147483647, %v5546
  %v5569 = vand.u32 2147483647, %v5551
  %v5570 = vand.u32 2147483647, %v5556
  %v5571 = vsub.f32 0.0, %v5568
  %v5572 = vsub.f32 0.0, %v5569
  %v5573 = vsub.f32 0.0, %v5570
  %v5574 = vmul.f32 %v5571, 1.442695
  %v5575 = vpow.pop %v5574
  %v5576 = vmul.f32 %v5572, 1.442695
  %v5577 = vpow.pop %v5576
  %v5578 = vmul.f32 %v5573, 1.442695
  %v5579 = vpow.pop %v5578
  %v5580 = vadd.f32 %v5575, 1.0
  %v5581 = vlog2.pop %v5580
  %v5582 = vmul.f32 %v5581, 0.6931472
  %v5583 = vmul.f32 -0.5, %v5575
  %v5584 = vadd.f32 %v5583, 1.0
  %v5585 = vmul.f32 %v5584, %v5575
  %v5586 = vand.u32 2147483647, %v5575
  %vm5587 = vcmp.lt.f32.partialorder %v5586, 0.0004427343
  %v5588 = vsel %vm5587, %v5585, %v5582
  %v5589 = vadd.f32 %v5577, 1.0
  %v5590 = vlog2.pop %v5589
  %v5591 = vmul.f32 %v5590, 0.6931472
  %v5592 = vmul.f32 -0.5, %v5577
  %v5593 = vadd.f32 %v5592, 1.0
  %v5594 = vmul.f32 %v5593, %v5577
  %v5595 = vand.u32 2147483647, %v5577
  %vm5596 = vcmp.lt.f32.partialorder %v5595, 0.0004427343
  %v5597 = vsel %vm5596, %v5594, %v5591
  %v5598 = vadd.f32 %v5579, 1.0
  %v5599 = vlog2.pop %v5598
  %v5600 = vmul.f32 %v5599, 0.6931472
  %v5601 = vmul.f32 -0.5, %v5579
  %v5602 = vadd.f32 %v5601, 1.0
  %v5603 = vmul.f32 %v5602, %v5579
  %v5604 = vand.u32 2147483647, %v5579
  %vm5605 = vcmp.lt.f32.partialorder %v5604, 0.0004427343
  %v5606 = vsel %vm5605, %v5603, %v5600
  %v5607 = vadd.f32 %v5559, %v5588
  %v5608 = vadd.f32 %v5560, %v5597
  %v5609 = vadd.f32 %v5561, %v5606
  %v5610 = vsel %vm5562, %v5565, %v5607
  %v5611 = vsel %vm5563, %v5566, %v5608
  %v5612 = vsel %vm5564, %v5567, %v5609
  %v5613 = vld [vmem:[%s6] sm:$0xff]
  %v5614 = vld [vmem:[%s6 + $0x8] sm:$0xff]
  %v5615 = vld [vmem:[%s6 + $0x10] sm:$0xf]
  %5619 = vrot.lane.b32.xlu0 %v5613, 4
  %v5620 = vpop.permute.xlu0 %5619
  %5621 = vrot.lane.b32.xlu0 %v5614, 4
  %v5622 = vpop.permute.xlu0 %5621
  %5623 = vrot.lane.b32.xlu0 %v5615, 4
  %v5624 = vpop.permute.xlu0 %5623
  %v5628 = vmul.f32 %v5610, %v5620
  %v5629 = vmul.f32 %v5611, %v5622
  %v5630 = vmul.f32 %v5612, %v5624
  %5634 = vrot.lane.b32.xlu0 %v5628, 124
  %v5635 = vpop.permute.xlu0 %5634
  %5636 = vrot.lane.b32.xlu0 %v5629, 124
  %v5637 = vpop.permute.xlu0 %5636
  %5638 = vrot.lane.b32.xlu0 %v5630, 124
  %v5639 = vpop.permute.xlu0 %5638
  %v5643 = vadd.f32 %v5546, %v5635
  %v5644 = vadd.f32 %v5551, %v5637
  %v5645 = vadd.f32 %v5556, %v5639
  %v5646 = vmul.f32 %v4002, %v5643
  %v5647 = vmul.f32 %v4007, %v5644
  %v5648 = vmul.f32 %v4012, %v5645
  %5649 = vst.msk [vmem:[%s17] sm:$0xff] %vm273, %v5646
  %5650 = vst.msk [vmem:[%s17 + $0x8] sm:$0xff] %vm273, %v5647
  %vm5651 = vcmask 27648
  %5652 = vst.msk [vmem:[%s17 + $0x10] sm:$0xf] %vm5651, %v5648
  %5653 = vmatprep.subr.mxu0 0.0
  %5654 = vmatpush1.msra.mxu0 %v70
  %5655 = vmatprep.subr.mxu0 0.0
  %5656 = vmatpush1.msra.mxu0 %v71
  %5657 = vmatprep.subr.mxu0 0.0
  %5658 = vmatpush1.msra.mxu0 %v72
  %5659 = vmatprep.subr.mxu0 0.0
  %5660 = vmatpush1.msra.mxu0 %v73
  %5661 = vmatprep.subr.mxu0 0.0
  %5662 = vmatpush1.msra.mxu0 0.0
  %5663 = vmatprep.subr.mxu0 0.0
  %5664 = vmatpush1.msra.mxu0 0.0
  %5665 = vmatprep.subr.mxu0 0.0
  %5666 = vmatpush1.msra.mxu0 0.0
  %5667 = vmatprep.subr.mxu0 0.0
  %5668 = vmatpush1.msra.mxu0 0.0
  %5669 = vmatprep.subr.mxu0 0.0
  %5670 = vmatpush1.msra.mxu0 0.0
  %5671 = vmatprep.subr.mxu0 0.0
  %5672 = vmatpush1.msra.mxu0 0.0
  %5673 = vmatprep.subr.mxu0 0.0
  %5674 = vmatpush1.msra.mxu0 0.0
  %5675 = vmatprep.subr.mxu0 0.0
  %5676 = vmatpush1.msra.mxu0 0.0
  %5677 = vmatprep.subr.mxu0 0.0
  %5678 = vmatpush1.msra.mxu0 0.0
  %5679 = vmatprep.subr.mxu0 0.0
  %5680 = vmatpush1.msra.mxu0 0.0
  %5681 = vmatprep.subr.mxu0 0.0
  %5682 = vmatpush1.msra.mxu0 0.0
  %5683 = vmatprep.subr.mxu0 0.0
  %5684 = vmatpush1.msra.mxu0 0.0
  %5685 = vmatprep.subr.mxu0 0.0
  %5686 = vmatpush1.msra.mxu0 0.0
  %5687 = vmatprep.subr.mxu0 0.0
  %5688 = vmatpush1.msra.mxu0 0.0
  %5689 = vmatprep.subr.mxu0 0.0
  %5690 = vmatpush1.msra.mxu0 0.0
  %5691 = vmatprep.subr.mxu0 0.0
  %5692 = vmatpush1.msra.mxu0 0.0
  %5693 = vmatprep.subr.mxu0 0.0
  %5694 = vmatpush1.msra.mxu0 0.0
  %5695 = vmatprep.subr.mxu0 0.0
  %5696 = vmatpush1.msra.mxu0 0.0
  %5697 = vmatprep.subr.mxu0 0.0
  %5698 = vmatpush1.msra.mxu0 0.0
  %5699 = vmatprep.subr.mxu0 0.0
  %5700 = vmatpush1.msra.mxu0 0.0
  %5701 = vmatprep.subr.mxu0 0.0
  %5702 = vmatpush1.msra.mxu0 0.0
  %5703 = vmatprep.subr.mxu0 0.0
  %5704 = vmatpush1.msra.mxu0 0.0
  %5705 = vmatprep.subr.mxu0 0.0
  %5706 = vmatpush1.msra.mxu0 0.0
  %5707 = vmatprep.subr.mxu0 0.0
  %5708 = vmatpush1.msra.mxu0 0.0
  %5709 = vmatprep.subr.mxu0 0.0
  %5710 = vmatpush1.msra.mxu0 0.0
  %5711 = vmatprep.subr.mxu0 0.0
  %5712 = vmatpush1.msra.mxu0 0.0
  %5713 = vmatprep.subr.mxu0 0.0
  %5714 = vmatpush1.msra.mxu0 0.0
  %5715 = vmatprep.subr.mxu0 0.0
  %5716 = vmatpush1.msra.mxu0 0.0
  %5717 = vmatprep.mubr.f32.mxu0 0.0
  %5718 = vmatmul.mubr.f32.gmra.mrb[0].mxu0 %v5285
  %v5719 = vpop.f32.mrb[0].mxu0
  %v5720 = vadd.f32 0.0, %v5719
  %v5721 = vpop.f32.mrb[0].mxu0
  %5722 = vmatprep.mubr.f32.mxu0 0.0
  %5723 = vmatmul.mubr.f32.gmra.mrb[0].mxu0 %v5287
  %v5724 = vpop.f32.mrb[0].mxu0
  %v5725 = vadd.f32 0.0, %v5724
  %v5726 = vpop.f32.mrb[0].mxu0
  %5727 = vmatprep.mubr.f32.mxu0 0.0
  %5728 = vmatmul.mubr.f32.gmra.mrb[0].mxu0 %v5289
  %v5729 = vpop.f32.mrb[0].mxu0
  %v5730 = vadd.f32 0.0, %v5729
  %v5731 = vpop.f32.mrb[0].mxu0
  %5732 = vdwg.mxu0
  %v5734 = vsel %vm199, %v4493, 0
  %5736 = vmatprep.subr.mxu0 0.0
  %5737 = vmatpush1.msra.mxu0 %v5734
  %5738 = vmatprep.subr.mxu0 0.0
  %5739 = vmatpush1.msra.mxu0 0.0
  %5740 = vmatprep.subr.mxu0 0.0
  %5741 = vmatpush1.msra.mxu0 0.0
  %5742 = vmatprep.subr.mxu0 0.0
  %5743 = vmatpush1.msra.mxu0 0.0
  %5744 = vmatprep.subr.mxu0 0.0
  %5745 = vmatpush1.msra.mxu0 0.0
  %5746 = vmatprep.subr.mxu0 0.0
  %5747 = vmatpush1.msra.mxu0 0.0
  %5748 = vmatprep.subr.mxu0 0.0
  %5749 = vmatpush1.msra.mxu0 0.0
  %5750 = vmatprep.subr.mxu0 0.0
  %5751 = vmatpush1.msra.mxu0 0.0
  %5752 = vmatprep.subr.mxu0 0.0
  %5753 = vmatpush1.msra.mxu0 0.0
  %5754 = vmatprep.subr.mxu0 0.0
  %5755 = vmatpush1.msra.mxu0 0.0
  %5756 = vmatprep.subr.mxu0 0.0
  %5757 = vmatpush1.msra.mxu0 0.0
  %5758 = vmatprep.subr.mxu0 0.0
  %5759 = vmatpush1.msra.mxu0 0.0
  %5760 = vmatprep.subr.mxu0 0.0
  %5761 = vmatpush1.msra.mxu0 0.0
  %5762 = vmatprep.subr.mxu0 0.0
  %5763 = vmatpush1.msra.mxu0 0.0
  %5764 = vmatprep.subr.mxu0 0.0
  %5765 = vmatpush1.msra.mxu0 0.0
  %5766 = vmatprep.subr.mxu0 0.0
  %5767 = vmatpush1.msra.mxu0 0.0
  %5768 = vmatprep.subr.mxu0 0.0
  %5769 = vmatpush1.msra.mxu0 0.0
  %5770 = vmatprep.subr.mxu0 0.0
  %5771 = vmatpush1.msra.mxu0 0.0
  %5772 = vmatprep.subr.mxu0 0.0
  %5773 = vmatpush1.msra.mxu0 0.0
  %5774 = vmatprep.subr.mxu0 0.0
  %5775 = vmatpush1.msra.mxu0 0.0
  %5776 = vmatprep.subr.mxu0 0.0
  %5777 = vmatpush1.msra.mxu0 0.0
  %5778 = vmatprep.subr.mxu0 0.0
  %5779 = vmatpush1.msra.mxu0 0.0
  %5780 = vmatprep.subr.mxu0 0.0
  %5781 = vmatpush1.msra.mxu0 0.0
  %5782 = vmatprep.subr.mxu0 0.0
  %5783 = vmatpush1.msra.mxu0 0.0
  %5784 = vmatprep.subr.mxu0 0.0
  %5785 = vmatpush1.msra.mxu0 0.0
  %5786 = vmatprep.subr.mxu0 0.0
  %5787 = vmatpush1.msra.mxu0 0.0
  %5788 = vmatprep.subr.mxu0 0.0
  %5789 = vmatpush1.msra.mxu0 0.0
  %5790 = vmatprep.subr.mxu0 0.0
  %5791 = vmatpush1.msra.mxu0 0.0
  %5792 = vmatprep.subr.mxu0 0.0
  %5793 = vmatpush1.msra.mxu0 0.0
  %5794 = vmatprep.subr.mxu0 0.0
  %5795 = vmatpush1.msra.mxu0 0.0
  %5796 = vmatprep.subr.mxu0 0.0
  %5797 = vmatpush1.msra.mxu0 0.0
  %5798 = vmatprep.subr.mxu0 0.0
  %5799 = vmatpush1.msra.mxu0 0.0
  %5800 = vmatprep.mubr.f32.mxu0 0.0
  %5801 = vmatmul.mubr.f32.gmra.mrb[0].mxu0 %v3587
  %v5802 = vpop.f32.mrb[0].mxu0
  %v5803 = vadd.f32 %v5720, %v5802
  %v5804 = vpop.f32.mrb[0].mxu0
  %5805 = vmatprep.mubr.f32.mxu0 0.0
  %5806 = vmatmul.mubr.f32.gmra.mrb[0].mxu0 %v3590
  %v5807 = vpop.f32.mrb[0].mxu0
  %v5808 = vadd.f32 %v5725, %v5807
  %v5809 = vpop.f32.mrb[0].mxu0
  %5810 = vmatprep.mubr.f32.mxu0 0.0
  %5811 = vmatmul.mubr.f32.gmra.mrb[0].mxu0 %v3593
  %v5812 = vpop.f32.mrb[0].mxu0
  %v5813 = vadd.f32 %v5730, %v5812
  %v5814 = vpop.f32.mrb[0].mxu0
  %5815 = vdwg.mxu0
  %v5816 = vmul.f32 %v5646, %v4085
  %v5817 = vmul.f32 %v5647, %v4090
  %v5818 = vmul.f32 %v5648, %v4095
  %v5820 = vsel %vm273, %v5816, 0
  %v5823 = vsel %vm273, %v5817, 0
  %v5826 = vsel %vm273, %v5818, 0
  %5828 = vmatprep.subr.mxu0 0.0
  %5829 = vmatpush1.msra.mxu0 %v279
  %5830 = vmatprep.subr.mxu0 0.0
  %5831 = vmatpush1.msra.mxu0 0.0
  %5832 = vmatprep.subr.mxu0 0.0
  %5833 = vmatpush1.msra.mxu0 0.0
  %5834 = vmatprep.subr.mxu0 0.0
  %5835 = vmatpush1.msra.mxu0 0.0
  %5836 = vmatprep.subr.mxu0 0.0
  %5837 = vmatpush1.msra.mxu0 0.0
  %5838 = vmatprep.subr.mxu0 0.0
  %5839 = vmatpush1.msra.mxu0 0.0
  %5840 = vmatprep.subr.mxu0 0.0
  %5841 = vmatpush1.msra.mxu0 0.0
  %5842 = vmatprep.subr.mxu0 0.0
  %5843 = vmatpush1.msra.mxu0 0.0
  %5844 = vmatprep.subr.mxu0 0.0
  %5845 = vmatpush1.msra.mxu0 0.0
  %5846 = vmatprep.subr.mxu0 0.0
  %5847 = vmatpush1.msra.mxu0 0.0
  %5848 = vmatprep.subr.mxu0 0.0
  %5849 = vmatpush1.msra.mxu0 0.0
  %5850 = vmatprep.subr.mxu0 0.0
  %5851 = vmatpush1.msra.mxu0 0.0
  %5852 = vmatprep.subr.mxu0 0.0
  %5853 = vmatpush1.msra.mxu0 0.0
  %5854 = vmatprep.subr.mxu0 0.0
  %5855 = vmatpush1.msra.mxu0 0.0
  %5856 = vmatprep.subr.mxu0 0.0
  %5857 = vmatpush1.msra.mxu0 0.0
  %5858 = vmatprep.subr.mxu0 0.0
  %5859 = vmatpush1.msra.mxu0 0.0
  %5860 = vmatprep.subr.mxu0 0.0
  %5861 = vmatpush1.msra.mxu0 0.0
  %5862 = vmatprep.subr.mxu0 0.0
  %5863 = vmatpush1.msra.mxu0 0.0
  %5864 = vmatprep.subr.mxu0 0.0
  %5865 = vmatpush1.msra.mxu0 0.0
  %5866 = vmatprep.subr.mxu0 0.0
  %5867 = vmatpush1.msra.mxu0 0.0
  %5868 = vmatprep.subr.mxu0 0.0
  %5869 = vmatpush1.msra.mxu0 0.0
  %5870 = vmatprep.subr.mxu0 0.0
  %5871 = vmatpush1.msra.mxu0 0.0
  %5872 = vmatprep.subr.mxu0 0.0
  %5873 = vmatpush1.msra.mxu0 0.0
  %5874 = vmatprep.subr.mxu0 0.0
  %5875 = vmatpush1.msra.mxu0 0.0
  %5876 = vmatprep.subr.mxu0 0.0
  %5877 = vmatpush1.msra.mxu0 0.0
  %5878 = vmatprep.subr.mxu0 0.0
  %5879 = vmatpush1.msra.mxu0 0.0
  %5880 = vmatprep.subr.mxu0 0.0
  %5881 = vmatpush1.msra.mxu0 0.0
  %5882 = vmatprep.subr.mxu0 0.0
  %5883 = vmatpush1.msra.mxu0 0.0
  %5884 = vmatprep.subr.mxu0 0.0
  %5885 = vmatpush1.msra.mxu0 0.0
  %5886 = vmatprep.subr.mxu0 0.0
  %5887 = vmatpush1.msra.mxu0 0.0
  %5888 = vmatprep.subr.mxu0 0.0
  %5889 = vmatpush1.msra.mxu0 0.0
  %5890 = vmatprep.subr.mxu0 0.0
  %5891 = vmatpush1.msra.mxu0 0.0
  %5892 = vmatprep.mubr.f32.mxu0 0.0
  %5893 = vmatmul.mubr.f32.gmra.mrb[0].mxu0 %v5820
  %v5894 = vpop.f32.mrb[0].mxu0
  %v5895 = vadd.f32 0.0, %v5894
  %v5896 = vpop.f32.mrb[0].mxu0
  %5897 = vmatprep.mubr.f32.mxu0 0.0
  %5898 = vmatmul.mubr.f32.gmra.mrb[0].mxu0 %v5823
  %v5899 = vpop.f32.mrb[0].mxu0
  %v5900 = vadd.f32 0.0, %v5899
  %v5901 = vpop.f32.mrb[0].mxu0
  %5902 = vmatprep.mubr.f32.mxu0 0.0
  %5903 = vmatmul.mubr.f32.gmra.mrb[0].mxu0 %v5826
  %v5904 = vpop.f32.mrb[0].mxu0
  %v5905 = vadd.f32 0.0, %v5904
  %v5906 = vpop.f32.mrb[0].mxu0
  %5907 = vdwg.mxu0
  %v5908 = vadd.f32 %v5803, %v5895
  %v5909 = vadd.f32 %v5808, %v5900
  %v5910 = vadd.f32 %v5813, %v5905
  %5911 = vmatprep.subr.mxu0 0.0
  %5912 = vmatpush1.msra.mxu0 %v356
  %5913 = vmatprep.subr.mxu0 0.0
  %5914 = vmatpush1.msra.mxu0 0.0
  %5915 = vmatprep.subr.mxu0 0.0
  %5916 = vmatpush1.msra.mxu0 0.0
  %5917 = vmatprep.subr.mxu0 0.0
  %5918 = vmatpush1.msra.mxu0 0.0
  %5919 = vmatprep.subr.mxu0 0.0
  %5920 = vmatpush1.msra.mxu0 0.0
  %5921 = vmatprep.subr.mxu0 0.0
  %5922 = vmatpush1.msra.mxu0 0.0
  %5923 = vmatprep.subr.mxu0 0.0
  %5924 = vmatpush1.msra.mxu0 0.0
  %5925 = vmatprep.subr.mxu0 0.0
  %5926 = vmatpush1.msra.mxu0 0.0
  %5927 = vmatprep.subr.mxu0 0.0
  %5928 = vmatpush1.msra.mxu0 0.0
  %5929 = vmatprep.subr.mxu0 0.0
  %5930 = vmatpush1.msra.mxu0 0.0
  %5931 = vmatprep.subr.mxu0 0.0
  %5932 = vmatpush1.msra.mxu0 0.0
  %5933 = vmatprep.subr.mxu0 0.0
  %5934 = vmatpush1.msra.mxu0 0.0
  %5935 = vmatprep.subr.mxu0 0.0
  %5936 = vmatpush1.msra.mxu0 0.0
  %5937 = vmatprep.subr.mxu0 0.0
  %5938 = vmatpush1.msra.mxu0 0.0
  %5939 = vmatprep.subr.mxu0 0.0
  %5940 = vmatpush1.msra.mxu0 0.0
  %5941 = vmatprep.subr.mxu0 0.0
  %5942 = vmatpush1.msra.mxu0 0.0
  %5943 = vmatprep.subr.mxu0 0.0
  %5944 = vmatpush1.msra.mxu0 0.0
  %5945 = vmatprep.subr.mxu0 0.0
  %5946 = vmatpush1.msra.mxu0 0.0
  %5947 = vmatprep.subr.mxu0 0.0
  %5948 = vmatpush1.msra.mxu0 0.0
  %5949 = vmatprep.subr.mxu0 0.0
  %5950 = vmatpush1.msra.mxu0 0.0
  %5951 = vmatprep.subr.mxu0 0.0
  %5952 = vmatpush1.msra.mxu0 0.0
  %5953 = vmatprep.subr.mxu0 0.0
  %5954 = vmatpush1.msra.mxu0 0.0
  %5955 = vmatprep.subr.mxu0 0.0
  %5956 = vmatpush1.msra.mxu0 0.0
  %5957 = vmatprep.subr.mxu0 0.0
  %5958 = vmatpush1.msra.mxu0 0.0
  %5959 = vmatprep.subr.mxu0 0.0
  %5960 = vmatpush1.msra.mxu0 0.0
  %5961 = vmatprep.subr.mxu0 0.0
  %5962 = vmatpush1.msra.mxu0 0.0
  %5963 = vmatprep.subr.mxu0 0.0
  %5964 = vmatpush1.msra.mxu0 0.0
  %5965 = vmatprep.subr.mxu0 0.0
  %5966 = vmatpush1.msra.mxu0 0.0
  %5967 = vmatprep.subr.mxu0 0.0
  %5968 = vmatpush1.msra.mxu0 0.0
  %5969 = vmatprep.subr.mxu0 0.0
  %5970 = vmatpush1.msra.mxu0 0.0
  %5971 = vmatprep.subr.mxu0 0.0
  %5972 = vmatpush1.msra.mxu0 0.0
  %5973 = vmatprep.subr.mxu0 0.0
  %5974 = vmatpush1.msra.mxu0 0.0
  %5975 = vmatprep.mubr.f32.mxu0 0.0
  %5976 = vmatmul.mubr.f32.gmra.mrb[0].mxu0 %v4822
  %v5977 = vpop.f32.mrb[0].mxu0
  %v5978 = vadd.f32 0.0, %v5977
  %v5979 = vpop.f32.mrb[0].mxu0
  %5980 = vmatprep.mubr.f32.mxu0 0.0
  %5981 = vmatmul.mubr.f32.gmra.mrb[0].mxu0 %v4825
  %v5982 = vpop.f32.mrb[0].mxu0
  %v5983 = vadd.f32 0.0, %v5982
  %v5984 = vpop.f32.mrb[0].mxu0
  %5985 = vmatprep.mubr.f32.mxu0 0.0
  %5986 = vmatmul.mubr.f32.gmra.mrb[0].mxu0 %v4828
  %v5987 = vpop.f32.mrb[0].mxu0
  %v5988 = vadd.f32 0.0, %v5987
  %v5989 = vpop.f32.mrb[0].mxu0
  %5990 = vdwg.mxu0
  %v5991 = vadd.f32 %v5908, %v5978
  %v5992 = vadd.f32 %v5909, %v5983
  %v5993 = vadd.f32 %v5910, %v5988
  %5994 = vmatprep.subr.mxu0 0.0
  %5995 = vmatpush1.msra.mxu0 %v433
  %5996 = vmatprep.subr.mxu0 0.0
  %5997 = vmatpush1.msra.mxu0 0.0
  %5998 = vmatprep.subr.mxu0 0.0
  %5999 = vmatpush1.msra.mxu0 0.0
  %6000 = vmatprep.subr.mxu0 0.0
  %6001 = vmatpush1.msra.mxu0 0.0
  %6002 = vmatprep.subr.mxu0 0.0
  %6003 = vmatpush1.msra.mxu0 0.0
  %6004 = vmatprep.subr.mxu0 0.0
  %6005 = vmatpush1.msra.mxu0 0.0
  %6006 = vmatprep.subr.mxu0 0.0
  %6007 = vmatpush1.msra.mxu0 0.0
  %6008 = vmatprep.subr.mxu0 0.0
  %6009 = vmatpush1.msra.mxu0 0.0
  %6010 = vmatprep.subr.mxu0 0.0
  %6011 = vmatpush1.msra.mxu0 0.0
  %6012 = vmatprep.subr.mxu0 0.0
  %6013 = vmatpush1.msra.mxu0 0.0
  %6014 = vmatprep.subr.mxu0 0.0
  %6015 = vmatpush1.msra.mxu0 0.0
  %6016 = vmatprep.subr.mxu0 0.0
  %6017 = vmatpush1.msra.mxu0 0.0
  %6018 = vmatprep.subr.mxu0 0.0
  %6019 = vmatpush1.msra.mxu0 0.0
  %6020 = vmatprep.subr.mxu0 0.0
  %6021 = vmatpush1.msra.mxu0 0.0
  %6022 = vmatprep.subr.mxu0 0.0
  %6023 = vmatpush1.msra.mxu0 0.0
  %6024 = vmatprep.subr.mxu0 0.0
  %6025 = vmatpush1.msra.mxu0 0.0
  %6026 = vmatprep.subr.mxu0 0.0
  %6027 = vmatpush1.msra.mxu0 0.0
  %6028 = vmatprep.subr.mxu0 0.0
  %6029 = vmatpush1.msra.mxu0 0.0
  %6030 = vmatprep.subr.mxu0 0.0
  %6031 = vmatpush1.msra.mxu0 0.0
  %6032 = vmatprep.subr.mxu0 0.0
  %6033 = vmatpush1.msra.mxu0 0.0
  %6034 = vmatprep.subr.mxu0 0.0
  %6035 = vmatpush1.msra.mxu0 0.0
  %6036 = vmatprep.subr.mxu0 0.0
  %6037 = vmatpush1.msra.mxu0 0.0
  %6038 = vmatprep.subr.mxu0 0.0
  %6039 = vmatpush1.msra.mxu0 0.0
  %6040 = vmatprep.subr.mxu0 0.0
  %6041 = vmatpush1.msra.mxu0 0.0
  %6042 = vmatprep.subr.mxu0 0.0
  %6043 = vmatpush1.msra.mxu0 0.0
  %6044 = vmatprep.subr.mxu0 0.0
  %6045 = vmatpush1.msra.mxu0 0.0
  %6046 = vmatprep.subr.mxu0 0.0
  %6047 = vmatpush1.msra.mxu0 0.0
  %6048 = vmatprep.subr.mxu0 0.0
  %6049 = vmatpush1.msra.mxu0 0.0
  %6050 = vmatprep.subr.mxu0 0.0
  %6051 = vmatpush1.msra.mxu0 0.0
  %6052 = vmatprep.subr.mxu0 0.0
  %6053 = vmatpush1.msra.mxu0 0.0
  %6054 = vmatprep.subr.mxu0 0.0
  %6055 = vmatpush1.msra.mxu0 0.0
  %6056 = vmatprep.subr.mxu0 0.0
  %6057 = vmatpush1.msra.mxu0 0.0
  %6058 = vmatprep.mubr.f32.mxu0 0.0
  %6059 = vmatmul.mubr.f32.gmra.mrb[0].mxu0 %v4917
  %v6060 = vpop.f32.mrb[0].mxu0
  %v6061 = vadd.f32 0.0, %v6060
  %v6062 = vpop.f32.mrb[0].mxu0
  %6063 = vmatprep.mubr.f32.mxu0 0.0
  %6064 = vmatmul.mubr.f32.gmra.mrb[0].mxu0 %v4920
  %v6065 = vpop.f32.mrb[0].mxu0
  %v6066 = vadd.f32 0.0, %v6065
  %v6067 = vpop.f32.mrb[0].mxu0
  %6068 = vmatprep.mubr.f32.mxu0 0.0
  %6069 = vmatmul.mubr.f32.gmra.mrb[0].mxu0 %v4923
  %v6070 = vpop.f32.mrb[0].mxu0
  %v6071 = vadd.f32 0.0, %v6070
  %v6072 = vpop.f32.mrb[0].mxu0
  %6073 = vdwg.mxu0
  %v6074 = vadd.f32 %v5991, %v6061
  %v6075 = vadd.f32 %v5992, %v6066
  %v6076 = vadd.f32 %v5993, %v6071
  %v6077 = vxor.u32 %v6074, 2147483648
  %v6078 = vxor.u32 %v6075, 2147483648
  %v6079 = vxor.u32 %v6076, 2147483648
  %v6080 = vmul.f32 %v6077, 1.442695
  %v6081 = vpow.pop %v6080
  %v6082 = vmul.f32 %v6078, 1.442695
  %v6083 = vpow.pop %v6082
  %v6084 = vmul.f32 %v6079, 1.442695
  %v6085 = vpow.pop %v6084
  %v6086 = vadd.f32 %v6081, 1.0
  %v6087 = vadd.f32 %v6083, 1.0
  %v6088 = vadd.f32 %v6085, 1.0
  %v6089 = vrcp.pop %v6086
  %v6090 = vmul.f32 1.0, %v6089
  %v6091 = vrcp.pop %v6087
  %v6092 = vmul.f32 1.0, %v6091
  %v6093 = vrcp.pop %v6088
  %v6094 = vmul.f32 1.0, %v6093
  %v6095 = vtanh.pop %v6074
  %v6096 = vtanh.pop %v6075
  %v6097 = vtanh.pop %v6076
  %v6098 = vmul.f32 %v6090, %v5166
  %v6099 = vmul.f32 %v6092, %v5167
  %v6100 = vmul.f32 %v6094, %v5168
  %6104 = vrot.lane.b32.xlu0 %v6095, 32
  %v6105 = vpop.permute.xlu0 %6104
  %6106 = vrot.lane.b32.xlu0 %v6096, 32
  %v6107 = vpop.permute.xlu0 %6106
  %6108 = vrot.lane.b32.xlu0 %v6097, 32
  %v6109 = vpop.permute.xlu0 %6108
  %v6113 = vmul.f32 %v6090, %v6105
  %v6114 = vmul.f32 %v6092, %v6107
  %v6115 = vmul.f32 %v6094, %v6109
  %6119 = vrot.lane.b32.xlu0 %v6113, 32
  %v6120 = vpop.permute.xlu0 %6119
  %6121 = vrot.lane.b32.xlu0 %v6114, 32
  %v6122 = vpop.permute.xlu0 %6121
  %6123 = vrot.lane.b32.xlu0 %v6115, 32
  %v6124 = vpop.permute.xlu0 %6123
  %v6128 = vadd.f32 %v6098, %v6120
  %v6129 = vadd.f32 %v6099, %v6122
  %v6130 = vadd.f32 %v6100, %v6124
  %v6131 = vtanh.pop %v6128
  %v6132 = vtanh.pop %v6129
  %v6133 = vtanh.pop %v6130
  %6137 = vrot.lane.b32.xlu0 %v6131, 32
  %v6138 = vpop.permute.xlu0 %6137
  %6139 = vrot.lane.b32.xlu0 %v6132, 32
  %v6140 = vpop.permute.xlu0 %6139
  %6141 = vrot.lane.b32.xlu0 %v6133, 32
  %v6142 = vpop.permute.xlu0 %6141
  %v6146 = vmul.f32 %v6090, %v6138
  %v6147 = vmul.f32 %v6092, %v6140
  %v6148 = vmul.f32 %v6094, %v6142
  %6149 = vmatprep.subr.mxu0 0.0
  %6150 = vmatpush1.msra.mxu0 %v78
  %6151 = vmatprep.subr.mxu0 0.0
  %6152 = vmatpush1.msra.mxu0 %v79
  %6153 = vmatprep.subr.mxu0 0.0
  %6154 = vmatpush1.msra.mxu0 %v80
  %6155 = vmatprep.subr.mxu0 0.0
  %6156 = vmatpush1.msra.mxu0 %v81
  %6157 = vmatprep.subr.mxu0 0.0
  %6158 = vmatpush1.msra.mxu0 0.0
  %6159 = vmatprep.subr.mxu0 0.0
  %6160 = vmatpush1.msra.mxu0 0.0
  %6161 = vmatprep.subr.mxu0 0.0
  %6162 = vmatpush1.msra.mxu0 0.0
  %6163 = vmatprep.subr.mxu0 0.0
  %6164 = vmatpush1.msra.mxu0 0.0
  %6165 = vmatprep.subr.mxu0 0.0
  %6166 = vmatpush1.msra.mxu0 0.0
  %6167 = vmatprep.subr.mxu0 0.0
  %6168 = vmatpush1.msra.mxu0 0.0
  %6169 = vmatprep.subr.mxu0 0.0
  %6170 = vmatpush1.msra.mxu0 0.0
  %6171 = vmatprep.subr.mxu0 0.0
  %6172 = vmatpush1.msra.mxu0 0.0
  %6173 = vmatprep.subr.mxu0 0.0
  %6174 = vmatpush1.msra.mxu0 0.0
  %6175 = vmatprep.subr.mxu0 0.0
  %6176 = vmatpush1.msra.mxu0 0.0
  %6177 = vmatprep.subr.mxu0 0.0
  %6178 = vmatpush1.msra.mxu0 0.0
  %6179 = vmatprep.subr.mxu0 0.0
  %6180 = vmatpush1.msra.mxu0 0.0
  %6181 = vmatprep.subr.mxu0 0.0
  %6182 = vmatpush1.msra.mxu0 0.0
  %6183 = vmatprep.subr.mxu0 0.0
  %6184 = vmatpush1.msra.mxu0 0.0
  %6185 = vmatprep.subr.mxu0 0.0
  %6186 = vmatpush1.msra.mxu0 0.0
  %6187 = vmatprep.subr.mxu0 0.0
  %6188 = vmatpush1.msra.mxu0 0.0
  %6189 = vmatprep.subr.mxu0 0.0
  %6190 = vmatpush1.msra.mxu0 0.0
  %6191 = vmatprep.subr.mxu0 0.0
  %6192 = vmatpush1.msra.mxu0 0.0
  %6193 = vmatprep.subr.mxu0 0.0
  %6194 = vmatpush1.msra.mxu0 0.0
  %6195 = vmatprep.subr.mxu0 0.0
  %6196 = vmatpush1.msra.mxu0 0.0
  %6197 = vmatprep.subr.mxu0 0.0
  %6198 = vmatpush1.msra.mxu0 0.0
  %6199 = vmatprep.subr.mxu0 0.0
  %6200 = vmatpush1.msra.mxu0 0.0
  %6201 = vmatprep.subr.mxu0 0.0
  %6202 = vmatpush1.msra.mxu0 0.0
  %6203 = vmatprep.subr.mxu0 0.0
  %6204 = vmatpush1.msra.mxu0 0.0
  %6205 = vmatprep.subr.mxu0 0.0
  %6206 = vmatpush1.msra.mxu0 0.0
  %6207 = vmatprep.subr.mxu0 0.0
  %6208 = vmatpush1.msra.mxu0 0.0
  %6209 = vmatprep.subr.mxu0 0.0
  %6210 = vmatpush1.msra.mxu0 0.0
  %6211 = vmatprep.subr.mxu0 0.0
  %6212 = vmatpush1.msra.mxu0 0.0
  %6213 = vmatprep.mubr.f32.mxu0 0.0
  %6214 = vmatmul.mubr.f32.gmra.mrb[0].mxu0 %v5473
  %v6215 = vpop.f32.mrb[0].mxu0
  %v6216 = vadd.f32 0.0, %v6215
  %v6217 = vpop.f32.mrb[0].mxu0
  %6218 = vmatprep.mubr.f32.mxu0 0.0
  %6219 = vmatmul.mubr.f32.gmra.mrb[0].mxu0 %v5475
  %v6220 = vpop.f32.mrb[0].mxu0
  %v6221 = vadd.f32 0.0, %v6220
  %v6222 = vpop.f32.mrb[0].mxu0
  %6223 = vmatprep.mubr.f32.mxu0 0.0
  %6224 = vmatmul.mubr.f32.gmra.mrb[0].mxu0 %v5477
  %v6225 = vpop.f32.mrb[0].mxu0
  %v6226 = vadd.f32 0.0, %v6225
  %v6227 = vpop.f32.mrb[0].mxu0
  %6228 = vdwg.mxu0
  %6232 = vrot.lane.b32.xlu0 %v6146, 64
  %v6233 = vpop.permute.xlu0 %6232
  %6234 = vrot.lane.b32.xlu0 %v6147, 64
  %v6235 = vpop.permute.xlu0 %6234
  %6236 = vrot.lane.b32.xlu0 %v6148, 64
  %v6237 = vpop.permute.xlu0 %6236
  %v6238 = vsel %vm1961, %v6233, 0
  %v6240 = vsel %vm1961, %v6235, 0
  %v6242 = vsel %vm1961, %v6237, 0
  %6244 = vmatprep.subr.mxu0 0.0
  %6245 = vmatpush1.msra.mxu0 %v74
  %6246 = vmatprep.subr.mxu0 0.0
  %6247 = vmatpush1.msra.mxu0 %v75
  %6248 = vmatprep.subr.mxu0 0.0
  %6249 = vmatpush1.msra.mxu0 %v76
  %6250 = vmatprep.subr.mxu0 0.0
  %6251 = vmatpush1.msra.mxu0 %v77
  %6252 = vmatprep.subr.mxu0 0.0
  %6253 = vmatpush1.msra.mxu0 0.0
  %6254 = vmatprep.subr.mxu0 0.0
  %6255 = vmatpush1.msra.mxu0 0.0
  %6256 = vmatprep.subr.mxu0 0.0
  %6257 = vmatpush1.msra.mxu0 0.0
  %6258 = vmatprep.subr.mxu0 0.0
  %6259 = vmatpush1.msra.mxu0 0.0
  %6260 = vmatprep.subr.mxu0 0.0
  %6261 = vmatpush1.msra.mxu0 0.0
  %6262 = vmatprep.subr.mxu0 0.0
  %6263 = vmatpush1.msra.mxu0 0.0
  %6264 = vmatprep.subr.mxu0 0.0
  %6265 = vmatpush1.msra.mxu0 0.0
  %6266 = vmatprep.subr.mxu0 0.0
  %6267 = vmatpush1.msra.mxu0 0.0
  %6268 = vmatprep.subr.mxu0 0.0
  %6269 = vmatpush1.msra.mxu0 0.0
  %6270 = vmatprep.subr.mxu0 0.0
  %6271 = vmatpush1.msra.mxu0 0.0
  %6272 = vmatprep.subr.mxu0 0.0
  %6273 = vmatpush1.msra.mxu0 0.0
  %6274 = vmatprep.subr.mxu0 0.0
  %6275 = vmatpush1.msra.mxu0 0.0
  %6276 = vmatprep.subr.mxu0 0.0
  %6277 = vmatpush1.msra.mxu0 0.0
  %6278 = vmatprep.subr.mxu0 0.0
  %6279 = vmatpush1.msra.mxu0 0.0
  %6280 = vmatprep.subr.mxu0 0.0
  %6281 = vmatpush1.msra.mxu0 0.0
  %6282 = vmatprep.subr.mxu0 0.0
  %6283 = vmatpush1.msra.mxu0 0.0
  %6284 = vmatprep.subr.mxu0 0.0
  %6285 = vmatpush1.msra.mxu0 0.0
  %6286 = vmatprep.subr.mxu0 0.0
  %6287 = vmatpush1.msra.mxu0 0.0
  %6288 = vmatprep.subr.mxu0 0.0
  %6289 = vmatpush1.msra.mxu0 0.0
  %6290 = vmatprep.subr.mxu0 0.0
  %6291 = vmatpush1.msra.mxu0 0.0
  %6292 = vmatprep.subr.mxu0 0.0
  %6293 = vmatpush1.msra.mxu0 0.0
  %6294 = vmatprep.subr.mxu0 0.0
  %6295 = vmatpush1.msra.mxu0 0.0
  %6296 = vmatprep.subr.mxu0 0.0
  %6297 = vmatpush1.msra.mxu0 0.0
  %6298 = vmatprep.subr.mxu0 0.0
  %6299 = vmatpush1.msra.mxu0 0.0
  %6300 = vmatprep.subr.mxu0 0.0
  %6301 = vmatpush1.msra.mxu0 0.0
  %6302 = vmatprep.subr.mxu0 0.0
  %6303 = vmatpush1.msra.mxu0 0.0
  %6304 = vmatprep.subr.mxu0 0.0
  %6305 = vmatpush1.msra.mxu0 0.0
  %6306 = vmatprep.subr.mxu0 0.0
  %6307 = vmatpush1.msra.mxu0 0.0
  %6308 = vmatprep.mubr.f32.mxu0 0.0
  %6309 = vmatmul.mubr.f32.gmra.mrb[0].mxu0 %v6238
  %v6310 = vpop.f32.mrb[0].mxu0
  %v6311 = vadd.f32 %v6216, %v6310
  %v6312 = vpop.f32.mrb[0].mxu0
  %6313 = vmatprep.mubr.f32.mxu0 0.0
  %6314 = vmatmul.mubr.f32.gmra.mrb[0].mxu0 %v6240
  %v6315 = vpop.f32.mrb[0].mxu0
  %v6316 = vadd.f32 %v6221, %v6315
  %v6317 = vpop.f32.mrb[0].mxu0
  %6318 = vmatprep.mubr.f32.mxu0 0.0
  %6319 = vmatmul.mubr.f32.gmra.mrb[0].mxu0 %v6242
  %v6320 = vpop.f32.mrb[0].mxu0
  %v6321 = vadd.f32 %v6226, %v6320
  %v6322 = vpop.f32.mrb[0].mxu0
  %6323 = vdwg.mxu0
  %v6324 = vadd.f32 %v6311, %v2209
  %v6325 = vadd.f32 %v6316, %v2209
  %v6326 = vadd.f32 %v6321, %v2209
  %v6327 = vxor.u32 %v6324, 2147483648
  %v6328 = vxor.u32 %v6325, 2147483648
  %v6329 = vxor.u32 %v6326, 2147483648
  %v6330 = vmul.f32 %v6327, 1.442695
  %v6331 = vpow.pop %v6330
  %v6332 = vmul.f32 %v6328, 1.442695
  %v6333 = vpow.pop %v6332
  %v6334 = vmul.f32 %v6329, 1.442695
  %v6335 = vpow.pop %v6334
  %v6336 = vadd.f32 %v6331, 1.0
  %v6337 = vadd.f32 %v6333, 1.0
  %v6338 = vadd.f32 %v6335, 1.0
  %v6339 = vrcp.pop %v6336
  %v6340 = vmul.f32 1.0, %v6339
  %v6341 = vrcp.pop %v6337
  %v6342 = vmul.f32 1.0, %v6341
  %v6343 = vrcp.pop %v6338
  %v6344 = vmul.f32 1.0, %v6343
  %v6345 = vtanh.pop %v6324
  %v6346 = vtanh.pop %v6325
  %v6347 = vtanh.pop %v6326
  %v6348 = vmul.f32 %v6340, %v5437
  %v6349 = vmul.f32 %v6342, %v5438
  %v6350 = vmul.f32 %v6344, %v5439
  %6354 = vrot.lane.b32.xlu0 %v6345, 32
  %v6355 = vpop.permute.xlu0 %6354
  %6356 = vrot.lane.b32.xlu0 %v6346, 32
  %v6357 = vpop.permute.xlu0 %6356
  %6358 = vrot.lane.b32.xlu0 %v6347, 32
  %v6359 = vpop.permute.xlu0 %6358
  %v6363 = vmul.f32 %v6340, %v6355
  %v6364 = vmul.f32 %v6342, %v6357
  %v6365 = vmul.f32 %v6344, %v6359
  %6369 = vrot.lane.b32.xlu0 %v6363, 32
  %v6370 = vpop.permute.xlu0 %6369
  %6371 = vrot.lane.b32.xlu0 %v6364, 32
  %v6372 = vpop.permute.xlu0 %6371
  %6373 = vrot.lane.b32.xlu0 %v6365, 32
  %v6374 = vpop.permute.xlu0 %6373
  %v6378 = vadd.f32 %v6348, %v6370
  %v6379 = vadd.f32 %v6349, %v6372
  %v6380 = vadd.f32 %v6350, %v6374
  %v6381 = vtanh.pop %v6378
  %v6382 = vtanh.pop %v6379
  %v6383 = vtanh.pop %v6380
  %6387 = vrot.lane.b32.xlu0 %v6381, 32
  %v6388 = vpop.permute.xlu0 %6387
  %6389 = vrot.lane.b32.xlu0 %v6382, 32
  %v6390 = vpop.permute.xlu0 %6389
  %6391 = vrot.lane.b32.xlu0 %v6383, 32
  %v6392 = vpop.permute.xlu0 %6391
  %v6396 = vmul.f32 %v6340, %v6388
  %v6397 = vmul.f32 %v6342, %v6390
  %v6398 = vmul.f32 %v6344, %v6392
  %6402 = vrot.lane.b32.xlu0 %v6396, 64
  %v6403 = vpop.permute.xlu0 %6402
  %6404 = vrot.lane.b32.xlu0 %v6397, 64
  %v6405 = vpop.permute.xlu0 %6404
  %6406 = vrot.lane.b32.xlu0 %v6398, 64
  %v6407 = vpop.permute.xlu0 %6406
  %v6408 = vsel %vm1961, %v6403, 0
  %v6410 = vsel %vm1961, %v6405, 0
  %v6412 = vsel %vm1961, %v6407, 0
  %6414 = vmatprep.subr.mxu0 0.0
  %6415 = vmatpush1.msra.mxu0 %v83
  %6416 = vmatprep.subr.mxu0 0.0
  %6417 = vmatpush1.msra.mxu0 %v84
  %6418 = vmatprep.subr.mxu0 0.0
  %6419 = vmatpush1.msra.mxu0 %v85
  %6420 = vmatprep.subr.mxu0 0.0
  %6421 = vmatpush1.msra.mxu0 %v86
  %6422 = vmatprep.subr.mxu0 0.0
  %6423 = vmatpush1.msra.mxu0 0.0
  %6424 = vmatprep.subr.mxu0 0.0
  %6425 = vmatpush1.msra.mxu0 0.0
  %6426 = vmatprep.subr.mxu0 0.0
  %6427 = vmatpush1.msra.mxu0 0.0
  %6428 = vmatprep.subr.mxu0 0.0
  %6429 = vmatpush1.msra.mxu0 0.0
  %6430 = vmatprep.subr.mxu0 0.0
  %6431 = vmatpush1.msra.mxu0 0.0
  %6432 = vmatprep.subr.mxu0 0.0
  %6433 = vmatpush1.msra.mxu0 0.0
  %6434 = vmatprep.subr.mxu0 0.0
  %6435 = vmatpush1.msra.mxu0 0.0
  %6436 = vmatprep.subr.mxu0 0.0
  %6437 = vmatpush1.msra.mxu0 0.0
  %6438 = vmatprep.subr.mxu0 0.0
  %6439 = vmatpush1.msra.mxu0 0.0
  %6440 = vmatprep.subr.mxu0 0.0
  %6441 = vmatpush1.msra.mxu0 0.0
  %6442 = vmatprep.subr.mxu0 0.0
  %6443 = vmatpush1.msra.mxu0 0.0
  %6444 = vmatprep.subr.mxu0 0.0
  %6445 = vmatpush1.msra.mxu0 0.0
  %6446 = vmatprep.subr.mxu0 0.0
  %6447 = vmatpush1.msra.mxu0 0.0
  %6448 = vmatprep.subr.mxu0 0.0
  %6449 = vmatpush1.msra.mxu0 0.0
  %6450 = vmatprep.subr.mxu0 0.0
  %6451 = vmatpush1.msra.mxu0 0.0
  %6452 = vmatprep.subr.mxu0 0.0
  %6453 = vmatpush1.msra.mxu0 0.0
  %6454 = vmatprep.subr.mxu0 0.0
  %6455 = vmatpush1.msra.mxu0 0.0
  %6456 = vmatprep.subr.mxu0 0.0
  %6457 = vmatpush1.msra.mxu0 0.0
  %6458 = vmatprep.subr.mxu0 0.0
  %6459 = vmatpush1.msra.mxu0 0.0
  %6460 = vmatprep.subr.mxu0 0.0
  %6461 = vmatpush1.msra.mxu0 0.0
  %6462 = vmatprep.subr.mxu0 0.0
  %6463 = vmatpush1.msra.mxu0 0.0
  %6464 = vmatprep.subr.mxu0 0.0
  %6465 = vmatpush1.msra.mxu0 0.0
  %6466 = vmatprep.subr.mxu0 0.0
  %6467 = vmatpush1.msra.mxu0 0.0
  %6468 = vmatprep.subr.mxu0 0.0
  %6469 = vmatpush1.msra.mxu0 0.0
  %6470 = vmatprep.subr.mxu0 0.0
  %6471 = vmatpush1.msra.mxu0 0.0
  %6472 = vmatprep.subr.mxu0 0.0
  %6473 = vmatpush1.msra.mxu0 0.0
  %6474 = vmatprep.subr.mxu0 0.0
  %6475 = vmatpush1.msra.mxu0 0.0
  %6476 = vmatprep.subr.mxu0 0.0
  %6477 = vmatpush1.msra.mxu0 0.0
  %6478 = vmatprep.mubr.f32.mxu0 0.0
  %6479 = vmatmul.mubr.f32.gmra.mrb[0].mxu0 %v6408
  %v6480 = vpop.f32.mrb[0].mxu0
  %v6481 = vadd.f32 %v5462, %v6480
  %v6482 = vpop.f32.mrb[0].mxu0
  %6483 = vmatprep.mubr.f32.mxu0 0.0
  %6484 = vmatmul.mubr.f32.gmra.mrb[0].mxu0 %v6410
  %v6485 = vpop.f32.mrb[0].mxu0
  %v6486 = vadd.f32 %v5462, %v6485
  %v6487 = vpop.f32.mrb[0].mxu0
  %6488 = vmatprep.mubr.f32.mxu0 0.0
  %6489 = vmatmul.mubr.f32.gmra.mrb[0].mxu0 %v6412
  %v6490 = vpop.f32.mrb[0].mxu0
  %v6491 = vadd.f32 %v5462, %v6490
  %v6492 = vpop.f32.mrb[0].mxu0
  %6493 = vdwg.mxu0
  %v6494 = vmax.f32 %v6481, 0.0
  %v6495 = vmax.f32 %v6486, 0.0
  %v6496 = vmax.f32 %v6491, 0.0
  %vm6497 = vcmp.ne.f32.partialorder %v6481, %v6481
  %vm6498 = vcmp.ne.f32.partialorder %v6486, %v6486
  %vm6499 = vcmp.ne.f32.partialorder %v6491, %v6491
  %v6500 = vadd.f32 %v6481, 0.0
  %v6501 = vadd.f32 %v6486, 0.0
  %v6502 = vadd.f32 %v6491, 0.0
  %v6503 = vand.u32 2147483647, %v6481
  %v6504 = vand.u32 2147483647, %v6486
  %v6505 = vand.u32 2147483647, %v6491
  %v6506 = vsub.f32 0.0, %v6503
  %v6507 = vsub.f32 0.0, %v6504
  %v6508 = vsub.f32 0.0, %v6505
  %v6509 = vmul.f32 %v6506, 1.442695
  %v6510 = vpow.pop %v6509
  %v6511 = vmul.f32 %v6507, 1.442695
  %v6512 = vpow.pop %v6511
  %v6513 = vmul.f32 %v6508, 1.442695
  %v6514 = vpow.pop %v6513
  %v6515 = vadd.f32 %v6510, 1.0
  %v6516 = vlog2.pop %v6515
  %v6517 = vmul.f32 %v6516, 0.6931472
  %v6518 = vmul.f32 -0.5, %v6510
  %v6519 = vadd.f32 %v6518, 1.0
  %v6520 = vmul.f32 %v6519, %v6510
  %v6521 = vand.u32 2147483647, %v6510
  %vm6522 = vcmp.lt.f32.partialorder %v6521, 0.0004427343
  %v6523 = vsel %vm6522, %v6520, %v6517
  %v6524 = vadd.f32 %v6512, 1.0
  %v6525 = vlog2.pop %v6524
  %v6526 = vmul.f32 %v6525, 0.6931472
  %v6527 = vmul.f32 -0.5, %v6512
  %v6528 = vadd.f32 %v6527, 1.0
  %v6529 = vmul.f32 %v6528, %v6512
  %v6530 = vand.u32 2147483647, %v6512
  %vm6531 = vcmp.lt.f32.partialorder %v6530, 0.0004427343
  %v6532 = vsel %vm6531, %v6529, %v6526
  %v6533 = vadd.f32 %v6514, 1.0
  %v6534 = vlog2.pop %v6533
  %v6535 = vmul.f32 %v6534, 0.6931472
  %v6536 = vmul.f32 -0.5, %v6514
  %v6537 = vadd.f32 %v6536, 1.0
  %v6538 = vmul.f32 %v6537, %v6514
  %v6539 = vand.u32 2147483647, %v6514
  %vm6540 = vcmp.lt.f32.partialorder %v6539, 0.0004427343
  %v6541 = vsel %vm6540, %v6538, %v6535
  %v6542 = vadd.f32 %v6494, %v6523
  %v6543 = vadd.f32 %v6495, %v6532
  %v6544 = vadd.f32 %v6496, %v6541
  %v6545 = vsel %vm6497, %v6500, %v6542
  %v6546 = vsel %vm6498, %v6501, %v6543
  %v6547 = vsel %vm6499, %v6502, %v6544
  %s6548 = scalar_lea.vmem %s6, 24
  %v6549 = vld [vmem:[%s6548] sm:$0xff]
  %v6550 = vld [vmem:[%s6548 + $0x8] sm:$0xff]
  %v6551 = vld [vmem:[%s6548 + $0x10] sm:$0xf]
  %6555 = vrot.lane.b32.xlu0 %v6549, 4
  %v6556 = vpop.permute.xlu0 %6555
  %6557 = vrot.lane.b32.xlu0 %v6550, 4
  %v6558 = vpop.permute.xlu0 %6557
  %6559 = vrot.lane.b32.xlu0 %v6551, 4
  %v6560 = vpop.permute.xlu0 %6559
  %v6564 = vmul.f32 %v6545, %v6556
  %v6565 = vmul.f32 %v6546, %v6558
  %v6566 = vmul.f32 %v6547, %v6560
  %6570 = vrot.lane.b32.xlu0 %v6564, 124
  %v6571 = vpop.permute.xlu0 %6570
  %6572 = vrot.lane.b32.xlu0 %v6565, 124
  %v6573 = vpop.permute.xlu0 %6572
  %6574 = vrot.lane.b32.xlu0 %v6566, 124
  %v6575 = vpop.permute.xlu0 %6574
  %v6579 = vadd.f32 %v6481, %v6571
  %v6580 = vadd.f32 %v6486, %v6573
  %v6581 = vadd.f32 %v6491, %v6575
  %v6582 = vmul.f32 %v4002, %v6579
  %v6583 = vmul.f32 %v4007, %v6580
  %v6584 = vmul.f32 %v4012, %v6581
  %s6585 = scalar_lea.vmem %s17, 24
  %6586 = vst.msk [vmem:[%s6585] sm:$0xff] %vm273, %v6582
  %6587 = vst.msk [vmem:[%s6585 + $0x8] sm:$0xff] %vm273, %v6583
  %6588 = vst.msk [vmem:[%s6585 + $0x10] sm:$0xf] %vm5651, %v6584
  %6589 = vmatprep.subr.mxu0 0.0
  %6590 = vmatpush1.msra.mxu0 %v70
  %6591 = vmatprep.subr.mxu0 0.0
  %6592 = vmatpush1.msra.mxu0 %v71
  %6593 = vmatprep.subr.mxu0 0.0
  %6594 = vmatpush1.msra.mxu0 %v72
  %6595 = vmatprep.subr.mxu0 0.0
  %6596 = vmatpush1.msra.mxu0 %v73
  %6597 = vmatprep.subr.mxu0 0.0
  %6598 = vmatpush1.msra.mxu0 0.0
  %6599 = vmatprep.subr.mxu0 0.0
  %6600 = vmatpush1.msra.mxu0 0.0
  %6601 = vmatprep.subr.mxu0 0.0
  %6602 = vmatpush1.msra.mxu0 0.0
  %6603 = vmatprep.subr.mxu0 0.0
  %6604 = vmatpush1.msra.mxu0 0.0
  %6605 = vmatprep.subr.mxu0 0.0
  %6606 = vmatpush1.msra.mxu0 0.0
  %6607 = vmatprep.subr.mxu0 0.0
  %6608 = vmatpush1.msra.mxu0 0.0
  %6609 = vmatprep.subr.mxu0 0.0
  %6610 = vmatpush1.msra.mxu0 0.0
  %6611 = vmatprep.subr.mxu0 0.0
  %6612 = vmatpush1.msra.mxu0 0.0
  %6613 = vmatprep.subr.mxu0 0.0
  %6614 = vmatpush1.msra.mxu0 0.0
  %6615 = vmatprep.subr.mxu0 0.0
  %6616 = vmatpush1.msra.mxu0 0.0
  %6617 = vmatprep.subr.mxu0 0.0
  %6618 = vmatpush1.msra.mxu0 0.0
  %6619 = vmatprep.subr.mxu0 0.0
  %6620 = vmatpush1.msra.mxu0 0.0
  %6621 = vmatprep.subr.mxu0 0.0
  %6622 = vmatpush1.msra.mxu0 0.0
  %6623 = vmatprep.subr.mxu0 0.0
  %6624 = vmatpush1.msra.mxu0 0.0
  %6625 = vmatprep.subr.mxu0 0.0
  %6626 = vmatpush1.msra.mxu0 0.0
  %6627 = vmatprep.subr.mxu0 0.0
  %6628 = vmatpush1.msra.mxu0 0.0
  %6629 = vmatprep.subr.mxu0 0.0
  %6630 = vmatpush1.msra.mxu0 0.0
  %6631 = vmatprep.subr.mxu0 0.0
  %6632 = vmatpush1.msra.mxu0 0.0
  %6633 = vmatprep.subr.mxu0 0.0
  %6634 = vmatpush1.msra.mxu0 0.0
  %6635 = vmatprep.subr.mxu0 0.0
  %6636 = vmatpush1.msra.mxu0 0.0
  %6637 = vmatprep.subr.mxu0 0.0
  %6638 = vmatpush1.msra.mxu0 0.0
  %6639 = vmatprep.subr.mxu0 0.0
  %6640 = vmatpush1.msra.mxu0 0.0
  %6641 = vmatprep.subr.mxu0 0.0
  %6642 = vmatpush1.msra.mxu0 0.0
  %6643 = vmatprep.subr.mxu0 0.0
  %6644 = vmatpush1.msra.mxu0 0.0
  %6645 = vmatprep.subr.mxu0 0.0
  %6646 = vmatpush1.msra.mxu0 0.0
  %6647 = vmatprep.subr.mxu0 0.0
  %6648 = vmatpush1.msra.mxu0 0.0
  %6649 = vmatprep.subr.mxu0 0.0
  %6650 = vmatpush1.msra.mxu0 0.0
  %6651 = vmatprep.subr.mxu0 0.0
  %6652 = vmatpush1.msra.mxu0 0.0
  %6653 = vmatprep.mubr.f32.mxu0 0.0
  %6654 = vmatmul.mubr.f32.gmra.mrb[0].mxu0 %v6238
  %v6655 = vpop.f32.mrb[0].mxu0
  %v6656 = vadd.f32 0.0, %v6655
  %v6657 = vpop.f32.mrb[0].mxu0
  %6658 = vmatprep.mubr.f32.mxu0 0.0
  %6659 = vmatmul.mubr.f32.gmra.mrb[0].mxu0 %v6240
  %v6660 = vpop.f32.mrb[0].mxu0
  %v6661 = vadd.f32 0.0, %v6660
  %v6662 = vpop.f32.mrb[0].mxu0
  %6663 = vmatprep.mubr.f32.mxu0 0.0
  %6664 = vmatmul.mubr.f32.gmra.mrb[0].mxu0 %v6242
  %v6665 = vpop.f32.mrb[0].mxu0
  %v6666 = vadd.f32 0.0, %v6665
  %v6667 = vpop.f32.mrb[0].mxu0
  %6668 = vdwg.mxu0
  %v6670 = vsel %vm199, %v4568, 0
  %6672 = vmatprep.subr.mxu0 0.0
  %6673 = vmatpush1.msra.mxu0 %v6670
  %6674 = vmatprep.subr.mxu0 0.0
  %6675 = vmatpush1.msra.mxu0 0.0
  %6676 = vmatprep.subr.mxu0 0.0
  %6677 = vmatpush1.msra.mxu0 0.0
  %6678 = vmatprep.subr.mxu0 0.0
  %6679 = vmatpush1.msra.mxu0 0.0
  %6680 = vmatprep.subr.mxu0 0.0
  %6681 = vmatpush1.msra.mxu0 0.0
  %6682 = vmatprep.subr.mxu0 0.0
  %6683 = vmatpush1.msra.mxu0 0.0
  %6684 = vmatprep.subr.mxu0 0.0
  %6685 = vmatpush1.msra.mxu0 0.0
  %6686 = vmatprep.subr.mxu0 0.0
  %6687 = vmatpush1.msra.mxu0 0.0
  %6688 = vmatprep.subr.mxu0 0.0
  %6689 = vmatpush1.msra.mxu0 0.0
  %6690 = vmatprep.subr.mxu0 0.0
  %6691 = vmatpush1.msra.mxu0 0.0
  %6692 = vmatprep.subr.mxu0 0.0
  %6693 = vmatpush1.msra.mxu0 0.0
  %6694 = vmatprep.subr.mxu0 0.0
  %6695 = vmatpush1.msra.mxu0 0.0
  %6696 = vmatprep.subr.mxu0 0.0
  %6697 = vmatpush1.msra.mxu0 0.0
  %6698 = vmatprep.subr.mxu0 0.0
  %6699 = vmatpush1.msra.mxu0 0.0
  %6700 = vmatprep.subr.mxu0 0.0
  %6701 = vmatpush1.msra.mxu0 0.0
  %6702 = vmatprep.subr.mxu0 0.0
  %6703 = vmatpush1.msra.mxu0 0.0
  %6704 = vmatprep.subr.mxu0 0.0
  %6705 = vmatpush1.msra.mxu0 0.0
  %6706 = vmatprep.subr.mxu0 0.0
  %6707 = vmatpush1.msra.mxu0 0.0
  %6708 = vmatprep.subr.mxu0 0.0
  %6709 = vmatpush1.msra.mxu0 0.0
  %6710 = vmatprep.subr.mxu0 0.0
  %6711 = vmatpush1.msra.mxu0 0.0
  %6712 = vmatprep.subr.mxu0 0.0
  %6713 = vmatpush1.msra.mxu0 0.0
  %6714 = vmatprep.subr.mxu0 0.0
  %6715 = vmatpush1.msra.mxu0 0.0
  %6716 = vmatprep.subr.mxu0 0.0
  %6717 = vmatpush1.msra.mxu0 0.0
  %6718 = vmatprep.subr.mxu0 0.0
  %6719 = vmatpush1.msra.mxu0 0.0
  %6720 = vmatprep.subr.mxu0 0.0
  %6721 = vmatpush1.msra.mxu0 0.0
  %6722 = vmatprep.subr.mxu0 0.0
  %6723 = vmatpush1.msra.mxu0 0.0
  %6724 = vmatprep.subr.mxu0 0.0
  %6725 = vmatpush1.msra.mxu0 0.0
  %6726 = vmatprep.subr.mxu0 0.0
  %6727 = vmatpush1.msra.mxu0 0.0
  %6728 = vmatprep.subr.mxu0 0.0
  %6729 = vmatpush1.msra.mxu0 0.0
  %6730 = vmatprep.subr.mxu0 0.0
  %6731 = vmatpush1.msra.mxu0 0.0
  %6732 = vmatprep.subr.mxu0 0.0
  %6733 = vmatpush1.msra.mxu0 0.0
  %6734 = vmatprep.subr.mxu0 0.0
  %6735 = vmatpush1.msra.mxu0 0.0
  %6736 = vmatprep.mubr.f32.mxu0 0.0
  %6737 = vmatmul.mubr.f32.gmra.mrb[0].mxu0 %v3587
  %v6738 = vpop.f32.mrb[0].mxu0
  %v6739 = vadd.f32 %v6656, %v6738
  %v6740 = vpop.f32.mrb[0].mxu0
  %6741 = vmatprep.mubr.f32.mxu0 0.0
  %6742 = vmatmul.mubr.f32.gmra.mrb[0].mxu0 %v3590
  %v6743 = vpop.f32.mrb[0].mxu0
  %v6744 = vadd.f32 %v6661, %v6743
  %v6745 = vpop.f32.mrb[0].mxu0
  %6746 = vmatprep.mubr.f32.mxu0 0.0
  %6747 = vmatmul.mubr.f32.gmra.mrb[0].mxu0 %v3593
  %v6748 = vpop.f32.mrb[0].mxu0
  %v6749 = vadd.f32 %v6666, %v6748
  %v6750 = vpop.f32.mrb[0].mxu0
  %6751 = vdwg.mxu0
  %v6752 = vmul.f32 %v6582, %v4085
  %v6753 = vmul.f32 %v6583, %v4090
  %v6754 = vmul.f32 %v6584, %v4095
  %v6756 = vsel %vm273, %v6752, 0
  %v6759 = vsel %vm273, %v6753, 0
  %v6762 = vsel %vm273, %v6754, 0
  %6764 = vmatprep.subr.mxu0 0.0
  %6765 = vmatpush1.msra.mxu0 %v279
  %6766 = vmatprep.subr.mxu0 0.0
  %6767 = vmatpush1.msra.mxu0 0.0
  %6768 = vmatprep.subr.mxu0 0.0
  %6769 = vmatpush1.msra.mxu0 0.0
  %6770 = vmatprep.subr.mxu0 0.0
  %6771 = vmatpush1.msra.mxu0 0.0
  %6772 = vmatprep.subr.mxu0 0.0
  %6773 = vmatpush1.msra.mxu0 0.0
  %6774 = vmatprep.subr.mxu0 0.0
  %6775 = vmatpush1.msra.mxu0 0.0
  %6776 = vmatprep.subr.mxu0 0.0
  %6777 = vmatpush1.msra.mxu0 0.0
  %6778 = vmatprep.subr.mxu0 0.0
  %6779 = vmatpush1.msra.mxu0 0.0
  %6780 = vmatprep.subr.mxu0 0.0
  %6781 = vmatpush1.msra.mxu0 0.0
  %6782 = vmatprep.subr.mxu0 0.0
  %6783 = vmatpush1.msra.mxu0 0.0
  %6784 = vmatprep.subr.mxu0 0.0
  %6785 = vmatpush1.msra.mxu0 0.0
  %6786 = vmatprep.subr.mxu0 0.0
  %6787 = vmatpush1.msra.mxu0 0.0
  %6788 = vmatprep.subr.mxu0 0.0
  %6789 = vmatpush1.msra.mxu0 0.0
  %6790 = vmatprep.subr.mxu0 0.0
  %6791 = vmatpush1.msra.mxu0 0.0
  %6792 = vmatprep.subr.mxu0 0.0
  %6793 = vmatpush1.msra.mxu0 0.0
  %6794 = vmatprep.subr.mxu0 0.0
  %6795 = vmatpush1.msra.mxu0 0.0
  %6796 = vmatprep.subr.mxu0 0.0
  %6797 = vmatpush1.msra.mxu0 0.0
  %6798 = vmatprep.subr.mxu0 0.0
  %6799 = vmatpush1.msra.mxu0 0.0
  %6800 = vmatprep.subr.mxu0 0.0
  %6801 = vmatpush1.msra.mxu0 0.0
  %6802 = vmatprep.subr.mxu0 0.0
  %6803 = vmatpush1.msra.mxu0 0.0
  %6804 = vmatprep.subr.mxu0 0.0
  %6805 = vmatpush1.msra.mxu0 0.0
  %6806 = vmatprep.subr.mxu0 0.0
  %6807 = vmatpush1.msra.mxu0 0.0
  %6808 = vmatprep.subr.mxu0 0.0
  %6809 = vmatpush1.msra.mxu0 0.0
  %6810 = vmatprep.subr.mxu0 0.0
  %6811 = vmatpush1.msra.mxu0 0.0
  %6812 = vmatprep.subr.mxu0 0.0
  %6813 = vmatpush1.msra.mxu0 0.0
  %6814 = vmatprep.subr.mxu0 0.0
  %6815 = vmatpush1.msra.mxu0 0.0
  %6816 = vmatprep.subr.mxu0 0.0
  %6817 = vmatpush1.msra.mxu0 0.0
  %6818 = vmatprep.subr.mxu0 0.0
  %6819 = vmatpush1.msra.mxu0 0.0
  %6820 = vmatprep.subr.mxu0 0.0
  %6821 = vmatpush1.msra.mxu0 0.0
  %6822 = vmatprep.subr.mxu0 0.0
  %6823 = vmatpush1.msra.mxu0 0.0
  %6824 = vmatprep.subr.mxu0 0.0
  %6825 = vmatpush1.msra.mxu0 0.0
  %6826 = vmatprep.subr.mxu0 0.0
  %6827 = vmatpush1.msra.mxu0 0.0
  %6828 = vmatprep.mubr.f32.mxu0 0.0
  %6829 = vmatmul.mubr.f32.gmra.mrb[0].mxu0 %v6756
  %v6830 = vpop.f32.mrb[0].mxu0
  %v6831 = vadd.f32 0.0, %v6830
  %v6832 = vpop.f32.mrb[0].mxu0
  %6833 = vmatprep.mubr.f32.mxu0 0.0
  %6834 = vmatmul.mubr.f32.gmra.mrb[0].mxu0 %v6759
  %v6835 = vpop.f32.mrb[0].mxu0
  %v6836 = vadd.f32 0.0, %v6835
  %v6837 = vpop.f32.mrb[0].mxu0
  %6838 = vmatprep.mubr.f32.mxu0 0.0
  %6839 = vmatmul.mubr.f32.gmra.mrb[0].mxu0 %v6762
  %v6840 = vpop.f32.mrb[0].mxu0
  %v6841 = vadd.f32 0.0, %v6840
  %v6842 = vpop.f32.mrb[0].mxu0
  %6843 = vdwg.mxu0
  %v6844 = vadd.f32 %v6739, %v6831
  %v6845 = vadd.f32 %v6744, %v6836
  %v6846 = vadd.f32 %v6749, %v6841
  %6847 = vmatprep.subr.mxu0 0.0
  %6848 = vmatpush1.msra.mxu0 %v356
  %6849 = vmatprep.subr.mxu0 0.0
  %6850 = vmatpush1.msra.mxu0 0.0
  %6851 = vmatprep.subr.mxu0 0.0
  %6852 = vmatpush1.msra.mxu0 0.0
  %6853 = vmatprep.subr.mxu0 0.0
  %6854 = vmatpush1.msra.mxu0 0.0
  %6855 = vmatprep.subr.mxu0 0.0
  %6856 = vmatpush1.msra.mxu0 0.0
  %6857 = vmatprep.subr.mxu0 0.0
  %6858 = vmatpush1.msra.mxu0 0.0
  %6859 = vmatprep.subr.mxu0 0.0
  %6860 = vmatpush1.msra.mxu0 0.0
  %6861 = vmatprep.subr.mxu0 0.0
  %6862 = vmatpush1.msra.mxu0 0.0
  %6863 = vmatprep.subr.mxu0 0.0
  %6864 = vmatpush1.msra.mxu0 0.0
  %6865 = vmatprep.subr.mxu0 0.0
  %6866 = vmatpush1.msra.mxu0 0.0
  %6867 = vmatprep.subr.mxu0 0.0
  %6868 = vmatpush1.msra.mxu0 0.0
  %6869 = vmatprep.subr.mxu0 0.0
  %6870 = vmatpush1.msra.mxu0 0.0
  %6871 = vmatprep.subr.mxu0 0.0
  %6872 = vmatpush1.msra.mxu0 0.0
  %6873 = vmatprep.subr.mxu0 0.0
  %6874 = vmatpush1.msra.mxu0 0.0
  %6875 = vmatprep.subr.mxu0 0.0
  %6876 = vmatpush1.msra.mxu0 0.0
  %6877 = vmatprep.subr.mxu0 0.0
  %6878 = vmatpush1.msra.mxu0 0.0
  %6879 = vmatprep.subr.mxu0 0.0
  %6880 = vmatpush1.msra.mxu0 0.0
  %6881 = vmatprep.subr.mxu0 0.0
  %6882 = vmatpush1.msra.mxu0 0.0
  %6883 = vmatprep.subr.mxu0 0.0
  %6884 = vmatpush1.msra.mxu0 0.0
  %6885 = vmatprep.subr.mxu0 0.0
  %6886 = vmatpush1.msra.mxu0 0.0
  %6887 = vmatprep.subr.mxu0 0.0
  %6888 = vmatpush1.msra.mxu0 0.0
  %6889 = vmatprep.subr.mxu0 0.0
  %6890 = vmatpush1.msra.mxu0 0.0
  %6891 = vmatprep.subr.mxu0 0.0
  %6892 = vmatpush1.msra.mxu0 0.0
  %6893 = vmatprep.subr.mxu0 0.0
  %6894 = vmatpush1.msra.mxu0 0.0
  %6895 = vmatprep.subr.mxu0 0.0
  %6896 = vmatpush1.msra.mxu0 0.0
  %6897 = vmatprep.subr.mxu0 0.0
  %6898 = vmatpush1.msra.mxu0 0.0
  %6899 = vmatprep.subr.mxu0 0.0
  %6900 = vmatpush1.msra.mxu0 0.0
  %6901 = vmatprep.subr.mxu0 0.0
  %6902 = vmatpush1.msra.mxu0 0.0
  %6903 = vmatprep.subr.mxu0 0.0
  %6904 = vmatpush1.msra.mxu0 0.0
  %6905 = vmatprep.subr.mxu0 0.0
  %6906 = vmatpush1.msra.mxu0 0.0
  %6907 = vmatprep.subr.mxu0 0.0
  %6908 = vmatpush1.msra.mxu0 0.0
  %6909 = vmatprep.subr.mxu0 0.0
  %6910 = vmatpush1.msra.mxu0 0.0
  %6911 = vmatprep.mubr.f32.mxu0 0.0
  %6912 = vmatmul.mubr.f32.gmra.mrb[0].mxu0 %v5820
  %v6913 = vpop.f32.mrb[0].mxu0
  %v6914 = vadd.f32 0.0, %v6913
  %v6915 = vpop.f32.mrb[0].mxu0
  %6916 = vmatprep.mubr.f32.mxu0 0.0
  %6917 = vmatmul.mubr.f32.gmra.mrb[0].mxu0 %v5823
  %v6918 = vpop.f32.mrb[0].mxu0
  %v6919 = vadd.f32 0.0, %v6918
  %v6920 = vpop.f32.mrb[0].mxu0
  %6921 = vmatprep.mubr.f32.mxu0 0.0
  %6922 = vmatmul.mubr.f32.gmra.mrb[0].mxu0 %v5826
  %v6923 = vpop.f32.mrb[0].mxu0
  %v6924 = vadd.f32 0.0, %v6923
  %v6925 = vpop.f32.mrb[0].mxu0
  %6926 = vdwg.mxu0
  %v6927 = vadd.f32 %v6844, %v6914
  %v6928 = vadd.f32 %v6845, %v6919
  %v6929 = vadd.f32 %v6846, %v6924
  %6930 = vmatprep.subr.mxu0 0.0
  %6931 = vmatpush1.msra.mxu0 %v433
  %6932 = vmatprep.subr.mxu0 0.0
  %6933 = vmatpush1.msra.mxu0 0.0
  %6934 = vmatprep.subr.mxu0 0.0
  %6935 = vmatpush1.msra.mxu0 0.0
  %6936 = vmatprep.subr.mxu0 0.0
  %6937 = vmatpush1.msra.mxu0 0.0
  %6938 = vmatprep.subr.mxu0 0.0
  %6939 = vmatpush1.msra.mxu0 0.0
  %6940 = vmatprep.subr.mxu0 0.0
  %6941 = vmatpush1.msra.mxu0 0.0
  %6942 = vmatprep.subr.mxu0 0.0
  %6943 = vmatpush1.msra.mxu0 0.0
  %6944 = vmatprep.subr.mxu0 0.0
  %6945 = vmatpush1.msra.mxu0 0.0
  %6946 = vmatprep.subr.mxu0 0.0
  %6947 = vmatpush1.msra.mxu0 0.0
  %6948 = vmatprep.subr.mxu0 0.0
  %6949 = vmatpush1.msra.mxu0 0.0
  %6950 = vmatprep.subr.mxu0 0.0
  %6951 = vmatpush1.msra.mxu0 0.0
  %6952 = vmatprep.subr.mxu0 0.0
  %6953 = vmatpush1.msra.mxu0 0.0
  %6954 = vmatprep.subr.mxu0 0.0
  %6955 = vmatpush1.msra.mxu0 0.0
  %6956 = vmatprep.subr.mxu0 0.0
  %6957 = vmatpush1.msra.mxu0 0.0
  %6958 = vmatprep.subr.mxu0 0.0
  %6959 = vmatpush1.msra.mxu0 0.0
  %6960 = vmatprep.subr.mxu0 0.0
  %6961 = vmatpush1.msra.mxu0 0.0
  %6962 = vmatprep.subr.mxu0 0.0
  %6963 = vmatpush1.msra.mxu0 0.0
  %6964 = vmatprep.subr.mxu0 0.0
  %6965 = vmatpush1.msra.mxu0 0.0
  %6966 = vmatprep.subr.mxu0 0.0
  %6967 = vmatpush1.msra.mxu0 0.0
  %6968 = vmatprep.subr.mxu0 0.0
  %6969 = vmatpush1.msra.mxu0 0.0
  %6970 = vmatprep.subr.mxu0 0.0
  %6971 = vmatpush1.msra.mxu0 0.0
  %6972 = vmatprep.subr.mxu0 0.0
  %6973 = vmatpush1.msra.mxu0 0.0
  %6974 = vmatprep.subr.mxu0 0.0
  %6975 = vmatpush1.msra.mxu0 0.0
  %6976 = vmatprep.subr.mxu0 0.0
  %6977 = vmatpush1.msra.mxu0 0.0
  %6978 = vmatprep.subr.mxu0 0.0
  %6979 = vmatpush1.msra.mxu0 0.0
  %6980 = vmatprep.subr.mxu0 0.0
  %6981 = vmatpush1.msra.mxu0 0.0
  %6982 = vmatprep.subr.mxu0 0.0
  %6983 = vmatpush1.msra.mxu0 0.0
  %6984 = vmatprep.subr.mxu0 0.0
  %6985 = vmatpush1.msra.mxu0 0.0
  %6986 = vmatprep.subr.mxu0 0.0
  %6987 = vmatpush1.msra.mxu0 0.0
  %6988 = vmatprep.subr.mxu0 0.0
  %6989 = vmatpush1.msra.mxu0 0.0
  %6990 = vmatprep.subr.mxu0 0.0
  %6991 = vmatpush1.msra.mxu0 0.0
  %6992 = vmatprep.subr.mxu0 0.0
  %6993 = vmatpush1.msra.mxu0 0.0
  %6994 = vmatprep.mubr.f32.mxu0 0.0
  %6995 = vmatmul.mubr.f32.gmra.mrb[0].mxu0 %v4822
  %v6996 = vpop.f32.mrb[0].mxu0
  %v6997 = vadd.f32 0.0, %v6996
  %v6998 = vpop.f32.mrb[0].mxu0
  %6999 = vmatprep.mubr.f32.mxu0 0.0
  %7000 = vmatmul.mubr.f32.gmra.mrb[0].mxu0 %v4825
  %v7001 = vpop.f32.mrb[0].mxu0
  %v7002 = vadd.f32 0.0, %v7001
  %v7003 = vpop.f32.mrb[0].mxu0
  %7004 = vmatprep.mubr.f32.mxu0 0.0
  %7005 = vmatmul.mubr.f32.gmra.mrb[0].mxu0 %v4828
  %v7006 = vpop.f32.mrb[0].mxu0
  %v7007 = vadd.f32 0.0, %v7006
  %v7008 = vpop.f32.mrb[0].mxu0
  %7009 = vdwg.mxu0
  %v7010 = vadd.f32 %v6927, %v6997
  %v7011 = vadd.f32 %v6928, %v7002
  %v7012 = vadd.f32 %v6929, %v7007
  %v7013 = vxor.u32 %v7010, 2147483648
  %v7014 = vxor.u32 %v7011, 2147483648
  %v7015 = vxor.u32 %v7012, 2147483648
  %v7016 = vmul.f32 %v7013, 1.442695
  %v7017 = vpow.pop %v7016
  %v7018 = vmul.f32 %v7014, 1.442695
  %v7019 = vpow.pop %v7018
  %v7020 = vmul.f32 %v7015, 1.442695
  %v7021 = vpow.pop %v7020
  %v7022 = vadd.f32 %v7017, 1.0
  %v7023 = vadd.f32 %v7019, 1.0
  %v7024 = vadd.f32 %v7021, 1.0
  %v7025 = vrcp.pop %v7022
  %v7026 = vmul.f32 1.0, %v7025
  %v7027 = vrcp.pop %v7023
  %v7028 = vmul.f32 1.0, %v7027
  %v7029 = vrcp.pop %v7024
  %v7030 = vmul.f32 1.0, %v7029
  %v7031 = vtanh.pop %v7010
  %v7032 = vtanh.pop %v7011
  %v7033 = vtanh.pop %v7012
  %v7034 = vmul.f32 %v7026, %v6128
  %v7035 = vmul.f32 %v7028, %v6129
  %v7036 = vmul.f32 %v7030, %v6130
  %7040 = vrot.lane.b32.xlu0 %v7031, 32
  %v7041 = vpop.permute.xlu0 %7040
  %7042 = vrot.lane.b32.xlu0 %v7032, 32
  %v7043 = vpop.permute.xlu0 %7042
  %7044 = vrot.lane.b32.xlu0 %v7033, 32
  %v7045 = vpop.permute.xlu0 %7044
  %v7049 = vmul.f32 %v7026, %v7041
  %v7050 = vmul.f32 %v7028, %v7043
  %v7051 = vmul.f32 %v7030, %v7045
  %7055 = vrot.lane.b32.xlu0 %v7049, 32
  %v7056 = vpop.permute.xlu0 %7055
  %7057 = vrot.lane.b32.xlu0 %v7050, 32
  %v7058 = vpop.permute.xlu0 %7057
  %7059 = vrot.lane.b32.xlu0 %v7051, 32
  %v7060 = vpop.permute.xlu0 %7059
  %v7064 = vadd.f32 %v7034, %v7056
  %v7065 = vadd.f32 %v7035, %v7058
  %v7066 = vadd.f32 %v7036, %v7060
  %v7067 = vtanh.pop %v7064
  %v7068 = vtanh.pop %v7065
  %v7069 = vtanh.pop %v7066
  %7073 = vrot.lane.b32.xlu0 %v7067, 32
  %v7074 = vpop.permute.xlu0 %7073
  %7075 = vrot.lane.b32.xlu0 %v7068, 32
  %v7076 = vpop.permute.xlu0 %7075
  %7077 = vrot.lane.b32.xlu0 %v7069, 32
  %v7078 = vpop.permute.xlu0 %7077
  %v7082 = vmul.f32 %v7026, %v7074
  %v7083 = vmul.f32 %v7028, %v7076
  %v7084 = vmul.f32 %v7030, %v7078
  %7085 = vmatprep.subr.mxu0 0.0
  %7086 = vmatpush1.msra.mxu0 %v78
  %7087 = vmatprep.subr.mxu0 0.0
  %7088 = vmatpush1.msra.mxu0 %v79
  %7089 = vmatprep.subr.mxu0 0.0
  %7090 = vmatpush1.msra.mxu0 %v80
  %7091 = vmatprep.subr.mxu0 0.0
  %7092 = vmatpush1.msra.mxu0 %v81
  %7093 = vmatprep.subr.mxu0 0.0
  %7094 = vmatpush1.msra.mxu0 0.0
  %7095 = vmatprep.subr.mxu0 0.0
  %7096 = vmatpush1.msra.mxu0 0.0
  %7097 = vmatprep.subr.mxu0 0.0
  %7098 = vmatpush1.msra.mxu0 0.0
  %7099 = vmatprep.subr.mxu0 0.0
  %7100 = vmatpush1.msra.mxu0 0.0
  %7101 = vmatprep.subr.mxu0 0.0
  %7102 = vmatpush1.msra.mxu0 0.0
  %7103 = vmatprep.subr.mxu0 0.0
  %7104 = vmatpush1.msra.mxu0 0.0
  %7105 = vmatprep.subr.mxu0 0.0
  %7106 = vmatpush1.msra.mxu0 0.0
  %7107 = vmatprep.subr.mxu0 0.0
  %7108 = vmatpush1.msra.mxu0 0.0
  %7109 = vmatprep.subr.mxu0 0.0
  %7110 = vmatpush1.msra.mxu0 0.0
  %7111 = vmatprep.subr.mxu0 0.0
  %7112 = vmatpush1.msra.mxu0 0.0
  %7113 = vmatprep.subr.mxu0 0.0
  %7114 = vmatpush1.msra.mxu0 0.0
  %7115 = vmatprep.subr.mxu0 0.0
  %7116 = vmatpush1.msra.mxu0 0.0
  %7117 = vmatprep.subr.mxu0 0.0
  %7118 = vmatpush1.msra.mxu0 0.0
  %7119 = vmatprep.subr.mxu0 0.0
  %7120 = vmatpush1.msra.mxu0 0.0
  %7121 = vmatprep.subr.mxu0 0.0
  %7122 = vmatpush1.msra.mxu0 0.0
  %7123 = vmatprep.subr.mxu0 0.0
  %7124 = vmatpush1.msra.mxu0 0.0
  %7125 = vmatprep.subr.mxu0 0.0
  %7126 = vmatpush1.msra.mxu0 0.0
  %7127 = vmatprep.subr.mxu0 0.0
  %7128 = vmatpush1.msra.mxu0 0.0
  %7129 = vmatprep.subr.mxu0 0.0
  %7130 = vmatpush1.msra.mxu0 0.0
  %7131 = vmatprep.subr.mxu0 0.0
  %7132 = vmatpush1.msra.mxu0 0.0
  %7133 = vmatprep.subr.mxu0 0.0
  %7134 = vmatpush1.msra.mxu0 0.0
  %7135 = vmatprep.subr.mxu0 0.0
  %7136 = vmatpush1.msra.mxu0 0.0
  %7137 = vmatprep.subr.mxu0 0.0
  %7138 = vmatpush1.msra.mxu0 0.0
  %7139 = vmatprep.subr.mxu0 0.0
  %7140 = vmatpush1.msra.mxu0 0.0
  %7141 = vmatprep.subr.mxu0 0.0
  %7142 = vmatpush1.msra.mxu0 0.0
  %7143 = vmatprep.subr.mxu0 0.0
  %7144 = vmatpush1.msra.mxu0 0.0
  %7145 = vmatprep.subr.mxu0 0.0
  %7146 = vmatpush1.msra.mxu0 0.0
  %7147 = vmatprep.subr.mxu0 0.0
  %7148 = vmatpush1.msra.mxu0 0.0
  %7149 = vmatprep.mubr.f32.mxu0 0.0
  %7150 = vmatmul.mubr.f32.gmra.mrb[0].mxu0 %v6408
  %v7151 = vpop.f32.mrb[0].mxu0
  %v7152 = vadd.f32 0.0, %v7151
  %v7153 = vpop.f32.mrb[0].mxu0
  %7154 = vmatprep.mubr.f32.mxu0 0.0
  %7155 = vmatmul.mubr.f32.gmra.mrb[0].mxu0 %v6410
  %v7156 = vpop.f32.mrb[0].mxu0
  %v7157 = vadd.f32 0.0, %v7156
  %v7158 = vpop.f32.mrb[0].mxu0
  %7159 = vmatprep.mubr.f32.mxu0 0.0
  %7160 = vmatmul.mubr.f32.gmra.mrb[0].mxu0 %v6412
  %v7161 = vpop.f32.mrb[0].mxu0
  %v7162 = vadd.f32 0.0, %v7161
  %v7163 = vpop.f32.mrb[0].mxu0
  %7164 = vdwg.mxu0
  %7168 = vrot.lane.b32.xlu0 %v7082, 64
  %v7169 = vpop.permute.xlu0 %7168
  %7170 = vrot.lane.b32.xlu0 %v7083, 64
  %v7171 = vpop.permute.xlu0 %7170
  %7172 = vrot.lane.b32.xlu0 %v7084, 64
  %v7173 = vpop.permute.xlu0 %7172
  %v7174 = vsel %vm1961, %v7169, 0
  %v7176 = vsel %vm1961, %v7171, 0
  %v7178 = vsel %vm1961, %v7173, 0
  %7180 = vmatprep.subr.mxu0 0.0
  %7181 = vmatpush1.msra.mxu0 %v74
  %7182 = vmatprep.subr.mxu0 0.0
  %7183 = vmatpush1.msra.mxu0 %v75
  %7184 = vmatprep.subr.mxu0 0.0
  %7185 = vmatpush1.msra.mxu0 %v76
  %7186 = vmatprep.subr.mxu0 0.0
  %7187 = vmatpush1.msra.mxu0 %v77
  %7188 = vmatprep.subr.mxu0 0.0
  %7189 = vmatpush1.msra.mxu0 0.0
  %7190 = vmatprep.subr.mxu0 0.0
  %7191 = vmatpush1.msra.mxu0 0.0
  %7192 = vmatprep.subr.mxu0 0.0
  %7193 = vmatpush1.msra.mxu0 0.0
  %7194 = vmatprep.subr.mxu0 0.0
  %7195 = vmatpush1.msra.mxu0 0.0
  %7196 = vmatprep.subr.mxu0 0.0
  %7197 = vmatpush1.msra.mxu0 0.0
  %7198 = vmatprep.subr.mxu0 0.0
  %7199 = vmatpush1.msra.mxu0 0.0
  %7200 = vmatprep.subr.mxu0 0.0
  %7201 = vmatpush1.msra.mxu0 0.0
  %7202 = vmatprep.subr.mxu0 0.0
  %7203 = vmatpush1.msra.mxu0 0.0
  %7204 = vmatprep.subr.mxu0 0.0
  %7205 = vmatpush1.msra.mxu0 0.0
  %7206 = vmatprep.subr.mxu0 0.0
  %7207 = vmatpush1.msra.mxu0 0.0
  %7208 = vmatprep.subr.mxu0 0.0
  %7209 = vmatpush1.msra.mxu0 0.0
  %7210 = vmatprep.subr.mxu0 0.0
  %7211 = vmatpush1.msra.mxu0 0.0
  %7212 = vmatprep.subr.mxu0 0.0
  %7213 = vmatpush1.msra.mxu0 0.0
  %7214 = vmatprep.subr.mxu0 0.0
  %7215 = vmatpush1.msra.mxu0 0.0
  %7216 = vmatprep.subr.mxu0 0.0
  %7217 = vmatpush1.msra.mxu0 0.0
  %7218 = vmatprep.subr.mxu0 0.0
  %7219 = vmatpush1.msra.mxu0 0.0
  %7220 = vmatprep.subr.mxu0 0.0
  %7221 = vmatpush1.msra.mxu0 0.0
  %7222 = vmatprep.subr.mxu0 0.0
  %7223 = vmatpush1.msra.mxu0 0.0
  %7224 = vmatprep.subr.mxu0 0.0
  %7225 = vmatpush1.msra.mxu0 0.0
  %7226 = vmatprep.subr.mxu0 0.0
  %7227 = vmatpush1.msra.mxu0 0.0
  %7228 = vmatprep.subr.mxu0 0.0
  %7229 = vmatpush1.msra.mxu0 0.0
  %7230 = vmatprep.subr.mxu0 0.0
  %7231 = vmatpush1.msra.mxu0 0.0
  %7232 = vmatprep.subr.mxu0 0.0
  %7233 = vmatpush1.msra.mxu0 0.0
  %7234 = vmatprep.subr.mxu0 0.0
  %7235 = vmatpush1.msra.mxu0 0.0
  %7236 = vmatprep.subr.mxu0 0.0
  %7237 = vmatpush1.msra.mxu0 0.0
  %7238 = vmatprep.subr.mxu0 0.0
  %7239 = vmatpush1.msra.mxu0 0.0
  %7240 = vmatprep.subr.mxu0 0.0
  %7241 = vmatpush1.msra.mxu0 0.0
  %7242 = vmatprep.subr.mxu0 0.0
  %7243 = vmatpush1.msra.mxu0 0.0
  %7244 = vmatprep.mubr.f32.mxu0 0.0
  %7245 = vmatmul.mubr.f32.gmra.mrb[0].mxu0 %v7174
  %v7246 = vpop.f32.mrb[0].mxu0
  %v7247 = vadd.f32 %v7152, %v7246
  %v7248 = vpop.f32.mrb[0].mxu0
  %7249 = vmatprep.mubr.f32.mxu0 0.0
  %7250 = vmatmul.mubr.f32.gmra.mrb[0].mxu0 %v7176
  %v7251 = vpop.f32.mrb[0].mxu0
  %v7252 = vadd.f32 %v7157, %v7251
  %v7253 = vpop.f32.mrb[0].mxu0
  %7254 = vmatprep.mubr.f32.mxu0 0.0
  %7255 = vmatmul.mubr.f32.gmra.mrb[0].mxu0 %v7178
  %v7256 = vpop.f32.mrb[0].mxu0
  %v7257 = vadd.f32 %v7162, %v7256
  %v7258 = vpop.f32.mrb[0].mxu0
  %7259 = vdwg.mxu0
  %v7260 = vadd.f32 %v7247, %v2209
  %v7261 = vadd.f32 %v7252, %v2209
  %v7262 = vadd.f32 %v7257, %v2209
  %v7263 = vxor.u32 %v7260, 2147483648
  %v7264 = vxor.u32 %v7261, 2147483648
  %v7265 = vxor.u32 %v7262, 2147483648
  %v7266 = vmul.f32 %v7263, 1.442695
  %v7267 = vpow.pop %v7266
  %v7268 = vmul.f32 %v7264, 1.442695
  %v7269 = vpow.pop %v7268
  %v7270 = vmul.f32 %v7265, 1.442695
  %v7271 = vpow.pop %v7270
  %v7272 = vadd.f32 %v7267, 1.0
  %v7273 = vadd.f32 %v7269, 1.0
  %v7274 = vadd.f32 %v7271, 1.0
  %v7275 = vrcp.pop %v7272
  %v7276 = vmul.f32 1.0, %v7275
  %v7277 = vrcp.pop %v7273
  %v7278 = vmul.f32 1.0, %v7277
  %v7279 = vrcp.pop %v7274
  %v7280 = vmul.f32 1.0, %v7279
  %v7281 = vtanh.pop %v7260
  %v7282 = vtanh.pop %v7261
  %v7283 = vtanh.pop %v7262
  %v7284 = vmul.f32 %v7276, %v6378
  %v7285 = vmul.f32 %v7278, %v6379
  %v7286 = vmul.f32 %v7280, %v6380
  %7290 = vrot.lane.b32.xlu0 %v7281, 32
  %v7291 = vpop.permute.xlu0 %7290
  %7292 = vrot.lane.b32.xlu0 %v7282, 32
  %v7293 = vpop.permute.xlu0 %7292
  %7294 = vrot.lane.b32.xlu0 %v7283, 32
  %v7295 = vpop.permute.xlu0 %7294
  %v7299 = vmul.f32 %v7276, %v7291
  %v7300 = vmul.f32 %v7278, %v7293
  %v7301 = vmul.f32 %v7280, %v7295
  %7305 = vrot.lane.b32.xlu0 %v7299, 32
  %v7306 = vpop.permute.xlu0 %7305
  %7307 = vrot.lane.b32.xlu0 %v7300, 32
  %v7308 = vpop.permute.xlu0 %7307
  %7309 = vrot.lane.b32.xlu0 %v7301, 32
  %v7310 = vpop.permute.xlu0 %7309
  %v7314 = vadd.f32 %v7284, %v7306
  %v7315 = vadd.f32 %v7285, %v7308
  %v7316 = vadd.f32 %v7286, %v7310
  %v7317 = vtanh.pop %v7314
  %v7318 = vtanh.pop %v7315
  %v7319 = vtanh.pop %v7316
  %7323 = vrot.lane.b32.xlu0 %v7317, 32
  %v7324 = vpop.permute.xlu0 %7323
  %7325 = vrot.lane.b32.xlu0 %v7318, 32
  %v7326 = vpop.permute.xlu0 %7325
  %7327 = vrot.lane.b32.xlu0 %v7319, 32
  %v7328 = vpop.permute.xlu0 %7327
  %v7332 = vmul.f32 %v7276, %v7324
  %v7333 = vmul.f32 %v7278, %v7326
  %v7334 = vmul.f32 %v7280, %v7328
  %7338 = vrot.lane.b32.xlu0 %v7332, 64
  %v7339 = vpop.permute.xlu0 %7338
  %7340 = vrot.lane.b32.xlu0 %v7333, 64
  %v7341 = vpop.permute.xlu0 %7340
  %7342 = vrot.lane.b32.xlu0 %v7334, 64
  %v7343 = vpop.permute.xlu0 %7342
  %v7344 = vsel %vm1961, %v7339, 0
  %v7346 = vsel %vm1961, %v7341, 0
  %v7348 = vsel %vm1961, %v7343, 0
  %7350 = vmatprep.subr.mxu0 0.0
  %7351 = vmatpush1.msra.mxu0 %v83
  %7352 = vmatprep.subr.mxu0 0.0
  %7353 = vmatpush1.msra.mxu0 %v84
  %7354 = vmatprep.subr.mxu0 0.0
  %7355 = vmatpush1.msra.mxu0 %v85
  %7356 = vmatprep.subr.mxu0 0.0
  %7357 = vmatpush1.msra.mxu0 %v86
  %7358 = vmatprep.subr.mxu0 0.0
  %7359 = vmatpush1.msra.mxu0 0.0
  %7360 = vmatprep.subr.mxu0 0.0
  %7361 = vmatpush1.msra.mxu0 0.0
  %7362 = vmatprep.subr.mxu0 0.0
  %7363 = vmatpush1.msra.mxu0 0.0
  %7364 = vmatprep.subr.mxu0 0.0
  %7365 = vmatpush1.msra.mxu0 0.0
  %7366 = vmatprep.subr.mxu0 0.0
  %7367 = vmatpush1.msra.mxu0 0.0
  %7368 = vmatprep.subr.mxu0 0.0
  %7369 = vmatpush1.msra.mxu0 0.0
  %7370 = vmatprep.subr.mxu0 0.0
  %7371 = vmatpush1.msra.mxu0 0.0
  %7372 = vmatprep.subr.mxu0 0.0
  %7373 = vmatpush1.msra.mxu0 0.0
  %7374 = vmatprep.subr.mxu0 0.0
  %7375 = vmatpush1.msra.mxu0 0.0
  %7376 = vmatprep.subr.mxu0 0.0
  %7377 = vmatpush1.msra.mxu0 0.0
  %7378 = vmatprep.subr.mxu0 0.0
  %7379 = vmatpush1.msra.mxu0 0.0
  %7380 = vmatprep.subr.mxu0 0.0
  %7381 = vmatpush1.msra.mxu0 0.0
  %7382 = vmatprep.subr.mxu0 0.0
  %7383 = vmatpush1.msra.mxu0 0.0
  %7384 = vmatprep.subr.mxu0 0.0
  %7385 = vmatpush1.msra.mxu0 0.0
  %7386 = vmatprep.subr.mxu0 0.0
  %7387 = vmatpush1.msra.mxu0 0.0
  %7388 = vmatprep.subr.mxu0 0.0
  %7389 = vmatpush1.msra.mxu0 0.0
  %7390 = vmatprep.subr.mxu0 0.0
  %7391 = vmatpush1.msra.mxu0 0.0
  %7392 = vmatprep.subr.mxu0 0.0
  %7393 = vmatpush1.msra.mxu0 0.0
  %7394 = vmatprep.subr.mxu0 0.0
  %7395 = vmatpush1.msra.mxu0 0.0
  %7396 = vmatprep.subr.mxu0 0.0
  %7397 = vmatpush1.msra.mxu0 0.0
  %7398 = vmatprep.subr.mxu0 0.0
  %7399 = vmatpush1.msra.mxu0 0.0
  %7400 = vmatprep.subr.mxu0 0.0
  %7401 = vmatpush1.msra.mxu0 0.0
  %7402 = vmatprep.subr.mxu0 0.0
  %7403 = vmatpush1.msra.mxu0 0.0
  %7404 = vmatprep.subr.mxu0 0.0
  %7405 = vmatpush1.msra.mxu0 0.0
  %7406 = vmatprep.subr.mxu0 0.0
  %7407 = vmatpush1.msra.mxu0 0.0
  %7408 = vmatprep.subr.mxu0 0.0
  %7409 = vmatpush1.msra.mxu0 0.0
  %7410 = vmatprep.subr.mxu0 0.0
  %7411 = vmatpush1.msra.mxu0 0.0
  %7412 = vmatprep.subr.mxu0 0.0
  %7413 = vmatpush1.msra.mxu0 0.0
  %7414 = vmatprep.mubr.f32.mxu0 0.0
  %7415 = vmatmul.mubr.f32.gmra.mrb[0].mxu0 %v7344
  %v7416 = vpop.f32.mrb[0].mxu0
  %v7417 = vadd.f32 %v5462, %v7416
  %v7418 = vpop.f32.mrb[0].mxu0
  %7419 = vmatprep.mubr.f32.mxu0 0.0
  %7420 = vmatmul.mubr.f32.gmra.mrb[0].mxu0 %v7346
  %v7421 = vpop.f32.mrb[0].mxu0
  %v7422 = vadd.f32 %v5462, %v7421
  %v7423 = vpop.f32.mrb[0].mxu0
  %7424 = vmatprep.mubr.f32.mxu0 0.0
  %7425 = vmatmul.mubr.f32.gmra.mrb[0].mxu0 %v7348
  %v7426 = vpop.f32.mrb[0].mxu0
  %v7427 = vadd.f32 %v5462, %v7426
  %v7428 = vpop.f32.mrb[0].mxu0
  %7429 = vdwg.mxu0
  %v7430 = vmax.f32 %v7417, 0.0
  %v7431 = vmax.f32 %v7422, 0.0
  %v7432 = vmax.f32 %v7427, 0.0
  %vm7433 = vcmp.ne.f32.partialorder %v7417, %v7417
  %vm7434 = vcmp.ne.f32.partialorder %v7422, %v7422
  %vm7435 = vcmp.ne.f32.partialorder %v7427, %v7427
  %v7436 = vadd.f32 %v7417, 0.0
  %v7437 = vadd.f32 %v7422, 0.0
  %v7438 = vadd.f32 %v7427, 0.0
  %v7439 = vand.u32 2147483647, %v7417
  %v7440 = vand.u32 2147483647, %v7422
  %v7441 = vand.u32 2147483647, %v7427
  %v7442 = vsub.f32 0.0, %v7439
  %v7443 = vsub.f32 0.0, %v7440
  %v7444 = vsub.f32 0.0, %v7441
  %v7445 = vmul.f32 %v7442, 1.442695
  %v7446 = vpow.pop %v7445
  %v7447 = vmul.f32 %v7443, 1.442695
  %v7448 = vpow.pop %v7447
  %v7449 = vmul.f32 %v7444, 1.442695
  %v7450 = vpow.pop %v7449
  %v7451 = vadd.f32 %v7446, 1.0
  %v7452 = vlog2.pop %v7451
  %v7453 = vmul.f32 %v7452, 0.6931472
  %v7454 = vmul.f32 -0.5, %v7446
  %v7455 = vadd.f32 %v7454, 1.0
  %v7456 = vmul.f32 %v7455, %v7446
  %v7457 = vand.u32 2147483647, %v7446
  %vm7458 = vcmp.lt.f32.partialorder %v7457, 0.0004427343
  %v7459 = vsel %vm7458, %v7456, %v7453
  %v7460 = vadd.f32 %v7448, 1.0
  %v7461 = vlog2.pop %v7460
  %v7462 = vmul.f32 %v7461, 0.6931472
  %v7463 = vmul.f32 -0.5, %v7448
  %v7464 = vadd.f32 %v7463, 1.0
  %v7465 = vmul.f32 %v7464, %v7448
  %v7466 = vand.u32 2147483647, %v7448
  %vm7467 = vcmp.lt.f32.partialorder %v7466, 0.0004427343
  %v7468 = vsel %vm7467, %v7465, %v7462
  %v7469 = vadd.f32 %v7450, 1.0
  %v7470 = vlog2.pop %v7469
  %v7471 = vmul.f32 %v7470, 0.6931472
  %v7472 = vmul.f32 -0.5, %v7450
  %v7473 = vadd.f32 %v7472, 1.0
  %v7474 = vmul.f32 %v7473, %v7450
  %v7475 = vand.u32 2147483647, %v7450
  %vm7476 = vcmp.lt.f32.partialorder %v7475, 0.0004427343
  %v7477 = vsel %vm7476, %v7474, %v7471
  %v7478 = vadd.f32 %v7430, %v7459
  %v7479 = vadd.f32 %v7431, %v7468
  %v7480 = vadd.f32 %v7432, %v7477
  %v7481 = vsel %vm7433, %v7436, %v7478
  %v7482 = vsel %vm7434, %v7437, %v7479
  %v7483 = vsel %vm7435, %v7438, %v7480
  %s7484 = scalar_lea.vmem %s6, 48
  %v7485 = vld [vmem:[%s7484] sm:$0xff]
  %v7486 = vld [vmem:[%s7484 + $0x8] sm:$0xff]
  %v7487 = vld [vmem:[%s7484 + $0x10] sm:$0xf]
  %7491 = vrot.lane.b32.xlu0 %v7485, 4
  %v7492 = vpop.permute.xlu0 %7491
  %7493 = vrot.lane.b32.xlu0 %v7486, 4
  %v7494 = vpop.permute.xlu0 %7493
  %7495 = vrot.lane.b32.xlu0 %v7487, 4
  %v7496 = vpop.permute.xlu0 %7495
  %v7500 = vmul.f32 %v7481, %v7492
  %v7501 = vmul.f32 %v7482, %v7494
  %v7502 = vmul.f32 %v7483, %v7496
  %7506 = vrot.lane.b32.xlu0 %v7500, 124
  %v7507 = vpop.permute.xlu0 %7506
  %7508 = vrot.lane.b32.xlu0 %v7501, 124
  %v7509 = vpop.permute.xlu0 %7508
  %7510 = vrot.lane.b32.xlu0 %v7502, 124
  %v7511 = vpop.permute.xlu0 %7510
  %v7515 = vadd.f32 %v7417, %v7507
  %v7516 = vadd.f32 %v7422, %v7509
  %v7517 = vadd.f32 %v7427, %v7511
  %v7518 = vmul.f32 %v4002, %v7515
  %v7519 = vmul.f32 %v4007, %v7516
  %v7520 = vmul.f32 %v4012, %v7517
  %s7521 = scalar_lea.vmem %s17, 48
  %7522 = vst.msk [vmem:[%s7521] sm:$0xff] %vm273, %v7518
  %7523 = vst.msk [vmem:[%s7521 + $0x8] sm:$0xff] %vm273, %v7519
  %7524 = vst.msk [vmem:[%s7521 + $0x10] sm:$0xf] %vm5651, %v7520
  %7525 = vmatprep.subr.mxu0 0.0
  %7526 = vmatpush1.msra.mxu0 %v70
  %7527 = vmatprep.subr.mxu0 0.0
  %7528 = vmatpush1.msra.mxu0 %v71
  %7529 = vmatprep.subr.mxu0 0.0
  %7530 = vmatpush1.msra.mxu0 %v72
  %7531 = vmatprep.subr.mxu0 0.0
  %7532 = vmatpush1.msra.mxu0 %v73
  %7533 = vmatprep.subr.mxu0 0.0
  %7534 = vmatpush1.msra.mxu0 0.0
  %7535 = vmatprep.subr.mxu0 0.0
  %7536 = vmatpush1.msra.mxu0 0.0
  %7537 = vmatprep.subr.mxu0 0.0
  %7538 = vmatpush1.msra.mxu0 0.0
  %7539 = vmatprep.subr.mxu0 0.0
  %7540 = vmatpush1.msra.mxu0 0.0
  %7541 = vmatprep.subr.mxu0 0.0
  %7542 = vmatpush1.msra.mxu0 0.0
  %7543 = vmatprep.subr.mxu0 0.0
  %7544 = vmatpush1.msra.mxu0 0.0
  %7545 = vmatprep.subr.mxu0 0.0
  %7546 = vmatpush1.msra.mxu0 0.0
  %7547 = vmatprep.subr.mxu0 0.0
  %7548 = vmatpush1.msra.mxu0 0.0
  %7549 = vmatprep.subr.mxu0 0.0
  %7550 = vmatpush1.msra.mxu0 0.0
  %7551 = vmatprep.subr.mxu0 0.0
  %7552 = vmatpush1.msra.mxu0 0.0
  %7553 = vmatprep.subr.mxu0 0.0
  %7554 = vmatpush1.msra.mxu0 0.0
  %7555 = vmatprep.subr.mxu0 0.0
  %7556 = vmatpush1.msra.mxu0 0.0
  %7557 = vmatprep.subr.mxu0 0.0
  %7558 = vmatpush1.msra.mxu0 0.0
  %7559 = vmatprep.subr.mxu0 0.0
  %7560 = vmatpush1.msra.mxu0 0.0
  %7561 = vmatprep.subr.mxu0 0.0
  %7562 = vmatpush1.msra.mxu0 0.0
  %7563 = vmatprep.subr.mxu0 0.0
  %7564 = vmatpush1.msra.mxu0 0.0
  %7565 = vmatprep.subr.mxu0 0.0
  %7566 = vmatpush1.msra.mxu0 0.0
  %7567 = vmatprep.subr.mxu0 0.0
  %7568 = vmatpush1.msra.mxu0 0.0
  %7569 = vmatprep.subr.mxu0 0.0
  %7570 = vmatpush1.msra.mxu0 0.0
  %7571 = vmatprep.subr.mxu0 0.0
  %7572 = vmatpush1.msra.mxu0 0.0
  %7573 = vmatprep.subr.mxu0 0.0
  %7574 = vmatpush1.msra.mxu0 0.0
  %7575 = vmatprep.subr.mxu0 0.0
  %7576 = vmatpush1.msra.mxu0 0.0
  %7577 = vmatprep.subr.mxu0 0.0
  %7578 = vmatpush1.msra.mxu0 0.0
  %7579 = vmatprep.subr.mxu0 0.0
  %7580 = vmatpush1.msra.mxu0 0.0
  %7581 = vmatprep.subr.mxu0 0.0
  %7582 = vmatpush1.msra.mxu0 0.0
  %7583 = vmatprep.subr.mxu0 0.0
  %7584 = vmatpush1.msra.mxu0 0.0
  %7585 = vmatprep.subr.mxu0 0.0
  %7586 = vmatpush1.msra.mxu0 0.0
  %7587 = vmatprep.subr.mxu0 0.0
  %7588 = vmatpush1.msra.mxu0 0.0
  %7589 = vmatprep.mubr.f32.mxu0 0.0
  %7590 = vmatmul.mubr.f32.gmra.mrb[0].mxu0 %v7174
  %v7591 = vpop.f32.mrb[0].mxu0
  %v7592 = vadd.f32 0.0, %v7591
  %v7593 = vpop.f32.mrb[0].mxu0
  %7594 = vmatprep.mubr.f32.mxu0 0.0
  %7595 = vmatmul.mubr.f32.gmra.mrb[0].mxu0 %v7176
  %v7596 = vpop.f32.mrb[0].mxu0
  %v7597 = vadd.f32 0.0, %v7596
  %v7598 = vpop.f32.mrb[0].mxu0
  %7599 = vmatprep.mubr.f32.mxu0 0.0
  %7600 = vmatmul.mubr.f32.gmra.mrb[0].mxu0 %v7178
  %v7601 = vpop.f32.mrb[0].mxu0
  %v7602 = vadd.f32 0.0, %v7601
  %v7603 = vpop.f32.mrb[0].mxu0
  %7604 = vdwg.mxu0
  %v7606 = vsel %vm199, %v4643, 0
  %7608 = vmatprep.subr.mxu0 0.0
  %7609 = vmatpush1.msra.mxu0 %v7606
  %7610 = vmatprep.subr.mxu0 0.0
  %7611 = vmatpush1.msra.mxu0 0.0
  %7612 = vmatprep.subr.mxu0 0.0
  %7613 = vmatpush1.msra.mxu0 0.0
  %7614 = vmatprep.subr.mxu0 0.0
  %7615 = vmatpush1.msra.mxu0 0.0
  %7616 = vmatprep.subr.mxu0 0.0
  %7617 = vmatpush1.msra.mxu0 0.0
  %7618 = vmatprep.subr.mxu0 0.0
  %7619 = vmatpush1.msra.mxu0 0.0
  %7620 = vmatprep.subr.mxu0 0.0
  %7621 = vmatpush1.msra.mxu0 0.0
  %7622 = vmatprep.subr.mxu0 0.0
  %7623 = vmatpush1.msra.mxu0 0.0
  %7624 = vmatprep.subr.mxu0 0.0
  %7625 = vmatpush1.msra.mxu0 0.0
  %7626 = vmatprep.subr.mxu0 0.0
  %7627 = vmatpush1.msra.mxu0 0.0
  %7628 = vmatprep.subr.mxu0 0.0
  %7629 = vmatpush1.msra.mxu0 0.0
  %7630 = vmatprep.subr.mxu0 0.0
  %7631 = vmatpush1.msra.mxu0 0.0
  %7632 = vmatprep.subr.mxu0 0.0
  %7633 = vmatpush1.msra.mxu0 0.0
  %7634 = vmatprep.subr.mxu0 0.0
  %7635 = vmatpush1.msra.mxu0 0.0
  %7636 = vmatprep.subr.mxu0 0.0
  %7637 = vmatpush1.msra.mxu0 0.0
  %7638 = vmatprep.subr.mxu0 0.0
  %7639 = vmatpush1.msra.mxu0 0.0
  %7640 = vmatprep.subr.mxu0 0.0
  %7641 = vmatpush1.msra.mxu0 0.0
  %7642 = vmatprep.subr.mxu0 0.0
  %7643 = vmatpush1.msra.mxu0 0.0
  %7644 = vmatprep.subr.mxu0 0.0
  %7645 = vmatpush1.msra.mxu0 0.0
  %7646 = vmatprep.subr.mxu0 0.0
  %7647 = vmatpush1.msra.mxu0 0.0
  %7648 = vmatprep.subr.mxu0 0.0
  %7649 = vmatpush1.msra.mxu0 0.0
  %7650 = vmatprep.subr.mxu0 0.0
  %7651 = vmatpush1.msra.mxu0 0.0
  %7652 = vmatprep.subr.mxu0 0.0
  %7653 = vmatpush1.msra.mxu0 0.0
  %7654 = vmatprep.subr.mxu0 0.0
  %7655 = vmatpush1.msra.mxu0 0.0
  %7656 = vmatprep.subr.mxu0 0.0
  %7657 = vmatpush1.msra.mxu0 0.0
  %7658 = vmatprep.subr.mxu0 0.0
  %7659 = vmatpush1.msra.mxu0 0.0
  %7660 = vmatprep.subr.mxu0 0.0
  %7661 = vmatpush1.msra.mxu0 0.0
  %7662 = vmatprep.subr.mxu0 0.0
  %7663 = vmatpush1.msra.mxu0 0.0
  %7664 = vmatprep.subr.mxu0 0.0
  %7665 = vmatpush1.msra.mxu0 0.0
  %7666 = vmatprep.subr.mxu0 0.0
  %7667 = vmatpush1.msra.mxu0 0.0
  %7668 = vmatprep.subr.mxu0 0.0
  %7669 = vmatpush1.msra.mxu0 0.0
  %7670 = vmatprep.subr.mxu0 0.0
  %7671 = vmatpush1.msra.mxu0 0.0
  %7672 = vmatprep.mubr.f32.mxu0 0.0
  %7673 = vmatmul.mubr.f32.gmra.mrb[0].mxu0 %v3587
  %v7674 = vpop.f32.mrb[0].mxu0
  %v7675 = vadd.f32 %v7592, %v7674
  %v7676 = vpop.f32.mrb[0].mxu0
  %7677 = vmatprep.mubr.f32.mxu0 0.0
  %7678 = vmatmul.mubr.f32.gmra.mrb[0].mxu0 %v3590
  %v7679 = vpop.f32.mrb[0].mxu0
  %v7680 = vadd.f32 %v7597, %v7679
  %v7681 = vpop.f32.mrb[0].mxu0
  %7682 = vmatprep.mubr.f32.mxu0 0.0
  %7683 = vmatmul.mubr.f32.gmra.mrb[0].mxu0 %v3593
  %v7684 = vpop.f32.mrb[0].mxu0
  %v7685 = vadd.f32 %v7602, %v7684
  %v7686 = vpop.f32.mrb[0].mxu0
  %7687 = vdwg.mxu0
  %v7688 = vmul.f32 %v7518, %v4085
  %v7689 = vmul.f32 %v7519, %v4090
  %v7690 = vmul.f32 %v7520, %v4095
  %v7692 = vsel %vm273, %v7688, 0
  %v7695 = vsel %vm273, %v7689, 0
  %v7698 = vsel %vm273, %v7690, 0
  %7700 = vmatprep.subr.mxu0 0.0
  %7701 = vmatpush1.msra.mxu0 %v279
  %7702 = vmatprep.subr.mxu0 0.0
  %7703 = vmatpush1.msra.mxu0 0.0
  %7704 = vmatprep.subr.mxu0 0.0
  %7705 = vmatpush1.msra.mxu0 0.0
  %7706 = vmatprep.subr.mxu0 0.0
  %7707 = vmatpush1.msra.mxu0 0.0
  %7708 = vmatprep.subr.mxu0 0.0
  %7709 = vmatpush1.msra.mxu0 0.0
  %7710 = vmatprep.subr.mxu0 0.0
  %7711 = vmatpush1.msra.mxu0 0.0
  %7712 = vmatprep.subr.mxu0 0.0
  %7713 = vmatpush1.msra.mxu0 0.0
  %7714 = vmatprep.subr.mxu0 0.0
  %7715 = vmatpush1.msra.mxu0 0.0
  %7716 = vmatprep.subr.mxu0 0.0
  %7717 = vmatpush1.msra.mxu0 0.0
  %7718 = vmatprep.subr.mxu0 0.0
  %7719 = vmatpush1.msra.mxu0 0.0
  %7720 = vmatprep.subr.mxu0 0.0
  %7721 = vmatpush1.msra.mxu0 0.0
  %7722 = vmatprep.subr.mxu0 0.0
  %7723 = vmatpush1.msra.mxu0 0.0
  %7724 = vmatprep.subr.mxu0 0.0
  %7725 = vmatpush1.msra.mxu0 0.0
  %7726 = vmatprep.subr.mxu0 0.0
  %7727 = vmatpush1.msra.mxu0 0.0
  %7728 = vmatprep.subr.mxu0 0.0
  %7729 = vmatpush1.msra.mxu0 0.0
  %7730 = vmatprep.subr.mxu0 0.0
  %7731 = vmatpush1.msra.mxu0 0.0
  %7732 = vmatprep.subr.mxu0 0.0
  %7733 = vmatpush1.msra.mxu0 0.0
  %7734 = vmatprep.subr.mxu0 0.0
  %7735 = vmatpush1.msra.mxu0 0.0
  %7736 = vmatprep.subr.mxu0 0.0
  %7737 = vmatpush1.msra.mxu0 0.0
  %7738 = vmatprep.subr.mxu0 0.0
  %7739 = vmatpush1.msra.mxu0 0.0
  %7740 = vmatprep.subr.mxu0 0.0
  %7741 = vmatpush1.msra.mxu0 0.0
  %7742 = vmatprep.subr.mxu0 0.0
  %7743 = vmatpush1.msra.mxu0 0.0
  %7744 = vmatprep.subr.mxu0 0.0
  %7745 = vmatpush1.msra.mxu0 0.0
  %7746 = vmatprep.subr.mxu0 0.0
  %7747 = vmatpush1.msra.mxu0 0.0
  %7748 = vmatprep.subr.mxu0 0.0
  %7749 = vmatpush1.msra.mxu0 0.0
  %7750 = vmatprep.subr.mxu0 0.0
  %7751 = vmatpush1.msra.mxu0 0.0
  %7752 = vmatprep.subr.mxu0 0.0
  %7753 = vmatpush1.msra.mxu0 0.0
  %7754 = vmatprep.subr.mxu0 0.0
  %7755 = vmatpush1.msra.mxu0 0.0
  %7756 = vmatprep.subr.mxu0 0.0
  %7757 = vmatpush1.msra.mxu0 0.0
  %7758 = vmatprep.subr.mxu0 0.0
  %7759 = vmatpush1.msra.mxu0 0.0
  %7760 = vmatprep.subr.mxu0 0.0
  %7761 = vmatpush1.msra.mxu0 0.0
  %7762 = vmatprep.subr.mxu0 0.0
  %7763 = vmatpush1.msra.mxu0 0.0
  %7764 = vmatprep.mubr.f32.mxu0 0.0
  %7765 = vmatmul.mubr.f32.gmra.mrb[0].mxu0 %v7692
  %v7766 = vpop.f32.mrb[0].mxu0
  %v7767 = vadd.f32 0.0, %v7766
  %v7768 = vpop.f32.mrb[0].mxu0
  %7769 = vmatprep.mubr.f32.mxu0 0.0
  %7770 = vmatmul.mubr.f32.gmra.mrb[0].mxu0 %v7695
  %v7771 = vpop.f32.mrb[0].mxu0
  %v7772 = vadd.f32 0.0, %v7771
  %v7773 = vpop.f32.mrb[0].mxu0
  %7774 = vmatprep.mubr.f32.mxu0 0.0
  %7775 = vmatmul.mubr.f32.gmra.mrb[0].mxu0 %v7698
  %v7776 = vpop.f32.mrb[0].mxu0
  %v7777 = vadd.f32 0.0, %v7776
  %v7778 = vpop.f32.mrb[0].mxu0
  %7779 = vdwg.mxu0
  %v7780 = vadd.f32 %v7675, %v7767
  %v7781 = vadd.f32 %v7680, %v7772
  %v7782 = vadd.f32 %v7685, %v7777
  %7783 = vmatprep.subr.mxu0 0.0
  %7784 = vmatpush1.msra.mxu0 %v356
  %7785 = vmatprep.subr.mxu0 0.0
  %7786 = vmatpush1.msra.mxu0 0.0
  %7787 = vmatprep.subr.mxu0 0.0
  %7788 = vmatpush1.msra.mxu0 0.0
  %7789 = vmatprep.subr.mxu0 0.0
  %7790 = vmatpush1.msra.mxu0 0.0
  %7791 = vmatprep.subr.mxu0 0.0
  %7792 = vmatpush1.msra.mxu0 0.0
  %7793 = vmatprep.subr.mxu0 0.0
  %7794 = vmatpush1.msra.mxu0 0.0
  %7795 = vmatprep.subr.mxu0 0.0
  %7796 = vmatpush1.msra.mxu0 0.0
  %7797 = vmatprep.subr.mxu0 0.0
  %7798 = vmatpush1.msra.mxu0 0.0
  %7799 = vmatprep.subr.mxu0 0.0
  %7800 = vmatpush1.msra.mxu0 0.0
  %7801 = vmatprep.subr.mxu0 0.0
  %7802 = vmatpush1.msra.mxu0 0.0
  %7803 = vmatprep.subr.mxu0 0.0
  %7804 = vmatpush1.msra.mxu0 0.0
  %7805 = vmatprep.subr.mxu0 0.0
  %7806 = vmatpush1.msra.mxu0 0.0
  %7807 = vmatprep.subr.mxu0 0.0
  %7808 = vmatpush1.msra.mxu0 0.0
  %7809 = vmatprep.subr.mxu0 0.0
  %7810 = vmatpush1.msra.mxu0 0.0
  %7811 = vmatprep.subr.mxu0 0.0
  %7812 = vmatpush1.msra.mxu0 0.0
  %7813 = vmatprep.subr.mxu0 0.0
  %7814 = vmatpush1.msra.mxu0 0.0
  %7815 = vmatprep.subr.mxu0 0.0
  %7816 = vmatpush1.msra.mxu0 0.0
  %7817 = vmatprep.subr.mxu0 0.0
  %7818 = vmatpush1.msra.mxu0 0.0
  %7819 = vmatprep.subr.mxu0 0.0
  %7820 = vmatpush1.msra.mxu0 0.0
  %7821 = vmatprep.subr.mxu0 0.0
  %7822 = vmatpush1.msra.mxu0 0.0
  %7823 = vmatprep.subr.mxu0 0.0
  %7824 = vmatpush1.msra.mxu0 0.0
  %7825 = vmatprep.subr.mxu0 0.0
  %7826 = vmatpush1.msra.mxu0 0.0
  %7827 = vmatprep.subr.mxu0 0.0
  %7828 = vmatpush1.msra.mxu0 0.0
  %7829 = vmatprep.subr.mxu0 0.0
  %7830 = vmatpush1.msra.mxu0 0.0
  %7831 = vmatprep.subr.mxu0 0.0
  %7832 = vmatpush1.msra.mxu0 0.0
  %7833 = vmatprep.subr.mxu0 0.0
  %7834 = vmatpush1.msra.mxu0 0.0
  %7835 = vmatprep.subr.mxu0 0.0
  %7836 = vmatpush1.msra.mxu0 0.0
  %7837 = vmatprep.subr.mxu0 0.0
  %7838 = vmatpush1.msra.mxu0 0.0
  %7839 = vmatprep.subr.mxu0 0.0
  %7840 = vmatpush1.msra.mxu0 0.0
  %7841 = vmatprep.subr.mxu0 0.0
  %7842 = vmatpush1.msra.mxu0 0.0
  %7843 = vmatprep.subr.mxu0 0.0
  %7844 = vmatpush1.msra.mxu0 0.0
  %7845 = vmatprep.subr.mxu0 0.0
  %7846 = vmatpush1.msra.mxu0 0.0
  %7847 = vmatprep.mubr.f32.mxu0 0.0
  %7848 = vmatmul.mubr.f32.gmra.mrb[0].mxu0 %v6756
  %v7849 = vpop.f32.mrb[0].mxu0
  %v7850 = vadd.f32 0.0, %v7849
  %v7851 = vpop.f32.mrb[0].mxu0
  %7852 = vmatprep.mubr.f32.mxu0 0.0
  %7853 = vmatmul.mubr.f32.gmra.mrb[0].mxu0 %v6759
  %v7854 = vpop.f32.mrb[0].mxu0
  %v7855 = vadd.f32 0.0, %v7854
  %v7856 = vpop.f32.mrb[0].mxu0
  %7857 = vmatprep.mubr.f32.mxu0 0.0
  %7858 = vmatmul.mubr.f32.gmra.mrb[0].mxu0 %v6762
  %v7859 = vpop.f32.mrb[0].mxu0
  %v7860 = vadd.f32 0.0, %v7859
  %v7861 = vpop.f32.mrb[0].mxu0
  %7862 = vdwg.mxu0
  %v7863 = vadd.f32 %v7780, %v7850
  %v7864 = vadd.f32 %v7781, %v7855
  %v7865 = vadd.f32 %v7782, %v7860
  %7866 = vmatprep.subr.mxu0 0.0
  %7867 = vmatpush1.msra.mxu0 %v433
  %7868 = vmatprep.subr.mxu0 0.0
  %7869 = vmatpush1.msra.mxu0 0.0
  %7870 = vmatprep.subr.mxu0 0.0
  %7871 = vmatpush1.msra.mxu0 0.0
  %7872 = vmatprep.subr.mxu0 0.0
  %7873 = vmatpush1.msra.mxu0 0.0
  %7874 = vmatprep.subr.mxu0 0.0
  %7875 = vmatpush1.msra.mxu0 0.0
  %7876 = vmatprep.subr.mxu0 0.0
  %7877 = vmatpush1.msra.mxu0 0.0
  %7878 = vmatprep.subr.mxu0 0.0
  %7879 = vmatpush1.msra.mxu0 0.0
  %7880 = vmatprep.subr.mxu0 0.0
  %7881 = vmatpush1.msra.mxu0 0.0
  %7882 = vmatprep.subr.mxu0 0.0
  %7883 = vmatpush1.msra.mxu0 0.0
  %7884 = vmatprep.subr.mxu0 0.0
  %7885 = vmatpush1.msra.mxu0 0.0
  %7886 = vmatprep.subr.mxu0 0.0
  %7887 = vmatpush1.msra.mxu0 0.0
  %7888 = vmatprep.subr.mxu0 0.0
  %7889 = vmatpush1.msra.mxu0 0.0
  %7890 = vmatprep.subr.mxu0 0.0
  %7891 = vmatpush1.msra.mxu0 0.0
  %7892 = vmatprep.subr.mxu0 0.0
  %7893 = vmatpush1.msra.mxu0 0.0
  %7894 = vmatprep.subr.mxu0 0.0
  %7895 = vmatpush1.msra.mxu0 0.0
  %7896 = vmatprep.subr.mxu0 0.0
  %7897 = vmatpush1.msra.mxu0 0.0
  %7898 = vmatprep.subr.mxu0 0.0
  %7899 = vmatpush1.msra.mxu0 0.0
  %7900 = vmatprep.subr.mxu0 0.0
  %7901 = vmatpush1.msra.mxu0 0.0
  %7902 = vmatprep.subr.mxu0 0.0
  %7903 = vmatpush1.msra.mxu0 0.0
  %7904 = vmatprep.subr.mxu0 0.0
  %7905 = vmatpush1.msra.mxu0 0.0
  %7906 = vmatprep.subr.mxu0 0.0
  %7907 = vmatpush1.msra.mxu0 0.0
  %7908 = vmatprep.subr.mxu0 0.0
  %7909 = vmatpush1.msra.mxu0 0.0
  %7910 = vmatprep.subr.mxu0 0.0
  %7911 = vmatpush1.msra.mxu0 0.0
  %7912 = vmatprep.subr.mxu0 0.0
  %7913 = vmatpush1.msra.mxu0 0.0
  %7914 = vmatprep.subr.mxu0 0.0
  %7915 = vmatpush1.msra.mxu0 0.0
  %7916 = vmatprep.subr.mxu0 0.0
  %7917 = vmatpush1.msra.mxu0 0.0
  %7918 = vmatprep.subr.mxu0 0.0
  %7919 = vmatpush1.msra.mxu0 0.0
  %7920 = vmatprep.subr.mxu0 0.0
  %7921 = vmatpush1.msra.mxu0 0.0
  %7922 = vmatprep.subr.mxu0 0.0
  %7923 = vmatpush1.msra.mxu0 0.0
  %7924 = vmatprep.subr.mxu0 0.0
  %7925 = vmatpush1.msra.mxu0 0.0
  %7926 = vmatprep.subr.mxu0 0.0
  %7927 = vmatpush1.msra.mxu0 0.0
  %7928 = vmatprep.subr.mxu0 0.0
  %7929 = vmatpush1.msra.mxu0 0.0
  %7930 = vmatprep.mubr.f32.mxu0 0.0
  %7931 = vmatmul.mubr.f32.gmra.mrb[0].mxu0 %v5820
  %v7932 = vpop.f32.mrb[0].mxu0
  %v7933 = vadd.f32 0.0, %v7932
  %v7934 = vpop.f32.mrb[0].mxu0
  %7935 = vmatprep.mubr.f32.mxu0 0.0
  %7936 = vmatmul.mubr.f32.gmra.mrb[0].mxu0 %v5823
  %v7937 = vpop.f32.mrb[0].mxu0
  %v7938 = vadd.f32 0.0, %v7937
  %v7939 = vpop.f32.mrb[0].mxu0
  %7940 = vmatprep.mubr.f32.mxu0 0.0
  %7941 = vmatmul.mubr.f32.gmra.mrb[0].mxu0 %v5826
  %v7942 = vpop.f32.mrb[0].mxu0
  %v7943 = vadd.f32 0.0, %v7942
  %v7944 = vpop.f32.mrb[0].mxu0
  %7945 = vdwg.mxu0
  %v7946 = vadd.f32 %v7863, %v7933
  %v7947 = vadd.f32 %v7864, %v7938
  %v7948 = vadd.f32 %v7865, %v7943
  %v7949 = vxor.u32 %v7946, 2147483648
  %v7950 = vxor.u32 %v7947, 2147483648
  %v7951 = vxor.u32 %v7948, 2147483648
  %v7952 = vmul.f32 %v7949, 1.442695
  %v7953 = vpow.pop %v7952
  %v7954 = vmul.f32 %v7950, 1.442695
  %v7955 = vpow.pop %v7954
  %v7956 = vmul.f32 %v7951, 1.442695
  %v7957 = vpow.pop %v7956
  %v7958 = vadd.f32 %v7953, 1.0
  %v7959 = vadd.f32 %v7955, 1.0
  %v7960 = vadd.f32 %v7957, 1.0
  %v7961 = vrcp.pop %v7958
  %v7962 = vmul.f32 1.0, %v7961
  %v7963 = vrcp.pop %v7959
  %v7964 = vmul.f32 1.0, %v7963
  %v7965 = vrcp.pop %v7960
  %v7966 = vmul.f32 1.0, %v7965
  %v7967 = vtanh.pop %v7946
  %v7968 = vtanh.pop %v7947
  %v7969 = vtanh.pop %v7948
  %v7970 = vmul.f32 %v7962, %v7064
  %v7971 = vmul.f32 %v7964, %v7065
  %v7972 = vmul.f32 %v7966, %v7066
  %7976 = vrot.lane.b32.xlu0 %v7967, 32
  %v7977 = vpop.permute.xlu0 %7976
  %7978 = vrot.lane.b32.xlu0 %v7968, 32
  %v7979 = vpop.permute.xlu0 %7978
  %7980 = vrot.lane.b32.xlu0 %v7969, 32
  %v7981 = vpop.permute.xlu0 %7980
  %v7985 = vmul.f32 %v7962, %v7977
  %v7986 = vmul.f32 %v7964, %v7979
  %v7987 = vmul.f32 %v7966, %v7981
  %7991 = vrot.lane.b32.xlu0 %v7985, 32
  %v7992 = vpop.permute.xlu0 %7991
  %7993 = vrot.lane.b32.xlu0 %v7986, 32
  %v7994 = vpop.permute.xlu0 %7993
  %7995 = vrot.lane.b32.xlu0 %v7987, 32
  %v7996 = vpop.permute.xlu0 %7995
  %v8000 = vadd.f32 %v7970, %v7992
  %v8001 = vadd.f32 %v7971, %v7994
  %v8002 = vadd.f32 %v7972, %v7996
  %v8003 = vtanh.pop %v8000
  %v8004 = vtanh.pop %v8001
  %v8005 = vtanh.pop %v8002
  %8009 = vrot.lane.b32.xlu0 %v8003, 32
  %v8010 = vpop.permute.xlu0 %8009
  %8011 = vrot.lane.b32.xlu0 %v8004, 32
  %v8012 = vpop.permute.xlu0 %8011
  %8013 = vrot.lane.b32.xlu0 %v8005, 32
  %v8014 = vpop.permute.xlu0 %8013
  %v8018 = vmul.f32 %v7962, %v8010
  %v8019 = vmul.f32 %v7964, %v8012
  %v8020 = vmul.f32 %v7966, %v8014
  %8021 = vmatprep.subr.mxu0 0.0
  %8022 = vmatpush1.msra.mxu0 %v78
  %8023 = vmatprep.subr.mxu0 0.0
  %8024 = vmatpush1.msra.mxu0 %v79
  %8025 = vmatprep.subr.mxu0 0.0
  %8026 = vmatpush1.msra.mxu0 %v80
  %8027 = vmatprep.subr.mxu0 0.0
  %8028 = vmatpush1.msra.mxu0 %v81
  %8029 = vmatprep.subr.mxu0 0.0
  %8030 = vmatpush1.msra.mxu0 0.0
  %8031 = vmatprep.subr.mxu0 0.0
  %8032 = vmatpush1.msra.mxu0 0.0
  %8033 = vmatprep.subr.mxu0 0.0
  %8034 = vmatpush1.msra.mxu0 0.0
  %8035 = vmatprep.subr.mxu0 0.0
  %8036 = vmatpush1.msra.mxu0 0.0
  %8037 = vmatprep.subr.mxu0 0.0
  %8038 = vmatpush1.msra.mxu0 0.0
  %8039 = vmatprep.subr.mxu0 0.0
  %8040 = vmatpush1.msra.mxu0 0.0
  %8041 = vmatprep.subr.mxu0 0.0
  %8042 = vmatpush1.msra.mxu0 0.0
  %8043 = vmatprep.subr.mxu0 0.0
  %8044 = vmatpush1.msra.mxu0 0.0
  %8045 = vmatprep.subr.mxu0 0.0
  %8046 = vmatpush1.msra.mxu0 0.0
  %8047 = vmatprep.subr.mxu0 0.0
  %8048 = vmatpush1.msra.mxu0 0.0
  %8049 = vmatprep.subr.mxu0 0.0
  %8050 = vmatpush1.msra.mxu0 0.0
  %8051 = vmatprep.subr.mxu0 0.0
  %8052 = vmatpush1.msra.mxu0 0.0
  %8053 = vmatprep.subr.mxu0 0.0
  %8054 = vmatpush1.msra.mxu0 0.0
  %8055 = vmatprep.subr.mxu0 0.0
  %8056 = vmatpush1.msra.mxu0 0.0
  %8057 = vmatprep.subr.mxu0 0.0
  %8058 = vmatpush1.msra.mxu0 0.0
  %8059 = vmatprep.subr.mxu0 0.0
  %8060 = vmatpush1.msra.mxu0 0.0
  %8061 = vmatprep.subr.mxu0 0.0
  %8062 = vmatpush1.msra.mxu0 0.0
  %8063 = vmatprep.subr.mxu0 0.0
  %8064 = vmatpush1.msra.mxu0 0.0
  %8065 = vmatprep.subr.mxu0 0.0
  %8066 = vmatpush1.msra.mxu0 0.0
  %8067 = vmatprep.subr.mxu0 0.0
  %8068 = vmatpush1.msra.mxu0 0.0
  %8069 = vmatprep.subr.mxu0 0.0
  %8070 = vmatpush1.msra.mxu0 0.0
  %8071 = vmatprep.subr.mxu0 0.0
  %8072 = vmatpush1.msra.mxu0 0.0
  %8073 = vmatprep.subr.mxu0 0.0
  %8074 = vmatpush1.msra.mxu0 0.0
  %8075 = vmatprep.subr.mxu0 0.0
  %8076 = vmatpush1.msra.mxu0 0.0
  %8077 = vmatprep.subr.mxu0 0.0
  %8078 = vmatpush1.msra.mxu0 0.0
  %8079 = vmatprep.subr.mxu0 0.0
  %8080 = vmatpush1.msra.mxu0 0.0
  %8081 = vmatprep.subr.mxu0 0.0
  %8082 = vmatpush1.msra.mxu0 0.0
  %8083 = vmatprep.subr.mxu0 0.0
  %8084 = vmatpush1.msra.mxu0 0.0
  %8085 = vmatprep.mubr.f32.mxu0 0.0
  %8086 = vmatmul.mubr.f32.gmra.mrb[0].mxu0 %v7344
  %v8087 = vpop.f32.mrb[0].mxu0
  %v8088 = vadd.f32 0.0, %v8087
  %v8089 = vpop.f32.mrb[0].mxu0
  %8090 = vmatprep.mubr.f32.mxu0 0.0
  %8091 = vmatmul.mubr.f32.gmra.mrb[0].mxu0 %v7346
  %v8092 = vpop.f32.mrb[0].mxu0
  %v8093 = vadd.f32 0.0, %v8092
  %v8094 = vpop.f32.mrb[0].mxu0
  %8095 = vmatprep.mubr.f32.mxu0 0.0
  %8096 = vmatmul.mubr.f32.gmra.mrb[0].mxu0 %v7348
  %v8097 = vpop.f32.mrb[0].mxu0
  %v8098 = vadd.f32 0.0, %v8097
  %v8099 = vpop.f32.mrb[0].mxu0
  %8100 = vdwg.mxu0
  %8104 = vrot.lane.b32.xlu0 %v8018, 64
  %v8105 = vpop.permute.xlu0 %8104
  %8106 = vrot.lane.b32.xlu0 %v8019, 64
  %v8107 = vpop.permute.xlu0 %8106
  %8108 = vrot.lane.b32.xlu0 %v8020, 64
  %v8109 = vpop.permute.xlu0 %8108
  %v8110 = vsel %vm1961, %v8105, 0
  %v8112 = vsel %vm1961, %v8107, 0
  %v8114 = vsel %vm1961, %v8109, 0
  %8116 = vmatprep.subr.mxu0 0.0
  %8117 = vmatpush1.msra.mxu0 %v74
  %8118 = vmatprep.subr.mxu0 0.0
  %8119 = vmatpush1.msra.mxu0 %v75
  %8120 = vmatprep.subr.mxu0 0.0
  %8121 = vmatpush1.msra.mxu0 %v76
  %8122 = vmatprep.subr.mxu0 0.0
  %8123 = vmatpush1.msra.mxu0 %v77
  %8124 = vmatprep.subr.mxu0 0.0
  %8125 = vmatpush1.msra.mxu0 0.0
  %8126 = vmatprep.subr.mxu0 0.0
  %8127 = vmatpush1.msra.mxu0 0.0
  %8128 = vmatprep.subr.mxu0 0.0
  %8129 = vmatpush1.msra.mxu0 0.0
  %8130 = vmatprep.subr.mxu0 0.0
  %8131 = vmatpush1.msra.mxu0 0.0
  %8132 = vmatprep.subr.mxu0 0.0
  %8133 = vmatpush1.msra.mxu0 0.0
  %8134 = vmatprep.subr.mxu0 0.0
  %8135 = vmatpush1.msra.mxu0 0.0
  %8136 = vmatprep.subr.mxu0 0.0
  %8137 = vmatpush1.msra.mxu0 0.0
  %8138 = vmatprep.subr.mxu0 0.0
  %8139 = vmatpush1.msra.mxu0 0.0
  %8140 = vmatprep.subr.mxu0 0.0
  %8141 = vmatpush1.msra.mxu0 0.0
  %8142 = vmatprep.subr.mxu0 0.0
  %8143 = vmatpush1.msra.mxu0 0.0
  %8144 = vmatprep.subr.mxu0 0.0
  %8145 = vmatpush1.msra.mxu0 0.0
  %8146 = vmatprep.subr.mxu0 0.0
  %8147 = vmatpush1.msra.mxu0 0.0
  %8148 = vmatprep.subr.mxu0 0.0
  %8149 = vmatpush1.msra.mxu0 0.0
  %8150 = vmatprep.subr.mxu0 0.0
  %8151 = vmatpush1.msra.mxu0 0.0
  %8152 = vmatprep.subr.mxu0 0.0
  %8153 = vmatpush1.msra.mxu0 0.0
  %8154 = vmatprep.subr.mxu0 0.0
  %8155 = vmatpush1.msra.mxu0 0.0
  %8156 = vmatprep.subr.mxu0 0.0
  %8157 = vmatpush1.msra.mxu0 0.0
  %8158 = vmatprep.subr.mxu0 0.0
  %8159 = vmatpush1.msra.mxu0 0.0
  %8160 = vmatprep.subr.mxu0 0.0
  %8161 = vmatpush1.msra.mxu0 0.0
  %8162 = vmatprep.subr.mxu0 0.0
  %8163 = vmatpush1.msra.mxu0 0.0
  %8164 = vmatprep.subr.mxu0 0.0
  %8165 = vmatpush1.msra.mxu0 0.0
  %8166 = vmatprep.subr.mxu0 0.0
  %8167 = vmatpush1.msra.mxu0 0.0
  %8168 = vmatprep.subr.mxu0 0.0
  %8169 = vmatpush1.msra.mxu0 0.0
  %8170 = vmatprep.subr.mxu0 0.0
  %8171 = vmatpush1.msra.mxu0 0.0
  %8172 = vmatprep.subr.mxu0 0.0
  %8173 = vmatpush1.msra.mxu0 0.0
  %8174 = vmatprep.subr.mxu0 0.0
  %8175 = vmatpush1.msra.mxu0 0.0
  %8176 = vmatprep.subr.mxu0 0.0
  %8177 = vmatpush1.msra.mxu0 0.0
  %8178 = vmatprep.subr.mxu0 0.0
  %8179 = vmatpush1.msra.mxu0 0.0
  %8180 = vmatprep.mubr.f32.mxu0 0.0
  %8181 = vmatmul.mubr.f32.gmra.mrb[0].mxu0 %v8110
  %v8182 = vpop.f32.mrb[0].mxu0
  %v8183 = vadd.f32 %v8088, %v8182
  %v8184 = vpop.f32.mrb[0].mxu0
  %8185 = vmatprep.mubr.f32.mxu0 0.0
  %8186 = vmatmul.mubr.f32.gmra.mrb[0].mxu0 %v8112
  %v8187 = vpop.f32.mrb[0].mxu0
  %v8188 = vadd.f32 %v8093, %v8187
  %v8189 = vpop.f32.mrb[0].mxu0
  %8190 = vmatprep.mubr.f32.mxu0 0.0
  %8191 = vmatmul.mubr.f32.gmra.mrb[0].mxu0 %v8114
  %v8192 = vpop.f32.mrb[0].mxu0
  %v8193 = vadd.f32 %v8098, %v8192
  %v8194 = vpop.f32.mrb[0].mxu0
  %8195 = vdwg.mxu0
  %v8196 = vadd.f32 %v8183, %v2209
  %v8197 = vadd.f32 %v8188, %v2209
  %v8198 = vadd.f32 %v8193, %v2209
  %v8199 = vxor.u32 %v8196, 2147483648
  %v8200 = vxor.u32 %v8197, 2147483648
  %v8201 = vxor.u32 %v8198, 2147483648
  %v8202 = vmul.f32 %v8199, 1.442695
  %v8203 = vpow.pop %v8202
  %v8204 = vmul.f32 %v8200, 1.442695
  %v8205 = vpow.pop %v8204
  %v8206 = vmul.f32 %v8201, 1.442695
  %v8207 = vpow.pop %v8206
  %v8208 = vadd.f32 %v8203, 1.0
  %v8209 = vadd.f32 %v8205, 1.0
  %v8210 = vadd.f32 %v8207, 1.0
  %v8211 = vrcp.pop %v8208
  %v8212 = vmul.f32 1.0, %v8211
  %v8213 = vrcp.pop %v8209
  %v8214 = vmul.f32 1.0, %v8213
  %v8215 = vrcp.pop %v8210
  %v8216 = vmul.f32 1.0, %v8215
  %v8217 = vtanh.pop %v8196
  %v8218 = vtanh.pop %v8197
  %v8219 = vtanh.pop %v8198
  %v8220 = vmul.f32 %v8212, %v7314
  %v8221 = vmul.f32 %v8214, %v7315
  %v8222 = vmul.f32 %v8216, %v7316
  %8226 = vrot.lane.b32.xlu0 %v8217, 32
  %v8227 = vpop.permute.xlu0 %8226
  %8228 = vrot.lane.b32.xlu0 %v8218, 32
  %v8229 = vpop.permute.xlu0 %8228
  %8230 = vrot.lane.b32.xlu0 %v8219, 32
  %v8231 = vpop.permute.xlu0 %8230
  %v8235 = vmul.f32 %v8212, %v8227
  %v8236 = vmul.f32 %v8214, %v8229
  %v8237 = vmul.f32 %v8216, %v8231
  %8241 = vrot.lane.b32.xlu0 %v8235, 32
  %v8242 = vpop.permute.xlu0 %8241
  %8243 = vrot.lane.b32.xlu0 %v8236, 32
  %v8244 = vpop.permute.xlu0 %8243
  %8245 = vrot.lane.b32.xlu0 %v8237, 32
  %v8246 = vpop.permute.xlu0 %8245
  %v8250 = vadd.f32 %v8220, %v8242
  %v8251 = vadd.f32 %v8221, %v8244
  %v8252 = vadd.f32 %v8222, %v8246
  %v8253 = vtanh.pop %v8250
  %v8254 = vtanh.pop %v8251
  %v8255 = vtanh.pop %v8252
  %8259 = vrot.lane.b32.xlu0 %v8253, 32
  %v8260 = vpop.permute.xlu0 %8259
  %8261 = vrot.lane.b32.xlu0 %v8254, 32
  %v8262 = vpop.permute.xlu0 %8261
  %8263 = vrot.lane.b32.xlu0 %v8255, 32
  %v8264 = vpop.permute.xlu0 %8263
  %v8268 = vmul.f32 %v8212, %v8260
  %v8269 = vmul.f32 %v8214, %v8262
  %v8270 = vmul.f32 %v8216, %v8264
  %8274 = vrot.lane.b32.xlu0 %v8268, 64
  %v8275 = vpop.permute.xlu0 %8274
  %8276 = vrot.lane.b32.xlu0 %v8269, 64
  %v8277 = vpop.permute.xlu0 %8276
  %8278 = vrot.lane.b32.xlu0 %v8270, 64
  %v8279 = vpop.permute.xlu0 %8278
  %v8280 = vsel %vm1961, %v8275, 0
  %v8282 = vsel %vm1961, %v8277, 0
  %v8284 = vsel %vm1961, %v8279, 0
  %8286 = vmatprep.subr.mxu0 0.0
  %8287 = vmatpush1.msra.mxu0 %v83
  %8288 = vmatprep.subr.mxu0 0.0
  %8289 = vmatpush1.msra.mxu0 %v84
  %8290 = vmatprep.subr.mxu0 0.0
  %8291 = vmatpush1.msra.mxu0 %v85
  %8292 = vmatprep.subr.mxu0 0.0
  %8293 = vmatpush1.msra.mxu0 %v86
  %8294 = vmatprep.subr.mxu0 0.0
  %8295 = vmatpush1.msra.mxu0 0.0
  %8296 = vmatprep.subr.mxu0 0.0
  %8297 = vmatpush1.msra.mxu0 0.0
  %8298 = vmatprep.subr.mxu0 0.0
  %8299 = vmatpush1.msra.mxu0 0.0
  %8300 = vmatprep.subr.mxu0 0.0
  %8301 = vmatpush1.msra.mxu0 0.0
  %8302 = vmatprep.subr.mxu0 0.0
  %8303 = vmatpush1.msra.mxu0 0.0
  %8304 = vmatprep.subr.mxu0 0.0
  %8305 = vmatpush1.msra.mxu0 0.0
  %8306 = vmatprep.subr.mxu0 0.0
  %8307 = vmatpush1.msra.mxu0 0.0
  %8308 = vmatprep.subr.mxu0 0.0
  %8309 = vmatpush1.msra.mxu0 0.0
  %8310 = vmatprep.subr.mxu0 0.0
  %8311 = vmatpush1.msra.mxu0 0.0
  %8312 = vmatprep.subr.mxu0 0.0
  %8313 = vmatpush1.msra.mxu0 0.0
  %8314 = vmatprep.subr.mxu0 0.0
  %8315 = vmatpush1.msra.mxu0 0.0
  %8316 = vmatprep.subr.mxu0 0.0
  %8317 = vmatpush1.msra.mxu0 0.0
  %8318 = vmatprep.subr.mxu0 0.0
  %8319 = vmatpush1.msra.mxu0 0.0
  %8320 = vmatprep.subr.mxu0 0.0
  %8321 = vmatpush1.msra.mxu0 0.0
  %8322 = vmatprep.subr.mxu0 0.0
  %8323 = vmatpush1.msra.mxu0 0.0
  %8324 = vmatprep.subr.mxu0 0.0
  %8325 = vmatpush1.msra.mxu0 0.0
  %8326 = vmatprep.subr.mxu0 0.0
  %8327 = vmatpush1.msra.mxu0 0.0
  %8328 = vmatprep.subr.mxu0 0.0
  %8329 = vmatpush1.msra.mxu0 0.0
  %8330 = vmatprep.subr.mxu0 0.0
  %8331 = vmatpush1.msra.mxu0 0.0
  %8332 = vmatprep.subr.mxu0 0.0
  %8333 = vmatpush1.msra.mxu0 0.0
  %8334 = vmatprep.subr.mxu0 0.0
  %8335 = vmatpush1.msra.mxu0 0.0
  %8336 = vmatprep.subr.mxu0 0.0
  %8337 = vmatpush1.msra.mxu0 0.0
  %8338 = vmatprep.subr.mxu0 0.0
  %8339 = vmatpush1.msra.mxu0 0.0
  %8340 = vmatprep.subr.mxu0 0.0
  %8341 = vmatpush1.msra.mxu0 0.0
  %8342 = vmatprep.subr.mxu0 0.0
  %8343 = vmatpush1.msra.mxu0 0.0
  %8344 = vmatprep.subr.mxu0 0.0
  %8345 = vmatpush1.msra.mxu0 0.0
  %8346 = vmatprep.subr.mxu0 0.0
  %8347 = vmatpush1.msra.mxu0 0.0
  %8348 = vmatprep.subr.mxu0 0.0
  %8349 = vmatpush1.msra.mxu0 0.0
  %8350 = vmatprep.mubr.f32.mxu0 0.0
  %8351 = vmatmul.mubr.f32.gmra.mrb[0].mxu0 %v8280
  %v8352 = vpop.f32.mrb[0].mxu0
  %v8353 = vadd.f32 %v5462, %v8352
  %v8354 = vpop.f32.mrb[0].mxu0
  %8355 = vmatprep.mubr.f32.mxu0 0.0
  %8356 = vmatmul.mubr.f32.gmra.mrb[0].mxu0 %v8282
  %v8357 = vpop.f32.mrb[0].mxu0
  %v8358 = vadd.f32 %v5462, %v8357
  %v8359 = vpop.f32.mrb[0].mxu0
  %8360 = vmatprep.mubr.f32.mxu0 0.0
  %8361 = vmatmul.mubr.f32.gmra.mrb[0].mxu0 %v8284
  %v8362 = vpop.f32.mrb[0].mxu0
  %v8363 = vadd.f32 %v5462, %v8362
  %v8364 = vpop.f32.mrb[0].mxu0
  %8365 = vdwg.mxu0
  %v8366 = vmax.f32 %v8353, 0.0
  %v8367 = vmax.f32 %v8358, 0.0
  %v8368 = vmax.f32 %v8363, 0.0
  %vm8369 = vcmp.ne.f32.partialorder %v8353, %v8353
  %vm8370 = vcmp.ne.f32.partialorder %v8358, %v8358
  %vm8371 = vcmp.ne.f32.partialorder %v8363, %v8363
  %v8372 = vadd.f32 %v8353, 0.0
  %v8373 = vadd.f32 %v8358, 0.0
  %v8374 = vadd.f32 %v8363, 0.0
  %v8375 = vand.u32 2147483647, %v8353
  %v8376 = vand.u32 2147483647, %v8358
  %v8377 = vand.u32 2147483647, %v8363
  %v8378 = vsub.f32 0.0, %v8375
  %v8379 = vsub.f32 0.0, %v8376
  %v8380 = vsub.f32 0.0, %v8377
  %v8381 = vmul.f32 %v8378, 1.442695
  %v8382 = vpow.pop %v8381
  %v8383 = vmul.f32 %v8379, 1.442695
  %v8384 = vpow.pop %v8383
  %v8385 = vmul.f32 %v8380, 1.442695
  %v8386 = vpow.pop %v8385
  %v8387 = vadd.f32 %v8382, 1.0
  %v8388 = vlog2.pop %v8387
  %v8389 = vmul.f32 %v8388, 0.6931472
  %v8390 = vmul.f32 -0.5, %v8382
  %v8391 = vadd.f32 %v8390, 1.0
  %v8392 = vmul.f32 %v8391, %v8382
  %v8393 = vand.u32 2147483647, %v8382
  %vm8394 = vcmp.lt.f32.partialorder %v8393, 0.0004427343
  %v8395 = vsel %vm8394, %v8392, %v8389
  %v8396 = vadd.f32 %v8384, 1.0
  %v8397 = vlog2.pop %v8396
  %v8398 = vmul.f32 %v8397, 0.6931472
  %v8399 = vmul.f32 -0.5, %v8384
  %v8400 = vadd.f32 %v8399, 1.0
  %v8401 = vmul.f32 %v8400, %v8384
  %v8402 = vand.u32 2147483647, %v8384
  %vm8403 = vcmp.lt.f32.partialorder %v8402, 0.0004427343
  %v8404 = vsel %vm8403, %v8401, %v8398
  %v8405 = vadd.f32 %v8386, 1.0
  %v8406 = vlog2.pop %v8405
  %v8407 = vmul.f32 %v8406, 0.6931472
  %v8408 = vmul.f32 -0.5, %v8386
  %v8409 = vadd.f32 %v8408, 1.0
  %v8410 = vmul.f32 %v8409, %v8386
  %v8411 = vand.u32 2147483647, %v8386
  %vm8412 = vcmp.lt.f32.partialorder %v8411, 0.0004427343
  %v8413 = vsel %vm8412, %v8410, %v8407
  %v8414 = vadd.f32 %v8366, %v8395
  %v8415 = vadd.f32 %v8367, %v8404
  %v8416 = vadd.f32 %v8368, %v8413
  %v8417 = vsel %vm8369, %v8372, %v8414
  %v8418 = vsel %vm8370, %v8373, %v8415
  %v8419 = vsel %vm8371, %v8374, %v8416
  %s8420 = scalar_lea.vmem %s6, 72
  %v8421 = vld [vmem:[%s8420] sm:$0xff]
  %v8422 = vld [vmem:[%s8420 + $0x8] sm:$0xff]
  %v8423 = vld [vmem:[%s8420 + $0x10] sm:$0xf]
  %8427 = vrot.lane.b32.xlu0 %v8421, 4
  %v8428 = vpop.permute.xlu0 %8427
  %8429 = vrot.lane.b32.xlu0 %v8422, 4
  %v8430 = vpop.permute.xlu0 %8429
  %8431 = vrot.lane.b32.xlu0 %v8423, 4
  %v8432 = vpop.permute.xlu0 %8431
  %v8436 = vmul.f32 %v8417, %v8428
  %v8437 = vmul.f32 %v8418, %v8430
  %v8438 = vmul.f32 %v8419, %v8432
  %8442 = vrot.lane.b32.xlu0 %v8436, 124
  %v8443 = vpop.permute.xlu0 %8442
  %8444 = vrot.lane.b32.xlu0 %v8437, 124
  %v8445 = vpop.permute.xlu0 %8444
  %8446 = vrot.lane.b32.xlu0 %v8438, 124
  %v8447 = vpop.permute.xlu0 %8446
  %v8451 = vadd.f32 %v8353, %v8443
  %v8452 = vadd.f32 %v8358, %v8445
  %v8453 = vadd.f32 %v8363, %v8447
  %v8454 = vmul.f32 %v4002, %v8451
  %v8455 = vmul.f32 %v4007, %v8452
  %v8456 = vmul.f32 %v4012, %v8453
  %s8457 = scalar_lea.vmem %s17, 72
  %8458 = vst.msk [vmem:[%s8457] sm:$0xff] %vm273, %v8454
  %8459 = vst.msk [vmem:[%s8457 + $0x8] sm:$0xff] %vm273, %v8455
  %8460 = vst.msk [vmem:[%s8457 + $0x10] sm:$0xf] %vm5651, %v8456
  // Predicated region
  $region70: #{forward.1} parent=0 // pred_check
    _
  $region71: #{forward.1} parent=0 // pred_check_branch
    %8462 = sbr.rel (0) target = $region73
  $region72: #{forward.1} parent=0 // pred_region
    _
  $region73: #{forward.1} parent=0 // pred_fallthru
    _
  // Predicated region
  $region74: #{forward.1} parent=0 // pred_check
    _
  $region75: #{forward.1} parent=0 // pred_check_branch
    %8464 = sbr.rel (0) target = $region77
  $region76: #{forward.1} parent=0 // pred_region
    _
  $region77: #{forward.1} parent=0 // pred_fallthru
    _

</llo_original>
